<compile_context>
chip_gen: v7x
topology: tpu7x:2x2x1
jax: 0.10.0
libtpu: 0.0.40
codegen_flags: <defaults>
</compile_context>

<pallas_src>
import numpy as np
import jax
import jax.numpy as jnp
from jax.experimental import pallas as pl
from jax.experimental.pallas import tpu as pltpu

# ------------------------- synthetic env / mpm_args config -------------------------
BOARD_START = 15                 # env_bldr.obs_board_idxs[0]
BOARD_LEN = 5 * 17               # 5 board cards, 17 one-hot features each
BOARD_STOP = BOARD_START + BOARD_LEN
PUB_OBS_SIZE = BOARD_LEN + 24    # 24 hist/state features -> 109
PRIV_OBS_SIZE = 2 * 17           # 34
RANGE_SIZE = 60
C_UNITS = 32                     # mpm_args.card_block_units
OTHER_UNITS = 64                 # mpm_args.other_units
U_PAD = 128                      # lane-dense padded FC output width
NORMALIZE = True

HA, WA = 8, 24                   # card image (2 priv + 5 board + 1 hist rows) x 24
WS = 25                          # canvas row stride (also fits the 9x25 pad=1 grid)
PC = 256                         # canvas lanes per batch element (2 lane tiles)
BT_MAX = 64                      # batch tile (f32 activations; fits v7x 64 MiB VMEM)

# Conv taps (dh, dw), k = 2*dh + dw.  Canvas shift convention: out[p] = x[p - s]
# (verified numerically against the conv reference in the previous run).
_TAPS = ((0, 0), (0, 1), (1, 0), (1, 1))
SHIFTS_PAD1 = tuple((1 - dh) * WS + (1 - dw) for dh, dw in _TAPS)   # 26, 25, 1, 0
SHIFTS_PAD0 = tuple(-(dh * WS + dw) for dh, dw in _TAPS)            # 0, -1, -25, -26


# ------------------------- kernel A: conv trunk -------------------------
def _conv_trunk_kernel(x0_ref, mask_ref, w1_ref, bconv_ref,
                       w2_ref, w3_ref, w4_ref, w5_ref, b5_ref, z_ref):
    n = x0_ref.shape[1]                               # bt * PC lanes
    lrelu = lambda v: jnp.maximum(v, 0.1 * v)         # LeakyReLU(0.1)

    def roll(x, s):
        s = s % n                                     # signed shifts -> mod lane length
        return x if s == 0 else pltpu.roll(x, s, 1)

    x0 = x0_ref[...]                                  # [1, n] f32 clean A-canvases
    w1 = w1_ref[...]                                  # [C, 4]
    bconv = bconv_ref[...]                            # [C, 4] = (b1 | b2 | b3 | b4)

    # ---- cards_cn_1: 1 -> C, 2x2, pad=1.  4 broadcast MACs on the VPU (no MXU).
    acc = None
    for k, s in enumerate(SHIFTS_PAD1):
        term = w1[:, k:k + 1] * roll(x0, s)           # [C,1]*[1,n] -> [C,n]
        acc = term if acc is None else acc + term
    out1 = lrelu(acc + bconv[:, 0:1])                 # B grid (tail lanes carry lrelu(b1))

    def conv_cc(x, w_ref, bcol, shifts):
        # x: [C, n] f32.  4 rolled taps cast to bf16, stacked on sublanes, one fused
        # K=4C bf16 matmul with f32 accumulation:  W[C,4C] @ X[4C, n].
        taps = [roll(x, s).astype(jnp.bfloat16) for s in shifts]
        xs = jnp.concatenate(taps, axis=0)                                # [4C, n] bf16
        y = jnp.dot(w_ref[...], xs, preferred_element_type=jnp.float32)  # [C, n] f32
        return y + bcol

    mask = mask_ref[...]                              # [1, n] valid-A-position mask

    # ---- cards_cn_2 (pad=0), _3 (pad=1, +res), _4 (pad=0, +res)
    out2 = lrelu(conv_cc(out1, w2_ref, bconv[:, 1:2], SHIFTS_PAD0)) * mask
    out3 = lrelu(conv_cc(out2, w3_ref, bconv[:, 2:3], SHIFTS_PAD1) + out1)
    out4 = lrelu(conv_cc(out3, w4_ref, bconv[:, 3:4], SHIFTS_PAD0) + out2)

    # ---- cards_cn_5: 1x1, C -> 1.  Per-channel scale + sublane reduction (no MXU,
    # no per-row loop, no scratch stores).
    z = jnp.sum(out4 * w5_ref[...], axis=0, keepdims=True)               # [1, n]
    z_ref[...] = lrelu(z + b5_ref[0])                                    # lane-dense store


# ------------------------- kernel B: final FC + normalization -------------------------
def _fc_norm_kernel(z_ref, wfc_ref, bfc_ref, out_ref):
    lrelu = lambda v: jnp.maximum(v, 0.1 * v)
    # Canvas-layout FC weight: zero rows at invalid canvas positions, zero columns
    # beyond OTHER_UNITS -> padded output columns are exactly 0 after lrelu.
    f = jnp.dot(z_ref[...], wfc_ref[...], preferred_element_type=jnp.float32)
    f = lrelu(f + bfc_ref[...])                                          # [bt, U_PAD]
    if NORMALIZE:
        mean = jnp.sum(f, axis=-1, keepdims=True) * (1.0 / OTHER_UNITS)  # pads add 0
        d = f - mean
        # padded columns of d are exactly -mean; remove their contribution to the var
        ss = jnp.sum(d * d, axis=-1, keepdims=True) \
            - float(U_PAD - OTHER_UNITS) * mean * mean
        f = d * jax.lax.rsqrt(ss * (1.0 / (OTHER_UNITS - 1)))            # unbiased std
    out_ref[...] = f.astype(out_ref.dtype)                               # padded cols sliced off


# ------------------------- wrapper (glue + pallas_calls) -------------------------
def _round_up(x, m):
    return ((x + m - 1) // m) * m


def mpm_cnn_forward(pub_obses, range_idxs, params):
    B = pub_obses.shape[0]
    bt = min(BT_MAX, _round_up(B, 8))                 # batch tile (>=8, multiple of 8)
    Bp = _round_up(B, bt)
    if Bp != B:
        pub_obses = jnp.pad(pub_obses, ((0, Bp - B), (0, 0)))
        range_idxs = jnp.pad(range_idxs, ((0, Bp - B),))

    # --- glue: LUT lookup, preflop override, card image -> zero-padded stride-25 canvas
    priv = jnp.take(params["lut"], range_idxs, axis=0)
    priv_pf = jnp.take(params["lut_pf"], range_idxs, axis=0)
    is_pf = pub_obses[:, 14] == 1
    priv = jnp.where(is_pf[:, None], priv_pf, priv).reshape(Bp, 2, 17)
    board = pub_obses[:, BOARD_START:BOARD_STOP].reshape(Bp, 5, 17)
    card = jnp.concatenate([priv, board], axis=1)                       # [Bp, 7, 17]
    card = jnp.pad(card, ((0, 0), (0, 0), (0, WA - 17)))                # ZeroPad2d((0,7,0,0))
    hist = jnp.concatenate([pub_obses[:, :BOARD_START],
                            pub_obses[:, BOARD_STOP:]], axis=-1)[:, None, :]
    card = jnp.concatenate([card, hist], axis=1)                        # [Bp, 8, 24]
    card = jnp.pad(card, ((0, 0), (0, 0), (0, WS - WA)))                # row stride WS=25
    x0 = jnp.pad(card.reshape(Bp, HA * WS), ((0, 0), (0, PC - HA * WS)))
    x0 = x0.reshape(1, Bp * PC).astype(jnp.float32)                     # clean canvases

    n_lane = bt * PC
    mask = jnp.tile(params["mask_a"], (1, bt))                          # [1, n_lane]
    grid = (Bp // bt,)

    def full(arr):
        nd = arr.ndim
        return pl.BlockSpec(arr.shape, lambda i, _n=nd: (0,) * _n)

    # ---- kernel A: conv trunk ----
    z_flat = pl.pallas_call(
        _conv_trunk_kernel,
        out_shape=jax.ShapeDtypeStruct((1, Bp * PC), jnp.float32),
        grid_spec=pltpu.PrefetchScalarGridSpec(
            num_scalar_prefetch=0,
            grid=grid,
            in_specs=[
                pl.BlockSpec((1, n_lane), lambda i: (0, i)),            # x0 canvases
                full(mask),                                             # valid-A mask
                full(params["w1m"]), full(params["bconv"]),             # conv1 w, b1..b4
                full(params["w2c"]), full(params["w3c"]), full(params["w4c"]),
                full(params["w5c"]),                                    # conv5 (C,1)
                pl.BlockSpec(memory_space=pltpu.MemorySpace.SMEM),      # b5 scalar
            ],
            out_specs=pl.BlockSpec((1, n_lane), lambda i: (0, i)),
        ),
        compiler_params=pltpu.CompilerParams(
            dimension_semantics=("parallel",),
            vmem_limit_bytes=48 * 1024 * 1024),
    )(x0, mask, params["w1m"], params["bconv"],
      params["w2c"], params["w3c"], params["w4c"],
      params["w5c"], params["b5s"])

    # Free XLA reshape (identical row-major layout): [1, Bp*PC] -> [Bp, PC]
    z = z_flat.reshape(Bp, PC)

    # ---- kernel B: final_fc_1 + LeakyReLU + normalize (lane-dense 128-wide output) ----
    out = pl.pallas_call(
        _fc_norm_kernel,
        out_shape=jax.ShapeDtypeStruct((Bp, U_PAD), jnp.float32),
        grid_spec=pltpu.PrefetchScalarGridSpec(
            num_scalar_prefetch=0,
            grid=grid,
            in_specs=[
                pl.BlockSpec((bt, PC), lambda i: (i, 0)),
                full(params["wfc_c"]), full(params["bfc_c"]),
            ],
            out_specs=pl.BlockSpec((bt, U_PAD), lambda i: (i, 0)),
        ),
        compiler_params=pltpu.CompilerParams(dimension_semantics=("parallel",)),
    )(z, params["wfc_c"], params["bfc_c"])

    return out[:B, :OTHER_UNITS]


# ------------------------- parameter re-layout helpers -------------------------
def _cat_weights(w):
    """OIHW [C,C,2,2] -> [C, 4C] with column block k = 2*dh + dw (matches tap order)."""
    wk = jnp.transpose(w, (2, 3, 0, 1)).reshape(4, C_UNITS, C_UNITS)    # [k, o, i]
    return jnp.transpose(wk, (1, 0, 2)).reshape(C_UNITS, 4 * C_UNITS)   # [o, k*C + i]


def _fc_to_canvas(wfc):
    """[U, 192] (flat h*24+w) -> [PC, U_PAD] canvas layout (h*25+w): zero rows at
    invalid canvas positions, zero columns beyond OTHER_UNITS (lane-dense output)."""
    t = wfc.T.reshape(HA, WA, OTHER_UNITS)
    t = jnp.pad(t, ((0, 0), (0, WS - WA), (0, 0))).reshape(HA * WS, OTHER_UNITS)
    return jnp.pad(t, ((0, PC - HA * WS), (0, U_PAD - OTHER_UNITS)))


def _mask_a():
    m = np.zeros((1, PC), np.float32)
    for h in range(HA):
        m[0, h * WS:h * WS + WA] = 1.0
    return jnp.asarray(m)


# ------------------------- deterministic parameter init -------------------------
def init_params(key):
    ks = jax.random.split(key, 16)
    w1 = jax.random.normal(ks[0], (C_UNITS, 1, 2, 2), jnp.float32) * 0.3
    b1 = jax.random.normal(ks[1], (C_UNITS,), jnp.float32) * 0.05
    w2 = jax.random.normal(ks[2], (C_UNITS, C_UNITS, 2, 2), jnp.float32) * 0.08
    b2 = jax.random.normal(ks[3], (C_UNITS,), jnp.float32) * 0.05
    w3 = jax.random.normal(ks[4], (C_UNITS, C_UNITS, 2, 2), jnp.float32) * 0.08
    b3 = jax.random.normal(ks[5], (C_UNITS,), jnp.float32) * 0.05
    w4 = jax.random.normal(ks[6], (C_UNITS, C_UNITS, 2, 2), jnp.float32) * 0.08
    b4 = jax.random.normal(ks[7], (C_UNITS,), jnp.float32) * 0.05
    w5 = jax.random.normal(ks[8], (1, C_UNITS, 1, 1), jnp.float32) * 0.15
    b5 = jax.random.normal(ks[9], (1,), jnp.float32) * 0.05
    wfc = jax.random.normal(ks[10], (OTHER_UNITS, HA * WA), jnp.float32) * 0.08
    bfc = jax.random.normal(ks[11], (OTHER_UNITS,), jnp.float32) * 0.05
    lut = jax.random.uniform(ks[12], (RANGE_SIZE, PRIV_OBS_SIZE), jnp.float32)
    lut_pf = jax.random.uniform(ks[13], (RANGE_SIZE, PRIV_OBS_SIZE), jnp.float32)

    return dict(
        # raw (NCHW / OIHW) parameters, used by the pure-JAX reference
        w1=w1, b1r=b1, w2=w2, b2r=b2, w3=w3, b3r=b3, w4=w4, b4r=b4,
        w5=w5, b5r=b5, wfc=wfc, bfcr=bfc, lut=lut, lut_pf=lut_pf,
        # kernel-layout parameters (conv weights pre-cast to bf16 for the MXU)
        w1m=w1.reshape(C_UNITS, 4),
        bconv=jnp.stack([b1, b2, b3, b4], axis=1),                      # [C, 4]
        w2c=_cat_weights(w2).astype(jnp.bfloat16),
        w3c=_cat_weights(w3).astype(jnp.bfloat16),
        w4c=_cat_weights(w4).astype(jnp.bfloat16),
        w5c=w5.reshape(C_UNITS, 1),
        b5s=b5.reshape(1,),                                             # SMEM scalar
        wfc_c=_fc_to_canvas(wfc),
        bfc_c=jnp.pad(bfc.reshape(1, OTHER_UNITS),
                      ((0, 0), (0, U_PAD - OTHER_UNITS))),
        mask_a=_mask_a(),
    )


# ------------------------- pure-JAX reference (for verification) -------------------------
def reference_forward(pub_obses, range_idxs, p):
    B = pub_obses.shape[0]
    priv = jnp.take(p["lut"], range_idxs, axis=0)
    priv_pf = jnp.take(p["lut_pf"], range_idxs, axis=0)
    is_pf = pub_obses[:, 14] == 1
    priv = jnp.where(is_pf[:, None], priv_pf, priv).reshape(B, 2, 17)
    board = pub_obses[:, BOARD_START:BOARD_STOP].reshape(B, 5, 17)
    card = jnp.concatenate([priv, board], axis=1)
    card = jnp.pad(card, ((0, 0), (0, 0), (0, WA - 17)))
    hist = jnp.concatenate([pub_obses[:, :BOARD_START],
                            pub_obses[:, BOARD_STOP:]], axis=-1)[:, None, :]
    card = jnp.concatenate([card, hist], axis=1)[:, None]               # [B, 1, 8, 24]

    def conv(x, w, b, pad):
        y = jax.lax.conv_general_dilated(
            x, w, (1, 1), ((pad, pad), (pad, pad)),
            dimension_numbers=("NCHW", "OIHW", "NCHW"))
        return y + b[None, :, None, None]

    lrelu = lambda v: jnp.maximum(v, 0.1 * v)
    o1 = lrelu(conv(card, p["w1"], p["b1r"], 1))
    o2 = lrelu(conv(o1, p["w2"], p["b2r"], 0))
    o3 = lrelu(conv(o2, p["w3"], p["b3r"], 1) + o1)
    o4 = lrelu(conv(o3, p["w4"], p["b4r"], 0) + o2)
    o5 = lrelu(conv(o4, p["w5"], p["b5r"], 0))
    flat = o5.reshape(B, -1)
    f = lrelu(flat @ p["wfc"].T + p["bfcr"])
    if NORMALIZE:
        m = f.mean(axis=1, keepdims=True)
        s = jnp.std(f, axis=1, keepdims=True, ddof=1)
        f = (f - m) / s
    return f


# ------------------------- main -------------------------
if __name__ == "__main__":
    key = jax.random.PRNGKey(0)
    kp, kx, kr = jax.random.split(key, 3)
    params = init_params(kp)

    B = 16
    pub_obses = jax.random.uniform(kx, (B, PUB_OBS_SIZE), jnp.float32)
    # force exact preflop flag (pub_obses[:, 14] == 1) on half the batch
    pub_obses = pub_obses.at[:, 14].set(
        jnp.tile(jnp.array([1.0, 0.0], jnp.float32), B // 2))
    range_idxs = jax.random.randint(kr, (B,), 0, RANGE_SIZE, dtype=jnp.int32)

    fwd = jax.jit(lambda po, ri: mpm_cnn_forward(po, ri, params))
    out = jax.block_until_ready(fwd(pub_obses, range_idxs))

    ref = jax.block_until_ready(reference_forward(pub_obses, range_idxs, params))
    # bf16 MXU operands in the conv trunk -> slightly looser tolerance than pure f32
    np.testing.assert_allclose(np.asarray(out), np.asarray(ref), rtol=3e-2, atol=3e-2)

    print("KERNEL_OK")
</pallas_src>

<mosaic_0001>
module attributes {stable_mosaic.version = 11 : i64} {
  func.func @_conv_trunk_kernel(%arg0: i32, %arg1: memref<1x4096xf32, #tpu.memory_space<vmem>>, %arg2: memref<1x4096xf32, #tpu.memory_space<vmem>>, %arg3: memref<32x4xf32, #tpu.memory_space<vmem>>, %arg4: memref<32x4xf32, #tpu.memory_space<vmem>>, %arg5: memref<32x128xbf16, #tpu.memory_space<vmem>>, %arg6: memref<32x128xbf16, #tpu.memory_space<vmem>>, %arg7: memref<32x128xbf16, #tpu.memory_space<vmem>>, %arg8: memref<32x1xf32, #tpu.memory_space<vmem>>, %arg9: memref<1xf32, #tpu.memory_space<smem>>, %arg10: memref<1x4096xf32, #tpu.memory_space<vmem>>) attributes {dimension_semantics = [#tpu.dimension_semantics<parallel>], iteration_bounds = array<i64: 1>, scalar_prefetch = 0 : i64, scratch_operands = 0 : i64, tpu.core_type = #tpu.core_type<tc>, window_params = [{transform_indices = @transform_0, window_bounds = array<i64: 1, 4096>}, {pipeline_mode = #tpu.pipeline_mode<synchronous>, transform_indices = @transform_1, window_bounds = array<i64: 1, 4096>}, {pipeline_mode = #tpu.pipeline_mode<synchronous>, transform_indices = @transform_2, window_bounds = array<i64: 32, 4>}, {pipeline_mode = #tpu.pipeline_mode<synchronous>, transform_indices = @transform_3, window_bounds = array<i64: 32, 4>}, {pipeline_mode = #tpu.pipeline_mode<synchronous>, transform_indices = @transform_4, window_bounds = array<i64: 32, 128>}, {pipeline_mode = #tpu.pipeline_mode<synchronous>, transform_indices = @transform_5, window_bounds = array<i64: 32, 128>}, {pipeline_mode = #tpu.pipeline_mode<synchronous>, transform_indices = @transform_6, window_bounds = array<i64: 32, 128>}, {pipeline_mode = #tpu.pipeline_mode<synchronous>, transform_indices = @transform_7, window_bounds = array<i64: 32, 1>}, {transform_indices = @transform_8, window_bounds = array<i64: 1>}, {transform_indices = @transform_9, window_bounds = array<i64: 1, 4096>}]} {
    %c0 = arith.constant 0 : index
    %c0_0 = arith.constant 0 : index
    %0 = vector.load %arg1[%c0, %c0_0] : memref<1x4096xf32, #tpu.memory_space<vmem>>, vector<1x4096xf32>
    %c0_1 = arith.constant 0 : index
    %c0_2 = arith.constant 0 : index
    %1 = vector.load %arg3[%c0_1, %c0_2] : memref<32x4xf32, #tpu.memory_space<vmem>>, vector<32x4xf32>
    %c0_3 = arith.constant 0 : index
    %c0_4 = arith.constant 0 : index
    %2 = vector.load %arg4[%c0_3, %c0_4] : memref<32x4xf32, #tpu.memory_space<vmem>>, vector<32x4xf32>
    %3 = vector.extract_strided_slice %1 {offsets = [0, 0], sizes = [32, 1], strides = [1, 1]} : vector<32x4xf32> to vector<32x1xf32>
    %c26_i32 = arith.constant 26 : i32
    %4 = tpu.dynamic_rotate %0 by %c26_i32 dim 1 : vector<1x4096xf32>, i32 -> vector<1x4096xf32>
    %5 = vector.broadcast %3 : vector<32x1xf32> to vector<32x4096xf32>
    %6 = vector.broadcast %4 : vector<1x4096xf32> to vector<32x4096xf32>
    %7 = arith.mulf %5, %6 : vector<32x4096xf32>
    %8 = vector.extract_strided_slice %1 {offsets = [0, 1], sizes = [32, 1], strides = [1, 1]} : vector<32x4xf32> to vector<32x1xf32>
    %c25_i32 = arith.constant 25 : i32
    %9 = tpu.dynamic_rotate %0 by %c25_i32 dim 1 : vector<1x4096xf32>, i32 -> vector<1x4096xf32>
    %10 = vector.broadcast %8 : vector<32x1xf32> to vector<32x4096xf32>
    %11 = vector.broadcast %9 : vector<1x4096xf32> to vector<32x4096xf32>
    %12 = arith.mulf %10, %11 : vector<32x4096xf32>
    %13 = arith.addf %7, %12 : vector<32x4096xf32>
    %14 = vector.extract_strided_slice %1 {offsets = [0, 2], sizes = [32, 1], strides = [1, 1]} : vector<32x4xf32> to vector<32x1xf32>
    %c1_i32 = arith.constant 1 : i32
    %15 = tpu.dynamic_rotate %0 by %c1_i32 dim 1 : vector<1x4096xf32>, i32 -> vector<1x4096xf32>
    %16 = vector.broadcast %14 : vector<32x1xf32> to vector<32x4096xf32>
    %17 = vector.broadcast %15 : vector<1x4096xf32> to vector<32x4096xf32>
    %18 = arith.mulf %16, %17 : vector<32x4096xf32>
    %19 = arith.addf %13, %18 : vector<32x4096xf32>
    %20 = vector.extract_strided_slice %1 {offsets = [0, 3], sizes = [32, 1], strides = [1, 1]} : vector<32x4xf32> to vector<32x1xf32>
    %21 = vector.broadcast %20 : vector<32x1xf32> to vector<32x4096xf32>
    %22 = vector.broadcast %0 : vector<1x4096xf32> to vector<32x4096xf32>
    %23 = arith.mulf %21, %22 : vector<32x4096xf32>
    %24 = arith.addf %19, %23 : vector<32x4096xf32>
    %25 = vector.extract_strided_slice %2 {offsets = [0, 0], sizes = [32, 1], strides = [1, 1]} : vector<32x4xf32> to vector<32x1xf32>
    %26 = vector.broadcast %25 : vector<32x1xf32> to vector<32x4096xf32>
    %27 = arith.addf %24, %26 : vector<32x4096xf32>
    %cst = arith.constant 1.000000e-01 : f32
    %28 = vector.broadcast %cst : f32 to vector<32x4096xf32>
    %29 = arith.mulf %28, %27 : vector<32x4096xf32>
    %30 = arith.maximumf %27, %29 : vector<32x4096xf32>
    %c0_5 = arith.constant 0 : index
    %c0_6 = arith.constant 0 : index
    %31 = vector.load %arg2[%c0_5, %c0_6] : memref<1x4096xf32, #tpu.memory_space<vmem>>, vector<1x4096xf32>
    %32 = vector.extract_strided_slice %2 {offsets = [0, 1], sizes = [32, 1], strides = [1, 1]} : vector<32x4xf32> to vector<32x1xf32>
    %33 = arith.truncf %30 : vector<32x4096xf32> to vector<32x4096xbf16>
    %c4095_i32 = arith.constant 4095 : i32
    %34 = tpu.dynamic_rotate %30 by %c4095_i32 dim 1 : vector<32x4096xf32>, i32 -> vector<32x4096xf32>
    %35 = arith.truncf %34 : vector<32x4096xf32> to vector<32x4096xbf16>
    %c4071_i32 = arith.constant 4071 : i32
    %36 = tpu.dynamic_rotate %30 by %c4071_i32 dim 1 : vector<32x4096xf32>, i32 -> vector<32x4096xf32>
    %37 = arith.truncf %36 : vector<32x4096xf32> to vector<32x4096xbf16>
    %c4070_i32 = arith.constant 4070 : i32
    %38 = tpu.dynamic_rotate %30 by %c4070_i32 dim 1 : vector<32x4096xf32>, i32 -> vector<32x4096xf32>
    %39 = arith.truncf %38 : vector<32x4096xf32> to vector<32x4096xbf16>
    %40 = tpu.concatenate %33, %35, %37, %39 in 0 : vector<32x4096xbf16>, vector<32x4096xbf16>, vector<32x4096xbf16>, vector<32x4096xbf16> -> vector<128x4096xbf16>
    %c0_7 = arith.constant 0 : index
    %c0_8 = arith.constant 0 : index
    %41 = vector.load %arg5[%c0_7, %c0_8] : memref<32x128xbf16, #tpu.memory_space<vmem>>, vector<32x128xbf16>
    %cst_9 = arith.constant dense<0.000000e+00> : vector<32x4096xf32>
    %42 = tpu.matmul %41, %40, %cst_9 {dimension_numbers = #tpu.dot_dimension_numbers<[1], [0], [0], [1], [0, 0, 1, 1], [], []>} : vector<32x128xbf16>, vector<128x4096xbf16>, vector<32x4096xf32> -> vector<32x4096xf32>
    %43 = vector.broadcast %32 : vector<32x1xf32> to vector<32x4096xf32>
    %44 = arith.addf %42, %43 : vector<32x4096xf32>
    %cst_10 = arith.constant 1.000000e-01 : f32
    %45 = vector.broadcast %cst_10 : f32 to vector<32x4096xf32>
    %46 = arith.mulf %45, %44 : vector<32x4096xf32>
    %47 = arith.maximumf %44, %46 : vector<32x4096xf32>
    %48 = vector.broadcast %31 : vector<1x4096xf32> to vector<32x4096xf32>
    %49 = arith.mulf %47, %48 : vector<32x4096xf32>
    %50 = vector.extract_strided_slice %2 {offsets = [0, 2], sizes = [32, 1], strides = [1, 1]} : vector<32x4xf32> to vector<32x1xf32>
    %c26_i32_11 = arith.constant 26 : i32
    %51 = tpu.dynamic_rotate %49 by %c26_i32_11 dim 1 : vector<32x4096xf32>, i32 -> vector<32x4096xf32>
    %52 = arith.truncf %51 : vector<32x4096xf32> to vector<32x4096xbf16>
    %c25_i32_12 = arith.constant 25 : i32
    %53 = tpu.dynamic_rotate %49 by %c25_i32_12 dim 1 : vector<32x4096xf32>, i32 -> vector<32x4096xf32>
    %54 = arith.truncf %53 : vector<32x4096xf32> to vector<32x4096xbf16>
    %c1_i32_13 = arith.constant 1 : i32
    %55 = tpu.dynamic_rotate %49 by %c1_i32_13 dim 1 : vector<32x4096xf32>, i32 -> vector<32x4096xf32>
    %56 = arith.truncf %55 : vector<32x4096xf32> to vector<32x4096xbf16>
    %57 = arith.truncf %49 : vector<32x4096xf32> to vector<32x4096xbf16>
    %58 = tpu.concatenate %52, %54, %56, %57 in 0 : vector<32x4096xbf16>, vector<32x4096xbf16>, vector<32x4096xbf16>, vector<32x4096xbf16> -> vector<128x4096xbf16>
    %c0_14 = arith.constant 0 : index
    %c0_15 = arith.constant 0 : index
    %59 = vector.load %arg6[%c0_14, %c0_15] : memref<32x128xbf16, #tpu.memory_space<vmem>>, vector<32x128xbf16>
    %cst_16 = arith.constant dense<0.000000e+00> : vector<32x4096xf32>
    %60 = tpu.matmul %59, %58, %cst_16 {dimension_numbers = #tpu.dot_dimension_numbers<[1], [0], [0], [1], [0, 0, 1, 1], [], []>} : vector<32x128xbf16>, vector<128x4096xbf16>, vector<32x4096xf32> -> vector<32x4096xf32>
    %61 = vector.broadcast %50 : vector<32x1xf32> to vector<32x4096xf32>
    %62 = arith.addf %60, %61 : vector<32x4096xf32>
    %63 = arith.addf %62, %30 : vector<32x4096xf32>
    %cst_17 = arith.constant 1.000000e-01 : f32
    %64 = vector.broadcast %cst_17 : f32 to vector<32x4096xf32>
    %65 = arith.mulf %64, %63 : vector<32x4096xf32>
    %66 = arith.maximumf %63, %65 : vector<32x4096xf32>
    %67 = vector.extract_strided_slice %2 {offsets = [0, 3], sizes = [32, 1], strides = [1, 1]} : vector<32x4xf32> to vector<32x1xf32>
    %68 = arith.truncf %66 : vector<32x4096xf32> to vector<32x4096xbf16>
    %c4095_i32_18 = arith.constant 4095 : i32
    %69 = tpu.dynamic_rotate %66 by %c4095_i32_18 dim 1 : vector<32x4096xf32>, i32 -> vector<32x4096xf32>
    %70 = arith.truncf %69 : vector<32x4096xf32> to vector<32x4096xbf16>
    %c4071_i32_19 = arith.constant 4071 : i32
    %71 = tpu.dynamic_rotate %66 by %c4071_i32_19 dim 1 : vector<32x4096xf32>, i32 -> vector<32x4096xf32>
    %72 = arith.truncf %71 : vector<32x4096xf32> to vector<32x4096xbf16>
    %c4070_i32_20 = arith.constant 4070 : i32
    %73 = tpu.dynamic_rotate %66 by %c4070_i32_20 dim 1 : vector<32x4096xf32>, i32 -> vector<32x4096xf32>
    %74 = arith.truncf %73 : vector<32x4096xf32> to vector<32x4096xbf16>
    %75 = tpu.concatenate %68, %70, %72, %74 in 0 : vector<32x4096xbf16>, vector<32x4096xbf16>, vector<32x4096xbf16>, vector<32x4096xbf16> -> vector<128x4096xbf16>
    %c0_21 = arith.constant 0 : index
    %c0_22 = arith.constant 0 : index
    %76 = vector.load %arg7[%c0_21, %c0_22] : memref<32x128xbf16, #tpu.memory_space<vmem>>, vector<32x128xbf16>
    %cst_23 = arith.constant dense<0.000000e+00> : vector<32x4096xf32>
    %77 = tpu.matmul %76, %75, %cst_23 {dimension_numbers = #tpu.dot_dimension_numbers<[1], [0], [0], [1], [0, 0, 1, 1], [], []>} : vector<32x128xbf16>, vector<128x4096xbf16>, vector<32x4096xf32> -> vector<32x4096xf32>
    %78 = vector.broadcast %67 : vector<32x1xf32> to vector<32x4096xf32>
    %79 = arith.addf %77, %78 : vector<32x4096xf32>
    %80 = arith.addf %79, %49 : vector<32x4096xf32>
    %cst_24 = arith.constant 1.000000e-01 : f32
    %81 = vector.broadcast %cst_24 : f32 to vector<32x4096xf32>
    %82 = arith.mulf %81, %80 : vector<32x4096xf32>
    %83 = arith.maximumf %80, %82 : vector<32x4096xf32>
    %c0_25 = arith.constant 0 : index
    %c0_26 = arith.constant 0 : index
    %84 = vector.load %arg8[%c0_25, %c0_26] : memref<32x1xf32, #tpu.memory_space<vmem>>, vector<32x1xf32>
    %85 = vector.broadcast %84 : vector<32x1xf32> to vector<32x4096xf32>
    %86 = arith.mulf %83, %85 : vector<32x4096xf32>
    %cst_27 = arith.constant dense<0.000000e+00> : vector<4096xf32>
    %87 = vector.multi_reduction <add>, %86, %cst_27 [0] : vector<32x4096xf32> to vector<4096xf32>
    %88 = vector.shape_cast %87 : vector<4096xf32> to vector<1x4096xf32>
    %c0_28 = arith.constant 0 : index
    %89 = memref.load %arg9[%c0_28] : memref<1xf32, #tpu.memory_space<smem>>
    %90 = vector.broadcast %89 : f32 to vector<1x4096xf32>
    %91 = arith.addf %88, %90 : vector<1x4096xf32>
    %cst_29 = arith.constant 1.000000e-01 : f32
    %92 = vector.broadcast %cst_29 : f32 to vector<1x4096xf32>
    %93 = arith.mulf %92, %91 : vector<1x4096xf32>
    %94 = arith.maximumf %91, %93 : vector<1x4096xf32>
    %c0_30 = arith.constant 0 : index
    %c0_31 = arith.constant 0 : index
    %95 = vector.load %arg10[%c0_30, %c0_31] : memref<1x4096xf32, #tpu.memory_space<vmem>>, vector<1x4096xf32>
    tpu.vector_store %arg10[%c0_30, %c0_31], %94 {strides = array<i32>} : memref<1x4096xf32, #tpu.memory_space<vmem>>, vector<1x4096xf32>,
    return
  }
  func.func @transform_0(%arg0: i32) -> (i32, i32) {
    %c0_i32 = arith.constant 0 : i32
    %c0_i32_0 = arith.constant 0 : i32
    return %c0_i32, %arg0 : i32, i32
  }
  func.func @transform_1(%arg0: i32) -> (i32, i32) {
    %c0_i32 = arith.constant 0 : i32
    %c0_i32_0 = arith.constant 0 : i32
    %c0_i32_1 = arith.constant 0 : i32
    return %c0_i32, %c0_i32_0 : i32, i32
  }
  func.func @transform_2(%arg0: i32) -> (i32, i32) {
    %c0_i32 = arith.constant 0 : i32
    %c0_i32_0 = arith.constant 0 : i32
    %c0_i32_1 = arith.constant 0 : i32
    return %c0_i32, %c0_i32_0 : i32, i32
  }
  func.func @transform_3(%arg0: i32) -> (i32, i32) {
    %c0_i32 = arith.constant 0 : i32
    %c0_i32_0 = arith.constant 0 : i32
    %c0_i32_1 = arith.constant 0 : i32
    return %c0_i32, %c0_i32_0 : i32, i32
  }
  func.func @transform_4(%arg0: i32) -> (i32, i32) {
    %c0_i32 = arith.constant 0 : i32
    %c0_i32_0 = arith.constant 0 : i32
    %c0_i32_1 = arith.constant 0 : i32
    return %c0_i32, %c0_i32_0 : i32, i32
  }
  func.func @transform_5(%arg0: i32) -> (i32, i32) {
    %c0_i32 = arith.constant 0 : i32
    %c0_i32_0 = arith.constant 0 : i32
    %c0_i32_1 = arith.constant 0 : i32
    return %c0_i32, %c0_i32_0 : i32, i32
  }
  func.func @transform_6(%arg0: i32) -> (i32, i32) {
    %c0_i32 = arith.constant 0 : i32
    %c0_i32_0 = arith.constant 0 : i32
    %c0_i32_1 = arith.constant 0 : i32
    return %c0_i32, %c0_i32_0 : i32, i32
  }
  func.func @transform_7(%arg0: i32) -> (i32, i32) {
    %c0_i32 = arith.constant 0 : i32
    %c0_i32_0 = arith.constant 0 : i32
    %c0_i32_1 = arith.constant 0 : i32
    return %c0_i32, %c0_i32_0 : i32, i32
  }
  func.func @transform_8(%arg0: i32) -> i32 {
    %c0_i32 = arith.constant 0 : i32
    %c0_i32_0 = arith.constant 0 : i32
    return %c0_i32 : i32
  }
  func.func @transform_9(%arg0: i32) -> (i32, i32) {
    %c0_i32 = arith.constant 0 : i32
    %c0_i32_0 = arith.constant 0 : i32
    return %c0_i32, %arg0 : i32, i32
  }
}

module attributes {stable_mosaic.version = 11 : i64} {
  func.func @_fc_norm_kernel(%arg0: i32, %arg1: memref<16x256xf32, #tpu.memory_space<vmem>>, %arg2: memref<256x128xf32, #tpu.memory_space<vmem>>, %arg3: memref<1x128xf32, #tpu.memory_space<vmem>>, %arg4: memref<16x128xf32, #tpu.memory_space<vmem>>) attributes {dimension_semantics = [#tpu.dimension_semantics<parallel>], iteration_bounds = array<i64: 1>, scalar_prefetch = 0 : i64, scratch_operands = 0 : i64, tpu.core_type = #tpu.core_type<tc>, window_params = [{transform_indices = @transform_0, window_bounds = array<i64: 16, 256>}, {pipeline_mode = #tpu.pipeline_mode<synchronous>, transform_indices = @transform_1, window_bounds = array<i64: 256, 128>}, {pipeline_mode = #tpu.pipeline_mode<synchronous>, transform_indices = @transform_2, window_bounds = array<i64: 1, 128>}, {transform_indices = @transform_3, window_bounds = array<i64: 16, 128>}]} {
    %c0 = arith.constant 0 : index
    %c0_0 = arith.constant 0 : index
    %0 = vector.load %arg1[%c0, %c0_0] : memref<16x256xf32, #tpu.memory_space<vmem>>, vector<16x256xf32>
    %c0_1 = arith.constant 0 : index
    %c0_2 = arith.constant 0 : index
    %1 = vector.load %arg2[%c0_1, %c0_2] : memref<256x128xf32, #tpu.memory_space<vmem>>, vector<256x128xf32>
    %cst = arith.constant dense<0.000000e+00> : vector<16x128xf32>
    %2 = tpu.matmul %0, %1, %cst {dimension_numbers = #tpu.dot_dimension_numbers<[1], [0], [0], [1], [0, 0, 1, 1], [], []>} : vector<16x256xf32>, vector<256x128xf32>, vector<16x128xf32> -> vector<16x128xf32>
    %c0_3 = arith.constant 0 : index
    %c0_4 = arith.constant 0 : index
    %3 = vector.load %arg3[%c0_3, %c0_4] : memref<1x128xf32, #tpu.memory_space<vmem>>, vector<1x128xf32>
    %4 = vector.broadcast %3 : vector<1x128xf32> to vector<16x128xf32>
    %5 = arith.addf %2, %4 : vector<16x128xf32>
    %cst_5 = arith.constant 1.000000e-01 : f32
    %6 = vector.broadcast %cst_5 : f32 to vector<16x128xf32>
    %7 = arith.mulf %6, %5 : vector<16x128xf32>
    %8 = arith.maximumf %5, %7 : vector<16x128xf32>
    %cst_6 = arith.constant dense<0.000000e+00> : vector<16xf32>
    %9 = vector.multi_reduction <add>, %8, %cst_6 [1] : vector<16x128xf32> to vector<16xf32>
    %10 = vector.shape_cast %9 : vector<16xf32> to vector<16x1xf32>
    %cst_7 = arith.constant 1.562500e-02 : f32
    %11 = vector.broadcast %cst_7 : f32 to vector<16x1xf32>
    %12 = arith.mulf %10, %11 : vector<16x1xf32>
    %13 = vector.broadcast %12 : vector<16x1xf32> to vector<16x128xf32>
    %14 = arith.subf %8, %13 : vector<16x128xf32>
    %15 = arith.mulf %14, %14 : vector<16x128xf32>
    %cst_8 = arith.constant dense<0.000000e+00> : vector<16xf32>
    %16 = vector.multi_reduction <add>, %15, %cst_8 [1] : vector<16x128xf32> to vector<16xf32>
    %17 = vector.shape_cast %16 : vector<16xf32> to vector<16x1xf32>
    %cst_9 = arith.constant 6.400000e+01 : f32
    %18 = vector.broadcast %cst_9 : f32 to vector<16x1xf32>
    %19 = arith.mulf %18, %12 : vector<16x1xf32>
    %20 = arith.mulf %19, %12 : vector<16x1xf32>
    %21 = arith.subf %17, %20 : vector<16x1xf32>
    %cst_10 = arith.constant 0.0158730168 : f32
    %22 = vector.broadcast %cst_10 : f32 to vector<16x1xf32>
    %23 = arith.mulf %21, %22 : vector<16x1xf32>
    %24 = math.rsqrt %23 : vector<16x1xf32>
    %25 = vector.broadcast %24 : vector<16x1xf32> to vector<16x128xf32>
    %26 = arith.mulf %14, %25 : vector<16x128xf32>
    %c0_11 = arith.constant 0 : index
    %c0_12 = arith.constant 0 : index
    %27 = vector.load %arg4[%c0_11, %c0_12] : memref<16x128xf32, #tpu.memory_space<vmem>>, vector<16x128xf32>
    tpu.vector_store %arg4[%c0_11, %c0_12], %26 {strides = array<i32>} : memref<16x128xf32, #tpu.memory_space<vmem>>, vector<16x128xf32>,
    return
  }
  func.func @transform_0(%arg0: i32) -> (i32, i32) {
    %c0_i32 = arith.constant 0 : i32
    %c0_i32_0 = arith.constant 0 : i32
    return %arg0, %c0_i32 : i32, i32
  }
  func.func @transform_1(%arg0: i32) -> (i32, i32) {
    %c0_i32 = arith.constant 0 : i32
    %c0_i32_0 = arith.constant 0 : i32
    %c0_i32_1 = arith.constant 0 : i32
    return %c0_i32, %c0_i32_0 : i32, i32
  }
  func.func @transform_2(%arg0: i32) -> (i32, i32) {
    %c0_i32 = arith.constant 0 : i32
    %c0_i32_0 = arith.constant 0 : i32
    %c0_i32_1 = arith.constant 0 : i32
    return %c0_i32, %c0_i32_0 : i32, i32
  }
  func.func @transform_3(%arg0: i32) -> (i32, i32) {
    %c0_i32 = arith.constant 0 : i32
    %c0_i32_0 = arith.constant 0 : i32
    return %arg0, %c0_i32 : i32, i32
  }
}

</mosaic_0001>

<llo_original>
// kernel: _lambda_.3
$region0: #{_lambda_.3}
  #allocation0 [shape = 'u32[]', space=smem, size = 0x4, offset = 0x4, fixed_abs, tag = 'smem constant byte address 0x4 - core index']
  #allocation1 [shape = 'u32[144,128]{1,0:T(1,128)}', space=vmem, size = 0x12000, scoped, tag = 'internal scratch']
  %s0 = inlined_call_operand.vmem [shape: f32[16,256], index: 0, kind: input, shape index: {}]
  %s1 = inlined_call_operand.vmem [shape: f32[256,128], index: 1, kind: input, shape index: {}]
  %s2 = inlined_call_operand.vmem [shape: f32[1,128], index: 2, kind: input, shape index: {}]
  %s3 = inlined_call_operand.hbm [shape: f32[16,128], index: 3, kind: output, shape index: {}]
  %s4 = sld [smem:[#allocation0]]
  $region22: #{_lambda_.3} parent=0
    _
  %s6 = ssub.s32 1, %s4
  %s7 = scalar_select 0, %s6, %s4
  $region1: #{_lambda_.3} parent=0
    #allocation2 [shape = 'u8[8192]{0}', space=vmem, size = 0x2000, scoped, tag = 'output window, operand 0, single buffered']
    #allocation3 [shape = 's32[1]{0}', space=sflag, size = 0x4, scoped, tag = 'scoped memory for _lambda_.3']
    %8 = vsyncpa [#allocation3], 0
    // Predicated region
    $region2: #{_lambda_.3} parent=1 // pred_check
      _
    $region3: #{_lambda_.3} parent=1 // pred_check_branch
      %10 = sbr.rel (0) target = $region5
    $region4: #{_lambda_.3} parent=1 // pred_region
      _
    $region5: #{_lambda_.3} parent=1 // pred_fallthru
      _
    // Predicated region
    $region6: #{_lambda_.3} parent=1 // pred_check
      _
    $region7: #{_lambda_.3} parent=1 // pred_check_branch
      %12 = sbr.rel (0) target = $region9
    $region8: #{_lambda_.3} parent=1 // pred_region
      _
    $region9: #{_lambda_.3} parent=1 // pred_fallthru
      _
    // Predicated region
    $region10: #{_lambda_.3} parent=1 // pred_check
      _
    $region11: #{_lambda_.3} parent=1 // pred_check_branch
      %14 = sbr.rel (0) target = $region13
    $region12: #{_lambda_.3} parent=1 // pred_region
      _
    $region13: #{_lambda_.3} parent=1 // pred_fallthru
      _
    %v15 = vld [vmem:[%s0] sm:$0xff]
    %v16 = vld [vmem:[%s0 + $0x8] sm:$0xff]
    %v17 = vld [vmem:[%s0 + $0x10] sm:$0xff]
    %v18 = vld [vmem:[%s0 + $0x18] sm:$0xff]
    %v19 = vld [vmem:[%s1] sm:$0xff]
    %v20 = vld [vmem:[%s1 + $0x8] sm:$0xff]
    %v21 = vld [vmem:[%s1 + $0x10] sm:$0xff]
    %v22 = vld [vmem:[%s1 + $0x18] sm:$0xff]
    %v23 = vld [vmem:[%s1 + $0x20] sm:$0xff]
    %v24 = vld [vmem:[%s1 + $0x28] sm:$0xff]
    %v25 = vld [vmem:[%s1 + $0x30] sm:$0xff]
    %v26 = vld [vmem:[%s1 + $0x38] sm:$0xff]
    %v27 = vld [vmem:[%s1 + $0x40] sm:$0xff]
    %v28 = vld [vmem:[%s1 + $0x48] sm:$0xff]
    %v29 = vld [vmem:[%s1 + $0x50] sm:$0xff]
    %v30 = vld [vmem:[%s1 + $0x58] sm:$0xff]
    %v31 = vld [vmem:[%s1 + $0x60] sm:$0xff]
    %v32 = vld [vmem:[%s1 + $0x68] sm:$0xff]
    %v33 = vld [vmem:[%s1 + $0x70] sm:$0xff]
    %v34 = vld [vmem:[%s1 + $0x78] sm:$0xff]
    %v35 = vld [vmem:[%s1 + $0x80] sm:$0xff]
    %v36 = vld [vmem:[%s1 + $0x88] sm:$0xff]
    %v37 = vld [vmem:[%s1 + $0x90] sm:$0xff]
    %v38 = vld [vmem:[%s1 + $0x98] sm:$0xff]
    %v39 = vld [vmem:[%s1 + $0xa0] sm:$0xff]
    %v40 = vld [vmem:[%s1 + $0xa8] sm:$0xff]
    %v41 = vld [vmem:[%s1 + $0xb0] sm:$0xff]
    %v42 = vld [vmem:[%s1 + $0xb8] sm:$0xff]
    %v43 = vld [vmem:[%s1 + $0xc0] sm:$0xff]
    %v44 = vld [vmem:[%s1 + $0xc8] sm:$0xff]
    %v45 = vld [vmem:[%s1 + $0xd0] sm:$0xff]
    %v46 = vld [vmem:[%s1 + $0xd8] sm:$0xff]
    %v47 = vld [vmem:[%s1 + $0xe0] sm:$0xff]
    %v48 = vld [vmem:[%s1 + $0xe8] sm:$0xff]
    %v49 = vld [vmem:[%s1 + $0xf0] sm:$0xff]
    %v50 = vld [vmem:[%s1 + $0xf8] sm:$0xff]
    %v51 = vld [vmem:[%s2] sm:$0x1]
    %v53 = vlaneseq
    %v54 = vshrl.u32 %v53, 7
    %v55 = vsub.s32 0, %v54
    %v56 = vrot.slane %v51, %v55
    %58 = vmatprep.subr.mxu0 0.0
    %59 = vmatpush1.msra.mxu0 %v19
    %60 = vmatprep.subr.mxu0 0.0
    %61 = vmatpush1.msra.mxu0 %v20
    %62 = vmatprep.subr.mxu0 0.0
    %63 = vmatpush1.msra.mxu0 %v21
    %64 = vmatprep.subr.mxu0 0.0
    %65 = vmatpush1.msra.mxu0 %v22
    %66 = vmatprep.subr.mxu0 0.0
    %67 = vmatpush1.msra.mxu0 %v23
    %68 = vmatprep.subr.mxu0 0.0
    %69 = vmatpush1.msra.mxu0 %v24
    %70 = vmatprep.subr.mxu0 0.0
    %71 = vmatpush1.msra.mxu0 %v25
    %72 = vmatprep.subr.mxu0 0.0
    %73 = vmatpush1.msra.mxu0 %v26
    %74 = vmatprep.subr.mxu0 0.0
    %75 = vmatpush1.msra.mxu0 %v27
    %76 = vmatprep.subr.mxu0 0.0
    %77 = vmatpush1.msra.mxu0 %v28
    %78 = vmatprep.subr.mxu0 0.0
    %79 = vmatpush1.msra.mxu0 %v29
    %80 = vmatprep.subr.mxu0 0.0
    %81 = vmatpush1.msra.mxu0 %v30
    %82 = vmatprep.subr.mxu0 0.0
    %83 = vmatpush1.msra.mxu0 %v31
    %84 = vmatprep.subr.mxu0 0.0
    %85 = vmatpush1.msra.mxu0 %v32
    %86 = vmatprep.subr.mxu0 0.0
    %87 = vmatpush1.msra.mxu0 %v33
    %88 = vmatprep.subr.mxu0 0.0
    %89 = vmatpush1.msra.mxu0 %v34
    %90 = vmatprep.subr.mxu0 0.0
    %91 = vmatpush1.msra.mxu0 %v35
    %92 = vmatprep.subr.mxu0 0.0
    %93 = vmatpush1.msra.mxu0 %v36
    %94 = vmatprep.subr.mxu0 0.0
    %95 = vmatpush1.msra.mxu0 %v37
    %96 = vmatprep.subr.mxu0 0.0
    %97 = vmatpush1.msra.mxu0 %v38
    %98 = vmatprep.subr.mxu0 0.0
    %99 = vmatpush1.msra.mxu0 %v39
    %100 = vmatprep.subr.mxu0 0.0
    %101 = vmatpush1.msra.mxu0 %v40
    %102 = vmatprep.subr.mxu0 0.0
    %103 = vmatpush1.msra.mxu0 %v41
    %104 = vmatprep.subr.mxu0 0.0
    %105 = vmatpush1.msra.mxu0 %v42
    %106 = vmatprep.subr.mxu0 0.0
    %107 = vmatpush1.msra.mxu0 %v43
    %108 = vmatprep.subr.mxu0 0.0
    %109 = vmatpush1.msra.mxu0 %v44
    %110 = vmatprep.subr.mxu0 0.0
    %111 = vmatpush1.msra.mxu0 %v45
    %112 = vmatprep.subr.mxu0 0.0
    %113 = vmatpush1.msra.mxu0 %v46
    %114 = vmatprep.subr.mxu0 0.0
    %115 = vmatpush1.msra.mxu0 %v47
    %116 = vmatprep.subr.mxu0 0.0
    %117 = vmatpush1.msra.mxu0 %v48
    %118 = vmatprep.subr.mxu0 0.0
    %119 = vmatpush1.msra.mxu0 %v49
    %120 = vmatprep.subr.mxu0 0.0
    %121 = vmatpush1.msra.mxu0 %v50
    %122 = vmatprep.mubr.f32.mxu0 %v16
    %123 = vmatmul.mubr.f32.gmra.mrb[0].mxu0 %v15
    %v124 = vpop.f32.mrb[0].mxu0
    %v125 = vadd.f32 %v56, %v124
    %v126 = vpop.f32.mrb[0].mxu0
    %127 = vmatprep.mubr.f32.mxu0 %v18
    %128 = vmatmul.mubr.f32.gmra.mrb[0].mxu0 %v17
    %v129 = vpop.f32.mrb[0].mxu0
    %v130 = vadd.f32 %v56, %v129
    %v131 = vpop.f32.mrb[0].mxu0
    %132 = vdwg.mxu0
    %v133 = vmul.f32 %v125, 0.1
    %v134 = vmul.f32 %v130, 0.1
    %v135 = vmax.f32 %v125, %v133
    %v136 = vmax.f32 %v130, %v134
    %137 = vadd.xlane.f32.xlu0 %v135
    %v138 = vpop.xlane.xlu0 %137
    %139 = vadd.xlane.f32.xlu0 %v136
    %v140 = vpop.xlane.xlu0 %139
    %v141 = vmul.f32 %v138, 0.015625
    %v142 = vmul.f32 %v140, 0.015625
    %v143 = vsub.f32 %v135, %v141
    %v144 = vsub.f32 %v136, %v142
    %v145 = vmul.f32 %v143, %v143
    %v146 = vmul.f32 %v144, %v144
    %147 = vadd.xlane.f32.xlu0 %v145
    %v148 = vpop.xlane.xlu0 %147
    %149 = vadd.xlane.f32.xlu0 %v146
    %v150 = vpop.xlane.xlu0 %149
    %v151 = vmul.f32 %v141, 64.0
    %v152 = vmul.f32 %v142, 64.0
    %v153 = vmul.f32 %v151, %v141
    %v154 = vmul.f32 %v152, %v142
    %v155 = vsub.f32 %v148, %v153
    %v156 = vsub.f32 %v150, %v154
    %v157 = vmul.f32 %v155, 0.015873017
    %v158 = vmul.f32 %v156, 0.015873017
    %v159 = vrsqrt.pop %v157
    %v160 = vrsqrt.pop %v158
    %v161 = vmul.f32 %v143, %v159
    %v162 = vmul.f32 %v144, %v160
    %163 = vst [vmem:[#allocation2] sm:$0xff] %v161
    %164 = vst [vmem:[#allocation2 + $0x8] sm:$0xff] %v162
    // Predicated region
    $region14: #{_lambda_.3} parent=1 // pred_check
      _
    $region15: #{_lambda_.3} parent=1 // pred_check_branch
      %166 = sbr.rel (0) target = $region17
    $region16: #{_lambda_.3} parent=1 // pred_region
      %s168 = ssub.s32 256, 256
      %169 = vsyncadd [#allocation3], %s168
      %s170 = sshll.u32 [#allocation2], 4
      %s171 = int_to_ptr.vmem [resolvable:$true] %s170
      %176 = dma.vmem_to_hbm [thread:$0]  %s171, 256, %s3, [#allocation3], 128, 128, 8
    $region17: #{_lambda_.3} parent=1 // pred_fallthru
      _
    // Predicated region
    $region18: #{_lambda_.3} parent=1 // pred_check
      _
    $region19: #{_lambda_.3} parent=1 // pred_check_branch
      %178 = sbr.rel (0) target = $region21
    $region20: #{_lambda_.3} parent=1 // pred_region
      %179 = dma.done [#allocation3], 256
    $region21: #{_lambda_.3} parent=1 // pred_fallthru
      _
    %180 = vsyncpa [#allocation3], 1

// kernel: _lambda_.2
$region0: #{_lambda_.2}
  #allocation0 [shape = 'u32[]', space=smem, size = 0x4, offset = 0x4, fixed_abs, tag = 'smem constant byte address 0x4 - core index']
  #allocation1 [shape = 'u32[144,128]{1,0:T(1,128)}', space=vmem, size = 0x12000, scoped, tag = 'internal scratch']
  #allocation2 [shape = 'f32[1]{0:T(128)S(6)}', space=smem, size = 0x200, scoped, tag = 'scoped memory for _lambda_.2']
  %s0 = inlined_call_operand.vmem [shape: f32[1,4096], index: 0, kind: input, shape index: {}]
  %s1 = inlined_call_operand.vmem [shape: f32[1,4096], index: 1, kind: input, shape index: {}]
  %s2 = inlined_call_operand.vmem [shape: f32[32,4], index: 2, kind: input, shape index: {}]
  %s3 = inlined_call_operand.vmem [shape: f32[32,4], index: 3, kind: input, shape index: {}]
  %s4 = inlined_call_operand.vmem [shape: bf16[32,128], index: 4, kind: input, shape index: {}]
  %s5 = inlined_call_operand.vmem [shape: bf16[32,128], index: 5, kind: input, shape index: {}]
  %s6 = inlined_call_operand.vmem [shape: bf16[32,128], index: 6, kind: input, shape index: {}]
  %s7 = inlined_call_operand.vmem [shape: f32[32,1], index: 7, kind: input, shape index: {}]
  %s8 = inlined_call_operand.<no memory space> [shape: f32[1], index: 8, kind: input, shape index: {}]
  %s9 = inlined_call_operand.vmem [shape: f32[1,4096], index: 9, kind: output, shape index: {}]
  %s10 = sld [smem:[#allocation0]]
  $region46: #{_lambda_.2} parent=0
    _
  %s12 = ssub.s32 1, %s10
  %s13 = scalar_select 0, %s12, %s10
  %14 = sst [smem:[#allocation2]] %s8
  // Predicated region
  $region2: #{_lambda_.2} parent=0 // pred_check
    _
  $region3: #{_lambda_.2} parent=0 // pred_check_branch
    %16 = sbr.rel (0) target = $region5
  $region4: #{_lambda_.2} parent=0 // pred_region
    _
  $region5: #{_lambda_.2} parent=0 // pred_fallthru
    _
  // Predicated region
  $region6: #{_lambda_.2} parent=0 // pred_check
    _
  $region7: #{_lambda_.2} parent=0 // pred_check_branch
    %18 = sbr.rel (0) target = $region9
  $region8: #{_lambda_.2} parent=0 // pred_region
    _
  $region9: #{_lambda_.2} parent=0 // pred_fallthru
    _
  // Predicated region
  $region10: #{_lambda_.2} parent=0 // pred_check
    _
  $region11: #{_lambda_.2} parent=0 // pred_check_branch
    %20 = sbr.rel (0) target = $region13
  $region12: #{_lambda_.2} parent=0 // pred_region
    _
  $region13: #{_lambda_.2} parent=0 // pred_fallthru
    _
  // Predicated region
  $region14: #{_lambda_.2} parent=0 // pred_check
    _
  $region15: #{_lambda_.2} parent=0 // pred_check_branch
    %22 = sbr.rel (0) target = $region17
  $region16: #{_lambda_.2} parent=0 // pred_region
    _
  $region17: #{_lambda_.2} parent=0 // pred_fallthru
    _
  // Predicated region
  $region18: #{_lambda_.2} parent=0 // pred_check
    _
  $region19: #{_lambda_.2} parent=0 // pred_check_branch
    %24 = sbr.rel (0) target = $region21
  $region20: #{_lambda_.2} parent=0 // pred_region
    _
  $region21: #{_lambda_.2} parent=0 // pred_fallthru
    _
  // Predicated region
  $region22: #{_lambda_.2} parent=0 // pred_check
    _
  $region23: #{_lambda_.2} parent=0 // pred_check_branch
    %26 = sbr.rel (0) target = $region25
  $region24: #{_lambda_.2} parent=0 // pred_region
    _
  $region25: #{_lambda_.2} parent=0 // pred_fallthru
    _
  // Predicated region
  $region26: #{_lambda_.2} parent=0 // pred_check
    _
  $region27: #{_lambda_.2} parent=0 // pred_check_branch
    %28 = sbr.rel (0) target = $region29
  $region28: #{_lambda_.2} parent=0 // pred_region
    _
  $region29: #{_lambda_.2} parent=0 // pred_fallthru
    _
  // Predicated region
  $region30: #{_lambda_.2} parent=0 // pred_check
    _
  $region31: #{_lambda_.2} parent=0 // pred_check_branch
    %30 = sbr.rel (0) target = $region33
  $region32: #{_lambda_.2} parent=0 // pred_region
    _
  $region33: #{_lambda_.2} parent=0 // pred_fallthru
    _
  // Predicated region
  $region34: #{_lambda_.2} parent=0 // pred_check
    _
  $region35: #{_lambda_.2} parent=0 // pred_check_branch
    %32 = sbr.rel (0) target = $region37
  $region36: #{_lambda_.2} parent=0 // pred_region
    _
  $region37: #{_lambda_.2} parent=0 // pred_fallthru
    _
  %v34 = vld [vmem:[%s0] sm:$0xff]
  %v35 = vld [vmem:[%s0 + $0x8] sm:$0xff]
  %v36 = vld [vmem:[%s0 + $0x10] sm:$0xff]
  %v37 = vld [vmem:[%s0 + $0x18] sm:$0xff]
  %v38 = vld [vmem:[%s2] sm:$0xff]
  %v39 = vld [vmem:[%s2 + $0x8] sm:$0xff]
  %v40 = vld [vmem:[%s2 + $0x10] sm:$0xff]
  %v41 = vld [vmem:[%s2 + $0x18] sm:$0xff]
  %v42 = vld [vmem:[%s3] sm:$0xff]
  %v43 = vld [vmem:[%s3 + $0x8] sm:$0xff]
  %v44 = vld [vmem:[%s3 + $0x10] sm:$0xff]
  %v45 = vld [vmem:[%s3 + $0x18] sm:$0xff]
  %v50 = vlaneseq
  %v51 = vshrl.u32 %v50, 7
  %v52 = vsub.s32 0, %v51
  %v53 = vrot.slane %v34, %v52
  %v54 = vlaneseq
  %v55 = vshrl.u32 %v54, 7
  %v56 = vsub.s32 1, %v55
  %v57 = vrot.slane %v34, %v56
  %v58 = vlaneseq
  %v59 = vshrl.u32 %v58, 7
  %v60 = vsub.s32 2, %v59
  %v61 = vrot.slane %v34, %v60
  %v62 = vlaneseq
  %v63 = vshrl.u32 %v62, 7
  %v64 = vsub.s32 3, %v63
  %v65 = vrot.slane %v34, %v64
  %v66 = vlaneseq
  %v67 = vshrl.u32 %v66, 7
  %v68 = vsub.s32 4, %v67
  %v69 = vrot.slane %v34, %v68
  %v70 = vlaneseq
  %v71 = vshrl.u32 %v70, 7
  %v72 = vsub.s32 5, %v71
  %v73 = vrot.slane %v34, %v72
  %v74 = vlaneseq
  %v75 = vshrl.u32 %v74, 7
  %v76 = vsub.s32 6, %v75
  %v77 = vrot.slane %v34, %v76
  %v78 = vlaneseq
  %v79 = vshrl.u32 %v78, 7
  %v80 = vsub.s32 7, %v79
  %v81 = vrot.slane %v34, %v80
  %v82 = vlaneseq
  %v83 = vshrl.u32 %v82, 7
  %v84 = vsub.s32 0, %v83
  %v85 = vrot.slane %v35, %v84
  %v86 = vlaneseq
  %v87 = vshrl.u32 %v86, 7
  %v88 = vsub.s32 1, %v87
  %v89 = vrot.slane %v35, %v88
  %v90 = vlaneseq
  %v91 = vshrl.u32 %v90, 7
  %v92 = vsub.s32 2, %v91
  %v93 = vrot.slane %v35, %v92
  %v94 = vlaneseq
  %v95 = vshrl.u32 %v94, 7
  %v96 = vsub.s32 3, %v95
  %v97 = vrot.slane %v35, %v96
  %v98 = vlaneseq
  %v99 = vshrl.u32 %v98, 7
  %v100 = vsub.s32 4, %v99
  %v101 = vrot.slane %v35, %v100
  %v102 = vlaneseq
  %v103 = vshrl.u32 %v102, 7
  %v104 = vsub.s32 5, %v103
  %v105 = vrot.slane %v35, %v104
  %v106 = vlaneseq
  %v107 = vshrl.u32 %v106, 7
  %v108 = vsub.s32 6, %v107
  %v109 = vrot.slane %v35, %v108
  %v110 = vlaneseq
  %v111 = vshrl.u32 %v110, 7
  %v112 = vsub.s32 7, %v111
  %v113 = vrot.slane %v35, %v112
  %v114 = vlaneseq
  %v115 = vshrl.u32 %v114, 7
  %v116 = vsub.s32 0, %v115
  %v117 = vrot.slane %v36, %v116
  %v118 = vlaneseq
  %v119 = vshrl.u32 %v118, 7
  %v120 = vsub.s32 1, %v119
  %v121 = vrot.slane %v36, %v120
  %v122 = vlaneseq
  %v123 = vshrl.u32 %v122, 7
  %v124 = vsub.s32 2, %v123
  %v125 = vrot.slane %v36, %v124
  %v126 = vlaneseq
  %v127 = vshrl.u32 %v126, 7
  %v128 = vsub.s32 3, %v127
  %v129 = vrot.slane %v36, %v128
  %v130 = vlaneseq
  %v131 = vshrl.u32 %v130, 7
  %v132 = vsub.s32 4, %v131
  %v133 = vrot.slane %v36, %v132
  %v134 = vlaneseq
  %v135 = vshrl.u32 %v134, 7
  %v136 = vsub.s32 5, %v135
  %v137 = vrot.slane %v36, %v136
  %v138 = vlaneseq
  %v139 = vshrl.u32 %v138, 7
  %v140 = vsub.s32 6, %v139
  %v141 = vrot.slane %v36, %v140
  %v142 = vlaneseq
  %v143 = vshrl.u32 %v142, 7
  %v144 = vsub.s32 7, %v143
  %v145 = vrot.slane %v36, %v144
  %v146 = vlaneseq
  %v147 = vshrl.u32 %v146, 7
  %v148 = vsub.s32 0, %v147
  %v149 = vrot.slane %v37, %v148
  %v150 = vlaneseq
  %v151 = vshrl.u32 %v150, 7
  %v152 = vsub.s32 1, %v151
  %v153 = vrot.slane %v37, %v152
  %v154 = vlaneseq
  %v155 = vshrl.u32 %v154, 7
  %v156 = vsub.s32 2, %v155
  %v157 = vrot.slane %v37, %v156
  %v158 = vlaneseq
  %v159 = vshrl.u32 %v158, 7
  %v160 = vsub.s32 3, %v159
  %v161 = vrot.slane %v37, %v160
  %v162 = vlaneseq
  %v163 = vshrl.u32 %v162, 7
  %v164 = vsub.s32 4, %v163
  %v165 = vrot.slane %v37, %v164
  %v166 = vlaneseq
  %v167 = vshrl.u32 %v166, 7
  %v168 = vsub.s32 5, %v167
  %v169 = vrot.slane %v37, %v168
  %v170 = vlaneseq
  %v171 = vshrl.u32 %v170, 7
  %v172 = vsub.s32 6, %v171
  %v173 = vrot.slane %v37, %v172
  %v174 = vlaneseq
  %v175 = vshrl.u32 %v174, 7
  %v176 = vsub.s32 7, %v175
  %v177 = vrot.slane %v37, %v176
  %210 = vrot.lane.b32.xlu0 %v53, 26
  %v211 = vpop.permute.xlu0 %210
  %212 = vrot.lane.b32.xlu0 %v57, 26
  %v213 = vpop.permute.xlu0 %212
  %214 = vrot.lane.b32.xlu0 %v61, 26
  %v215 = vpop.permute.xlu0 %214
  %216 = vrot.lane.b32.xlu0 %v65, 26
  %v217 = vpop.permute.xlu0 %216
  %218 = vrot.lane.b32.xlu0 %v69, 26
  %v219 = vpop.permute.xlu0 %218
  %220 = vrot.lane.b32.xlu0 %v73, 26
  %v221 = vpop.permute.xlu0 %220
  %222 = vrot.lane.b32.xlu0 %v77, 26
  %v223 = vpop.permute.xlu0 %222
  %224 = vrot.lane.b32.xlu0 %v81, 26
  %v225 = vpop.permute.xlu0 %224
  %226 = vrot.lane.b32.xlu0 %v85, 26
  %v227 = vpop.permute.xlu0 %226
  %228 = vrot.lane.b32.xlu0 %v89, 26
  %v229 = vpop.permute.xlu0 %228
  %230 = vrot.lane.b32.xlu0 %v93, 26
  %v231 = vpop.permute.xlu0 %230
  %232 = vrot.lane.b32.xlu0 %v97, 26
  %v233 = vpop.permute.xlu0 %232
  %234 = vrot.lane.b32.xlu0 %v101, 26
  %v235 = vpop.permute.xlu0 %234
  %236 = vrot.lane.b32.xlu0 %v105, 26
  %v237 = vpop.permute.xlu0 %236
  %238 = vrot.lane.b32.xlu0 %v109, 26
  %v239 = vpop.permute.xlu0 %238
  %240 = vrot.lane.b32.xlu0 %v113, 26
  %v241 = vpop.permute.xlu0 %240
  %242 = vrot.lane.b32.xlu0 %v117, 26
  %v243 = vpop.permute.xlu0 %242
  %244 = vrot.lane.b32.xlu0 %v121, 26
  %v245 = vpop.permute.xlu0 %244
  %246 = vrot.lane.b32.xlu0 %v125, 26
  %v247 = vpop.permute.xlu0 %246
  %248 = vrot.lane.b32.xlu0 %v129, 26
  %v249 = vpop.permute.xlu0 %248
  %250 = vrot.lane.b32.xlu0 %v133, 26
  %v251 = vpop.permute.xlu0 %250
  %252 = vrot.lane.b32.xlu0 %v137, 26
  %v253 = vpop.permute.xlu0 %252
  %254 = vrot.lane.b32.xlu0 %v141, 26
  %v255 = vpop.permute.xlu0 %254
  %256 = vrot.lane.b32.xlu0 %v145, 26
  %v257 = vpop.permute.xlu0 %256
  %258 = vrot.lane.b32.xlu0 %v149, 26
  %v259 = vpop.permute.xlu0 %258
  %260 = vrot.lane.b32.xlu0 %v153, 26
  %v261 = vpop.permute.xlu0 %260
  %262 = vrot.lane.b32.xlu0 %v157, 26
  %v263 = vpop.permute.xlu0 %262
  %264 = vrot.lane.b32.xlu0 %v161, 26
  %v265 = vpop.permute.xlu0 %264
  %266 = vrot.lane.b32.xlu0 %v165, 26
  %v267 = vpop.permute.xlu0 %266
  %268 = vrot.lane.b32.xlu0 %v169, 26
  %v269 = vpop.permute.xlu0 %268
  %270 = vrot.lane.b32.xlu0 %v173, 26
  %v271 = vpop.permute.xlu0 %270
  %272 = vrot.lane.b32.xlu0 %v177, 26
  %v273 = vpop.permute.xlu0 %272
  %v274 = vlaneseq
  %v275 = vand.u32 %v274, 127
  %vm276 = vcmp.lt.s32.totalorder %v275, 26
  %v277 = vsel %vm276, %v271, %v273
  %v278 = vsel %vm276, %v269, %v271
  %v279 = vsel %vm276, %v267, %v269
  %v280 = vsel %vm276, %v265, %v267
  %v281 = vsel %vm276, %v263, %v265
  %v282 = vsel %vm276, %v261, %v263
  %v283 = vsel %vm276, %v259, %v261
  %v284 = vsel %vm276, %v257, %v259
  %v285 = vsel %vm276, %v255, %v257
  %v286 = vsel %vm276, %v253, %v255
  %v287 = vsel %vm276, %v251, %v253
  %v288 = vsel %vm276, %v249, %v251
  %v289 = vsel %vm276, %v247, %v249
  %v290 = vsel %vm276, %v245, %v247
  %v291 = vsel %vm276, %v243, %v245
  %v292 = vsel %vm276, %v241, %v243
  %v293 = vsel %vm276, %v239, %v241
  %v294 = vsel %vm276, %v237, %v239
  %v295 = vsel %vm276, %v235, %v237
  %v296 = vsel %vm276, %v233, %v235
  %v297 = vsel %vm276, %v231, %v233
  %v298 = vsel %vm276, %v229, %v231
  %v299 = vsel %vm276, %v227, %v229
  %v300 = vsel %vm276, %v225, %v227
  %v301 = vsel %vm276, %v223, %v225
  %v302 = vsel %vm276, %v221, %v223
  %v303 = vsel %vm276, %v219, %v221
  %v304 = vsel %vm276, %v217, %v219
  %v305 = vsel %vm276, %v215, %v217
  %v306 = vsel %vm276, %v213, %v215
  %v307 = vsel %vm276, %v211, %v213
  %v308 = vsel %vm276, %v273, %v211
  %310 = vset.pattern.permute.xlu0 0
  %311 = vperm.xlu0 %310, %v38
  %v312 = vpop.permute.xlu0 %311
  %315 = vset.pattern.permute.xlu0 0
  %316 = vperm.xlu0 %315, %v39
  %v317 = vpop.permute.xlu0 %316
  %320 = vset.pattern.permute.xlu0 0
  %321 = vperm.xlu0 %320, %v40
  %v322 = vpop.permute.xlu0 %321
  %325 = vset.pattern.permute.xlu0 0
  %326 = vperm.xlu0 %325, %v41
  %v327 = vpop.permute.xlu0 %326
  %v329 = vlaneseq
  %v330 = vshrl.u32 %v329, 7
  %v331 = vsub.s32 0, %v330
  %v332 = vrot.slane %v308, %v331
  %v333 = vlaneseq
  %v334 = vshrl.u32 %v333, 7
  %v335 = vsub.s32 0, %v334
  %v336 = vrot.slane %v307, %v335
  %v337 = vlaneseq
  %v338 = vshrl.u32 %v337, 7
  %v339 = vsub.s32 0, %v338
  %v340 = vrot.slane %v306, %v339
  %v341 = vlaneseq
  %v342 = vshrl.u32 %v341, 7
  %v343 = vsub.s32 0, %v342
  %v344 = vrot.slane %v305, %v343
  %v345 = vlaneseq
  %v346 = vshrl.u32 %v345, 7
  %v347 = vsub.s32 0, %v346
  %v348 = vrot.slane %v304, %v347
  %v349 = vlaneseq
  %v350 = vshrl.u32 %v349, 7
  %v351 = vsub.s32 0, %v350
  %v352 = vrot.slane %v303, %v351
  %v353 = vlaneseq
  %v354 = vshrl.u32 %v353, 7
  %v355 = vsub.s32 0, %v354
  %v356 = vrot.slane %v302, %v355
  %v357 = vlaneseq
  %v358 = vshrl.u32 %v357, 7
  %v359 = vsub.s32 0, %v358
  %v360 = vrot.slane %v301, %v359
  %v361 = vlaneseq
  %v362 = vshrl.u32 %v361, 7
  %v363 = vsub.s32 0, %v362
  %v364 = vrot.slane %v300, %v363
  %v365 = vlaneseq
  %v366 = vshrl.u32 %v365, 7
  %v367 = vsub.s32 0, %v366
  %v368 = vrot.slane %v299, %v367
  %v369 = vlaneseq
  %v370 = vshrl.u32 %v369, 7
  %v371 = vsub.s32 0, %v370
  %v372 = vrot.slane %v298, %v371
  %v373 = vlaneseq
  %v374 = vshrl.u32 %v373, 7
  %v375 = vsub.s32 0, %v374
  %v376 = vrot.slane %v297, %v375
  %v377 = vlaneseq
  %v378 = vshrl.u32 %v377, 7
  %v379 = vsub.s32 0, %v378
  %v380 = vrot.slane %v296, %v379
  %v381 = vlaneseq
  %v382 = vshrl.u32 %v381, 7
  %v383 = vsub.s32 0, %v382
  %v384 = vrot.slane %v295, %v383
  %v385 = vlaneseq
  %v386 = vshrl.u32 %v385, 7
  %v387 = vsub.s32 0, %v386
  %v388 = vrot.slane %v294, %v387
  %v389 = vlaneseq
  %v390 = vshrl.u32 %v389, 7
  %v391 = vsub.s32 0, %v390
  %v392 = vrot.slane %v293, %v391
  %v393 = vlaneseq
  %v394 = vshrl.u32 %v393, 7
  %v395 = vsub.s32 0, %v394
  %v396 = vrot.slane %v292, %v395
  %v397 = vlaneseq
  %v398 = vshrl.u32 %v397, 7
  %v399 = vsub.s32 0, %v398
  %v400 = vrot.slane %v291, %v399
  %v401 = vlaneseq
  %v402 = vshrl.u32 %v401, 7
  %v403 = vsub.s32 0, %v402
  %v404 = vrot.slane %v290, %v403
  %v405 = vlaneseq
  %v406 = vshrl.u32 %v405, 7
  %v407 = vsub.s32 0, %v406
  %v408 = vrot.slane %v289, %v407
  %v409 = vlaneseq
  %v410 = vshrl.u32 %v409, 7
  %v411 = vsub.s32 0, %v410
  %v412 = vrot.slane %v288, %v411
  %v413 = vlaneseq
  %v414 = vshrl.u32 %v413, 7
  %v415 = vsub.s32 0, %v414
  %v416 = vrot.slane %v287, %v415
  %v417 = vlaneseq
  %v418 = vshrl.u32 %v417, 7
  %v419 = vsub.s32 0, %v418
  %v420 = vrot.slane %v286, %v419
  %v421 = vlaneseq
  %v422 = vshrl.u32 %v421, 7
  %v423 = vsub.s32 0, %v422
  %v424 = vrot.slane %v285, %v423
  %v425 = vlaneseq
  %v426 = vshrl.u32 %v425, 7
  %v427 = vsub.s32 0, %v426
  %v428 = vrot.slane %v284, %v427
  %v429 = vlaneseq
  %v430 = vshrl.u32 %v429, 7
  %v431 = vsub.s32 0, %v430
  %v432 = vrot.slane %v283, %v431
  %v433 = vlaneseq
  %v434 = vshrl.u32 %v433, 7
  %v435 = vsub.s32 0, %v434
  %v436 = vrot.slane %v282, %v435
  %v437 = vlaneseq
  %v438 = vshrl.u32 %v437, 7
  %v439 = vsub.s32 0, %v438
  %v440 = vrot.slane %v281, %v439
  %v441 = vlaneseq
  %v442 = vshrl.u32 %v441, 7
  %v443 = vsub.s32 0, %v442
  %v444 = vrot.slane %v280, %v443
  %v445 = vlaneseq
  %v446 = vshrl.u32 %v445, 7
  %v447 = vsub.s32 0, %v446
  %v448 = vrot.slane %v279, %v447
  %v449 = vlaneseq
  %v450 = vshrl.u32 %v449, 7
  %v451 = vsub.s32 0, %v450
  %v452 = vrot.slane %v278, %v451
  %v453 = vlaneseq
  %v454 = vshrl.u32 %v453, 7
  %v455 = vsub.s32 0, %v454
  %v456 = vrot.slane %v277, %v455
  %v457 = vmul.f32 %v312, %v332
  %v458 = vmul.f32 %v312, %v336
  %v459 = vmul.f32 %v312, %v340
  %v460 = vmul.f32 %v312, %v344
  %v461 = vmul.f32 %v312, %v348
  %v462 = vmul.f32 %v312, %v352
  %v463 = vmul.f32 %v312, %v356
  %v464 = vmul.f32 %v312, %v360
  %v465 = vmul.f32 %v312, %v364
  %v466 = vmul.f32 %v312, %v368
  %v467 = vmul.f32 %v312, %v372
  %v468 = vmul.f32 %v312, %v376
  %v469 = vmul.f32 %v312, %v380
  %v470 = vmul.f32 %v312, %v384
  %v471 = vmul.f32 %v312, %v388
  %v472 = vmul.f32 %v312, %v392
  %v473 = vmul.f32 %v312, %v396
  %v474 = vmul.f32 %v312, %v400
  %v475 = vmul.f32 %v312, %v404
  %v476 = vmul.f32 %v312, %v408
  %v477 = vmul.f32 %v312, %v412
  %v478 = vmul.f32 %v312, %v416
  %v479 = vmul.f32 %v312, %v420
  %v480 = vmul.f32 %v312, %v424
  %v481 = vmul.f32 %v312, %v428
  %v482 = vmul.f32 %v312, %v432
  %v483 = vmul.f32 %v312, %v436
  %v484 = vmul.f32 %v312, %v440
  %v485 = vmul.f32 %v312, %v444
  %v486 = vmul.f32 %v312, %v448
  %v487 = vmul.f32 %v312, %v452
  %v488 = vmul.f32 %v312, %v456
  %v489 = vmul.f32 %v317, %v332
  %v490 = vmul.f32 %v317, %v336
  %v491 = vmul.f32 %v317, %v340
  %v492 = vmul.f32 %v317, %v344
  %v493 = vmul.f32 %v317, %v348
  %v494 = vmul.f32 %v317, %v352
  %v495 = vmul.f32 %v317, %v356
  %v496 = vmul.f32 %v317, %v360
  %v497 = vmul.f32 %v317, %v364
  %v498 = vmul.f32 %v317, %v368
  %v499 = vmul.f32 %v317, %v372
  %v500 = vmul.f32 %v317, %v376
  %v501 = vmul.f32 %v317, %v380
  %v502 = vmul.f32 %v317, %v384
  %v503 = vmul.f32 %v317, %v388
  %v504 = vmul.f32 %v317, %v392
  %v505 = vmul.f32 %v317, %v396
  %v506 = vmul.f32 %v317, %v400
  %v507 = vmul.f32 %v317, %v404
  %v508 = vmul.f32 %v317, %v408
  %v509 = vmul.f32 %v317, %v412
  %v510 = vmul.f32 %v317, %v416
  %v511 = vmul.f32 %v317, %v420
  %v512 = vmul.f32 %v317, %v424
  %v513 = vmul.f32 %v317, %v428
  %v514 = vmul.f32 %v317, %v432
  %v515 = vmul.f32 %v317, %v436
  %v516 = vmul.f32 %v317, %v440
  %v517 = vmul.f32 %v317, %v444
  %v518 = vmul.f32 %v317, %v448
  %v519 = vmul.f32 %v317, %v452
  %v520 = vmul.f32 %v317, %v456
  %v521 = vmul.f32 %v322, %v332
  %v522 = vmul.f32 %v322, %v336
  %v523 = vmul.f32 %v322, %v340
  %v524 = vmul.f32 %v322, %v344
  %v525 = vmul.f32 %v322, %v348
  %v526 = vmul.f32 %v322, %v352
  %v527 = vmul.f32 %v322, %v356
  %v528 = vmul.f32 %v322, %v360
  %v529 = vmul.f32 %v322, %v364
  %v530 = vmul.f32 %v322, %v368
  %v531 = vmul.f32 %v322, %v372
  %v532 = vmul.f32 %v322, %v376
  %v533 = vmul.f32 %v322, %v380
  %v534 = vmul.f32 %v322, %v384
  %v535 = vmul.f32 %v322, %v388
  %v536 = vmul.f32 %v322, %v392
  %v537 = vmul.f32 %v322, %v396
  %v538 = vmul.f32 %v322, %v400
  %v539 = vmul.f32 %v322, %v404
  %v540 = vmul.f32 %v322, %v408
  %v541 = vmul.f32 %v322, %v412
  %v542 = vmul.f32 %v322, %v416
  %v543 = vmul.f32 %v322, %v420
  %v544 = vmul.f32 %v322, %v424
  %v545 = vmul.f32 %v322, %v428
  %v546 = vmul.f32 %v322, %v432
  %v547 = vmul.f32 %v322, %v436
  %v548 = vmul.f32 %v322, %v440
  %v549 = vmul.f32 %v322, %v444
  %v550 = vmul.f32 %v322, %v448
  %v551 = vmul.f32 %v322, %v452
  %v552 = vmul.f32 %v322, %v456
  %v553 = vmul.f32 %v327, %v332
  %v554 = vmul.f32 %v327, %v336
  %v555 = vmul.f32 %v327, %v340
  %v556 = vmul.f32 %v327, %v344
  %v557 = vmul.f32 %v327, %v348
  %v558 = vmul.f32 %v327, %v352
  %v559 = vmul.f32 %v327, %v356
  %v560 = vmul.f32 %v327, %v360
  %v561 = vmul.f32 %v327, %v364
  %v562 = vmul.f32 %v327, %v368
  %v563 = vmul.f32 %v327, %v372
  %v564 = vmul.f32 %v327, %v376
  %v565 = vmul.f32 %v327, %v380
  %v566 = vmul.f32 %v327, %v384
  %v567 = vmul.f32 %v327, %v388
  %v568 = vmul.f32 %v327, %v392
  %v569 = vmul.f32 %v327, %v396
  %v570 = vmul.f32 %v327, %v400
  %v571 = vmul.f32 %v327, %v404
  %v572 = vmul.f32 %v327, %v408
  %v573 = vmul.f32 %v327, %v412
  %v574 = vmul.f32 %v327, %v416
  %v575 = vmul.f32 %v327, %v420
  %v576 = vmul.f32 %v327, %v424
  %v577 = vmul.f32 %v327, %v428
  %v578 = vmul.f32 %v327, %v432
  %v579 = vmul.f32 %v327, %v436
  %v580 = vmul.f32 %v327, %v440
  %v581 = vmul.f32 %v327, %v444
  %v582 = vmul.f32 %v327, %v448
  %v583 = vmul.f32 %v327, %v452
  %v584 = vmul.f32 %v327, %v456
  %585 = vrot.lane.b32.xlu0 %v53, 25
  %v586 = vpop.permute.xlu0 %585
  %587 = vrot.lane.b32.xlu0 %v57, 25
  %v588 = vpop.permute.xlu0 %587
  %589 = vrot.lane.b32.xlu0 %v61, 25
  %v590 = vpop.permute.xlu0 %589
  %591 = vrot.lane.b32.xlu0 %v65, 25
  %v592 = vpop.permute.xlu0 %591
  %593 = vrot.lane.b32.xlu0 %v69, 25
  %v594 = vpop.permute.xlu0 %593
  %595 = vrot.lane.b32.xlu0 %v73, 25
  %v596 = vpop.permute.xlu0 %595
  %597 = vrot.lane.b32.xlu0 %v77, 25
  %v598 = vpop.permute.xlu0 %597
  %599 = vrot.lane.b32.xlu0 %v81, 25
  %v600 = vpop.permute.xlu0 %599
  %601 = vrot.lane.b32.xlu0 %v85, 25
  %v602 = vpop.permute.xlu0 %601
  %603 = vrot.lane.b32.xlu0 %v89, 25
  %v604 = vpop.permute.xlu0 %603
  %605 = vrot.lane.b32.xlu0 %v93, 25
  %v606 = vpop.permute.xlu0 %605
  %607 = vrot.lane.b32.xlu0 %v97, 25
  %v608 = vpop.permute.xlu0 %607
  %609 = vrot.lane.b32.xlu0 %v101, 25
  %v610 = vpop.permute.xlu0 %609
  %611 = vrot.lane.b32.xlu0 %v105, 25
  %v612 = vpop.permute.xlu0 %611
  %613 = vrot.lane.b32.xlu0 %v109, 25
  %v614 = vpop.permute.xlu0 %613
  %615 = vrot.lane.b32.xlu0 %v113, 25
  %v616 = vpop.permute.xlu0 %615
  %617 = vrot.lane.b32.xlu0 %v117, 25
  %v618 = vpop.permute.xlu0 %617
  %619 = vrot.lane.b32.xlu0 %v121, 25
  %v620 = vpop.permute.xlu0 %619
  %621 = vrot.lane.b32.xlu0 %v125, 25
  %v622 = vpop.permute.xlu0 %621
  %623 = vrot.lane.b32.xlu0 %v129, 25
  %v624 = vpop.permute.xlu0 %623
  %625 = vrot.lane.b32.xlu0 %v133, 25
  %v626 = vpop.permute.xlu0 %625
  %627 = vrot.lane.b32.xlu0 %v137, 25
  %v628 = vpop.permute.xlu0 %627
  %629 = vrot.lane.b32.xlu0 %v141, 25
  %v630 = vpop.permute.xlu0 %629
  %631 = vrot.lane.b32.xlu0 %v145, 25
  %v632 = vpop.permute.xlu0 %631
  %633 = vrot.lane.b32.xlu0 %v149, 25
  %v634 = vpop.permute.xlu0 %633
  %635 = vrot.lane.b32.xlu0 %v153, 25
  %v636 = vpop.permute.xlu0 %635
  %637 = vrot.lane.b32.xlu0 %v157, 25
  %v638 = vpop.permute.xlu0 %637
  %639 = vrot.lane.b32.xlu0 %v161, 25
  %v640 = vpop.permute.xlu0 %639
  %641 = vrot.lane.b32.xlu0 %v165, 25
  %v642 = vpop.permute.xlu0 %641
  %643 = vrot.lane.b32.xlu0 %v169, 25
  %v644 = vpop.permute.xlu0 %643
  %645 = vrot.lane.b32.xlu0 %v173, 25
  %v646 = vpop.permute.xlu0 %645
  %647 = vrot.lane.b32.xlu0 %v177, 25
  %v648 = vpop.permute.xlu0 %647
  %vm649 = vcmp.lt.s32.totalorder %v275, 25
  %v650 = vsel %vm649, %v646, %v648
  %v651 = vsel %vm649, %v644, %v646
  %v652 = vsel %vm649, %v642, %v644
  %v653 = vsel %vm649, %v640, %v642
  %v654 = vsel %vm649, %v638, %v640
  %v655 = vsel %vm649, %v636, %v638
  %v656 = vsel %vm649, %v634, %v636
  %v657 = vsel %vm649, %v632, %v634
  %v658 = vsel %vm649, %v630, %v632
  %v659 = vsel %vm649, %v628, %v630
  %v660 = vsel %vm649, %v626, %v628
  %v661 = vsel %vm649, %v624, %v626
  %v662 = vsel %vm649, %v622, %v624
  %v663 = vsel %vm649, %v620, %v622
  %v664 = vsel %vm649, %v618, %v620
  %v665 = vsel %vm649, %v616, %v618
  %v666 = vsel %vm649, %v614, %v616
  %v667 = vsel %vm649, %v612, %v614
  %v668 = vsel %vm649, %v610, %v612
  %v669 = vsel %vm649, %v608, %v610
  %v670 = vsel %vm649, %v606, %v608
  %v671 = vsel %vm649, %v604, %v606
  %v672 = vsel %vm649, %v602, %v604
  %v673 = vsel %vm649, %v600, %v602
  %v674 = vsel %vm649, %v598, %v600
  %v675 = vsel %vm649, %v596, %v598
  %v676 = vsel %vm649, %v594, %v596
  %v677 = vsel %vm649, %v592, %v594
  %v678 = vsel %vm649, %v590, %v592
  %v679 = vsel %vm649, %v588, %v590
  %v680 = vsel %vm649, %v586, %v588
  %v681 = vsel %vm649, %v648, %v586
  %682 = vset.pattern.permute.xlu0 1
  %683 = vperm.xlu0 %682, %v38
  %v684 = vpop.permute.xlu0 %683
  %686 = vset.pattern.permute.xlu0 1
  %687 = vperm.xlu0 %686, %v39
  %v688 = vpop.permute.xlu0 %687
  %690 = vset.pattern.permute.xlu0 1
  %691 = vperm.xlu0 %690, %v40
  %v692 = vpop.permute.xlu0 %691
  %694 = vset.pattern.permute.xlu0 1
  %695 = vperm.xlu0 %694, %v41
  %v696 = vpop.permute.xlu0 %695
  %v698 = vlaneseq
  %v699 = vshrl.u32 %v698, 7
  %v700 = vsub.s32 0, %v699
  %v701 = vrot.slane %v681, %v700
  %v702 = vlaneseq
  %v703 = vshrl.u32 %v702, 7
  %v704 = vsub.s32 0, %v703
  %v705 = vrot.slane %v680, %v704
  %v706 = vlaneseq
  %v707 = vshrl.u32 %v706, 7
  %v708 = vsub.s32 0, %v707
  %v709 = vrot.slane %v679, %v708
  %v710 = vlaneseq
  %v711 = vshrl.u32 %v710, 7
  %v712 = vsub.s32 0, %v711
  %v713 = vrot.slane %v678, %v712
  %v714 = vlaneseq
  %v715 = vshrl.u32 %v714, 7
  %v716 = vsub.s32 0, %v715
  %v717 = vrot.slane %v677, %v716
  %v718 = vlaneseq
  %v719 = vshrl.u32 %v718, 7
  %v720 = vsub.s32 0, %v719
  %v721 = vrot.slane %v676, %v720
  %v722 = vlaneseq
  %v723 = vshrl.u32 %v722, 7
  %v724 = vsub.s32 0, %v723
  %v725 = vrot.slane %v675, %v724
  %v726 = vlaneseq
  %v727 = vshrl.u32 %v726, 7
  %v728 = vsub.s32 0, %v727
  %v729 = vrot.slane %v674, %v728
  %v730 = vlaneseq
  %v731 = vshrl.u32 %v730, 7
  %v732 = vsub.s32 0, %v731
  %v733 = vrot.slane %v673, %v732
  %v734 = vlaneseq
  %v735 = vshrl.u32 %v734, 7
  %v736 = vsub.s32 0, %v735
  %v737 = vrot.slane %v672, %v736
  %v738 = vlaneseq
  %v739 = vshrl.u32 %v738, 7
  %v740 = vsub.s32 0, %v739
  %v741 = vrot.slane %v671, %v740
  %v742 = vlaneseq
  %v743 = vshrl.u32 %v742, 7
  %v744 = vsub.s32 0, %v743
  %v745 = vrot.slane %v670, %v744
  %v746 = vlaneseq
  %v747 = vshrl.u32 %v746, 7
  %v748 = vsub.s32 0, %v747
  %v749 = vrot.slane %v669, %v748
  %v750 = vlaneseq
  %v751 = vshrl.u32 %v750, 7
  %v752 = vsub.s32 0, %v751
  %v753 = vrot.slane %v668, %v752
  %v754 = vlaneseq
  %v755 = vshrl.u32 %v754, 7
  %v756 = vsub.s32 0, %v755
  %v757 = vrot.slane %v667, %v756
  %v758 = vlaneseq
  %v759 = vshrl.u32 %v758, 7
  %v760 = vsub.s32 0, %v759
  %v761 = vrot.slane %v666, %v760
  %v762 = vlaneseq
  %v763 = vshrl.u32 %v762, 7
  %v764 = vsub.s32 0, %v763
  %v765 = vrot.slane %v665, %v764
  %v766 = vlaneseq
  %v767 = vshrl.u32 %v766, 7
  %v768 = vsub.s32 0, %v767
  %v769 = vrot.slane %v664, %v768
  %v770 = vlaneseq
  %v771 = vshrl.u32 %v770, 7
  %v772 = vsub.s32 0, %v771
  %v773 = vrot.slane %v663, %v772
  %v774 = vlaneseq
  %v775 = vshrl.u32 %v774, 7
  %v776 = vsub.s32 0, %v775
  %v777 = vrot.slane %v662, %v776
  %v778 = vlaneseq
  %v779 = vshrl.u32 %v778, 7
  %v780 = vsub.s32 0, %v779
  %v781 = vrot.slane %v661, %v780
  %v782 = vlaneseq
  %v783 = vshrl.u32 %v782, 7
  %v784 = vsub.s32 0, %v783
  %v785 = vrot.slane %v660, %v784
  %v786 = vlaneseq
  %v787 = vshrl.u32 %v786, 7
  %v788 = vsub.s32 0, %v787
  %v789 = vrot.slane %v659, %v788
  %v790 = vlaneseq
  %v791 = vshrl.u32 %v790, 7
  %v792 = vsub.s32 0, %v791
  %v793 = vrot.slane %v658, %v792
  %v794 = vlaneseq
  %v795 = vshrl.u32 %v794, 7
  %v796 = vsub.s32 0, %v795
  %v797 = vrot.slane %v657, %v796
  %v798 = vlaneseq
  %v799 = vshrl.u32 %v798, 7
  %v800 = vsub.s32 0, %v799
  %v801 = vrot.slane %v656, %v800
  %v802 = vlaneseq
  %v803 = vshrl.u32 %v802, 7
  %v804 = vsub.s32 0, %v803
  %v805 = vrot.slane %v655, %v804
  %v806 = vlaneseq
  %v807 = vshrl.u32 %v806, 7
  %v808 = vsub.s32 0, %v807
  %v809 = vrot.slane %v654, %v808
  %v810 = vlaneseq
  %v811 = vshrl.u32 %v810, 7
  %v812 = vsub.s32 0, %v811
  %v813 = vrot.slane %v653, %v812
  %v814 = vlaneseq
  %v815 = vshrl.u32 %v814, 7
  %v816 = vsub.s32 0, %v815
  %v817 = vrot.slane %v652, %v816
  %v818 = vlaneseq
  %v819 = vshrl.u32 %v818, 7
  %v820 = vsub.s32 0, %v819
  %v821 = vrot.slane %v651, %v820
  %v822 = vlaneseq
  %v823 = vshrl.u32 %v822, 7
  %v824 = vsub.s32 0, %v823
  %v825 = vrot.slane %v650, %v824
  %v826 = vmul.f32 %v684, %v701
  %v827 = vmul.f32 %v684, %v705
  %v828 = vmul.f32 %v684, %v709
  %v829 = vmul.f32 %v684, %v713
  %v830 = vmul.f32 %v684, %v717
  %v831 = vmul.f32 %v684, %v721
  %v832 = vmul.f32 %v684, %v725
  %v833 = vmul.f32 %v684, %v729
  %v834 = vmul.f32 %v684, %v733
  %v835 = vmul.f32 %v684, %v737
  %v836 = vmul.f32 %v684, %v741
  %v837 = vmul.f32 %v684, %v745
  %v838 = vmul.f32 %v684, %v749
  %v839 = vmul.f32 %v684, %v753
  %v840 = vmul.f32 %v684, %v757
  %v841 = vmul.f32 %v684, %v761
  %v842 = vmul.f32 %v684, %v765
  %v843 = vmul.f32 %v684, %v769
  %v844 = vmul.f32 %v684, %v773
  %v845 = vmul.f32 %v684, %v777
  %v846 = vmul.f32 %v684, %v781
  %v847 = vmul.f32 %v684, %v785
  %v848 = vmul.f32 %v684, %v789
  %v849 = vmul.f32 %v684, %v793
  %v850 = vmul.f32 %v684, %v797
  %v851 = vmul.f32 %v684, %v801
  %v852 = vmul.f32 %v684, %v805
  %v853 = vmul.f32 %v684, %v809
  %v854 = vmul.f32 %v684, %v813
  %v855 = vmul.f32 %v684, %v817
  %v856 = vmul.f32 %v684, %v821
  %v857 = vmul.f32 %v684, %v825
  %v858 = vmul.f32 %v688, %v701
  %v859 = vmul.f32 %v688, %v705
  %v860 = vmul.f32 %v688, %v709
  %v861 = vmul.f32 %v688, %v713
  %v862 = vmul.f32 %v688, %v717
  %v863 = vmul.f32 %v688, %v721
  %v864 = vmul.f32 %v688, %v725
  %v865 = vmul.f32 %v688, %v729
  %v866 = vmul.f32 %v688, %v733
  %v867 = vmul.f32 %v688, %v737
  %v868 = vmul.f32 %v688, %v741
  %v869 = vmul.f32 %v688, %v745
  %v870 = vmul.f32 %v688, %v749
  %v871 = vmul.f32 %v688, %v753
  %v872 = vmul.f32 %v688, %v757
  %v873 = vmul.f32 %v688, %v761
  %v874 = vmul.f32 %v688, %v765
  %v875 = vmul.f32 %v688, %v769
  %v876 = vmul.f32 %v688, %v773
  %v877 = vmul.f32 %v688, %v777
  %v878 = vmul.f32 %v688, %v781
  %v879 = vmul.f32 %v688, %v785
  %v880 = vmul.f32 %v688, %v789
  %v881 = vmul.f32 %v688, %v793
  %v882 = vmul.f32 %v688, %v797
  %v883 = vmul.f32 %v688, %v801
  %v884 = vmul.f32 %v688, %v805
  %v885 = vmul.f32 %v688, %v809
  %v886 = vmul.f32 %v688, %v813
  %v887 = vmul.f32 %v688, %v817
  %v888 = vmul.f32 %v688, %v821
  %v889 = vmul.f32 %v688, %v825
  %v890 = vmul.f32 %v692, %v701
  %v891 = vmul.f32 %v692, %v705
  %v892 = vmul.f32 %v692, %v709
  %v893 = vmul.f32 %v692, %v713
  %v894 = vmul.f32 %v692, %v717
  %v895 = vmul.f32 %v692, %v721
  %v896 = vmul.f32 %v692, %v725
  %v897 = vmul.f32 %v692, %v729
  %v898 = vmul.f32 %v692, %v733
  %v899 = vmul.f32 %v692, %v737
  %v900 = vmul.f32 %v692, %v741
  %v901 = vmul.f32 %v692, %v745
  %v902 = vmul.f32 %v692, %v749
  %v903 = vmul.f32 %v692, %v753
  %v904 = vmul.f32 %v692, %v757
  %v905 = vmul.f32 %v692, %v761
  %v906 = vmul.f32 %v692, %v765
  %v907 = vmul.f32 %v692, %v769
  %v908 = vmul.f32 %v692, %v773
  %v909 = vmul.f32 %v692, %v777
  %v910 = vmul.f32 %v692, %v781
  %v911 = vmul.f32 %v692, %v785
  %v912 = vmul.f32 %v692, %v789
  %v913 = vmul.f32 %v692, %v793
  %v914 = vmul.f32 %v692, %v797
  %v915 = vmul.f32 %v692, %v801
  %v916 = vmul.f32 %v692, %v805
  %v917 = vmul.f32 %v692, %v809
  %v918 = vmul.f32 %v692, %v813
  %v919 = vmul.f32 %v692, %v817
  %v920 = vmul.f32 %v692, %v821
  %v921 = vmul.f32 %v692, %v825
  %v922 = vmul.f32 %v696, %v701
  %v923 = vmul.f32 %v696, %v705
  %v924 = vmul.f32 %v696, %v709
  %v925 = vmul.f32 %v696, %v713
  %v926 = vmul.f32 %v696, %v717
  %v927 = vmul.f32 %v696, %v721
  %v928 = vmul.f32 %v696, %v725
  %v929 = vmul.f32 %v696, %v729
  %v930 = vmul.f32 %v696, %v733
  %v931 = vmul.f32 %v696, %v737
  %v932 = vmul.f32 %v696, %v741
  %v933 = vmul.f32 %v696, %v745
  %v934 = vmul.f32 %v696, %v749
  %v935 = vmul.f32 %v696, %v753
  %v936 = vmul.f32 %v696, %v757
  %v937 = vmul.f32 %v696, %v761
  %v938 = vmul.f32 %v696, %v765
  %v939 = vmul.f32 %v696, %v769
  %v940 = vmul.f32 %v696, %v773
  %v941 = vmul.f32 %v696, %v777
  %v942 = vmul.f32 %v696, %v781
  %v943 = vmul.f32 %v696, %v785
  %v944 = vmul.f32 %v696, %v789
  %v945 = vmul.f32 %v696, %v793
  %v946 = vmul.f32 %v696, %v797
  %v947 = vmul.f32 %v696, %v801
  %v948 = vmul.f32 %v696, %v805
  %v949 = vmul.f32 %v696, %v809
  %v950 = vmul.f32 %v696, %v813
  %v951 = vmul.f32 %v696, %v817
  %v952 = vmul.f32 %v696, %v821
  %v953 = vmul.f32 %v696, %v825
  %v954 = vadd.f32 %v457, %v826
  %v955 = vadd.f32 %v458, %v827
  %v956 = vadd.f32 %v459, %v828
  %v957 = vadd.f32 %v460, %v829
  %v958 = vadd.f32 %v461, %v830
  %v959 = vadd.f32 %v462, %v831
  %v960 = vadd.f32 %v463, %v832
  %v961 = vadd.f32 %v464, %v833
  %v962 = vadd.f32 %v465, %v834
  %v963 = vadd.f32 %v466, %v835
  %v964 = vadd.f32 %v467, %v836
  %v965 = vadd.f32 %v468, %v837
  %v966 = vadd.f32 %v469, %v838
  %v967 = vadd.f32 %v470, %v839
  %v968 = vadd.f32 %v471, %v840
  %v969 = vadd.f32 %v472, %v841
  %v970 = vadd.f32 %v473, %v842
  %v971 = vadd.f32 %v474, %v843
  %v972 = vadd.f32 %v475, %v844
  %v973 = vadd.f32 %v476, %v845
  %v974 = vadd.f32 %v477, %v846
  %v975 = vadd.f32 %v478, %v847
  %v976 = vadd.f32 %v479, %v848
  %v977 = vadd.f32 %v480, %v849
  %v978 = vadd.f32 %v481, %v850
  %v979 = vadd.f32 %v482, %v851
  %v980 = vadd.f32 %v483, %v852
  %v981 = vadd.f32 %v484, %v853
  %v982 = vadd.f32 %v485, %v854
  %v983 = vadd.f32 %v486, %v855
  %v984 = vadd.f32 %v487, %v856
  %v985 = vadd.f32 %v488, %v857
  %v986 = vadd.f32 %v489, %v858
  %v987 = vadd.f32 %v490, %v859
  %v988 = vadd.f32 %v491, %v860
  %v989 = vadd.f32 %v492, %v861
  %v990 = vadd.f32 %v493, %v862
  %v991 = vadd.f32 %v494, %v863
  %v992 = vadd.f32 %v495, %v864
  %v993 = vadd.f32 %v496, %v865
  %v994 = vadd.f32 %v497, %v866
  %v995 = vadd.f32 %v498, %v867
  %v996 = vadd.f32 %v499, %v868
  %v997 = vadd.f32 %v500, %v869
  %v998 = vadd.f32 %v501, %v870
  %v999 = vadd.f32 %v502, %v871
  %v1000 = vadd.f32 %v503, %v872
  %v1001 = vadd.f32 %v504, %v873
  %v1002 = vadd.f32 %v505, %v874
  %v1003 = vadd.f32 %v506, %v875
  %v1004 = vadd.f32 %v507, %v876
  %v1005 = vadd.f32 %v508, %v877
  %v1006 = vadd.f32 %v509, %v878
  %v1007 = vadd.f32 %v510, %v879
  %v1008 = vadd.f32 %v511, %v880
  %v1009 = vadd.f32 %v512, %v881
  %v1010 = vadd.f32 %v513, %v882
  %v1011 = vadd.f32 %v514, %v883
  %v1012 = vadd.f32 %v515, %v884
  %v1013 = vadd.f32 %v516, %v885
  %v1014 = vadd.f32 %v517, %v886
  %v1015 = vadd.f32 %v518, %v887
  %v1016 = vadd.f32 %v519, %v888
  %v1017 = vadd.f32 %v520, %v889
  %v1018 = vadd.f32 %v521, %v890
  %v1019 = vadd.f32 %v522, %v891
  %v1020 = vadd.f32 %v523, %v892
  %v1021 = vadd.f32 %v524, %v893
  %v1022 = vadd.f32 %v525, %v894
  %v1023 = vadd.f32 %v526, %v895
  %v1024 = vadd.f32 %v527, %v896
  %v1025 = vadd.f32 %v528, %v897
  %v1026 = vadd.f32 %v529, %v898
  %v1027 = vadd.f32 %v530, %v899
  %v1028 = vadd.f32 %v531, %v900
  %v1029 = vadd.f32 %v532, %v901
  %v1030 = vadd.f32 %v533, %v902
  %v1031 = vadd.f32 %v534, %v903
  %v1032 = vadd.f32 %v535, %v904
  %v1033 = vadd.f32 %v536, %v905
  %v1034 = vadd.f32 %v537, %v906
  %v1035 = vadd.f32 %v538, %v907
  %v1036 = vadd.f32 %v539, %v908
  %v1037 = vadd.f32 %v540, %v909
  %v1038 = vadd.f32 %v541, %v910
  %v1039 = vadd.f32 %v542, %v911
  %v1040 = vadd.f32 %v543, %v912
  %v1041 = vadd.f32 %v544, %v913
  %v1042 = vadd.f32 %v545, %v914
  %v1043 = vadd.f32 %v546, %v915
  %v1044 = vadd.f32 %v547, %v916
  %v1045 = vadd.f32 %v548, %v917
  %v1046 = vadd.f32 %v549, %v918
  %v1047 = vadd.f32 %v550, %v919
  %v1048 = vadd.f32 %v551, %v920
  %v1049 = vadd.f32 %v552, %v921
  %v1050 = vadd.f32 %v553, %v922
  %v1051 = vadd.f32 %v554, %v923
  %v1052 = vadd.f32 %v555, %v924
  %v1053 = vadd.f32 %v556, %v925
  %v1054 = vadd.f32 %v557, %v926
  %v1055 = vadd.f32 %v558, %v927
  %v1056 = vadd.f32 %v559, %v928
  %v1057 = vadd.f32 %v560, %v929
  %v1058 = vadd.f32 %v561, %v930
  %v1059 = vadd.f32 %v562, %v931
  %v1060 = vadd.f32 %v563, %v932
  %v1061 = vadd.f32 %v564, %v933
  %v1062 = vadd.f32 %v565, %v934
  %v1063 = vadd.f32 %v566, %v935
  %v1064 = vadd.f32 %v567, %v936
  %v1065 = vadd.f32 %v568, %v937
  %v1066 = vadd.f32 %v569, %v938
  %v1067 = vadd.f32 %v570, %v939
  %v1068 = vadd.f32 %v571, %v940
  %v1069 = vadd.f32 %v572, %v941
  %v1070 = vadd.f32 %v573, %v942
  %v1071 = vadd.f32 %v574, %v943
  %v1072 = vadd.f32 %v575, %v944
  %v1073 = vadd.f32 %v576, %v945
  %v1074 = vadd.f32 %v577, %v946
  %v1075 = vadd.f32 %v578, %v947
  %v1076 = vadd.f32 %v579, %v948
  %v1077 = vadd.f32 %v580, %v949
  %v1078 = vadd.f32 %v581, %v950
  %v1079 = vadd.f32 %v582, %v951
  %v1080 = vadd.f32 %v583, %v952
  %v1081 = vadd.f32 %v584, %v953
  %1082 = vrot.lane.b32.xlu0 %v53, 1
  %v1083 = vpop.permute.xlu0 %1082
  %1084 = vrot.lane.b32.xlu0 %v57, 1
  %v1085 = vpop.permute.xlu0 %1084
  %1086 = vrot.lane.b32.xlu0 %v61, 1
  %v1087 = vpop.permute.xlu0 %1086
  %1088 = vrot.lane.b32.xlu0 %v65, 1
  %v1089 = vpop.permute.xlu0 %1088
  %1090 = vrot.lane.b32.xlu0 %v69, 1
  %v1091 = vpop.permute.xlu0 %1090
  %1092 = vrot.lane.b32.xlu0 %v73, 1
  %v1093 = vpop.permute.xlu0 %1092
  %1094 = vrot.lane.b32.xlu0 %v77, 1
  %v1095 = vpop.permute.xlu0 %1094
  %1096 = vrot.lane.b32.xlu0 %v81, 1
  %v1097 = vpop.permute.xlu0 %1096
  %1098 = vrot.lane.b32.xlu0 %v85, 1
  %v1099 = vpop.permute.xlu0 %1098
  %1100 = vrot.lane.b32.xlu0 %v89, 1
  %v1101 = vpop.permute.xlu0 %1100
  %1102 = vrot.lane.b32.xlu0 %v93, 1
  %v1103 = vpop.permute.xlu0 %1102
  %1104 = vrot.lane.b32.xlu0 %v97, 1
  %v1105 = vpop.permute.xlu0 %1104
  %1106 = vrot.lane.b32.xlu0 %v101, 1
  %v1107 = vpop.permute.xlu0 %1106
  %1108 = vrot.lane.b32.xlu0 %v105, 1
  %v1109 = vpop.permute.xlu0 %1108
  %1110 = vrot.lane.b32.xlu0 %v109, 1
  %v1111 = vpop.permute.xlu0 %1110
  %1112 = vrot.lane.b32.xlu0 %v113, 1
  %v1113 = vpop.permute.xlu0 %1112
  %1114 = vrot.lane.b32.xlu0 %v117, 1
  %v1115 = vpop.permute.xlu0 %1114
  %1116 = vrot.lane.b32.xlu0 %v121, 1
  %v1117 = vpop.permute.xlu0 %1116
  %1118 = vrot.lane.b32.xlu0 %v125, 1
  %v1119 = vpop.permute.xlu0 %1118
  %1120 = vrot.lane.b32.xlu0 %v129, 1
  %v1121 = vpop.permute.xlu0 %1120
  %1122 = vrot.lane.b32.xlu0 %v133, 1
  %v1123 = vpop.permute.xlu0 %1122
  %1124 = vrot.lane.b32.xlu0 %v137, 1
  %v1125 = vpop.permute.xlu0 %1124
  %1126 = vrot.lane.b32.xlu0 %v141, 1
  %v1127 = vpop.permute.xlu0 %1126
  %1128 = vrot.lane.b32.xlu0 %v145, 1
  %v1129 = vpop.permute.xlu0 %1128
  %1130 = vrot.lane.b32.xlu0 %v149, 1
  %v1131 = vpop.permute.xlu0 %1130
  %1132 = vrot.lane.b32.xlu0 %v153, 1
  %v1133 = vpop.permute.xlu0 %1132
  %1134 = vrot.lane.b32.xlu0 %v157, 1
  %v1135 = vpop.permute.xlu0 %1134
  %1136 = vrot.lane.b32.xlu0 %v161, 1
  %v1137 = vpop.permute.xlu0 %1136
  %1138 = vrot.lane.b32.xlu0 %v165, 1
  %v1139 = vpop.permute.xlu0 %1138
  %1140 = vrot.lane.b32.xlu0 %v169, 1
  %v1141 = vpop.permute.xlu0 %1140
  %1142 = vrot.lane.b32.xlu0 %v173, 1
  %v1143 = vpop.permute.xlu0 %1142
  %1144 = vrot.lane.b32.xlu0 %v177, 1
  %v1145 = vpop.permute.xlu0 %1144
  %vm1146 = vcmp.lt.s32.totalorder %v275, 1
  %v1147 = vsel %vm1146, %v1143, %v1145
  %v1148 = vsel %vm1146, %v1141, %v1143
  %v1149 = vsel %vm1146, %v1139, %v1141
  %v1150 = vsel %vm1146, %v1137, %v1139
  %v1151 = vsel %vm1146, %v1135, %v1137
  %v1152 = vsel %vm1146, %v1133, %v1135
  %v1153 = vsel %vm1146, %v1131, %v1133
  %v1154 = vsel %vm1146, %v1129, %v1131
  %v1155 = vsel %vm1146, %v1127, %v1129
  %v1156 = vsel %vm1146, %v1125, %v1127
  %v1157 = vsel %vm1146, %v1123, %v1125
  %v1158 = vsel %vm1146, %v1121, %v1123
  %v1159 = vsel %vm1146, %v1119, %v1121
  %v1160 = vsel %vm1146, %v1117, %v1119
  %v1161 = vsel %vm1146, %v1115, %v1117
  %v1162 = vsel %vm1146, %v1113, %v1115
  %v1163 = vsel %vm1146, %v1111, %v1113
  %v1164 = vsel %vm1146, %v1109, %v1111
  %v1165 = vsel %vm1146, %v1107, %v1109
  %v1166 = vsel %vm1146, %v1105, %v1107
  %v1167 = vsel %vm1146, %v1103, %v1105
  %v1168 = vsel %vm1146, %v1101, %v1103
  %v1169 = vsel %vm1146, %v1099, %v1101
  %v1170 = vsel %vm1146, %v1097, %v1099
  %v1171 = vsel %vm1146, %v1095, %v1097
  %v1172 = vsel %vm1146, %v1093, %v1095
  %v1173 = vsel %vm1146, %v1091, %v1093
  %v1174 = vsel %vm1146, %v1089, %v1091
  %v1175 = vsel %vm1146, %v1087, %v1089
  %v1176 = vsel %vm1146, %v1085, %v1087
  %v1177 = vsel %vm1146, %v1083, %v1085
  %v1178 = vsel %vm1146, %v1145, %v1083
  %1179 = vset.pattern.permute.xlu0 2
  %1180 = vperm.xlu0 %1179, %v38
  %v1181 = vpop.permute.xlu0 %1180
  %1183 = vset.pattern.permute.xlu0 2
  %1184 = vperm.xlu0 %1183, %v39
  %v1185 = vpop.permute.xlu0 %1184
  %1187 = vset.pattern.permute.xlu0 2
  %1188 = vperm.xlu0 %1187, %v40
  %v1189 = vpop.permute.xlu0 %1188
  %1191 = vset.pattern.permute.xlu0 2
  %1192 = vperm.xlu0 %1191, %v41
  %v1193 = vpop.permute.xlu0 %1192
  %v1195 = vlaneseq
  %v1196 = vshrl.u32 %v1195, 7
  %v1197 = vsub.s32 0, %v1196
  %v1198 = vrot.slane %v1178, %v1197
  %v1199 = vlaneseq
  %v1200 = vshrl.u32 %v1199, 7
  %v1201 = vsub.s32 0, %v1200
  %v1202 = vrot.slane %v1177, %v1201
  %v1203 = vlaneseq
  %v1204 = vshrl.u32 %v1203, 7
  %v1205 = vsub.s32 0, %v1204
  %v1206 = vrot.slane %v1176, %v1205
  %v1207 = vlaneseq
  %v1208 = vshrl.u32 %v1207, 7
  %v1209 = vsub.s32 0, %v1208
  %v1210 = vrot.slane %v1175, %v1209
  %v1211 = vlaneseq
  %v1212 = vshrl.u32 %v1211, 7
  %v1213 = vsub.s32 0, %v1212
  %v1214 = vrot.slane %v1174, %v1213
  %v1215 = vlaneseq
  %v1216 = vshrl.u32 %v1215, 7
  %v1217 = vsub.s32 0, %v1216
  %v1218 = vrot.slane %v1173, %v1217
  %v1219 = vlaneseq
  %v1220 = vshrl.u32 %v1219, 7
  %v1221 = vsub.s32 0, %v1220
  %v1222 = vrot.slane %v1172, %v1221
  %v1223 = vlaneseq
  %v1224 = vshrl.u32 %v1223, 7
  %v1225 = vsub.s32 0, %v1224
  %v1226 = vrot.slane %v1171, %v1225
  %v1227 = vlaneseq
  %v1228 = vshrl.u32 %v1227, 7
  %v1229 = vsub.s32 0, %v1228
  %v1230 = vrot.slane %v1170, %v1229
  %v1231 = vlaneseq
  %v1232 = vshrl.u32 %v1231, 7
  %v1233 = vsub.s32 0, %v1232
  %v1234 = vrot.slane %v1169, %v1233
  %v1235 = vlaneseq
  %v1236 = vshrl.u32 %v1235, 7
  %v1237 = vsub.s32 0, %v1236
  %v1238 = vrot.slane %v1168, %v1237
  %v1239 = vlaneseq
  %v1240 = vshrl.u32 %v1239, 7
  %v1241 = vsub.s32 0, %v1240
  %v1242 = vrot.slane %v1167, %v1241
  %v1243 = vlaneseq
  %v1244 = vshrl.u32 %v1243, 7
  %v1245 = vsub.s32 0, %v1244
  %v1246 = vrot.slane %v1166, %v1245
  %v1247 = vlaneseq
  %v1248 = vshrl.u32 %v1247, 7
  %v1249 = vsub.s32 0, %v1248
  %v1250 = vrot.slane %v1165, %v1249
  %v1251 = vlaneseq
  %v1252 = vshrl.u32 %v1251, 7
  %v1253 = vsub.s32 0, %v1252
  %v1254 = vrot.slane %v1164, %v1253
  %v1255 = vlaneseq
  %v1256 = vshrl.u32 %v1255, 7
  %v1257 = vsub.s32 0, %v1256
  %v1258 = vrot.slane %v1163, %v1257
  %v1259 = vlaneseq
  %v1260 = vshrl.u32 %v1259, 7
  %v1261 = vsub.s32 0, %v1260
  %v1262 = vrot.slane %v1162, %v1261
  %v1263 = vlaneseq
  %v1264 = vshrl.u32 %v1263, 7
  %v1265 = vsub.s32 0, %v1264
  %v1266 = vrot.slane %v1161, %v1265
  %v1267 = vlaneseq
  %v1268 = vshrl.u32 %v1267, 7
  %v1269 = vsub.s32 0, %v1268
  %v1270 = vrot.slane %v1160, %v1269
  %v1271 = vlaneseq
  %v1272 = vshrl.u32 %v1271, 7
  %v1273 = vsub.s32 0, %v1272
  %v1274 = vrot.slane %v1159, %v1273
  %v1275 = vlaneseq
  %v1276 = vshrl.u32 %v1275, 7
  %v1277 = vsub.s32 0, %v1276
  %v1278 = vrot.slane %v1158, %v1277
  %v1279 = vlaneseq
  %v1280 = vshrl.u32 %v1279, 7
  %v1281 = vsub.s32 0, %v1280
  %v1282 = vrot.slane %v1157, %v1281
  %v1283 = vlaneseq
  %v1284 = vshrl.u32 %v1283, 7
  %v1285 = vsub.s32 0, %v1284
  %v1286 = vrot.slane %v1156, %v1285
  %v1287 = vlaneseq
  %v1288 = vshrl.u32 %v1287, 7
  %v1289 = vsub.s32 0, %v1288
  %v1290 = vrot.slane %v1155, %v1289
  %v1291 = vlaneseq
  %v1292 = vshrl.u32 %v1291, 7
  %v1293 = vsub.s32 0, %v1292
  %v1294 = vrot.slane %v1154, %v1293
  %v1295 = vlaneseq
  %v1296 = vshrl.u32 %v1295, 7
  %v1297 = vsub.s32 0, %v1296
  %v1298 = vrot.slane %v1153, %v1297
  %v1299 = vlaneseq
  %v1300 = vshrl.u32 %v1299, 7
  %v1301 = vsub.s32 0, %v1300
  %v1302 = vrot.slane %v1152, %v1301
  %v1303 = vlaneseq
  %v1304 = vshrl.u32 %v1303, 7
  %v1305 = vsub.s32 0, %v1304
  %v1306 = vrot.slane %v1151, %v1305
  %v1307 = vlaneseq
  %v1308 = vshrl.u32 %v1307, 7
  %v1309 = vsub.s32 0, %v1308
  %v1310 = vrot.slane %v1150, %v1309
  %v1311 = vlaneseq
  %v1312 = vshrl.u32 %v1311, 7
  %v1313 = vsub.s32 0, %v1312
  %v1314 = vrot.slane %v1149, %v1313
  %v1315 = vlaneseq
  %v1316 = vshrl.u32 %v1315, 7
  %v1317 = vsub.s32 0, %v1316
  %v1318 = vrot.slane %v1148, %v1317
  %v1319 = vlaneseq
  %v1320 = vshrl.u32 %v1319, 7
  %v1321 = vsub.s32 0, %v1320
  %v1322 = vrot.slane %v1147, %v1321
  %v1323 = vmul.f32 %v1181, %v1198
  %v1324 = vmul.f32 %v1181, %v1202
  %v1325 = vmul.f32 %v1181, %v1206
  %v1326 = vmul.f32 %v1181, %v1210
  %v1327 = vmul.f32 %v1181, %v1214
  %v1328 = vmul.f32 %v1181, %v1218
  %v1329 = vmul.f32 %v1181, %v1222
  %v1330 = vmul.f32 %v1181, %v1226
  %v1331 = vmul.f32 %v1181, %v1230
  %v1332 = vmul.f32 %v1181, %v1234
  %v1333 = vmul.f32 %v1181, %v1238
  %v1334 = vmul.f32 %v1181, %v1242
  %v1335 = vmul.f32 %v1181, %v1246
  %v1336 = vmul.f32 %v1181, %v1250
  %v1337 = vmul.f32 %v1181, %v1254
  %v1338 = vmul.f32 %v1181, %v1258
  %v1339 = vmul.f32 %v1181, %v1262
  %v1340 = vmul.f32 %v1181, %v1266
  %v1341 = vmul.f32 %v1181, %v1270
  %v1342 = vmul.f32 %v1181, %v1274
  %v1343 = vmul.f32 %v1181, %v1278
  %v1344 = vmul.f32 %v1181, %v1282
  %v1345 = vmul.f32 %v1181, %v1286
  %v1346 = vmul.f32 %v1181, %v1290
  %v1347 = vmul.f32 %v1181, %v1294
  %v1348 = vmul.f32 %v1181, %v1298
  %v1349 = vmul.f32 %v1181, %v1302
  %v1350 = vmul.f32 %v1181, %v1306
  %v1351 = vmul.f32 %v1181, %v1310
  %v1352 = vmul.f32 %v1181, %v1314
  %v1353 = vmul.f32 %v1181, %v1318
  %v1354 = vmul.f32 %v1181, %v1322
  %v1355 = vmul.f32 %v1185, %v1198
  %v1356 = vmul.f32 %v1185, %v1202
  %v1357 = vmul.f32 %v1185, %v1206
  %v1358 = vmul.f32 %v1185, %v1210
  %v1359 = vmul.f32 %v1185, %v1214
  %v1360 = vmul.f32 %v1185, %v1218
  %v1361 = vmul.f32 %v1185, %v1222
  %v1362 = vmul.f32 %v1185, %v1226
  %v1363 = vmul.f32 %v1185, %v1230
  %v1364 = vmul.f32 %v1185, %v1234
  %v1365 = vmul.f32 %v1185, %v1238
  %v1366 = vmul.f32 %v1185, %v1242
  %v1367 = vmul.f32 %v1185, %v1246
  %v1368 = vmul.f32 %v1185, %v1250
  %v1369 = vmul.f32 %v1185, %v1254
  %v1370 = vmul.f32 %v1185, %v1258
  %v1371 = vmul.f32 %v1185, %v1262
  %v1372 = vmul.f32 %v1185, %v1266
  %v1373 = vmul.f32 %v1185, %v1270
  %v1374 = vmul.f32 %v1185, %v1274
  %v1375 = vmul.f32 %v1185, %v1278
  %v1376 = vmul.f32 %v1185, %v1282
  %v1377 = vmul.f32 %v1185, %v1286
  %v1378 = vmul.f32 %v1185, %v1290
  %v1379 = vmul.f32 %v1185, %v1294
  %v1380 = vmul.f32 %v1185, %v1298
  %v1381 = vmul.f32 %v1185, %v1302
  %v1382 = vmul.f32 %v1185, %v1306
  %v1383 = vmul.f32 %v1185, %v1310
  %v1384 = vmul.f32 %v1185, %v1314
  %v1385 = vmul.f32 %v1185, %v1318
  %v1386 = vmul.f32 %v1185, %v1322
  %v1387 = vmul.f32 %v1189, %v1198
  %v1388 = vmul.f32 %v1189, %v1202
  %v1389 = vmul.f32 %v1189, %v1206
  %v1390 = vmul.f32 %v1189, %v1210
  %v1391 = vmul.f32 %v1189, %v1214
  %v1392 = vmul.f32 %v1189, %v1218
  %v1393 = vmul.f32 %v1189, %v1222
  %v1394 = vmul.f32 %v1189, %v1226
  %v1395 = vmul.f32 %v1189, %v1230
  %v1396 = vmul.f32 %v1189, %v1234
  %v1397 = vmul.f32 %v1189, %v1238
  %v1398 = vmul.f32 %v1189, %v1242
  %v1399 = vmul.f32 %v1189, %v1246
  %v1400 = vmul.f32 %v1189, %v1250
  %v1401 = vmul.f32 %v1189, %v1254
  %v1402 = vmul.f32 %v1189, %v1258
  %v1403 = vmul.f32 %v1189, %v1262
  %v1404 = vmul.f32 %v1189, %v1266
  %v1405 = vmul.f32 %v1189, %v1270
  %v1406 = vmul.f32 %v1189, %v1274
  %v1407 = vmul.f32 %v1189, %v1278
  %v1408 = vmul.f32 %v1189, %v1282
  %v1409 = vmul.f32 %v1189, %v1286
  %v1410 = vmul.f32 %v1189, %v1290
  %v1411 = vmul.f32 %v1189, %v1294
  %v1412 = vmul.f32 %v1189, %v1298
  %v1413 = vmul.f32 %v1189, %v1302
  %v1414 = vmul.f32 %v1189, %v1306
  %v1415 = vmul.f32 %v1189, %v1310
  %v1416 = vmul.f32 %v1189, %v1314
  %v1417 = vmul.f32 %v1189, %v1318
  %v1418 = vmul.f32 %v1189, %v1322
  %v1419 = vmul.f32 %v1193, %v1198
  %v1420 = vmul.f32 %v1193, %v1202
  %v1421 = vmul.f32 %v1193, %v1206
  %v1422 = vmul.f32 %v1193, %v1210
  %v1423 = vmul.f32 %v1193, %v1214
  %v1424 = vmul.f32 %v1193, %v1218
  %v1425 = vmul.f32 %v1193, %v1222
  %v1426 = vmul.f32 %v1193, %v1226
  %v1427 = vmul.f32 %v1193, %v1230
  %v1428 = vmul.f32 %v1193, %v1234
  %v1429 = vmul.f32 %v1193, %v1238
  %v1430 = vmul.f32 %v1193, %v1242
  %v1431 = vmul.f32 %v1193, %v1246
  %v1432 = vmul.f32 %v1193, %v1250
  %v1433 = vmul.f32 %v1193, %v1254
  %v1434 = vmul.f32 %v1193, %v1258
  %v1435 = vmul.f32 %v1193, %v1262
  %v1436 = vmul.f32 %v1193, %v1266
  %v1437 = vmul.f32 %v1193, %v1270
  %v1438 = vmul.f32 %v1193, %v1274
  %v1439 = vmul.f32 %v1193, %v1278
  %v1440 = vmul.f32 %v1193, %v1282
  %v1441 = vmul.f32 %v1193, %v1286
  %v1442 = vmul.f32 %v1193, %v1290
  %v1443 = vmul.f32 %v1193, %v1294
  %v1444 = vmul.f32 %v1193, %v1298
  %v1445 = vmul.f32 %v1193, %v1302
  %v1446 = vmul.f32 %v1193, %v1306
  %v1447 = vmul.f32 %v1193, %v1310
  %v1448 = vmul.f32 %v1193, %v1314
  %v1449 = vmul.f32 %v1193, %v1318
  %v1450 = vmul.f32 %v1193, %v1322
  %v1451 = vadd.f32 %v954, %v1323
  %v1452 = vadd.f32 %v955, %v1324
  %v1453 = vadd.f32 %v956, %v1325
  %v1454 = vadd.f32 %v957, %v1326
  %v1455 = vadd.f32 %v958, %v1327
  %v1456 = vadd.f32 %v959, %v1328
  %v1457 = vadd.f32 %v960, %v1329
  %v1458 = vadd.f32 %v961, %v1330
  %v1459 = vadd.f32 %v962, %v1331
  %v1460 = vadd.f32 %v963, %v1332
  %v1461 = vadd.f32 %v964, %v1333
  %v1462 = vadd.f32 %v965, %v1334
  %v1463 = vadd.f32 %v966, %v1335
  %v1464 = vadd.f32 %v967, %v1336
  %v1465 = vadd.f32 %v968, %v1337
  %v1466 = vadd.f32 %v969, %v1338
  %v1467 = vadd.f32 %v970, %v1339
  %v1468 = vadd.f32 %v971, %v1340
  %v1469 = vadd.f32 %v972, %v1341
  %v1470 = vadd.f32 %v973, %v1342
  %v1471 = vadd.f32 %v974, %v1343
  %v1472 = vadd.f32 %v975, %v1344
  %v1473 = vadd.f32 %v976, %v1345
  %v1474 = vadd.f32 %v977, %v1346
  %v1475 = vadd.f32 %v978, %v1347
  %v1476 = vadd.f32 %v979, %v1348
  %v1477 = vadd.f32 %v980, %v1349
  %v1478 = vadd.f32 %v981, %v1350
  %v1479 = vadd.f32 %v982, %v1351
  %v1480 = vadd.f32 %v983, %v1352
  %v1481 = vadd.f32 %v984, %v1353
  %v1482 = vadd.f32 %v985, %v1354
  %v1483 = vadd.f32 %v986, %v1355
  %v1484 = vadd.f32 %v987, %v1356
  %v1485 = vadd.f32 %v988, %v1357
  %v1486 = vadd.f32 %v989, %v1358
  %v1487 = vadd.f32 %v990, %v1359
  %v1488 = vadd.f32 %v991, %v1360
  %v1489 = vadd.f32 %v992, %v1361
  %v1490 = vadd.f32 %v993, %v1362
  %v1491 = vadd.f32 %v994, %v1363
  %v1492 = vadd.f32 %v995, %v1364
  %v1493 = vadd.f32 %v996, %v1365
  %v1494 = vadd.f32 %v997, %v1366
  %v1495 = vadd.f32 %v998, %v1367
  %v1496 = vadd.f32 %v999, %v1368
  %v1497 = vadd.f32 %v1000, %v1369
  %v1498 = vadd.f32 %v1001, %v1370
  %v1499 = vadd.f32 %v1002, %v1371
  %v1500 = vadd.f32 %v1003, %v1372
  %v1501 = vadd.f32 %v1004, %v1373
  %v1502 = vadd.f32 %v1005, %v1374
  %v1503 = vadd.f32 %v1006, %v1375
  %v1504 = vadd.f32 %v1007, %v1376
  %v1505 = vadd.f32 %v1008, %v1377
  %v1506 = vadd.f32 %v1009, %v1378
  %v1507 = vadd.f32 %v1010, %v1379
  %v1508 = vadd.f32 %v1011, %v1380
  %v1509 = vadd.f32 %v1012, %v1381
  %v1510 = vadd.f32 %v1013, %v1382
  %v1511 = vadd.f32 %v1014, %v1383
  %v1512 = vadd.f32 %v1015, %v1384
  %v1513 = vadd.f32 %v1016, %v1385
  %v1514 = vadd.f32 %v1017, %v1386
  %v1515 = vadd.f32 %v1018, %v1387
  %v1516 = vadd.f32 %v1019, %v1388
  %v1517 = vadd.f32 %v1020, %v1389
  %v1518 = vadd.f32 %v1021, %v1390
  %v1519 = vadd.f32 %v1022, %v1391
  %v1520 = vadd.f32 %v1023, %v1392
  %v1521 = vadd.f32 %v1024, %v1393
  %v1522 = vadd.f32 %v1025, %v1394
  %v1523 = vadd.f32 %v1026, %v1395
  %v1524 = vadd.f32 %v1027, %v1396
  %v1525 = vadd.f32 %v1028, %v1397
  %v1526 = vadd.f32 %v1029, %v1398
  %v1527 = vadd.f32 %v1030, %v1399
  %v1528 = vadd.f32 %v1031, %v1400
  %v1529 = vadd.f32 %v1032, %v1401
  %v1530 = vadd.f32 %v1033, %v1402
  %v1531 = vadd.f32 %v1034, %v1403
  %v1532 = vadd.f32 %v1035, %v1404
  %v1533 = vadd.f32 %v1036, %v1405
  %v1534 = vadd.f32 %v1037, %v1406
  %v1535 = vadd.f32 %v1038, %v1407
  %v1536 = vadd.f32 %v1039, %v1408
  %v1537 = vadd.f32 %v1040, %v1409
  %v1538 = vadd.f32 %v1041, %v1410
  %v1539 = vadd.f32 %v1042, %v1411
  %v1540 = vadd.f32 %v1043, %v1412
  %v1541 = vadd.f32 %v1044, %v1413
  %v1542 = vadd.f32 %v1045, %v1414
  %v1543 = vadd.f32 %v1046, %v1415
  %v1544 = vadd.f32 %v1047, %v1416
  %v1545 = vadd.f32 %v1048, %v1417
  %v1546 = vadd.f32 %v1049, %v1418
  %v1547 = vadd.f32 %v1050, %v1419
  %v1548 = vadd.f32 %v1051, %v1420
  %v1549 = vadd.f32 %v1052, %v1421
  %v1550 = vadd.f32 %v1053, %v1422
  %v1551 = vadd.f32 %v1054, %v1423
  %v1552 = vadd.f32 %v1055, %v1424
  %v1553 = vadd.f32 %v1056, %v1425
  %v1554 = vadd.f32 %v1057, %v1426
  %v1555 = vadd.f32 %v1058, %v1427
  %v1556 = vadd.f32 %v1059, %v1428
  %v1557 = vadd.f32 %v1060, %v1429
  %v1558 = vadd.f32 %v1061, %v1430
  %v1559 = vadd.f32 %v1062, %v1431
  %v1560 = vadd.f32 %v1063, %v1432
  %v1561 = vadd.f32 %v1064, %v1433
  %v1562 = vadd.f32 %v1065, %v1434
  %v1563 = vadd.f32 %v1066, %v1435
  %v1564 = vadd.f32 %v1067, %v1436
  %v1565 = vadd.f32 %v1068, %v1437
  %v1566 = vadd.f32 %v1069, %v1438
  %v1567 = vadd.f32 %v1070, %v1439
  %v1568 = vadd.f32 %v1071, %v1440
  %v1569 = vadd.f32 %v1072, %v1441
  %v1570 = vadd.f32 %v1073, %v1442
  %v1571 = vadd.f32 %v1074, %v1443
  %v1572 = vadd.f32 %v1075, %v1444
  %v1573 = vadd.f32 %v1076, %v1445
  %v1574 = vadd.f32 %v1077, %v1446
  %v1575 = vadd.f32 %v1078, %v1447
  %v1576 = vadd.f32 %v1079, %v1448
  %v1577 = vadd.f32 %v1080, %v1449
  %v1578 = vadd.f32 %v1081, %v1450
  %1579 = vset.pattern.permute.xlu0 3
  %1580 = vperm.xlu0 %1579, %v38
  %v1581 = vpop.permute.xlu0 %1580
  %1583 = vset.pattern.permute.xlu0 3
  %1584 = vperm.xlu0 %1583, %v39
  %v1585 = vpop.permute.xlu0 %1584
  %1587 = vset.pattern.permute.xlu0 3
  %1588 = vperm.xlu0 %1587, %v40
  %v1589 = vpop.permute.xlu0 %1588
  %1591 = vset.pattern.permute.xlu0 3
  %1592 = vperm.xlu0 %1591, %v41
  %v1593 = vpop.permute.xlu0 %1592
  %v1595 = vmul.f32 %v1581, %v53
  %v1596 = vmul.f32 %v1581, %v57
  %v1597 = vmul.f32 %v1581, %v61
  %v1598 = vmul.f32 %v1581, %v65
  %v1599 = vmul.f32 %v1581, %v69
  %v1600 = vmul.f32 %v1581, %v73
  %v1601 = vmul.f32 %v1581, %v77
  %v1602 = vmul.f32 %v1581, %v81
  %v1603 = vmul.f32 %v1581, %v85
  %v1604 = vmul.f32 %v1581, %v89
  %v1605 = vmul.f32 %v1581, %v93
  %v1606 = vmul.f32 %v1581, %v97
  %v1607 = vmul.f32 %v1581, %v101
  %v1608 = vmul.f32 %v1581, %v105
  %v1609 = vmul.f32 %v1581, %v109
  %v1610 = vmul.f32 %v1581, %v113
  %v1611 = vmul.f32 %v1581, %v117
  %v1612 = vmul.f32 %v1581, %v121
  %v1613 = vmul.f32 %v1581, %v125
  %v1614 = vmul.f32 %v1581, %v129
  %v1615 = vmul.f32 %v1581, %v133
  %v1616 = vmul.f32 %v1581, %v137
  %v1617 = vmul.f32 %v1581, %v141
  %v1618 = vmul.f32 %v1581, %v145
  %v1619 = vmul.f32 %v1581, %v149
  %v1620 = vmul.f32 %v1581, %v153
  %v1621 = vmul.f32 %v1581, %v157
  %v1622 = vmul.f32 %v1581, %v161
  %v1623 = vmul.f32 %v1581, %v165
  %v1624 = vmul.f32 %v1581, %v169
  %v1625 = vmul.f32 %v1581, %v173
  %v1626 = vmul.f32 %v1581, %v177
  %v1627 = vmul.f32 %v1585, %v53
  %v1628 = vmul.f32 %v1585, %v57
  %v1629 = vmul.f32 %v1585, %v61
  %v1630 = vmul.f32 %v1585, %v65
  %v1631 = vmul.f32 %v1585, %v69
  %v1632 = vmul.f32 %v1585, %v73
  %v1633 = vmul.f32 %v1585, %v77
  %v1634 = vmul.f32 %v1585, %v81
  %v1635 = vmul.f32 %v1585, %v85
  %v1636 = vmul.f32 %v1585, %v89
  %v1637 = vmul.f32 %v1585, %v93
  %v1638 = vmul.f32 %v1585, %v97
  %v1639 = vmul.f32 %v1585, %v101
  %v1640 = vmul.f32 %v1585, %v105
  %v1641 = vmul.f32 %v1585, %v109
  %v1642 = vmul.f32 %v1585, %v113
  %v1643 = vmul.f32 %v1585, %v117
  %v1644 = vmul.f32 %v1585, %v121
  %v1645 = vmul.f32 %v1585, %v125
  %v1646 = vmul.f32 %v1585, %v129
  %v1647 = vmul.f32 %v1585, %v133
  %v1648 = vmul.f32 %v1585, %v137
  %v1649 = vmul.f32 %v1585, %v141
  %v1650 = vmul.f32 %v1585, %v145
  %v1651 = vmul.f32 %v1585, %v149
  %v1652 = vmul.f32 %v1585, %v153
  %v1653 = vmul.f32 %v1585, %v157
  %v1654 = vmul.f32 %v1585, %v161
  %v1655 = vmul.f32 %v1585, %v165
  %v1656 = vmul.f32 %v1585, %v169
  %v1657 = vmul.f32 %v1585, %v173
  %v1658 = vmul.f32 %v1585, %v177
  %v1659 = vmul.f32 %v1589, %v53
  %v1660 = vmul.f32 %v1589, %v57
  %v1661 = vmul.f32 %v1589, %v61
  %v1662 = vmul.f32 %v1589, %v65
  %v1663 = vmul.f32 %v1589, %v69
  %v1664 = vmul.f32 %v1589, %v73
  %v1665 = vmul.f32 %v1589, %v77
  %v1666 = vmul.f32 %v1589, %v81
  %v1667 = vmul.f32 %v1589, %v85
  %v1668 = vmul.f32 %v1589, %v89
  %v1669 = vmul.f32 %v1589, %v93
  %v1670 = vmul.f32 %v1589, %v97
  %v1671 = vmul.f32 %v1589, %v101
  %v1672 = vmul.f32 %v1589, %v105
  %v1673 = vmul.f32 %v1589, %v109
  %v1674 = vmul.f32 %v1589, %v113
  %v1675 = vmul.f32 %v1589, %v117
  %v1676 = vmul.f32 %v1589, %v121
  %v1677 = vmul.f32 %v1589, %v125
  %v1678 = vmul.f32 %v1589, %v129
  %v1679 = vmul.f32 %v1589, %v133
  %v1680 = vmul.f32 %v1589, %v137
  %v1681 = vmul.f32 %v1589, %v141
  %v1682 = vmul.f32 %v1589, %v145
  %v1683 = vmul.f32 %v1589, %v149
  %v1684 = vmul.f32 %v1589, %v153
  %v1685 = vmul.f32 %v1589, %v157
  %v1686 = vmul.f32 %v1589, %v161
  %v1687 = vmul.f32 %v1589, %v165
  %v1688 = vmul.f32 %v1589, %v169
  %v1689 = vmul.f32 %v1589, %v173
  %v1690 = vmul.f32 %v1589, %v177
  %v1691 = vmul.f32 %v1593, %v53
  %v1692 = vmul.f32 %v1593, %v57
  %v1693 = vmul.f32 %v1593, %v61
  %v1694 = vmul.f32 %v1593, %v65
  %v1695 = vmul.f32 %v1593, %v69
  %v1696 = vmul.f32 %v1593, %v73
  %v1697 = vmul.f32 %v1593, %v77
  %v1698 = vmul.f32 %v1593, %v81
  %v1699 = vmul.f32 %v1593, %v85
  %v1700 = vmul.f32 %v1593, %v89
  %v1701 = vmul.f32 %v1593, %v93
  %v1702 = vmul.f32 %v1593, %v97
  %v1703 = vmul.f32 %v1593, %v101
  %v1704 = vmul.f32 %v1593, %v105
  %v1705 = vmul.f32 %v1593, %v109
  %v1706 = vmul.f32 %v1593, %v113
  %v1707 = vmul.f32 %v1593, %v117
  %v1708 = vmul.f32 %v1593, %v121
  %v1709 = vmul.f32 %v1593, %v125
  %v1710 = vmul.f32 %v1593, %v129
  %v1711 = vmul.f32 %v1593, %v133
  %v1712 = vmul.f32 %v1593, %v137
  %v1713 = vmul.f32 %v1593, %v141
  %v1714 = vmul.f32 %v1593, %v145
  %v1715 = vmul.f32 %v1593, %v149
  %v1716 = vmul.f32 %v1593, %v153
  %v1717 = vmul.f32 %v1593, %v157
  %v1718 = vmul.f32 %v1593, %v161
  %v1719 = vmul.f32 %v1593, %v165
  %v1720 = vmul.f32 %v1593, %v169
  %v1721 = vmul.f32 %v1593, %v173
  %v1722 = vmul.f32 %v1593, %v177
  %v1723 = vadd.f32 %v1451, %v1595
  %v1724 = vadd.f32 %v1452, %v1596
  %v1725 = vadd.f32 %v1453, %v1597
  %v1726 = vadd.f32 %v1454, %v1598
  %v1727 = vadd.f32 %v1455, %v1599
  %v1728 = vadd.f32 %v1456, %v1600
  %v1729 = vadd.f32 %v1457, %v1601
  %v1730 = vadd.f32 %v1458, %v1602
  %v1731 = vadd.f32 %v1459, %v1603
  %v1732 = vadd.f32 %v1460, %v1604
  %v1733 = vadd.f32 %v1461, %v1605
  %v1734 = vadd.f32 %v1462, %v1606
  %v1735 = vadd.f32 %v1463, %v1607
  %v1736 = vadd.f32 %v1464, %v1608
  %v1737 = vadd.f32 %v1465, %v1609
  %v1738 = vadd.f32 %v1466, %v1610
  %v1739 = vadd.f32 %v1467, %v1611
  %v1740 = vadd.f32 %v1468, %v1612
  %v1741 = vadd.f32 %v1469, %v1613
  %v1742 = vadd.f32 %v1470, %v1614
  %v1743 = vadd.f32 %v1471, %v1615
  %v1744 = vadd.f32 %v1472, %v1616
  %v1745 = vadd.f32 %v1473, %v1617
  %v1746 = vadd.f32 %v1474, %v1618
  %v1747 = vadd.f32 %v1475, %v1619
  %v1748 = vadd.f32 %v1476, %v1620
  %v1749 = vadd.f32 %v1477, %v1621
  %v1750 = vadd.f32 %v1478, %v1622
  %v1751 = vadd.f32 %v1479, %v1623
  %v1752 = vadd.f32 %v1480, %v1624
  %v1753 = vadd.f32 %v1481, %v1625
  %v1754 = vadd.f32 %v1482, %v1626
  %v1755 = vadd.f32 %v1483, %v1627
  %v1756 = vadd.f32 %v1484, %v1628
  %v1757 = vadd.f32 %v1485, %v1629
  %v1758 = vadd.f32 %v1486, %v1630
  %v1759 = vadd.f32 %v1487, %v1631
  %v1760 = vadd.f32 %v1488, %v1632
  %v1761 = vadd.f32 %v1489, %v1633
  %v1762 = vadd.f32 %v1490, %v1634
  %v1763 = vadd.f32 %v1491, %v1635
  %v1764 = vadd.f32 %v1492, %v1636
  %v1765 = vadd.f32 %v1493, %v1637
  %v1766 = vadd.f32 %v1494, %v1638
  %v1767 = vadd.f32 %v1495, %v1639
  %v1768 = vadd.f32 %v1496, %v1640
  %v1769 = vadd.f32 %v1497, %v1641
  %v1770 = vadd.f32 %v1498, %v1642
  %v1771 = vadd.f32 %v1499, %v1643
  %v1772 = vadd.f32 %v1500, %v1644
  %v1773 = vadd.f32 %v1501, %v1645
  %v1774 = vadd.f32 %v1502, %v1646
  %v1775 = vadd.f32 %v1503, %v1647
  %v1776 = vadd.f32 %v1504, %v1648
  %v1777 = vadd.f32 %v1505, %v1649
  %v1778 = vadd.f32 %v1506, %v1650
  %v1779 = vadd.f32 %v1507, %v1651
  %v1780 = vadd.f32 %v1508, %v1652
  %v1781 = vadd.f32 %v1509, %v1653
  %v1782 = vadd.f32 %v1510, %v1654
  %v1783 = vadd.f32 %v1511, %v1655
  %v1784 = vadd.f32 %v1512, %v1656
  %v1785 = vadd.f32 %v1513, %v1657
  %v1786 = vadd.f32 %v1514, %v1658
  %v1787 = vadd.f32 %v1515, %v1659
  %v1788 = vadd.f32 %v1516, %v1660
  %v1789 = vadd.f32 %v1517, %v1661
  %v1790 = vadd.f32 %v1518, %v1662
  %v1791 = vadd.f32 %v1519, %v1663
  %v1792 = vadd.f32 %v1520, %v1664
  %v1793 = vadd.f32 %v1521, %v1665
  %v1794 = vadd.f32 %v1522, %v1666
  %v1795 = vadd.f32 %v1523, %v1667
  %v1796 = vadd.f32 %v1524, %v1668
  %v1797 = vadd.f32 %v1525, %v1669
  %v1798 = vadd.f32 %v1526, %v1670
  %v1799 = vadd.f32 %v1527, %v1671
  %v1800 = vadd.f32 %v1528, %v1672
  %v1801 = vadd.f32 %v1529, %v1673
  %v1802 = vadd.f32 %v1530, %v1674
  %v1803 = vadd.f32 %v1531, %v1675
  %v1804 = vadd.f32 %v1532, %v1676
  %v1805 = vadd.f32 %v1533, %v1677
  %v1806 = vadd.f32 %v1534, %v1678
  %v1807 = vadd.f32 %v1535, %v1679
  %v1808 = vadd.f32 %v1536, %v1680
  %v1809 = vadd.f32 %v1537, %v1681
  %v1810 = vadd.f32 %v1538, %v1682
  %v1811 = vadd.f32 %v1539, %v1683
  %v1812 = vadd.f32 %v1540, %v1684
  %v1813 = vadd.f32 %v1541, %v1685
  %v1814 = vadd.f32 %v1542, %v1686
  %v1815 = vadd.f32 %v1543, %v1687
  %v1816 = vadd.f32 %v1544, %v1688
  %v1817 = vadd.f32 %v1545, %v1689
  %v1818 = vadd.f32 %v1546, %v1690
  %v1819 = vadd.f32 %v1547, %v1691
  %v1820 = vadd.f32 %v1548, %v1692
  %v1821 = vadd.f32 %v1549, %v1693
  %v1822 = vadd.f32 %v1550, %v1694
  %v1823 = vadd.f32 %v1551, %v1695
  %v1824 = vadd.f32 %v1552, %v1696
  %v1825 = vadd.f32 %v1553, %v1697
  %v1826 = vadd.f32 %v1554, %v1698
  %v1827 = vadd.f32 %v1555, %v1699
  %v1828 = vadd.f32 %v1556, %v1700
  %v1829 = vadd.f32 %v1557, %v1701
  %v1830 = vadd.f32 %v1558, %v1702
  %v1831 = vadd.f32 %v1559, %v1703
  %v1832 = vadd.f32 %v1560, %v1704
  %v1833 = vadd.f32 %v1561, %v1705
  %v1834 = vadd.f32 %v1562, %v1706
  %v1835 = vadd.f32 %v1563, %v1707
  %v1836 = vadd.f32 %v1564, %v1708
  %v1837 = vadd.f32 %v1565, %v1709
  %v1838 = vadd.f32 %v1566, %v1710
  %v1839 = vadd.f32 %v1567, %v1711
  %v1840 = vadd.f32 %v1568, %v1712
  %v1841 = vadd.f32 %v1569, %v1713
  %v1842 = vadd.f32 %v1570, %v1714
  %v1843 = vadd.f32 %v1571, %v1715
  %v1844 = vadd.f32 %v1572, %v1716
  %v1845 = vadd.f32 %v1573, %v1717
  %v1846 = vadd.f32 %v1574, %v1718
  %v1847 = vadd.f32 %v1575, %v1719
  %v1848 = vadd.f32 %v1576, %v1720
  %v1849 = vadd.f32 %v1577, %v1721
  %v1850 = vadd.f32 %v1578, %v1722
  %1852 = vset.pattern.permute.xlu0 0
  %1853 = vperm.xlu0 %1852, %v42
  %v1854 = vpop.permute.xlu0 %1853
  %1857 = vset.pattern.permute.xlu0 0
  %1858 = vperm.xlu0 %1857, %v43
  %v1859 = vpop.permute.xlu0 %1858
  %1862 = vset.pattern.permute.xlu0 0
  %1863 = vperm.xlu0 %1862, %v44
  %v1864 = vpop.permute.xlu0 %1863
  %1867 = vset.pattern.permute.xlu0 0
  %1868 = vperm.xlu0 %1867, %v45
  %v1869 = vpop.permute.xlu0 %1868
  %v1871 = vadd.f32 %v1723, %v1854
  %v1872 = vadd.f32 %v1724, %v1854
  %v1873 = vadd.f32 %v1725, %v1854
  %v1874 = vadd.f32 %v1726, %v1854
  %v1875 = vadd.f32 %v1727, %v1854
  %v1876 = vadd.f32 %v1728, %v1854
  %v1877 = vadd.f32 %v1729, %v1854
  %v1878 = vadd.f32 %v1730, %v1854
  %v1879 = vadd.f32 %v1731, %v1854
  %v1880 = vadd.f32 %v1732, %v1854
  %v1881 = vadd.f32 %v1733, %v1854
  %v1882 = vadd.f32 %v1734, %v1854
  %v1883 = vadd.f32 %v1735, %v1854
  %v1884 = vadd.f32 %v1736, %v1854
  %v1885 = vadd.f32 %v1737, %v1854
  %v1886 = vadd.f32 %v1738, %v1854
  %v1887 = vadd.f32 %v1739, %v1854
  %v1888 = vadd.f32 %v1740, %v1854
  %v1889 = vadd.f32 %v1741, %v1854
  %v1890 = vadd.f32 %v1742, %v1854
  %v1891 = vadd.f32 %v1743, %v1854
  %v1892 = vadd.f32 %v1744, %v1854
  %v1893 = vadd.f32 %v1745, %v1854
  %v1894 = vadd.f32 %v1746, %v1854
  %v1895 = vadd.f32 %v1747, %v1854
  %v1896 = vadd.f32 %v1748, %v1854
  %v1897 = vadd.f32 %v1749, %v1854
  %v1898 = vadd.f32 %v1750, %v1854
  %v1899 = vadd.f32 %v1751, %v1854
  %v1900 = vadd.f32 %v1752, %v1854
  %v1901 = vadd.f32 %v1753, %v1854
  %v1902 = vadd.f32 %v1754, %v1854
  %v1903 = vadd.f32 %v1755, %v1859
  %v1904 = vadd.f32 %v1756, %v1859
  %v1905 = vadd.f32 %v1757, %v1859
  %v1906 = vadd.f32 %v1758, %v1859
  %v1907 = vadd.f32 %v1759, %v1859
  %v1908 = vadd.f32 %v1760, %v1859
  %v1909 = vadd.f32 %v1761, %v1859
  %v1910 = vadd.f32 %v1762, %v1859
  %v1911 = vadd.f32 %v1763, %v1859
  %v1912 = vadd.f32 %v1764, %v1859
  %v1913 = vadd.f32 %v1765, %v1859
  %v1914 = vadd.f32 %v1766, %v1859
  %v1915 = vadd.f32 %v1767, %v1859
  %v1916 = vadd.f32 %v1768, %v1859
  %v1917 = vadd.f32 %v1769, %v1859
  %v1918 = vadd.f32 %v1770, %v1859
  %v1919 = vadd.f32 %v1771, %v1859
  %v1920 = vadd.f32 %v1772, %v1859
  %v1921 = vadd.f32 %v1773, %v1859
  %v1922 = vadd.f32 %v1774, %v1859
  %v1923 = vadd.f32 %v1775, %v1859
  %v1924 = vadd.f32 %v1776, %v1859
  %v1925 = vadd.f32 %v1777, %v1859
  %v1926 = vadd.f32 %v1778, %v1859
  %v1927 = vadd.f32 %v1779, %v1859
  %v1928 = vadd.f32 %v1780, %v1859
  %v1929 = vadd.f32 %v1781, %v1859
  %v1930 = vadd.f32 %v1782, %v1859
  %v1931 = vadd.f32 %v1783, %v1859
  %v1932 = vadd.f32 %v1784, %v1859
  %v1933 = vadd.f32 %v1785, %v1859
  %v1934 = vadd.f32 %v1786, %v1859
  %v1935 = vadd.f32 %v1787, %v1864
  %v1936 = vadd.f32 %v1788, %v1864
  %v1937 = vadd.f32 %v1789, %v1864
  %v1938 = vadd.f32 %v1790, %v1864
  %v1939 = vadd.f32 %v1791, %v1864
  %v1940 = vadd.f32 %v1792, %v1864
  %v1941 = vadd.f32 %v1793, %v1864
  %v1942 = vadd.f32 %v1794, %v1864
  %v1943 = vadd.f32 %v1795, %v1864
  %v1944 = vadd.f32 %v1796, %v1864
  %v1945 = vadd.f32 %v1797, %v1864
  %v1946 = vadd.f32 %v1798, %v1864
  %v1947 = vadd.f32 %v1799, %v1864
  %v1948 = vadd.f32 %v1800, %v1864
  %v1949 = vadd.f32 %v1801, %v1864
  %v1950 = vadd.f32 %v1802, %v1864
  %v1951 = vadd.f32 %v1803, %v1864
  %v1952 = vadd.f32 %v1804, %v1864
  %v1953 = vadd.f32 %v1805, %v1864
  %v1954 = vadd.f32 %v1806, %v1864
  %v1955 = vadd.f32 %v1807, %v1864
  %v1956 = vadd.f32 %v1808, %v1864
  %v1957 = vadd.f32 %v1809, %v1864
  %v1958 = vadd.f32 %v1810, %v1864
  %v1959 = vadd.f32 %v1811, %v1864
  %v1960 = vadd.f32 %v1812, %v1864
  %v1961 = vadd.f32 %v1813, %v1864
  %v1962 = vadd.f32 %v1814, %v1864
  %v1963 = vadd.f32 %v1815, %v1864
  %v1964 = vadd.f32 %v1816, %v1864
  %v1965 = vadd.f32 %v1817, %v1864
  %v1966 = vadd.f32 %v1818, %v1864
  %v1967 = vadd.f32 %v1819, %v1869
  %v1968 = vadd.f32 %v1820, %v1869
  %v1969 = vadd.f32 %v1821, %v1869
  %v1970 = vadd.f32 %v1822, %v1869
  %v1971 = vadd.f32 %v1823, %v1869
  %v1972 = vadd.f32 %v1824, %v1869
  %v1973 = vadd.f32 %v1825, %v1869
  %v1974 = vadd.f32 %v1826, %v1869
  %v1975 = vadd.f32 %v1827, %v1869
  %v1976 = vadd.f32 %v1828, %v1869
  %v1977 = vadd.f32 %v1829, %v1869
  %v1978 = vadd.f32 %v1830, %v1869
  %v1979 = vadd.f32 %v1831, %v1869
  %v1980 = vadd.f32 %v1832, %v1869
  %v1981 = vadd.f32 %v1833, %v1869
  %v1982 = vadd.f32 %v1834, %v1869
  %v1983 = vadd.f32 %v1835, %v1869
  %v1984 = vadd.f32 %v1836, %v1869
  %v1985 = vadd.f32 %v1837, %v1869
  %v1986 = vadd.f32 %v1838, %v1869
  %v1987 = vadd.f32 %v1839, %v1869
  %v1988 = vadd.f32 %v1840, %v1869
  %v1989 = vadd.f32 %v1841, %v1869
  %v1990 = vadd.f32 %v1842, %v1869
  %v1991 = vadd.f32 %v1843, %v1869
  %v1992 = vadd.f32 %v1844, %v1869
  %v1993 = vadd.f32 %v1845, %v1869
  %v1994 = vadd.f32 %v1846, %v1869
  %v1995 = vadd.f32 %v1847, %v1869
  %v1996 = vadd.f32 %v1848, %v1869
  %v1997 = vadd.f32 %v1849, %v1869
  %v1998 = vadd.f32 %v1850, %v1869
  %v1999 = vmul.f32 %v1871, 0.1
  %v2000 = vmul.f32 %v1872, 0.1
  %v2001 = vmul.f32 %v1873, 0.1
  %v2002 = vmul.f32 %v1874, 0.1
  %v2003 = vmul.f32 %v1875, 0.1
  %v2004 = vmul.f32 %v1876, 0.1
  %v2005 = vmul.f32 %v1877, 0.1
  %v2006 = vmul.f32 %v1878, 0.1
  %v2007 = vmul.f32 %v1879, 0.1
  %v2008 = vmul.f32 %v1880, 0.1
  %v2009 = vmul.f32 %v1881, 0.1
  %v2010 = vmul.f32 %v1882, 0.1
  %v2011 = vmul.f32 %v1883, 0.1
  %v2012 = vmul.f32 %v1884, 0.1
  %v2013 = vmul.f32 %v1885, 0.1
  %v2014 = vmul.f32 %v1886, 0.1
  %v2015 = vmul.f32 %v1887, 0.1
  %v2016 = vmul.f32 %v1888, 0.1
  %v2017 = vmul.f32 %v1889, 0.1
  %v2018 = vmul.f32 %v1890, 0.1
  %v2019 = vmul.f32 %v1891, 0.1
  %v2020 = vmul.f32 %v1892, 0.1
  %v2021 = vmul.f32 %v1893, 0.1
  %v2022 = vmul.f32 %v1894, 0.1
  %v2023 = vmul.f32 %v1895, 0.1
  %v2024 = vmul.f32 %v1896, 0.1
  %v2025 = vmul.f32 %v1897, 0.1
  %v2026 = vmul.f32 %v1898, 0.1
  %v2027 = vmul.f32 %v1899, 0.1
  %v2028 = vmul.f32 %v1900, 0.1
  %v2029 = vmul.f32 %v1901, 0.1
  %v2030 = vmul.f32 %v1902, 0.1
  %v2031 = vmul.f32 %v1903, 0.1
  %v2032 = vmul.f32 %v1904, 0.1
  %v2033 = vmul.f32 %v1905, 0.1
  %v2034 = vmul.f32 %v1906, 0.1
  %v2035 = vmul.f32 %v1907, 0.1
  %v2036 = vmul.f32 %v1908, 0.1
  %v2037 = vmul.f32 %v1909, 0.1
  %v2038 = vmul.f32 %v1910, 0.1
  %v2039 = vmul.f32 %v1911, 0.1
  %v2040 = vmul.f32 %v1912, 0.1
  %v2041 = vmul.f32 %v1913, 0.1
  %v2042 = vmul.f32 %v1914, 0.1
  %v2043 = vmul.f32 %v1915, 0.1
  %v2044 = vmul.f32 %v1916, 0.1
  %v2045 = vmul.f32 %v1917, 0.1
  %v2046 = vmul.f32 %v1918, 0.1
  %v2047 = vmul.f32 %v1919, 0.1
  %v2048 = vmul.f32 %v1920, 0.1
  %v2049 = vmul.f32 %v1921, 0.1
  %v2050 = vmul.f32 %v1922, 0.1
  %v2051 = vmul.f32 %v1923, 0.1
  %v2052 = vmul.f32 %v1924, 0.1
  %v2053 = vmul.f32 %v1925, 0.1
  %v2054 = vmul.f32 %v1926, 0.1
  %v2055 = vmul.f32 %v1927, 0.1
  %v2056 = vmul.f32 %v1928, 0.1
  %v2057 = vmul.f32 %v1929, 0.1
  %v2058 = vmul.f32 %v1930, 0.1
  %v2059 = vmul.f32 %v1931, 0.1
  %v2060 = vmul.f32 %v1932, 0.1
  %v2061 = vmul.f32 %v1933, 0.1
  %v2062 = vmul.f32 %v1934, 0.1
  %v2063 = vmul.f32 %v1935, 0.1
  %v2064 = vmul.f32 %v1936, 0.1
  %v2065 = vmul.f32 %v1937, 0.1
  %v2066 = vmul.f32 %v1938, 0.1
  %v2067 = vmul.f32 %v1939, 0.1
  %v2068 = vmul.f32 %v1940, 0.1
  %v2069 = vmul.f32 %v1941, 0.1
  %v2070 = vmul.f32 %v1942, 0.1
  %v2071 = vmul.f32 %v1943, 0.1
  %v2072 = vmul.f32 %v1944, 0.1
  %v2073 = vmul.f32 %v1945, 0.1
  %v2074 = vmul.f32 %v1946, 0.1
  %v2075 = vmul.f32 %v1947, 0.1
  %v2076 = vmul.f32 %v1948, 0.1
  %v2077 = vmul.f32 %v1949, 0.1
  %v2078 = vmul.f32 %v1950, 0.1
  %v2079 = vmul.f32 %v1951, 0.1
  %v2080 = vmul.f32 %v1952, 0.1
  %v2081 = vmul.f32 %v1953, 0.1
  %v2082 = vmul.f32 %v1954, 0.1
  %v2083 = vmul.f32 %v1955, 0.1
  %v2084 = vmul.f32 %v1956, 0.1
  %v2085 = vmul.f32 %v1957, 0.1
  %v2086 = vmul.f32 %v1958, 0.1
  %v2087 = vmul.f32 %v1959, 0.1
  %v2088 = vmul.f32 %v1960, 0.1
  %v2089 = vmul.f32 %v1961, 0.1
  %v2090 = vmul.f32 %v1962, 0.1
  %v2091 = vmul.f32 %v1963, 0.1
  %v2092 = vmul.f32 %v1964, 0.1
  %v2093 = vmul.f32 %v1965, 0.1
  %v2094 = vmul.f32 %v1966, 0.1
  %v2095 = vmul.f32 %v1967, 0.1
  %v2096 = vmul.f32 %v1968, 0.1
  %v2097 = vmul.f32 %v1969, 0.1
  %v2098 = vmul.f32 %v1970, 0.1
  %v2099 = vmul.f32 %v1971, 0.1
  %v2100 = vmul.f32 %v1972, 0.1
  %v2101 = vmul.f32 %v1973, 0.1
  %v2102 = vmul.f32 %v1974, 0.1
  %v2103 = vmul.f32 %v1975, 0.1
  %v2104 = vmul.f32 %v1976, 0.1
  %v2105 = vmul.f32 %v1977, 0.1
  %v2106 = vmul.f32 %v1978, 0.1
  %v2107 = vmul.f32 %v1979, 0.1
  %v2108 = vmul.f32 %v1980, 0.1
  %v2109 = vmul.f32 %v1981, 0.1
  %v2110 = vmul.f32 %v1982, 0.1
  %v2111 = vmul.f32 %v1983, 0.1
  %v2112 = vmul.f32 %v1984, 0.1
  %v2113 = vmul.f32 %v1985, 0.1
  %v2114 = vmul.f32 %v1986, 0.1
  %v2115 = vmul.f32 %v1987, 0.1
  %v2116 = vmul.f32 %v1988, 0.1
  %v2117 = vmul.f32 %v1989, 0.1
  %v2118 = vmul.f32 %v1990, 0.1
  %v2119 = vmul.f32 %v1991, 0.1
  %v2120 = vmul.f32 %v1992, 0.1
  %v2121 = vmul.f32 %v1993, 0.1
  %v2122 = vmul.f32 %v1994, 0.1
  %v2123 = vmul.f32 %v1995, 0.1
  %v2124 = vmul.f32 %v1996, 0.1
  %v2125 = vmul.f32 %v1997, 0.1
  %v2126 = vmul.f32 %v1998, 0.1
  %v2127 = vmax.f32 %v1871, %v1999
  %v2128 = vmax.f32 %v1872, %v2000
  %v2129 = vmax.f32 %v1873, %v2001
  %v2130 = vmax.f32 %v1874, %v2002
  %v2131 = vmax.f32 %v1875, %v2003
  %v2132 = vmax.f32 %v1876, %v2004
  %v2133 = vmax.f32 %v1877, %v2005
  %v2134 = vmax.f32 %v1878, %v2006
  %v2135 = vmax.f32 %v1879, %v2007
  %v2136 = vmax.f32 %v1880, %v2008
  %v2137 = vmax.f32 %v1881, %v2009
  %v2138 = vmax.f32 %v1882, %v2010
  %v2139 = vmax.f32 %v1883, %v2011
  %v2140 = vmax.f32 %v1884, %v2012
  %v2141 = vmax.f32 %v1885, %v2013
  %v2142 = vmax.f32 %v1886, %v2014
  %v2143 = vmax.f32 %v1887, %v2015
  %v2144 = vmax.f32 %v1888, %v2016
  %v2145 = vmax.f32 %v1889, %v2017
  %v2146 = vmax.f32 %v1890, %v2018
  %v2147 = vmax.f32 %v1891, %v2019
  %v2148 = vmax.f32 %v1892, %v2020
  %v2149 = vmax.f32 %v1893, %v2021
  %v2150 = vmax.f32 %v1894, %v2022
  %v2151 = vmax.f32 %v1895, %v2023
  %v2152 = vmax.f32 %v1896, %v2024
  %v2153 = vmax.f32 %v1897, %v2025
  %v2154 = vmax.f32 %v1898, %v2026
  %v2155 = vmax.f32 %v1899, %v2027
  %v2156 = vmax.f32 %v1900, %v2028
  %v2157 = vmax.f32 %v1901, %v2029
  %v2158 = vmax.f32 %v1902, %v2030
  %v2159 = vmax.f32 %v1903, %v2031
  %v2160 = vmax.f32 %v1904, %v2032
  %v2161 = vmax.f32 %v1905, %v2033
  %v2162 = vmax.f32 %v1906, %v2034
  %v2163 = vmax.f32 %v1907, %v2035
  %v2164 = vmax.f32 %v1908, %v2036
  %v2165 = vmax.f32 %v1909, %v2037
  %v2166 = vmax.f32 %v1910, %v2038
  %v2167 = vmax.f32 %v1911, %v2039
  %v2168 = vmax.f32 %v1912, %v2040
  %v2169 = vmax.f32 %v1913, %v2041
  %v2170 = vmax.f32 %v1914, %v2042
  %v2171 = vmax.f32 %v1915, %v2043
  %v2172 = vmax.f32 %v1916, %v2044
  %v2173 = vmax.f32 %v1917, %v2045
  %v2174 = vmax.f32 %v1918, %v2046
  %v2175 = vmax.f32 %v1919, %v2047
  %v2176 = vmax.f32 %v1920, %v2048
  %v2177 = vmax.f32 %v1921, %v2049
  %v2178 = vmax.f32 %v1922, %v2050
  %v2179 = vmax.f32 %v1923, %v2051
  %v2180 = vmax.f32 %v1924, %v2052
  %v2181 = vmax.f32 %v1925, %v2053
  %v2182 = vmax.f32 %v1926, %v2054
  %v2183 = vmax.f32 %v1927, %v2055
  %v2184 = vmax.f32 %v1928, %v2056
  %v2185 = vmax.f32 %v1929, %v2057
  %v2186 = vmax.f32 %v1930, %v2058
  %v2187 = vmax.f32 %v1931, %v2059
  %v2188 = vmax.f32 %v1932, %v2060
  %v2189 = vmax.f32 %v1933, %v2061
  %v2190 = vmax.f32 %v1934, %v2062
  %v2191 = vmax.f32 %v1935, %v2063
  %v2192 = vmax.f32 %v1936, %v2064
  %v2193 = vmax.f32 %v1937, %v2065
  %v2194 = vmax.f32 %v1938, %v2066
  %v2195 = vmax.f32 %v1939, %v2067
  %v2196 = vmax.f32 %v1940, %v2068
  %v2197 = vmax.f32 %v1941, %v2069
  %v2198 = vmax.f32 %v1942, %v2070
  %v2199 = vmax.f32 %v1943, %v2071
  %v2200 = vmax.f32 %v1944, %v2072
  %v2201 = vmax.f32 %v1945, %v2073
  %v2202 = vmax.f32 %v1946, %v2074
  %v2203 = vmax.f32 %v1947, %v2075
  %v2204 = vmax.f32 %v1948, %v2076
  %v2205 = vmax.f32 %v1949, %v2077
  %v2206 = vmax.f32 %v1950, %v2078
  %v2207 = vmax.f32 %v1951, %v2079
  %v2208 = vmax.f32 %v1952, %v2080
  %v2209 = vmax.f32 %v1953, %v2081
  %v2210 = vmax.f32 %v1954, %v2082
  %v2211 = vmax.f32 %v1955, %v2083
  %v2212 = vmax.f32 %v1956, %v2084
  %v2213 = vmax.f32 %v1957, %v2085
  %v2214 = vmax.f32 %v1958, %v2086
  %v2215 = vmax.f32 %v1959, %v2087
  %v2216 = vmax.f32 %v1960, %v2088
  %v2217 = vmax.f32 %v1961, %v2089
  %v2218 = vmax.f32 %v1962, %v2090
  %v2219 = vmax.f32 %v1963, %v2091
  %v2220 = vmax.f32 %v1964, %v2092
  %v2221 = vmax.f32 %v1965, %v2093
  %v2222 = vmax.f32 %v1966, %v2094
  %v2223 = vmax.f32 %v1967, %v2095
  %v2224 = vmax.f32 %v1968, %v2096
  %v2225 = vmax.f32 %v1969, %v2097
  %v2226 = vmax.f32 %v1970, %v2098
  %v2227 = vmax.f32 %v1971, %v2099
  %v2228 = vmax.f32 %v1972, %v2100
  %v2229 = vmax.f32 %v1973, %v2101
  %v2230 = vmax.f32 %v1974, %v2102
  %v2231 = vmax.f32 %v1975, %v2103
  %v2232 = vmax.f32 %v1976, %v2104
  %v2233 = vmax.f32 %v1977, %v2105
  %v2234 = vmax.f32 %v1978, %v2106
  %v2235 = vmax.f32 %v1979, %v2107
  %v2236 = vmax.f32 %v1980, %v2108
  %v2237 = vmax.f32 %v1981, %v2109
  %v2238 = vmax.f32 %v1982, %v2110
  %v2239 = vmax.f32 %v1983, %v2111
  %v2240 = vmax.f32 %v1984, %v2112
  %v2241 = vmax.f32 %v1985, %v2113
  %v2242 = vmax.f32 %v1986, %v2114
  %v2243 = vmax.f32 %v1987, %v2115
  %v2244 = vmax.f32 %v1988, %v2116
  %v2245 = vmax.f32 %v1989, %v2117
  %v2246 = vmax.f32 %v1990, %v2118
  %v2247 = vmax.f32 %v1991, %v2119
  %v2248 = vmax.f32 %v1992, %v2120
  %v2249 = vmax.f32 %v1993, %v2121
  %v2250 = vmax.f32 %v1994, %v2122
  %v2251 = vmax.f32 %v1995, %v2123
  %v2252 = vmax.f32 %v1996, %v2124
  %v2253 = vmax.f32 %v1997, %v2125
  %v2254 = vmax.f32 %v1998, %v2126
  %v2255 = vld [vmem:[%s1] sm:$0xff]
  %v2256 = vld [vmem:[%s1 + $0x8] sm:$0xff]
  %v2257 = vld [vmem:[%s1 + $0x10] sm:$0xff]
  %v2258 = vld [vmem:[%s1 + $0x18] sm:$0xff]
  %v2259 = vpack.c.bf16 %v2159, %v2127
  %v2260 = vpack.c.bf16 %v2160, %v2128
  %v2261 = vpack.c.bf16 %v2161, %v2129
  %v2262 = vpack.c.bf16 %v2162, %v2130
  %v2263 = vpack.c.bf16 %v2163, %v2131
  %v2264 = vpack.c.bf16 %v2164, %v2132
  %v2265 = vpack.c.bf16 %v2165, %v2133
  %v2266 = vpack.c.bf16 %v2166, %v2134
  %v2267 = vpack.c.bf16 %v2167, %v2135
  %v2268 = vpack.c.bf16 %v2168, %v2136
  %v2269 = vpack.c.bf16 %v2169, %v2137
  %v2270 = vpack.c.bf16 %v2170, %v2138
  %v2271 = vpack.c.bf16 %v2171, %v2139
  %v2272 = vpack.c.bf16 %v2172, %v2140
  %v2273 = vpack.c.bf16 %v2173, %v2141
  %v2274 = vpack.c.bf16 %v2174, %v2142
  %v2275 = vpack.c.bf16 %v2175, %v2143
  %v2276 = vpack.c.bf16 %v2176, %v2144
  %v2277 = vpack.c.bf16 %v2177, %v2145
  %v2278 = vpack.c.bf16 %v2178, %v2146
  %v2279 = vpack.c.bf16 %v2179, %v2147
  %v2280 = vpack.c.bf16 %v2180, %v2148
  %v2281 = vpack.c.bf16 %v2181, %v2149
  %v2282 = vpack.c.bf16 %v2182, %v2150
  %v2283 = vpack.c.bf16 %v2183, %v2151
  %v2284 = vpack.c.bf16 %v2184, %v2152
  %v2285 = vpack.c.bf16 %v2185, %v2153
  %v2286 = vpack.c.bf16 %v2186, %v2154
  %v2287 = vpack.c.bf16 %v2187, %v2155
  %v2288 = vpack.c.bf16 %v2188, %v2156
  %v2289 = vpack.c.bf16 %v2189, %v2157
  %v2290 = vpack.c.bf16 %v2190, %v2158
  %v2291 = vpack.c.bf16 %v2223, %v2191
  %v2292 = vpack.c.bf16 %v2224, %v2192
  %v2293 = vpack.c.bf16 %v2225, %v2193
  %v2294 = vpack.c.bf16 %v2226, %v2194
  %v2295 = vpack.c.bf16 %v2227, %v2195
  %v2296 = vpack.c.bf16 %v2228, %v2196
  %v2297 = vpack.c.bf16 %v2229, %v2197
  %v2298 = vpack.c.bf16 %v2230, %v2198
  %v2299 = vpack.c.bf16 %v2231, %v2199
  %v2300 = vpack.c.bf16 %v2232, %v2200
  %v2301 = vpack.c.bf16 %v2233, %v2201
  %v2302 = vpack.c.bf16 %v2234, %v2202
  %v2303 = vpack.c.bf16 %v2235, %v2203
  %v2304 = vpack.c.bf16 %v2236, %v2204
  %v2305 = vpack.c.bf16 %v2237, %v2205
  %v2306 = vpack.c.bf16 %v2238, %v2206
  %v2307 = vpack.c.bf16 %v2239, %v2207
  %v2308 = vpack.c.bf16 %v2240, %v2208
  %v2309 = vpack.c.bf16 %v2241, %v2209
  %v2310 = vpack.c.bf16 %v2242, %v2210
  %v2311 = vpack.c.bf16 %v2243, %v2211
  %v2312 = vpack.c.bf16 %v2244, %v2212
  %v2313 = vpack.c.bf16 %v2245, %v2213
  %v2314 = vpack.c.bf16 %v2246, %v2214
  %v2315 = vpack.c.bf16 %v2247, %v2215
  %v2316 = vpack.c.bf16 %v2248, %v2216
  %v2317 = vpack.c.bf16 %v2249, %v2217
  %v2318 = vpack.c.bf16 %v2250, %v2218
  %v2319 = vpack.c.bf16 %v2251, %v2219
  %v2320 = vpack.c.bf16 %v2252, %v2220
  %v2321 = vpack.c.bf16 %v2253, %v2221
  %v2322 = vpack.c.bf16 %v2254, %v2222
  %2323 = vrot.lane.b32.xlu0 %v2127, 127
  %v2324 = vpop.permute.xlu0 %2323
  %2325 = vrot.lane.b32.xlu0 %v2159, 127
  %v2326 = vpop.permute.xlu0 %2325
  %2327 = vrot.lane.b32.xlu0 %v2191, 127
  %v2328 = vpop.permute.xlu0 %2327
  %2329 = vrot.lane.b32.xlu0 %v2223, 127
  %v2330 = vpop.permute.xlu0 %2329
  %2331 = vrot.lane.b32.xlu0 %v2128, 127
  %v2332 = vpop.permute.xlu0 %2331
  %2333 = vrot.lane.b32.xlu0 %v2160, 127
  %v2334 = vpop.permute.xlu0 %2333
  %2335 = vrot.lane.b32.xlu0 %v2192, 127
  %v2336 = vpop.permute.xlu0 %2335
  %2337 = vrot.lane.b32.xlu0 %v2224, 127
  %v2338 = vpop.permute.xlu0 %2337
  %2339 = vrot.lane.b32.xlu0 %v2129, 127
  %v2340 = vpop.permute.xlu0 %2339
  %2341 = vrot.lane.b32.xlu0 %v2161, 127
  %v2342 = vpop.permute.xlu0 %2341
  %2343 = vrot.lane.b32.xlu0 %v2193, 127
  %v2344 = vpop.permute.xlu0 %2343
  %2345 = vrot.lane.b32.xlu0 %v2225, 127
  %v2346 = vpop.permute.xlu0 %2345
  %2347 = vrot.lane.b32.xlu0 %v2130, 127
  %v2348 = vpop.permute.xlu0 %2347
  %2349 = vrot.lane.b32.xlu0 %v2162, 127
  %v2350 = vpop.permute.xlu0 %2349
  %2351 = vrot.lane.b32.xlu0 %v2194, 127
  %v2352 = vpop.permute.xlu0 %2351
  %2353 = vrot.lane.b32.xlu0 %v2226, 127
  %v2354 = vpop.permute.xlu0 %2353
  %2355 = vrot.lane.b32.xlu0 %v2131, 127
  %v2356 = vpop.permute.xlu0 %2355
  %2357 = vrot.lane.b32.xlu0 %v2163, 127
  %v2358 = vpop.permute.xlu0 %2357
  %2359 = vrot.lane.b32.xlu0 %v2195, 127
  %v2360 = vpop.permute.xlu0 %2359
  %2361 = vrot.lane.b32.xlu0 %v2227, 127
  %v2362 = vpop.permute.xlu0 %2361
  %2363 = vrot.lane.b32.xlu0 %v2132, 127
  %v2364 = vpop.permute.xlu0 %2363
  %2365 = vrot.lane.b32.xlu0 %v2164, 127
  %v2366 = vpop.permute.xlu0 %2365
  %2367 = vrot.lane.b32.xlu0 %v2196, 127
  %v2368 = vpop.permute.xlu0 %2367
  %2369 = vrot.lane.b32.xlu0 %v2228, 127
  %v2370 = vpop.permute.xlu0 %2369
  %2371 = vrot.lane.b32.xlu0 %v2133, 127
  %v2372 = vpop.permute.xlu0 %2371
  %2373 = vrot.lane.b32.xlu0 %v2165, 127
  %v2374 = vpop.permute.xlu0 %2373
  %2375 = vrot.lane.b32.xlu0 %v2197, 127
  %v2376 = vpop.permute.xlu0 %2375
  %2377 = vrot.lane.b32.xlu0 %v2229, 127
  %v2378 = vpop.permute.xlu0 %2377
  %2379 = vrot.lane.b32.xlu0 %v2134, 127
  %v2380 = vpop.permute.xlu0 %2379
  %2381 = vrot.lane.b32.xlu0 %v2166, 127
  %v2382 = vpop.permute.xlu0 %2381
  %2383 = vrot.lane.b32.xlu0 %v2198, 127
  %v2384 = vpop.permute.xlu0 %2383
  %2385 = vrot.lane.b32.xlu0 %v2230, 127
  %v2386 = vpop.permute.xlu0 %2385
  %2387 = vrot.lane.b32.xlu0 %v2135, 127
  %v2388 = vpop.permute.xlu0 %2387
  %2389 = vrot.lane.b32.xlu0 %v2167, 127
  %v2390 = vpop.permute.xlu0 %2389
  %2391 = vrot.lane.b32.xlu0 %v2199, 127
  %v2392 = vpop.permute.xlu0 %2391
  %2393 = vrot.lane.b32.xlu0 %v2231, 127
  %v2394 = vpop.permute.xlu0 %2393
  %2395 = vrot.lane.b32.xlu0 %v2136, 127
  %v2396 = vpop.permute.xlu0 %2395
  %2397 = vrot.lane.b32.xlu0 %v2168, 127
  %v2398 = vpop.permute.xlu0 %2397
  %2399 = vrot.lane.b32.xlu0 %v2200, 127
  %v2400 = vpop.permute.xlu0 %2399
  %2401 = vrot.lane.b32.xlu0 %v2232, 127
  %v2402 = vpop.permute.xlu0 %2401
  %2403 = vrot.lane.b32.xlu0 %v2137, 127
  %v2404 = vpop.permute.xlu0 %2403
  %2405 = vrot.lane.b32.xlu0 %v2169, 127
  %v2406 = vpop.permute.xlu0 %2405
  %2407 = vrot.lane.b32.xlu0 %v2201, 127
  %v2408 = vpop.permute.xlu0 %2407
  %2409 = vrot.lane.b32.xlu0 %v2233, 127
  %v2410 = vpop.permute.xlu0 %2409
  %2411 = vrot.lane.b32.xlu0 %v2138, 127
  %v2412 = vpop.permute.xlu0 %2411
  %2413 = vrot.lane.b32.xlu0 %v2170, 127
  %v2414 = vpop.permute.xlu0 %2413
  %2415 = vrot.lane.b32.xlu0 %v2202, 127
  %v2416 = vpop.permute.xlu0 %2415
  %2417 = vrot.lane.b32.xlu0 %v2234, 127
  %v2418 = vpop.permute.xlu0 %2417
  %2419 = vrot.lane.b32.xlu0 %v2139, 127
  %v2420 = vpop.permute.xlu0 %2419
  %2421 = vrot.lane.b32.xlu0 %v2171, 127
  %v2422 = vpop.permute.xlu0 %2421
  %2423 = vrot.lane.b32.xlu0 %v2203, 127
  %v2424 = vpop.permute.xlu0 %2423
  %2425 = vrot.lane.b32.xlu0 %v2235, 127
  %v2426 = vpop.permute.xlu0 %2425
  %2427 = vrot.lane.b32.xlu0 %v2140, 127
  %v2428 = vpop.permute.xlu0 %2427
  %2429 = vrot.lane.b32.xlu0 %v2172, 127
  %v2430 = vpop.permute.xlu0 %2429
  %2431 = vrot.lane.b32.xlu0 %v2204, 127
  %v2432 = vpop.permute.xlu0 %2431
  %2433 = vrot.lane.b32.xlu0 %v2236, 127
  %v2434 = vpop.permute.xlu0 %2433
  %2435 = vrot.lane.b32.xlu0 %v2141, 127
  %v2436 = vpop.permute.xlu0 %2435
  %2437 = vrot.lane.b32.xlu0 %v2173, 127
  %v2438 = vpop.permute.xlu0 %2437
  %2439 = vrot.lane.b32.xlu0 %v2205, 127
  %v2440 = vpop.permute.xlu0 %2439
  %2441 = vrot.lane.b32.xlu0 %v2237, 127
  %v2442 = vpop.permute.xlu0 %2441
  %2443 = vrot.lane.b32.xlu0 %v2142, 127
  %v2444 = vpop.permute.xlu0 %2443
  %2445 = vrot.lane.b32.xlu0 %v2174, 127
  %v2446 = vpop.permute.xlu0 %2445
  %2447 = vrot.lane.b32.xlu0 %v2206, 127
  %v2448 = vpop.permute.xlu0 %2447
  %2449 = vrot.lane.b32.xlu0 %v2238, 127
  %v2450 = vpop.permute.xlu0 %2449
  %2451 = vrot.lane.b32.xlu0 %v2143, 127
  %v2452 = vpop.permute.xlu0 %2451
  %2453 = vrot.lane.b32.xlu0 %v2175, 127
  %v2454 = vpop.permute.xlu0 %2453
  %2455 = vrot.lane.b32.xlu0 %v2207, 127
  %v2456 = vpop.permute.xlu0 %2455
  %2457 = vrot.lane.b32.xlu0 %v2239, 127
  %v2458 = vpop.permute.xlu0 %2457
  %2459 = vrot.lane.b32.xlu0 %v2144, 127
  %v2460 = vpop.permute.xlu0 %2459
  %2461 = vrot.lane.b32.xlu0 %v2176, 127
  %v2462 = vpop.permute.xlu0 %2461
  %2463 = vrot.lane.b32.xlu0 %v2208, 127
  %v2464 = vpop.permute.xlu0 %2463
  %2465 = vrot.lane.b32.xlu0 %v2240, 127
  %v2466 = vpop.permute.xlu0 %2465
  %2467 = vrot.lane.b32.xlu0 %v2145, 127
  %v2468 = vpop.permute.xlu0 %2467
  %2469 = vrot.lane.b32.xlu0 %v2177, 127
  %v2470 = vpop.permute.xlu0 %2469
  %2471 = vrot.lane.b32.xlu0 %v2209, 127
  %v2472 = vpop.permute.xlu0 %2471
  %2473 = vrot.lane.b32.xlu0 %v2241, 127
  %v2474 = vpop.permute.xlu0 %2473
  %2475 = vrot.lane.b32.xlu0 %v2146, 127
  %v2476 = vpop.permute.xlu0 %2475
  %2477 = vrot.lane.b32.xlu0 %v2178, 127
  %v2478 = vpop.permute.xlu0 %2477
  %2479 = vrot.lane.b32.xlu0 %v2210, 127
  %v2480 = vpop.permute.xlu0 %2479
  %2481 = vrot.lane.b32.xlu0 %v2242, 127
  %v2482 = vpop.permute.xlu0 %2481
  %2483 = vrot.lane.b32.xlu0 %v2147, 127
  %v2484 = vpop.permute.xlu0 %2483
  %2485 = vrot.lane.b32.xlu0 %v2179, 127
  %v2486 = vpop.permute.xlu0 %2485
  %2487 = vrot.lane.b32.xlu0 %v2211, 127
  %v2488 = vpop.permute.xlu0 %2487
  %2489 = vrot.lane.b32.xlu0 %v2243, 127
  %v2490 = vpop.permute.xlu0 %2489
  %2491 = vrot.lane.b32.xlu0 %v2148, 127
  %v2492 = vpop.permute.xlu0 %2491
  %2493 = vrot.lane.b32.xlu0 %v2180, 127
  %v2494 = vpop.permute.xlu0 %2493
  %2495 = vrot.lane.b32.xlu0 %v2212, 127
  %v2496 = vpop.permute.xlu0 %2495
  %2497 = vrot.lane.b32.xlu0 %v2244, 127
  %v2498 = vpop.permute.xlu0 %2497
  %2499 = vrot.lane.b32.xlu0 %v2149, 127
  %v2500 = vpop.permute.xlu0 %2499
  %2501 = vrot.lane.b32.xlu0 %v2181, 127
  %v2502 = vpop.permute.xlu0 %2501
  %2503 = vrot.lane.b32.xlu0 %v2213, 127
  %v2504 = vpop.permute.xlu0 %2503
  %2505 = vrot.lane.b32.xlu0 %v2245, 127
  %v2506 = vpop.permute.xlu0 %2505
  %2507 = vrot.lane.b32.xlu0 %v2150, 127
  %v2508 = vpop.permute.xlu0 %2507
  %2509 = vrot.lane.b32.xlu0 %v2182, 127
  %v2510 = vpop.permute.xlu0 %2509
  %2511 = vrot.lane.b32.xlu0 %v2214, 127
  %v2512 = vpop.permute.xlu0 %2511
  %2513 = vrot.lane.b32.xlu0 %v2246, 127
  %v2514 = vpop.permute.xlu0 %2513
  %2515 = vrot.lane.b32.xlu0 %v2151, 127
  %v2516 = vpop.permute.xlu0 %2515
  %2517 = vrot.lane.b32.xlu0 %v2183, 127
  %v2518 = vpop.permute.xlu0 %2517
  %2519 = vrot.lane.b32.xlu0 %v2215, 127
  %v2520 = vpop.permute.xlu0 %2519
  %2521 = vrot.lane.b32.xlu0 %v2247, 127
  %v2522 = vpop.permute.xlu0 %2521
  %2523 = vrot.lane.b32.xlu0 %v2152, 127
  %v2524 = vpop.permute.xlu0 %2523
  %2525 = vrot.lane.b32.xlu0 %v2184, 127
  %v2526 = vpop.permute.xlu0 %2525
  %2527 = vrot.lane.b32.xlu0 %v2216, 127
  %v2528 = vpop.permute.xlu0 %2527
  %2529 = vrot.lane.b32.xlu0 %v2248, 127
  %v2530 = vpop.permute.xlu0 %2529
  %2531 = vrot.lane.b32.xlu0 %v2153, 127
  %v2532 = vpop.permute.xlu0 %2531
  %2533 = vrot.lane.b32.xlu0 %v2185, 127
  %v2534 = vpop.permute.xlu0 %2533
  %2535 = vrot.lane.b32.xlu0 %v2217, 127
  %v2536 = vpop.permute.xlu0 %2535
  %2537 = vrot.lane.b32.xlu0 %v2249, 127
  %v2538 = vpop.permute.xlu0 %2537
  %2539 = vrot.lane.b32.xlu0 %v2154, 127
  %v2540 = vpop.permute.xlu0 %2539
  %2541 = vrot.lane.b32.xlu0 %v2186, 127
  %v2542 = vpop.permute.xlu0 %2541
  %2543 = vrot.lane.b32.xlu0 %v2218, 127
  %v2544 = vpop.permute.xlu0 %2543
  %2545 = vrot.lane.b32.xlu0 %v2250, 127
  %v2546 = vpop.permute.xlu0 %2545
  %2547 = vrot.lane.b32.xlu0 %v2155, 127
  %v2548 = vpop.permute.xlu0 %2547
  %2549 = vrot.lane.b32.xlu0 %v2187, 127
  %v2550 = vpop.permute.xlu0 %2549
  %2551 = vrot.lane.b32.xlu0 %v2219, 127
  %v2552 = vpop.permute.xlu0 %2551
  %2553 = vrot.lane.b32.xlu0 %v2251, 127
  %v2554 = vpop.permute.xlu0 %2553
  %2555 = vrot.lane.b32.xlu0 %v2156, 127
  %v2556 = vpop.permute.xlu0 %2555
  %2557 = vrot.lane.b32.xlu0 %v2188, 127
  %v2558 = vpop.permute.xlu0 %2557
  %2559 = vrot.lane.b32.xlu0 %v2220, 127
  %v2560 = vpop.permute.xlu0 %2559
  %2561 = vrot.lane.b32.xlu0 %v2252, 127
  %v2562 = vpop.permute.xlu0 %2561
  %2563 = vrot.lane.b32.xlu0 %v2157, 127
  %v2564 = vpop.permute.xlu0 %2563
  %2565 = vrot.lane.b32.xlu0 %v2189, 127
  %v2566 = vpop.permute.xlu0 %2565
  %2567 = vrot.lane.b32.xlu0 %v2221, 127
  %v2568 = vpop.permute.xlu0 %2567
  %2569 = vrot.lane.b32.xlu0 %v2253, 127
  %v2570 = vpop.permute.xlu0 %2569
  %2571 = vrot.lane.b32.xlu0 %v2158, 127
  %v2572 = vpop.permute.xlu0 %2571
  %2573 = vrot.lane.b32.xlu0 %v2190, 127
  %v2574 = vpop.permute.xlu0 %2573
  %2575 = vrot.lane.b32.xlu0 %v2222, 127
  %v2576 = vpop.permute.xlu0 %2575
  %2577 = vrot.lane.b32.xlu0 %v2254, 127
  %v2578 = vpop.permute.xlu0 %2577
  %vm2579 = vcmp.lt.s32.totalorder %v275, 127
  %v2580 = vsel %vm2579, %v2564, %v2572
  %v2581 = vsel %vm2579, %v2566, %v2574
  %v2582 = vsel %vm2579, %v2568, %v2576
  %v2583 = vsel %vm2579, %v2570, %v2578
  %v2584 = vsel %vm2579, %v2556, %v2564
  %v2585 = vsel %vm2579, %v2558, %v2566
  %v2586 = vsel %vm2579, %v2560, %v2568
  %v2587 = vsel %vm2579, %v2562, %v2570
  %v2588 = vsel %vm2579, %v2548, %v2556
  %v2589 = vsel %vm2579, %v2550, %v2558
  %v2590 = vsel %vm2579, %v2552, %v2560
  %v2591 = vsel %vm2579, %v2554, %v2562
  %v2592 = vsel %vm2579, %v2540, %v2548
  %v2593 = vsel %vm2579, %v2542, %v2550
  %v2594 = vsel %vm2579, %v2544, %v2552
  %v2595 = vsel %vm2579, %v2546, %v2554
  %v2596 = vsel %vm2579, %v2532, %v2540
  %v2597 = vsel %vm2579, %v2534, %v2542
  %v2598 = vsel %vm2579, %v2536, %v2544
  %v2599 = vsel %vm2579, %v2538, %v2546
  %v2600 = vsel %vm2579, %v2524, %v2532
  %v2601 = vsel %vm2579, %v2526, %v2534
  %v2602 = vsel %vm2579, %v2528, %v2536
  %v2603 = vsel %vm2579, %v2530, %v2538
  %v2604 = vsel %vm2579, %v2516, %v2524
  %v2605 = vsel %vm2579, %v2518, %v2526
  %v2606 = vsel %vm2579, %v2520, %v2528
  %v2607 = vsel %vm2579, %v2522, %v2530
  %v2608 = vsel %vm2579, %v2508, %v2516
  %v2609 = vsel %vm2579, %v2510, %v2518
  %v2610 = vsel %vm2579, %v2512, %v2520
  %v2611 = vsel %vm2579, %v2514, %v2522
  %v2612 = vsel %vm2579, %v2500, %v2508
  %v2613 = vsel %vm2579, %v2502, %v2510
  %v2614 = vsel %vm2579, %v2504, %v2512
  %v2615 = vsel %vm2579, %v2506, %v2514
  %v2616 = vsel %vm2579, %v2492, %v2500
  %v2617 = vsel %vm2579, %v2494, %v2502
  %v2618 = vsel %vm2579, %v2496, %v2504
  %v2619 = vsel %vm2579, %v2498, %v2506
  %v2620 = vsel %vm2579, %v2484, %v2492
  %v2621 = vsel %vm2579, %v2486, %v2494
  %v2622 = vsel %vm2579, %v2488, %v2496
  %v2623 = vsel %vm2579, %v2490, %v2498
  %v2624 = vsel %vm2579, %v2476, %v2484
  %v2625 = vsel %vm2579, %v2478, %v2486
  %v2626 = vsel %vm2579, %v2480, %v2488
  %v2627 = vsel %vm2579, %v2482, %v2490
  %v2628 = vsel %vm2579, %v2468, %v2476
  %v2629 = vsel %vm2579, %v2470, %v2478
  %v2630 = vsel %vm2579, %v2472, %v2480
  %v2631 = vsel %vm2579, %v2474, %v2482
  %v2632 = vsel %vm2579, %v2460, %v2468
  %v2633 = vsel %vm2579, %v2462, %v2470
  %v2634 = vsel %vm2579, %v2464, %v2472
  %v2635 = vsel %vm2579, %v2466, %v2474
  %v2636 = vsel %vm2579, %v2452, %v2460
  %v2637 = vsel %vm2579, %v2454, %v2462
  %v2638 = vsel %vm2579, %v2456, %v2464
  %v2639 = vsel %vm2579, %v2458, %v2466
  %v2640 = vsel %vm2579, %v2444, %v2452
  %v2641 = vsel %vm2579, %v2446, %v2454
  %v2642 = vsel %vm2579, %v2448, %v2456
  %v2643 = vsel %vm2579, %v2450, %v2458
  %v2644 = vsel %vm2579, %v2436, %v2444
  %v2645 = vsel %vm2579, %v2438, %v2446
  %v2646 = vsel %vm2579, %v2440, %v2448
  %v2647 = vsel %vm2579, %v2442, %v2450
  %v2648 = vsel %vm2579, %v2428, %v2436
  %v2649 = vsel %vm2579, %v2430, %v2438
  %v2650 = vsel %vm2579, %v2432, %v2440
  %v2651 = vsel %vm2579, %v2434, %v2442
  %v2652 = vsel %vm2579, %v2420, %v2428
  %v2653 = vsel %vm2579, %v2422, %v2430
  %v2654 = vsel %vm2579, %v2424, %v2432
  %v2655 = vsel %vm2579, %v2426, %v2434
  %v2656 = vsel %vm2579, %v2412, %v2420
  %v2657 = vsel %vm2579, %v2414, %v2422
  %v2658 = vsel %vm2579, %v2416, %v2424
  %v2659 = vsel %vm2579, %v2418, %v2426
  %v2660 = vsel %vm2579, %v2404, %v2412
  %v2661 = vsel %vm2579, %v2406, %v2414
  %v2662 = vsel %vm2579, %v2408, %v2416
  %v2663 = vsel %vm2579, %v2410, %v2418
  %v2664 = vsel %vm2579, %v2396, %v2404
  %v2665 = vsel %vm2579, %v2398, %v2406
  %v2666 = vsel %vm2579, %v2400, %v2408
  %v2667 = vsel %vm2579, %v2402, %v2410
  %v2668 = vsel %vm2579, %v2388, %v2396
  %v2669 = vsel %vm2579, %v2390, %v2398
  %v2670 = vsel %vm2579, %v2392, %v2400
  %v2671 = vsel %vm2579, %v2394, %v2402
  %v2672 = vsel %vm2579, %v2380, %v2388
  %v2673 = vsel %vm2579, %v2382, %v2390
  %v2674 = vsel %vm2579, %v2384, %v2392
  %v2675 = vsel %vm2579, %v2386, %v2394
  %v2676 = vsel %vm2579, %v2372, %v2380
  %v2677 = vsel %vm2579, %v2374, %v2382
  %v2678 = vsel %vm2579, %v2376, %v2384
  %v2679 = vsel %vm2579, %v2378, %v2386
  %v2680 = vsel %vm2579, %v2364, %v2372
  %v2681 = vsel %vm2579, %v2366, %v2374
  %v2682 = vsel %vm2579, %v2368, %v2376
  %v2683 = vsel %vm2579, %v2370, %v2378
  %v2684 = vsel %vm2579, %v2356, %v2364
  %v2685 = vsel %vm2579, %v2358, %v2366
  %v2686 = vsel %vm2579, %v2360, %v2368
  %v2687 = vsel %vm2579, %v2362, %v2370
  %v2688 = vsel %vm2579, %v2348, %v2356
  %v2689 = vsel %vm2579, %v2350, %v2358
  %v2690 = vsel %vm2579, %v2352, %v2360
  %v2691 = vsel %vm2579, %v2354, %v2362
  %v2692 = vsel %vm2579, %v2340, %v2348
  %v2693 = vsel %vm2579, %v2342, %v2350
  %v2694 = vsel %vm2579, %v2344, %v2352
  %v2695 = vsel %vm2579, %v2346, %v2354
  %v2696 = vsel %vm2579, %v2332, %v2340
  %v2697 = vsel %vm2579, %v2334, %v2342
  %v2698 = vsel %vm2579, %v2336, %v2344
  %v2699 = vsel %vm2579, %v2338, %v2346
  %v2700 = vsel %vm2579, %v2324, %v2332
  %v2701 = vsel %vm2579, %v2326, %v2334
  %v2702 = vsel %vm2579, %v2328, %v2336
  %v2703 = vsel %vm2579, %v2330, %v2338
  %v2704 = vsel %vm2579, %v2572, %v2324
  %v2705 = vsel %vm2579, %v2574, %v2326
  %v2706 = vsel %vm2579, %v2576, %v2328
  %v2707 = vsel %vm2579, %v2578, %v2330
  %v2708 = vpack.c.bf16 %v2701, %v2700
  %v2709 = vpack.c.bf16 %v2697, %v2696
  %v2710 = vpack.c.bf16 %v2693, %v2692
  %v2711 = vpack.c.bf16 %v2689, %v2688
  %v2712 = vpack.c.bf16 %v2685, %v2684
  %v2713 = vpack.c.bf16 %v2681, %v2680
  %v2714 = vpack.c.bf16 %v2677, %v2676
  %v2715 = vpack.c.bf16 %v2673, %v2672
  %v2716 = vpack.c.bf16 %v2669, %v2668
  %v2717 = vpack.c.bf16 %v2665, %v2664
  %v2718 = vpack.c.bf16 %v2661, %v2660
  %v2719 = vpack.c.bf16 %v2657, %v2656
  %v2720 = vpack.c.bf16 %v2653, %v2652
  %v2721 = vpack.c.bf16 %v2649, %v2648
  %v2722 = vpack.c.bf16 %v2645, %v2644
  %v2723 = vpack.c.bf16 %v2641, %v2640
  %v2724 = vpack.c.bf16 %v2637, %v2636
  %v2725 = vpack.c.bf16 %v2633, %v2632
  %v2726 = vpack.c.bf16 %v2629, %v2628
  %v2727 = vpack.c.bf16 %v2625, %v2624
  %v2728 = vpack.c.bf16 %v2621, %v2620
  %v2729 = vpack.c.bf16 %v2617, %v2616
  %v2730 = vpack.c.bf16 %v2613, %v2612
  %v2731 = vpack.c.bf16 %v2609, %v2608
  %v2732 = vpack.c.bf16 %v2605, %v2604
  %v2733 = vpack.c.bf16 %v2601, %v2600
  %v2734 = vpack.c.bf16 %v2597, %v2596
  %v2735 = vpack.c.bf16 %v2593, %v2592
  %v2736 = vpack.c.bf16 %v2589, %v2588
  %v2737 = vpack.c.bf16 %v2585, %v2584
  %v2738 = vpack.c.bf16 %v2581, %v2580
  %v2739 = vpack.c.bf16 %v2705, %v2704
  %v2740 = vpack.c.bf16 %v2703, %v2702
  %v2741 = vpack.c.bf16 %v2699, %v2698
  %v2742 = vpack.c.bf16 %v2695, %v2694
  %v2743 = vpack.c.bf16 %v2691, %v2690
  %v2744 = vpack.c.bf16 %v2687, %v2686
  %v2745 = vpack.c.bf16 %v2683, %v2682
  %v2746 = vpack.c.bf16 %v2679, %v2678
  %v2747 = vpack.c.bf16 %v2675, %v2674
  %v2748 = vpack.c.bf16 %v2671, %v2670
  %v2749 = vpack.c.bf16 %v2667, %v2666
  %v2750 = vpack.c.bf16 %v2663, %v2662
  %v2751 = vpack.c.bf16 %v2659, %v2658
  %v2752 = vpack.c.bf16 %v2655, %v2654
  %v2753 = vpack.c.bf16 %v2651, %v2650
  %v2754 = vpack.c.bf16 %v2647, %v2646
  %v2755 = vpack.c.bf16 %v2643, %v2642
  %v2756 = vpack.c.bf16 %v2639, %v2638
  %v2757 = vpack.c.bf16 %v2635, %v2634
  %v2758 = vpack.c.bf16 %v2631, %v2630
  %v2759 = vpack.c.bf16 %v2627, %v2626
  %v2760 = vpack.c.bf16 %v2623, %v2622
  %v2761 = vpack.c.bf16 %v2619, %v2618
  %v2762 = vpack.c.bf16 %v2615, %v2614
  %v2763 = vpack.c.bf16 %v2611, %v2610
  %v2764 = vpack.c.bf16 %v2607, %v2606
  %v2765 = vpack.c.bf16 %v2603, %v2602
  %v2766 = vpack.c.bf16 %v2599, %v2598
  %v2767 = vpack.c.bf16 %v2595, %v2594
  %v2768 = vpack.c.bf16 %v2591, %v2590
  %v2769 = vpack.c.bf16 %v2587, %v2586
  %v2770 = vpack.c.bf16 %v2583, %v2582
  %v2771 = vpack.c.bf16 %v2707, %v2706
  %2772 = vrot.lane.b32.xlu0 %v2127, 103
  %v2773 = vpop.permute.xlu0 %2772
  %2774 = vrot.lane.b32.xlu0 %v2159, 103
  %v2775 = vpop.permute.xlu0 %2774
  %2776 = vrot.lane.b32.xlu0 %v2191, 103
  %v2777 = vpop.permute.xlu0 %2776
  %2778 = vrot.lane.b32.xlu0 %v2223, 103
  %v2779 = vpop.permute.xlu0 %2778
  %2780 = vrot.lane.b32.xlu0 %v2128, 103
  %v2781 = vpop.permute.xlu0 %2780
  %2782 = vrot.lane.b32.xlu0 %v2160, 103
  %v2783 = vpop.permute.xlu0 %2782
  %2784 = vrot.lane.b32.xlu0 %v2192, 103
  %v2785 = vpop.permute.xlu0 %2784
  %2786 = vrot.lane.b32.xlu0 %v2224, 103
  %v2787 = vpop.permute.xlu0 %2786
  %2788 = vrot.lane.b32.xlu0 %v2129, 103
  %v2789 = vpop.permute.xlu0 %2788
  %2790 = vrot.lane.b32.xlu0 %v2161, 103
  %v2791 = vpop.permute.xlu0 %2790
  %2792 = vrot.lane.b32.xlu0 %v2193, 103
  %v2793 = vpop.permute.xlu0 %2792
  %2794 = vrot.lane.b32.xlu0 %v2225, 103
  %v2795 = vpop.permute.xlu0 %2794
  %2796 = vrot.lane.b32.xlu0 %v2130, 103
  %v2797 = vpop.permute.xlu0 %2796
  %2798 = vrot.lane.b32.xlu0 %v2162, 103
  %v2799 = vpop.permute.xlu0 %2798
  %2800 = vrot.lane.b32.xlu0 %v2194, 103
  %v2801 = vpop.permute.xlu0 %2800
  %2802 = vrot.lane.b32.xlu0 %v2226, 103
  %v2803 = vpop.permute.xlu0 %2802
  %2804 = vrot.lane.b32.xlu0 %v2131, 103
  %v2805 = vpop.permute.xlu0 %2804
  %2806 = vrot.lane.b32.xlu0 %v2163, 103
  %v2807 = vpop.permute.xlu0 %2806
  %2808 = vrot.lane.b32.xlu0 %v2195, 103
  %v2809 = vpop.permute.xlu0 %2808
  %2810 = vrot.lane.b32.xlu0 %v2227, 103
  %v2811 = vpop.permute.xlu0 %2810
  %2812 = vrot.lane.b32.xlu0 %v2132, 103
  %v2813 = vpop.permute.xlu0 %2812
  %2814 = vrot.lane.b32.xlu0 %v2164, 103
  %v2815 = vpop.permute.xlu0 %2814
  %2816 = vrot.lane.b32.xlu0 %v2196, 103
  %v2817 = vpop.permute.xlu0 %2816
  %2818 = vrot.lane.b32.xlu0 %v2228, 103
  %v2819 = vpop.permute.xlu0 %2818
  %2820 = vrot.lane.b32.xlu0 %v2133, 103
  %v2821 = vpop.permute.xlu0 %2820
  %2822 = vrot.lane.b32.xlu0 %v2165, 103
  %v2823 = vpop.permute.xlu0 %2822
  %2824 = vrot.lane.b32.xlu0 %v2197, 103
  %v2825 = vpop.permute.xlu0 %2824
  %2826 = vrot.lane.b32.xlu0 %v2229, 103
  %v2827 = vpop.permute.xlu0 %2826
  %2828 = vrot.lane.b32.xlu0 %v2134, 103
  %v2829 = vpop.permute.xlu0 %2828
  %2830 = vrot.lane.b32.xlu0 %v2166, 103
  %v2831 = vpop.permute.xlu0 %2830
  %2832 = vrot.lane.b32.xlu0 %v2198, 103
  %v2833 = vpop.permute.xlu0 %2832
  %2834 = vrot.lane.b32.xlu0 %v2230, 103
  %v2835 = vpop.permute.xlu0 %2834
  %2836 = vrot.lane.b32.xlu0 %v2135, 103
  %v2837 = vpop.permute.xlu0 %2836
  %2838 = vrot.lane.b32.xlu0 %v2167, 103
  %v2839 = vpop.permute.xlu0 %2838
  %2840 = vrot.lane.b32.xlu0 %v2199, 103
  %v2841 = vpop.permute.xlu0 %2840
  %2842 = vrot.lane.b32.xlu0 %v2231, 103
  %v2843 = vpop.permute.xlu0 %2842
  %2844 = vrot.lane.b32.xlu0 %v2136, 103
  %v2845 = vpop.permute.xlu0 %2844
  %2846 = vrot.lane.b32.xlu0 %v2168, 103
  %v2847 = vpop.permute.xlu0 %2846
  %2848 = vrot.lane.b32.xlu0 %v2200, 103
  %v2849 = vpop.permute.xlu0 %2848
  %2850 = vrot.lane.b32.xlu0 %v2232, 103
  %v2851 = vpop.permute.xlu0 %2850
  %2852 = vrot.lane.b32.xlu0 %v2137, 103
  %v2853 = vpop.permute.xlu0 %2852
  %2854 = vrot.lane.b32.xlu0 %v2169, 103
  %v2855 = vpop.permute.xlu0 %2854
  %2856 = vrot.lane.b32.xlu0 %v2201, 103
  %v2857 = vpop.permute.xlu0 %2856
  %2858 = vrot.lane.b32.xlu0 %v2233, 103
  %v2859 = vpop.permute.xlu0 %2858
  %2860 = vrot.lane.b32.xlu0 %v2138, 103
  %v2861 = vpop.permute.xlu0 %2860
  %2862 = vrot.lane.b32.xlu0 %v2170, 103
  %v2863 = vpop.permute.xlu0 %2862
  %2864 = vrot.lane.b32.xlu0 %v2202, 103
  %v2865 = vpop.permute.xlu0 %2864
  %2866 = vrot.lane.b32.xlu0 %v2234, 103
  %v2867 = vpop.permute.xlu0 %2866
  %2868 = vrot.lane.b32.xlu0 %v2139, 103
  %v2869 = vpop.permute.xlu0 %2868
  %2870 = vrot.lane.b32.xlu0 %v2171, 103
  %v2871 = vpop.permute.xlu0 %2870
  %2872 = vrot.lane.b32.xlu0 %v2203, 103
  %v2873 = vpop.permute.xlu0 %2872
  %2874 = vrot.lane.b32.xlu0 %v2235, 103
  %v2875 = vpop.permute.xlu0 %2874
  %2876 = vrot.lane.b32.xlu0 %v2140, 103
  %v2877 = vpop.permute.xlu0 %2876
  %2878 = vrot.lane.b32.xlu0 %v2172, 103
  %v2879 = vpop.permute.xlu0 %2878
  %2880 = vrot.lane.b32.xlu0 %v2204, 103
  %v2881 = vpop.permute.xlu0 %2880
  %2882 = vrot.lane.b32.xlu0 %v2236, 103
  %v2883 = vpop.permute.xlu0 %2882
  %2884 = vrot.lane.b32.xlu0 %v2141, 103
  %v2885 = vpop.permute.xlu0 %2884
  %2886 = vrot.lane.b32.xlu0 %v2173, 103
  %v2887 = vpop.permute.xlu0 %2886
  %2888 = vrot.lane.b32.xlu0 %v2205, 103
  %v2889 = vpop.permute.xlu0 %2888
  %2890 = vrot.lane.b32.xlu0 %v2237, 103
  %v2891 = vpop.permute.xlu0 %2890
  %2892 = vrot.lane.b32.xlu0 %v2142, 103
  %v2893 = vpop.permute.xlu0 %2892
  %2894 = vrot.lane.b32.xlu0 %v2174, 103
  %v2895 = vpop.permute.xlu0 %2894
  %2896 = vrot.lane.b32.xlu0 %v2206, 103
  %v2897 = vpop.permute.xlu0 %2896
  %2898 = vrot.lane.b32.xlu0 %v2238, 103
  %v2899 = vpop.permute.xlu0 %2898
  %2900 = vrot.lane.b32.xlu0 %v2143, 103
  %v2901 = vpop.permute.xlu0 %2900
  %2902 = vrot.lane.b32.xlu0 %v2175, 103
  %v2903 = vpop.permute.xlu0 %2902
  %2904 = vrot.lane.b32.xlu0 %v2207, 103
  %v2905 = vpop.permute.xlu0 %2904
  %2906 = vrot.lane.b32.xlu0 %v2239, 103
  %v2907 = vpop.permute.xlu0 %2906
  %2908 = vrot.lane.b32.xlu0 %v2144, 103
  %v2909 = vpop.permute.xlu0 %2908
  %2910 = vrot.lane.b32.xlu0 %v2176, 103
  %v2911 = vpop.permute.xlu0 %2910
  %2912 = vrot.lane.b32.xlu0 %v2208, 103
  %v2913 = vpop.permute.xlu0 %2912
  %2914 = vrot.lane.b32.xlu0 %v2240, 103
  %v2915 = vpop.permute.xlu0 %2914
  %2916 = vrot.lane.b32.xlu0 %v2145, 103
  %v2917 = vpop.permute.xlu0 %2916
  %2918 = vrot.lane.b32.xlu0 %v2177, 103
  %v2919 = vpop.permute.xlu0 %2918
  %2920 = vrot.lane.b32.xlu0 %v2209, 103
  %v2921 = vpop.permute.xlu0 %2920
  %2922 = vrot.lane.b32.xlu0 %v2241, 103
  %v2923 = vpop.permute.xlu0 %2922
  %2924 = vrot.lane.b32.xlu0 %v2146, 103
  %v2925 = vpop.permute.xlu0 %2924
  %2926 = vrot.lane.b32.xlu0 %v2178, 103
  %v2927 = vpop.permute.xlu0 %2926
  %2928 = vrot.lane.b32.xlu0 %v2210, 103
  %v2929 = vpop.permute.xlu0 %2928
  %2930 = vrot.lane.b32.xlu0 %v2242, 103
  %v2931 = vpop.permute.xlu0 %2930
  %2932 = vrot.lane.b32.xlu0 %v2147, 103
  %v2933 = vpop.permute.xlu0 %2932
  %2934 = vrot.lane.b32.xlu0 %v2179, 103
  %v2935 = vpop.permute.xlu0 %2934
  %2936 = vrot.lane.b32.xlu0 %v2211, 103
  %v2937 = vpop.permute.xlu0 %2936
  %2938 = vrot.lane.b32.xlu0 %v2243, 103
  %v2939 = vpop.permute.xlu0 %2938
  %2940 = vrot.lane.b32.xlu0 %v2148, 103
  %v2941 = vpop.permute.xlu0 %2940
  %2942 = vrot.lane.b32.xlu0 %v2180, 103
  %v2943 = vpop.permute.xlu0 %2942
  %2944 = vrot.lane.b32.xlu0 %v2212, 103
  %v2945 = vpop.permute.xlu0 %2944
  %2946 = vrot.lane.b32.xlu0 %v2244, 103
  %v2947 = vpop.permute.xlu0 %2946
  %2948 = vrot.lane.b32.xlu0 %v2149, 103
  %v2949 = vpop.permute.xlu0 %2948
  %2950 = vrot.lane.b32.xlu0 %v2181, 103
  %v2951 = vpop.permute.xlu0 %2950
  %2952 = vrot.lane.b32.xlu0 %v2213, 103
  %v2953 = vpop.permute.xlu0 %2952
  %2954 = vrot.lane.b32.xlu0 %v2245, 103
  %v2955 = vpop.permute.xlu0 %2954
  %2956 = vrot.lane.b32.xlu0 %v2150, 103
  %v2957 = vpop.permute.xlu0 %2956
  %2958 = vrot.lane.b32.xlu0 %v2182, 103
  %v2959 = vpop.permute.xlu0 %2958
  %2960 = vrot.lane.b32.xlu0 %v2214, 103
  %v2961 = vpop.permute.xlu0 %2960
  %2962 = vrot.lane.b32.xlu0 %v2246, 103
  %v2963 = vpop.permute.xlu0 %2962
  %2964 = vrot.lane.b32.xlu0 %v2151, 103
  %v2965 = vpop.permute.xlu0 %2964
  %2966 = vrot.lane.b32.xlu0 %v2183, 103
  %v2967 = vpop.permute.xlu0 %2966
  %2968 = vrot.lane.b32.xlu0 %v2215, 103
  %v2969 = vpop.permute.xlu0 %2968
  %2970 = vrot.lane.b32.xlu0 %v2247, 103
  %v2971 = vpop.permute.xlu0 %2970
  %2972 = vrot.lane.b32.xlu0 %v2152, 103
  %v2973 = vpop.permute.xlu0 %2972
  %2974 = vrot.lane.b32.xlu0 %v2184, 103
  %v2975 = vpop.permute.xlu0 %2974
  %2976 = vrot.lane.b32.xlu0 %v2216, 103
  %v2977 = vpop.permute.xlu0 %2976
  %2978 = vrot.lane.b32.xlu0 %v2248, 103
  %v2979 = vpop.permute.xlu0 %2978
  %2980 = vrot.lane.b32.xlu0 %v2153, 103
  %v2981 = vpop.permute.xlu0 %2980
  %2982 = vrot.lane.b32.xlu0 %v2185, 103
  %v2983 = vpop.permute.xlu0 %2982
  %2984 = vrot.lane.b32.xlu0 %v2217, 103
  %v2985 = vpop.permute.xlu0 %2984
  %2986 = vrot.lane.b32.xlu0 %v2249, 103
  %v2987 = vpop.permute.xlu0 %2986
  %2988 = vrot.lane.b32.xlu0 %v2154, 103
  %v2989 = vpop.permute.xlu0 %2988
  %2990 = vrot.lane.b32.xlu0 %v2186, 103
  %v2991 = vpop.permute.xlu0 %2990
  %2992 = vrot.lane.b32.xlu0 %v2218, 103
  %v2993 = vpop.permute.xlu0 %2992
  %2994 = vrot.lane.b32.xlu0 %v2250, 103
  %v2995 = vpop.permute.xlu0 %2994
  %2996 = vrot.lane.b32.xlu0 %v2155, 103
  %v2997 = vpop.permute.xlu0 %2996
  %2998 = vrot.lane.b32.xlu0 %v2187, 103
  %v2999 = vpop.permute.xlu0 %2998
  %3000 = vrot.lane.b32.xlu0 %v2219, 103
  %v3001 = vpop.permute.xlu0 %3000
  %3002 = vrot.lane.b32.xlu0 %v2251, 103
  %v3003 = vpop.permute.xlu0 %3002
  %3004 = vrot.lane.b32.xlu0 %v2156, 103
  %v3005 = vpop.permute.xlu0 %3004
  %3006 = vrot.lane.b32.xlu0 %v2188, 103
  %v3007 = vpop.permute.xlu0 %3006
  %3008 = vrot.lane.b32.xlu0 %v2220, 103
  %v3009 = vpop.permute.xlu0 %3008
  %3010 = vrot.lane.b32.xlu0 %v2252, 103
  %v3011 = vpop.permute.xlu0 %3010
  %3012 = vrot.lane.b32.xlu0 %v2157, 103
  %v3013 = vpop.permute.xlu0 %3012
  %3014 = vrot.lane.b32.xlu0 %v2189, 103
  %v3015 = vpop.permute.xlu0 %3014
  %3016 = vrot.lane.b32.xlu0 %v2221, 103
  %v3017 = vpop.permute.xlu0 %3016
  %3018 = vrot.lane.b32.xlu0 %v2253, 103
  %v3019 = vpop.permute.xlu0 %3018
  %3020 = vrot.lane.b32.xlu0 %v2158, 103
  %v3021 = vpop.permute.xlu0 %3020
  %3022 = vrot.lane.b32.xlu0 %v2190, 103
  %v3023 = vpop.permute.xlu0 %3022
  %3024 = vrot.lane.b32.xlu0 %v2222, 103
  %v3025 = vpop.permute.xlu0 %3024
  %3026 = vrot.lane.b32.xlu0 %v2254, 103
  %v3027 = vpop.permute.xlu0 %3026
  %vm3028 = vcmp.lt.s32.totalorder %v275, 103
  %v3029 = vsel %vm3028, %v3013, %v3021
  %v3030 = vsel %vm3028, %v3015, %v3023
  %v3031 = vsel %vm3028, %v3017, %v3025
  %v3032 = vsel %vm3028, %v3019, %v3027
  %v3033 = vsel %vm3028, %v3005, %v3013
  %v3034 = vsel %vm3028, %v3007, %v3015
  %v3035 = vsel %vm3028, %v3009, %v3017
  %v3036 = vsel %vm3028, %v3011, %v3019
  %v3037 = vsel %vm3028, %v2997, %v3005
  %v3038 = vsel %vm3028, %v2999, %v3007
  %v3039 = vsel %vm3028, %v3001, %v3009
  %v3040 = vsel %vm3028, %v3003, %v3011
  %v3041 = vsel %vm3028, %v2989, %v2997
  %v3042 = vsel %vm3028, %v2991, %v2999
  %v3043 = vsel %vm3028, %v2993, %v3001
  %v3044 = vsel %vm3028, %v2995, %v3003
  %v3045 = vsel %vm3028, %v2981, %v2989
  %v3046 = vsel %vm3028, %v2983, %v2991
  %v3047 = vsel %vm3028, %v2985, %v2993
  %v3048 = vsel %vm3028, %v2987, %v2995
  %v3049 = vsel %vm3028, %v2973, %v2981
  %v3050 = vsel %vm3028, %v2975, %v2983
  %v3051 = vsel %vm3028, %v2977, %v2985
  %v3052 = vsel %vm3028, %v2979, %v2987
  %v3053 = vsel %vm3028, %v2965, %v2973
  %v3054 = vsel %vm3028, %v2967, %v2975
  %v3055 = vsel %vm3028, %v2969, %v2977
  %v3056 = vsel %vm3028, %v2971, %v2979
  %v3057 = vsel %vm3028, %v2957, %v2965
  %v3058 = vsel %vm3028, %v2959, %v2967
  %v3059 = vsel %vm3028, %v2961, %v2969
  %v3060 = vsel %vm3028, %v2963, %v2971
  %v3061 = vsel %vm3028, %v2949, %v2957
  %v3062 = vsel %vm3028, %v2951, %v2959
  %v3063 = vsel %vm3028, %v2953, %v2961
  %v3064 = vsel %vm3028, %v2955, %v2963
  %v3065 = vsel %vm3028, %v2941, %v2949
  %v3066 = vsel %vm3028, %v2943, %v2951
  %v3067 = vsel %vm3028, %v2945, %v2953
  %v3068 = vsel %vm3028, %v2947, %v2955
  %v3069 = vsel %vm3028, %v2933, %v2941
  %v3070 = vsel %vm3028, %v2935, %v2943
  %v3071 = vsel %vm3028, %v2937, %v2945
  %v3072 = vsel %vm3028, %v2939, %v2947
  %v3073 = vsel %vm3028, %v2925, %v2933
  %v3074 = vsel %vm3028, %v2927, %v2935
  %v3075 = vsel %vm3028, %v2929, %v2937
  %v3076 = vsel %vm3028, %v2931, %v2939
  %v3077 = vsel %vm3028, %v2917, %v2925
  %v3078 = vsel %vm3028, %v2919, %v2927
  %v3079 = vsel %vm3028, %v2921, %v2929
  %v3080 = vsel %vm3028, %v2923, %v2931
  %v3081 = vsel %vm3028, %v2909, %v2917
  %v3082 = vsel %vm3028, %v2911, %v2919
  %v3083 = vsel %vm3028, %v2913, %v2921
  %v3084 = vsel %vm3028, %v2915, %v2923
  %v3085 = vsel %vm3028, %v2901, %v2909
  %v3086 = vsel %vm3028, %v2903, %v2911
  %v3087 = vsel %vm3028, %v2905, %v2913
  %v3088 = vsel %vm3028, %v2907, %v2915
  %v3089 = vsel %vm3028, %v2893, %v2901
  %v3090 = vsel %vm3028, %v2895, %v2903
  %v3091 = vsel %vm3028, %v2897, %v2905
  %v3092 = vsel %vm3028, %v2899, %v2907
  %v3093 = vsel %vm3028, %v2885, %v2893
  %v3094 = vsel %vm3028, %v2887, %v2895
  %v3095 = vsel %vm3028, %v2889, %v2897
  %v3096 = vsel %vm3028, %v2891, %v2899
  %v3097 = vsel %vm3028, %v2877, %v2885
  %v3098 = vsel %vm3028, %v2879, %v2887
  %v3099 = vsel %vm3028, %v2881, %v2889
  %v3100 = vsel %vm3028, %v2883, %v2891
  %v3101 = vsel %vm3028, %v2869, %v2877
  %v3102 = vsel %vm3028, %v2871, %v2879
  %v3103 = vsel %vm3028, %v2873, %v2881
  %v3104 = vsel %vm3028, %v2875, %v2883
  %v3105 = vsel %vm3028, %v2861, %v2869
  %v3106 = vsel %vm3028, %v2863, %v2871
  %v3107 = vsel %vm3028, %v2865, %v2873
  %v3108 = vsel %vm3028, %v2867, %v2875
  %v3109 = vsel %vm3028, %v2853, %v2861
  %v3110 = vsel %vm3028, %v2855, %v2863
  %v3111 = vsel %vm3028, %v2857, %v2865
  %v3112 = vsel %vm3028, %v2859, %v2867
  %v3113 = vsel %vm3028, %v2845, %v2853
  %v3114 = vsel %vm3028, %v2847, %v2855
  %v3115 = vsel %vm3028, %v2849, %v2857
  %v3116 = vsel %vm3028, %v2851, %v2859
  %v3117 = vsel %vm3028, %v2837, %v2845
  %v3118 = vsel %vm3028, %v2839, %v2847
  %v3119 = vsel %vm3028, %v2841, %v2849
  %v3120 = vsel %vm3028, %v2843, %v2851
  %v3121 = vsel %vm3028, %v2829, %v2837
  %v3122 = vsel %vm3028, %v2831, %v2839
  %v3123 = vsel %vm3028, %v2833, %v2841
  %v3124 = vsel %vm3028, %v2835, %v2843
  %v3125 = vsel %vm3028, %v2821, %v2829
  %v3126 = vsel %vm3028, %v2823, %v2831
  %v3127 = vsel %vm3028, %v2825, %v2833
  %v3128 = vsel %vm3028, %v2827, %v2835
  %v3129 = vsel %vm3028, %v2813, %v2821
  %v3130 = vsel %vm3028, %v2815, %v2823
  %v3131 = vsel %vm3028, %v2817, %v2825
  %v3132 = vsel %vm3028, %v2819, %v2827
  %v3133 = vsel %vm3028, %v2805, %v2813
  %v3134 = vsel %vm3028, %v2807, %v2815
  %v3135 = vsel %vm3028, %v2809, %v2817
  %v3136 = vsel %vm3028, %v2811, %v2819
  %v3137 = vsel %vm3028, %v2797, %v2805
  %v3138 = vsel %vm3028, %v2799, %v2807
  %v3139 = vsel %vm3028, %v2801, %v2809
  %v3140 = vsel %vm3028, %v2803, %v2811
  %v3141 = vsel %vm3028, %v2789, %v2797
  %v3142 = vsel %vm3028, %v2791, %v2799
  %v3143 = vsel %vm3028, %v2793, %v2801
  %v3144 = vsel %vm3028, %v2795, %v2803
  %v3145 = vsel %vm3028, %v2781, %v2789
  %v3146 = vsel %vm3028, %v2783, %v2791
  %v3147 = vsel %vm3028, %v2785, %v2793
  %v3148 = vsel %vm3028, %v2787, %v2795
  %v3149 = vsel %vm3028, %v2773, %v2781
  %v3150 = vsel %vm3028, %v2775, %v2783
  %v3151 = vsel %vm3028, %v2777, %v2785
  %v3152 = vsel %vm3028, %v2779, %v2787
  %v3153 = vsel %vm3028, %v3021, %v2773
  %v3154 = vsel %vm3028, %v3023, %v2775
  %v3155 = vsel %vm3028, %v3025, %v2777
  %v3156 = vsel %vm3028, %v3027, %v2779
  %v3157 = vpack.c.bf16 %v3150, %v3149
  %v3158 = vpack.c.bf16 %v3146, %v3145
  %v3159 = vpack.c.bf16 %v3142, %v3141
  %v3160 = vpack.c.bf16 %v3138, %v3137
  %v3161 = vpack.c.bf16 %v3134, %v3133
  %v3162 = vpack.c.bf16 %v3130, %v3129
  %v3163 = vpack.c.bf16 %v3126, %v3125
  %v3164 = vpack.c.bf16 %v3122, %v3121
  %v3165 = vpack.c.bf16 %v3118, %v3117
  %v3166 = vpack.c.bf16 %v3114, %v3113
  %v3167 = vpack.c.bf16 %v3110, %v3109
  %v3168 = vpack.c.bf16 %v3106, %v3105
  %v3169 = vpack.c.bf16 %v3102, %v3101
  %v3170 = vpack.c.bf16 %v3098, %v3097
  %v3171 = vpack.c.bf16 %v3094, %v3093
  %v3172 = vpack.c.bf16 %v3090, %v3089
  %v3173 = vpack.c.bf16 %v3086, %v3085
  %v3174 = vpack.c.bf16 %v3082, %v3081
  %v3175 = vpack.c.bf16 %v3078, %v3077
  %v3176 = vpack.c.bf16 %v3074, %v3073
  %v3177 = vpack.c.bf16 %v3070, %v3069
  %v3178 = vpack.c.bf16 %v3066, %v3065
  %v3179 = vpack.c.bf16 %v3062, %v3061
  %v3180 = vpack.c.bf16 %v3058, %v3057
  %v3181 = vpack.c.bf16 %v3054, %v3053
  %v3182 = vpack.c.bf16 %v3050, %v3049
  %v3183 = vpack.c.bf16 %v3046, %v3045
  %v3184 = vpack.c.bf16 %v3042, %v3041
  %v3185 = vpack.c.bf16 %v3038, %v3037
  %v3186 = vpack.c.bf16 %v3034, %v3033
  %v3187 = vpack.c.bf16 %v3030, %v3029
  %v3188 = vpack.c.bf16 %v3154, %v3153
  %v3189 = vpack.c.bf16 %v3152, %v3151
  %v3190 = vpack.c.bf16 %v3148, %v3147
  %v3191 = vpack.c.bf16 %v3144, %v3143
  %v3192 = vpack.c.bf16 %v3140, %v3139
  %v3193 = vpack.c.bf16 %v3136, %v3135
  %v3194 = vpack.c.bf16 %v3132, %v3131
  %v3195 = vpack.c.bf16 %v3128, %v3127
  %v3196 = vpack.c.bf16 %v3124, %v3123
  %v3197 = vpack.c.bf16 %v3120, %v3119
  %v3198 = vpack.c.bf16 %v3116, %v3115
  %v3199 = vpack.c.bf16 %v3112, %v3111
  %v3200 = vpack.c.bf16 %v3108, %v3107
  %v3201 = vpack.c.bf16 %v3104, %v3103
  %v3202 = vpack.c.bf16 %v3100, %v3099
  %v3203 = vpack.c.bf16 %v3096, %v3095
  %v3204 = vpack.c.bf16 %v3092, %v3091
  %v3205 = vpack.c.bf16 %v3088, %v3087
  %v3206 = vpack.c.bf16 %v3084, %v3083
  %v3207 = vpack.c.bf16 %v3080, %v3079
  %v3208 = vpack.c.bf16 %v3076, %v3075
  %v3209 = vpack.c.bf16 %v3072, %v3071
  %v3210 = vpack.c.bf16 %v3068, %v3067
  %v3211 = vpack.c.bf16 %v3064, %v3063
  %v3212 = vpack.c.bf16 %v3060, %v3059
  %v3213 = vpack.c.bf16 %v3056, %v3055
  %v3214 = vpack.c.bf16 %v3052, %v3051
  %v3215 = vpack.c.bf16 %v3048, %v3047
  %v3216 = vpack.c.bf16 %v3044, %v3043
  %v3217 = vpack.c.bf16 %v3040, %v3039
  %v3218 = vpack.c.bf16 %v3036, %v3035
  %v3219 = vpack.c.bf16 %v3032, %v3031
  %v3220 = vpack.c.bf16 %v3156, %v3155
  %3221 = vrot.lane.b32.xlu0 %v2127, 102
  %v3222 = vpop.permute.xlu0 %3221
  %3223 = vrot.lane.b32.xlu0 %v2159, 102
  %v3224 = vpop.permute.xlu0 %3223
  %3225 = vrot.lane.b32.xlu0 %v2191, 102
  %v3226 = vpop.permute.xlu0 %3225
  %3227 = vrot.lane.b32.xlu0 %v2223, 102
  %v3228 = vpop.permute.xlu0 %3227
  %3229 = vrot.lane.b32.xlu0 %v2128, 102
  %v3230 = vpop.permute.xlu0 %3229
  %3231 = vrot.lane.b32.xlu0 %v2160, 102
  %v3232 = vpop.permute.xlu0 %3231
  %3233 = vrot.lane.b32.xlu0 %v2192, 102
  %v3234 = vpop.permute.xlu0 %3233
  %3235 = vrot.lane.b32.xlu0 %v2224, 102
  %v3236 = vpop.permute.xlu0 %3235
  %3237 = vrot.lane.b32.xlu0 %v2129, 102
  %v3238 = vpop.permute.xlu0 %3237
  %3239 = vrot.lane.b32.xlu0 %v2161, 102
  %v3240 = vpop.permute.xlu0 %3239
  %3241 = vrot.lane.b32.xlu0 %v2193, 102
  %v3242 = vpop.permute.xlu0 %3241
  %3243 = vrot.lane.b32.xlu0 %v2225, 102
  %v3244 = vpop.permute.xlu0 %3243
  %3245 = vrot.lane.b32.xlu0 %v2130, 102
  %v3246 = vpop.permute.xlu0 %3245
  %3247 = vrot.lane.b32.xlu0 %v2162, 102
  %v3248 = vpop.permute.xlu0 %3247
  %3249 = vrot.lane.b32.xlu0 %v2194, 102
  %v3250 = vpop.permute.xlu0 %3249
  %3251 = vrot.lane.b32.xlu0 %v2226, 102
  %v3252 = vpop.permute.xlu0 %3251
  %3253 = vrot.lane.b32.xlu0 %v2131, 102
  %v3254 = vpop.permute.xlu0 %3253
  %3255 = vrot.lane.b32.xlu0 %v2163, 102
  %v3256 = vpop.permute.xlu0 %3255
  %3257 = vrot.lane.b32.xlu0 %v2195, 102
  %v3258 = vpop.permute.xlu0 %3257
  %3259 = vrot.lane.b32.xlu0 %v2227, 102
  %v3260 = vpop.permute.xlu0 %3259
  %3261 = vrot.lane.b32.xlu0 %v2132, 102
  %v3262 = vpop.permute.xlu0 %3261
  %3263 = vrot.lane.b32.xlu0 %v2164, 102
  %v3264 = vpop.permute.xlu0 %3263
  %3265 = vrot.lane.b32.xlu0 %v2196, 102
  %v3266 = vpop.permute.xlu0 %3265
  %3267 = vrot.lane.b32.xlu0 %v2228, 102
  %v3268 = vpop.permute.xlu0 %3267
  %3269 = vrot.lane.b32.xlu0 %v2133, 102
  %v3270 = vpop.permute.xlu0 %3269
  %3271 = vrot.lane.b32.xlu0 %v2165, 102
  %v3272 = vpop.permute.xlu0 %3271
  %3273 = vrot.lane.b32.xlu0 %v2197, 102
  %v3274 = vpop.permute.xlu0 %3273
  %3275 = vrot.lane.b32.xlu0 %v2229, 102
  %v3276 = vpop.permute.xlu0 %3275
  %3277 = vrot.lane.b32.xlu0 %v2134, 102
  %v3278 = vpop.permute.xlu0 %3277
  %3279 = vrot.lane.b32.xlu0 %v2166, 102
  %v3280 = vpop.permute.xlu0 %3279
  %3281 = vrot.lane.b32.xlu0 %v2198, 102
  %v3282 = vpop.permute.xlu0 %3281
  %3283 = vrot.lane.b32.xlu0 %v2230, 102
  %v3284 = vpop.permute.xlu0 %3283
  %3285 = vrot.lane.b32.xlu0 %v2135, 102
  %v3286 = vpop.permute.xlu0 %3285
  %3287 = vrot.lane.b32.xlu0 %v2167, 102
  %v3288 = vpop.permute.xlu0 %3287
  %3289 = vrot.lane.b32.xlu0 %v2199, 102
  %v3290 = vpop.permute.xlu0 %3289
  %3291 = vrot.lane.b32.xlu0 %v2231, 102
  %v3292 = vpop.permute.xlu0 %3291
  %3293 = vrot.lane.b32.xlu0 %v2136, 102
  %v3294 = vpop.permute.xlu0 %3293
  %3295 = vrot.lane.b32.xlu0 %v2168, 102
  %v3296 = vpop.permute.xlu0 %3295
  %3297 = vrot.lane.b32.xlu0 %v2200, 102
  %v3298 = vpop.permute.xlu0 %3297
  %3299 = vrot.lane.b32.xlu0 %v2232, 102
  %v3300 = vpop.permute.xlu0 %3299
  %3301 = vrot.lane.b32.xlu0 %v2137, 102
  %v3302 = vpop.permute.xlu0 %3301
  %3303 = vrot.lane.b32.xlu0 %v2169, 102
  %v3304 = vpop.permute.xlu0 %3303
  %3305 = vrot.lane.b32.xlu0 %v2201, 102
  %v3306 = vpop.permute.xlu0 %3305
  %3307 = vrot.lane.b32.xlu0 %v2233, 102
  %v3308 = vpop.permute.xlu0 %3307
  %3309 = vrot.lane.b32.xlu0 %v2138, 102
  %v3310 = vpop.permute.xlu0 %3309
  %3311 = vrot.lane.b32.xlu0 %v2170, 102
  %v3312 = vpop.permute.xlu0 %3311
  %3313 = vrot.lane.b32.xlu0 %v2202, 102
  %v3314 = vpop.permute.xlu0 %3313
  %3315 = vrot.lane.b32.xlu0 %v2234, 102
  %v3316 = vpop.permute.xlu0 %3315
  %3317 = vrot.lane.b32.xlu0 %v2139, 102
  %v3318 = vpop.permute.xlu0 %3317
  %3319 = vrot.lane.b32.xlu0 %v2171, 102
  %v3320 = vpop.permute.xlu0 %3319
  %3321 = vrot.lane.b32.xlu0 %v2203, 102
  %v3322 = vpop.permute.xlu0 %3321
  %3323 = vrot.lane.b32.xlu0 %v2235, 102
  %v3324 = vpop.permute.xlu0 %3323
  %3325 = vrot.lane.b32.xlu0 %v2140, 102
  %v3326 = vpop.permute.xlu0 %3325
  %3327 = vrot.lane.b32.xlu0 %v2172, 102
  %v3328 = vpop.permute.xlu0 %3327
  %3329 = vrot.lane.b32.xlu0 %v2204, 102
  %v3330 = vpop.permute.xlu0 %3329
  %3331 = vrot.lane.b32.xlu0 %v2236, 102
  %v3332 = vpop.permute.xlu0 %3331
  %3333 = vrot.lane.b32.xlu0 %v2141, 102
  %v3334 = vpop.permute.xlu0 %3333
  %3335 = vrot.lane.b32.xlu0 %v2173, 102
  %v3336 = vpop.permute.xlu0 %3335
  %3337 = vrot.lane.b32.xlu0 %v2205, 102
  %v3338 = vpop.permute.xlu0 %3337
  %3339 = vrot.lane.b32.xlu0 %v2237, 102
  %v3340 = vpop.permute.xlu0 %3339
  %3341 = vrot.lane.b32.xlu0 %v2142, 102
  %v3342 = vpop.permute.xlu0 %3341
  %3343 = vrot.lane.b32.xlu0 %v2174, 102
  %v3344 = vpop.permute.xlu0 %3343
  %3345 = vrot.lane.b32.xlu0 %v2206, 102
  %v3346 = vpop.permute.xlu0 %3345
  %3347 = vrot.lane.b32.xlu0 %v2238, 102
  %v3348 = vpop.permute.xlu0 %3347
  %3349 = vrot.lane.b32.xlu0 %v2143, 102
  %v3350 = vpop.permute.xlu0 %3349
  %3351 = vrot.lane.b32.xlu0 %v2175, 102
  %v3352 = vpop.permute.xlu0 %3351
  %3353 = vrot.lane.b32.xlu0 %v2207, 102
  %v3354 = vpop.permute.xlu0 %3353
  %3355 = vrot.lane.b32.xlu0 %v2239, 102
  %v3356 = vpop.permute.xlu0 %3355
  %3357 = vrot.lane.b32.xlu0 %v2144, 102
  %v3358 = vpop.permute.xlu0 %3357
  %3359 = vrot.lane.b32.xlu0 %v2176, 102
  %v3360 = vpop.permute.xlu0 %3359
  %3361 = vrot.lane.b32.xlu0 %v2208, 102
  %v3362 = vpop.permute.xlu0 %3361
  %3363 = vrot.lane.b32.xlu0 %v2240, 102
  %v3364 = vpop.permute.xlu0 %3363
  %3365 = vrot.lane.b32.xlu0 %v2145, 102
  %v3366 = vpop.permute.xlu0 %3365
  %3367 = vrot.lane.b32.xlu0 %v2177, 102
  %v3368 = vpop.permute.xlu0 %3367
  %3369 = vrot.lane.b32.xlu0 %v2209, 102
  %v3370 = vpop.permute.xlu0 %3369
  %3371 = vrot.lane.b32.xlu0 %v2241, 102
  %v3372 = vpop.permute.xlu0 %3371
  %3373 = vrot.lane.b32.xlu0 %v2146, 102
  %v3374 = vpop.permute.xlu0 %3373
  %3375 = vrot.lane.b32.xlu0 %v2178, 102
  %v3376 = vpop.permute.xlu0 %3375
  %3377 = vrot.lane.b32.xlu0 %v2210, 102
  %v3378 = vpop.permute.xlu0 %3377
  %3379 = vrot.lane.b32.xlu0 %v2242, 102
  %v3380 = vpop.permute.xlu0 %3379
  %3381 = vrot.lane.b32.xlu0 %v2147, 102
  %v3382 = vpop.permute.xlu0 %3381
  %3383 = vrot.lane.b32.xlu0 %v2179, 102
  %v3384 = vpop.permute.xlu0 %3383
  %3385 = vrot.lane.b32.xlu0 %v2211, 102
  %v3386 = vpop.permute.xlu0 %3385
  %3387 = vrot.lane.b32.xlu0 %v2243, 102
  %v3388 = vpop.permute.xlu0 %3387
  %3389 = vrot.lane.b32.xlu0 %v2148, 102
  %v3390 = vpop.permute.xlu0 %3389
  %3391 = vrot.lane.b32.xlu0 %v2180, 102
  %v3392 = vpop.permute.xlu0 %3391
  %3393 = vrot.lane.b32.xlu0 %v2212, 102
  %v3394 = vpop.permute.xlu0 %3393
  %3395 = vrot.lane.b32.xlu0 %v2244, 102
  %v3396 = vpop.permute.xlu0 %3395
  %3397 = vrot.lane.b32.xlu0 %v2149, 102
  %v3398 = vpop.permute.xlu0 %3397
  %3399 = vrot.lane.b32.xlu0 %v2181, 102
  %v3400 = vpop.permute.xlu0 %3399
  %3401 = vrot.lane.b32.xlu0 %v2213, 102
  %v3402 = vpop.permute.xlu0 %3401
  %3403 = vrot.lane.b32.xlu0 %v2245, 102
  %v3404 = vpop.permute.xlu0 %3403
  %3405 = vrot.lane.b32.xlu0 %v2150, 102
  %v3406 = vpop.permute.xlu0 %3405
  %3407 = vrot.lane.b32.xlu0 %v2182, 102
  %v3408 = vpop.permute.xlu0 %3407
  %3409 = vrot.lane.b32.xlu0 %v2214, 102
  %v3410 = vpop.permute.xlu0 %3409
  %3411 = vrot.lane.b32.xlu0 %v2246, 102
  %v3412 = vpop.permute.xlu0 %3411
  %3413 = vrot.lane.b32.xlu0 %v2151, 102
  %v3414 = vpop.permute.xlu0 %3413
  %3415 = vrot.lane.b32.xlu0 %v2183, 102
  %v3416 = vpop.permute.xlu0 %3415
  %3417 = vrot.lane.b32.xlu0 %v2215, 102
  %v3418 = vpop.permute.xlu0 %3417
  %3419 = vrot.lane.b32.xlu0 %v2247, 102
  %v3420 = vpop.permute.xlu0 %3419
  %3421 = vrot.lane.b32.xlu0 %v2152, 102
  %v3422 = vpop.permute.xlu0 %3421
  %3423 = vrot.lane.b32.xlu0 %v2184, 102
  %v3424 = vpop.permute.xlu0 %3423
  %3425 = vrot.lane.b32.xlu0 %v2216, 102
  %v3426 = vpop.permute.xlu0 %3425
  %3427 = vrot.lane.b32.xlu0 %v2248, 102
  %v3428 = vpop.permute.xlu0 %3427
  %3429 = vrot.lane.b32.xlu0 %v2153, 102
  %v3430 = vpop.permute.xlu0 %3429
  %3431 = vrot.lane.b32.xlu0 %v2185, 102
  %v3432 = vpop.permute.xlu0 %3431
  %3433 = vrot.lane.b32.xlu0 %v2217, 102
  %v3434 = vpop.permute.xlu0 %3433
  %3435 = vrot.lane.b32.xlu0 %v2249, 102
  %v3436 = vpop.permute.xlu0 %3435
  %3437 = vrot.lane.b32.xlu0 %v2154, 102
  %v3438 = vpop.permute.xlu0 %3437
  %3439 = vrot.lane.b32.xlu0 %v2186, 102
  %v3440 = vpop.permute.xlu0 %3439
  %3441 = vrot.lane.b32.xlu0 %v2218, 102
  %v3442 = vpop.permute.xlu0 %3441
  %3443 = vrot.lane.b32.xlu0 %v2250, 102
  %v3444 = vpop.permute.xlu0 %3443
  %3445 = vrot.lane.b32.xlu0 %v2155, 102
  %v3446 = vpop.permute.xlu0 %3445
  %3447 = vrot.lane.b32.xlu0 %v2187, 102
  %v3448 = vpop.permute.xlu0 %3447
  %3449 = vrot.lane.b32.xlu0 %v2219, 102
  %v3450 = vpop.permute.xlu0 %3449
  %3451 = vrot.lane.b32.xlu0 %v2251, 102
  %v3452 = vpop.permute.xlu0 %3451
  %3453 = vrot.lane.b32.xlu0 %v2156, 102
  %v3454 = vpop.permute.xlu0 %3453
  %3455 = vrot.lane.b32.xlu0 %v2188, 102
  %v3456 = vpop.permute.xlu0 %3455
  %3457 = vrot.lane.b32.xlu0 %v2220, 102
  %v3458 = vpop.permute.xlu0 %3457
  %3459 = vrot.lane.b32.xlu0 %v2252, 102
  %v3460 = vpop.permute.xlu0 %3459
  %3461 = vrot.lane.b32.xlu0 %v2157, 102
  %v3462 = vpop.permute.xlu0 %3461
  %3463 = vrot.lane.b32.xlu0 %v2189, 102
  %v3464 = vpop.permute.xlu0 %3463
  %3465 = vrot.lane.b32.xlu0 %v2221, 102
  %v3466 = vpop.permute.xlu0 %3465
  %3467 = vrot.lane.b32.xlu0 %v2253, 102
  %v3468 = vpop.permute.xlu0 %3467
  %3469 = vrot.lane.b32.xlu0 %v2158, 102
  %v3470 = vpop.permute.xlu0 %3469
  %3471 = vrot.lane.b32.xlu0 %v2190, 102
  %v3472 = vpop.permute.xlu0 %3471
  %3473 = vrot.lane.b32.xlu0 %v2222, 102
  %v3474 = vpop.permute.xlu0 %3473
  %3475 = vrot.lane.b32.xlu0 %v2254, 102
  %v3476 = vpop.permute.xlu0 %3475
  %vm3477 = vcmp.lt.s32.totalorder %v275, 102
  %v3478 = vsel %vm3477, %v3462, %v3470
  %v3479 = vsel %vm3477, %v3464, %v3472
  %v3480 = vsel %vm3477, %v3466, %v3474
  %v3481 = vsel %vm3477, %v3468, %v3476
  %v3482 = vsel %vm3477, %v3454, %v3462
  %v3483 = vsel %vm3477, %v3456, %v3464
  %v3484 = vsel %vm3477, %v3458, %v3466
  %v3485 = vsel %vm3477, %v3460, %v3468
  %v3486 = vsel %vm3477, %v3446, %v3454
  %v3487 = vsel %vm3477, %v3448, %v3456
  %v3488 = vsel %vm3477, %v3450, %v3458
  %v3489 = vsel %vm3477, %v3452, %v3460
  %v3490 = vsel %vm3477, %v3438, %v3446
  %v3491 = vsel %vm3477, %v3440, %v3448
  %v3492 = vsel %vm3477, %v3442, %v3450
  %v3493 = vsel %vm3477, %v3444, %v3452
  %v3494 = vsel %vm3477, %v3430, %v3438
  %v3495 = vsel %vm3477, %v3432, %v3440
  %v3496 = vsel %vm3477, %v3434, %v3442
  %v3497 = vsel %vm3477, %v3436, %v3444
  %v3498 = vsel %vm3477, %v3422, %v3430
  %v3499 = vsel %vm3477, %v3424, %v3432
  %v3500 = vsel %vm3477, %v3426, %v3434
  %v3501 = vsel %vm3477, %v3428, %v3436
  %v3502 = vsel %vm3477, %v3414, %v3422
  %v3503 = vsel %vm3477, %v3416, %v3424
  %v3504 = vsel %vm3477, %v3418, %v3426
  %v3505 = vsel %vm3477, %v3420, %v3428
  %v3506 = vsel %vm3477, %v3406, %v3414
  %v3507 = vsel %vm3477, %v3408, %v3416
  %v3508 = vsel %vm3477, %v3410, %v3418
  %v3509 = vsel %vm3477, %v3412, %v3420
  %v3510 = vsel %vm3477, %v3398, %v3406
  %v3511 = vsel %vm3477, %v3400, %v3408
  %v3512 = vsel %vm3477, %v3402, %v3410
  %v3513 = vsel %vm3477, %v3404, %v3412
  %v3514 = vsel %vm3477, %v3390, %v3398
  %v3515 = vsel %vm3477, %v3392, %v3400
  %v3516 = vsel %vm3477, %v3394, %v3402
  %v3517 = vsel %vm3477, %v3396, %v3404
  %v3518 = vsel %vm3477, %v3382, %v3390
  %v3519 = vsel %vm3477, %v3384, %v3392
  %v3520 = vsel %vm3477, %v3386, %v3394
  %v3521 = vsel %vm3477, %v3388, %v3396
  %v3522 = vsel %vm3477, %v3374, %v3382
  %v3523 = vsel %vm3477, %v3376, %v3384
  %v3524 = vsel %vm3477, %v3378, %v3386
  %v3525 = vsel %vm3477, %v3380, %v3388
  %v3526 = vsel %vm3477, %v3366, %v3374
  %v3527 = vsel %vm3477, %v3368, %v3376
  %v3528 = vsel %vm3477, %v3370, %v3378
  %v3529 = vsel %vm3477, %v3372, %v3380
  %v3530 = vsel %vm3477, %v3358, %v3366
  %v3531 = vsel %vm3477, %v3360, %v3368
  %v3532 = vsel %vm3477, %v3362, %v3370
  %v3533 = vsel %vm3477, %v3364, %v3372
  %v3534 = vsel %vm3477, %v3350, %v3358
  %v3535 = vsel %vm3477, %v3352, %v3360
  %v3536 = vsel %vm3477, %v3354, %v3362
  %v3537 = vsel %vm3477, %v3356, %v3364
  %v3538 = vsel %vm3477, %v3342, %v3350
  %v3539 = vsel %vm3477, %v3344, %v3352
  %v3540 = vsel %vm3477, %v3346, %v3354
  %v3541 = vsel %vm3477, %v3348, %v3356
  %v3542 = vsel %vm3477, %v3334, %v3342
  %v3543 = vsel %vm3477, %v3336, %v3344
  %v3544 = vsel %vm3477, %v3338, %v3346
  %v3545 = vsel %vm3477, %v3340, %v3348
  %v3546 = vsel %vm3477, %v3326, %v3334
  %v3547 = vsel %vm3477, %v3328, %v3336
  %v3548 = vsel %vm3477, %v3330, %v3338
  %v3549 = vsel %vm3477, %v3332, %v3340
  %v3550 = vsel %vm3477, %v3318, %v3326
  %v3551 = vsel %vm3477, %v3320, %v3328
  %v3552 = vsel %vm3477, %v3322, %v3330
  %v3553 = vsel %vm3477, %v3324, %v3332
  %v3554 = vsel %vm3477, %v3310, %v3318
  %v3555 = vsel %vm3477, %v3312, %v3320
  %v3556 = vsel %vm3477, %v3314, %v3322
  %v3557 = vsel %vm3477, %v3316, %v3324
  %v3558 = vsel %vm3477, %v3302, %v3310
  %v3559 = vsel %vm3477, %v3304, %v3312
  %v3560 = vsel %vm3477, %v3306, %v3314
  %v3561 = vsel %vm3477, %v3308, %v3316
  %v3562 = vsel %vm3477, %v3294, %v3302
  %v3563 = vsel %vm3477, %v3296, %v3304
  %v3564 = vsel %vm3477, %v3298, %v3306
  %v3565 = vsel %vm3477, %v3300, %v3308
  %v3566 = vsel %vm3477, %v3286, %v3294
  %v3567 = vsel %vm3477, %v3288, %v3296
  %v3568 = vsel %vm3477, %v3290, %v3298
  %v3569 = vsel %vm3477, %v3292, %v3300
  %v3570 = vsel %vm3477, %v3278, %v3286
  %v3571 = vsel %vm3477, %v3280, %v3288
  %v3572 = vsel %vm3477, %v3282, %v3290
  %v3573 = vsel %vm3477, %v3284, %v3292
  %v3574 = vsel %vm3477, %v3270, %v3278
  %v3575 = vsel %vm3477, %v3272, %v3280
  %v3576 = vsel %vm3477, %v3274, %v3282
  %v3577 = vsel %vm3477, %v3276, %v3284
  %v3578 = vsel %vm3477, %v3262, %v3270
  %v3579 = vsel %vm3477, %v3264, %v3272
  %v3580 = vsel %vm3477, %v3266, %v3274
  %v3581 = vsel %vm3477, %v3268, %v3276
  %v3582 = vsel %vm3477, %v3254, %v3262
  %v3583 = vsel %vm3477, %v3256, %v3264
  %v3584 = vsel %vm3477, %v3258, %v3266
  %v3585 = vsel %vm3477, %v3260, %v3268
  %v3586 = vsel %vm3477, %v3246, %v3254
  %v3587 = vsel %vm3477, %v3248, %v3256
  %v3588 = vsel %vm3477, %v3250, %v3258
  %v3589 = vsel %vm3477, %v3252, %v3260
  %v3590 = vsel %vm3477, %v3238, %v3246
  %v3591 = vsel %vm3477, %v3240, %v3248
  %v3592 = vsel %vm3477, %v3242, %v3250
  %v3593 = vsel %vm3477, %v3244, %v3252
  %v3594 = vsel %vm3477, %v3230, %v3238
  %v3595 = vsel %vm3477, %v3232, %v3240
  %v3596 = vsel %vm3477, %v3234, %v3242
  %v3597 = vsel %vm3477, %v3236, %v3244
  %v3598 = vsel %vm3477, %v3222, %v3230
  %v3599 = vsel %vm3477, %v3224, %v3232
  %v3600 = vsel %vm3477, %v3226, %v3234
  %v3601 = vsel %vm3477, %v3228, %v3236
  %v3602 = vsel %vm3477, %v3470, %v3222
  %v3603 = vsel %vm3477, %v3472, %v3224
  %v3604 = vsel %vm3477, %v3474, %v3226
  %v3605 = vsel %vm3477, %v3476, %v3228
  %v3606 = vpack.c.bf16 %v3599, %v3598
  %v3607 = vpack.c.bf16 %v3595, %v3594
  %v3608 = vpack.c.bf16 %v3591, %v3590
  %v3609 = vpack.c.bf16 %v3587, %v3586
  %v3610 = vpack.c.bf16 %v3583, %v3582
  %v3611 = vpack.c.bf16 %v3579, %v3578
  %v3612 = vpack.c.bf16 %v3575, %v3574
  %v3613 = vpack.c.bf16 %v3571, %v3570
  %v3614 = vpack.c.bf16 %v3567, %v3566
  %v3615 = vpack.c.bf16 %v3563, %v3562
  %v3616 = vpack.c.bf16 %v3559, %v3558
  %v3617 = vpack.c.bf16 %v3555, %v3554
  %v3618 = vpack.c.bf16 %v3551, %v3550
  %v3619 = vpack.c.bf16 %v3547, %v3546
  %v3620 = vpack.c.bf16 %v3543, %v3542
  %v3621 = vpack.c.bf16 %v3539, %v3538
  %v3622 = vpack.c.bf16 %v3535, %v3534
  %v3623 = vpack.c.bf16 %v3531, %v3530
  %v3624 = vpack.c.bf16 %v3527, %v3526
  %v3625 = vpack.c.bf16 %v3523, %v3522
  %v3626 = vpack.c.bf16 %v3519, %v3518
  %v3627 = vpack.c.bf16 %v3515, %v3514
  %v3628 = vpack.c.bf16 %v3511, %v3510
  %v3629 = vpack.c.bf16 %v3507, %v3506
  %v3630 = vpack.c.bf16 %v3503, %v3502
  %v3631 = vpack.c.bf16 %v3499, %v3498
  %v3632 = vpack.c.bf16 %v3495, %v3494
  %v3633 = vpack.c.bf16 %v3491, %v3490
  %v3634 = vpack.c.bf16 %v3487, %v3486
  %v3635 = vpack.c.bf16 %v3483, %v3482
  %v3636 = vpack.c.bf16 %v3479, %v3478
  %v3637 = vpack.c.bf16 %v3603, %v3602
  %v3638 = vpack.c.bf16 %v3601, %v3600
  %v3639 = vpack.c.bf16 %v3597, %v3596
  %v3640 = vpack.c.bf16 %v3593, %v3592
  %v3641 = vpack.c.bf16 %v3589, %v3588
  %v3642 = vpack.c.bf16 %v3585, %v3584
  %v3643 = vpack.c.bf16 %v3581, %v3580
  %v3644 = vpack.c.bf16 %v3577, %v3576
  %v3645 = vpack.c.bf16 %v3573, %v3572
  %v3646 = vpack.c.bf16 %v3569, %v3568
  %v3647 = vpack.c.bf16 %v3565, %v3564
  %v3648 = vpack.c.bf16 %v3561, %v3560
  %v3649 = vpack.c.bf16 %v3557, %v3556
  %v3650 = vpack.c.bf16 %v3553, %v3552
  %v3651 = vpack.c.bf16 %v3549, %v3548
  %v3652 = vpack.c.bf16 %v3545, %v3544
  %v3653 = vpack.c.bf16 %v3541, %v3540
  %v3654 = vpack.c.bf16 %v3537, %v3536
  %v3655 = vpack.c.bf16 %v3533, %v3532
  %v3656 = vpack.c.bf16 %v3529, %v3528
  %v3657 = vpack.c.bf16 %v3525, %v3524
  %v3658 = vpack.c.bf16 %v3521, %v3520
  %v3659 = vpack.c.bf16 %v3517, %v3516
  %v3660 = vpack.c.bf16 %v3513, %v3512
  %v3661 = vpack.c.bf16 %v3509, %v3508
  %v3662 = vpack.c.bf16 %v3505, %v3504
  %v3663 = vpack.c.bf16 %v3501, %v3500
  %v3664 = vpack.c.bf16 %v3497, %v3496
  %v3665 = vpack.c.bf16 %v3493, %v3492
  %v3666 = vpack.c.bf16 %v3489, %v3488
  %v3667 = vpack.c.bf16 %v3485, %v3484
  %v3668 = vpack.c.bf16 %v3481, %v3480
  %v3669 = vpack.c.bf16 %v3605, %v3604
  %v3670 = vld [vmem:[%s4] sm:$0xf]
  %v3671 = vld [vmem:[%s4 + $0x4] sm:$0xf]
  %v3672 = vld [vmem:[%s4 + $0x8] sm:$0xf]
  %v3673 = vld [vmem:[%s4 + $0xc] sm:$0xf]
  %3674 = vset.pattern.permute.xlu0 1
  %3675 = vperm.xlu0 %3674, %v42
  %v3676 = vpop.permute.xlu0 %3675
  %3678 = vset.pattern.permute.xlu0 1
  %3679 = vperm.xlu0 %3678, %v43
  %v3680 = vpop.permute.xlu0 %3679
  %3682 = vset.pattern.permute.xlu0 1
  %3683 = vperm.xlu0 %3682, %v44
  %v3684 = vpop.permute.xlu0 %3683
  %3686 = vset.pattern.permute.xlu0 1
  %3687 = vperm.xlu0 %3686, %v45
  %v3688 = vpop.permute.xlu0 %3687
  %v3694 = vunpack.c.l.b16 %v3670
  %v3695 = vunpack.c.l.b16 %v3671
  %v3696 = vunpack.c.l.b16 %v3672
  %v3697 = vunpack.c.l.b16 %v3673
  %v3698 = vpack.c.b16 %v3695, %v3694
  %v3699 = vpack.c.b16 %v3697, %v3696
  %3702 = vmatprep.subr.bf16.mxu0 %v2260
  %3703 = vmatpush1.bf16.msra.mxu0 %v2259
  %3704 = vmatprep.subr.bf16.mxu0 %v2292
  %3705 = vmatpush1.bf16.msra.mxu0 %v2291
  %3706 = vmatprep.subr.bf16.mxu0 %v2709
  %3707 = vmatpush1.bf16.msra.mxu0 %v2708
  %3708 = vmatprep.subr.bf16.mxu0 %v2741
  %3709 = vmatpush1.bf16.msra.mxu0 %v2740
  %3710 = vmatprep.subr.bf16.mxu0 %v3158
  %3711 = vmatpush1.bf16.msra.mxu0 %v3157
  %3712 = vmatprep.subr.bf16.mxu0 %v3190
  %3713 = vmatpush1.bf16.msra.mxu0 %v3189
  %3714 = vmatprep.subr.bf16.mxu0 %v3607
  %3715 = vmatpush1.bf16.msra.mxu0 %v3606
  %3716 = vmatprep.subr.bf16.mxu0 %v3639
  %3717 = vmatpush1.bf16.msra.mxu0 %v3638
  %3718 = vmatprep.subr.bf16.mxu0 0
  %3719 = vmatpush1.bf16.msra.mxu0 0
  %3720 = vmatprep.subr.bf16.mxu0 0
  %3721 = vmatpush1.bf16.msra.mxu0 0
  %3722 = vmatprep.subr.bf16.mxu0 0
  %3723 = vmatpush1.bf16.msra.mxu0 0
  %3724 = vmatprep.subr.bf16.mxu0 0
  %3725 = vmatpush1.bf16.msra.mxu0 0
  %3726 = vmatprep.subr.bf16.mxu0 0
  %3727 = vmatpush1.bf16.msra.mxu0 0
  %3728 = vmatprep.subr.bf16.mxu0 0
  %3729 = vmatpush1.bf16.msra.mxu0 0
  %3730 = vmatprep.subr.bf16.mxu0 0
  %3731 = vmatpush1.bf16.msra.mxu0 0
  %3732 = vmatprep.subr.bf16.mxu0 0
  %3733 = vmatpush1.bf16.msra.mxu0 0
  %3734 = vmatprep.mubr.bf16.mxu0 0
  %3735 = vmatmul.mubr.bf16.gmra.mrb[0].mxu0 %v3698
  %v3736 = vpop.f32.mrb[0].mxu0
  %v3737 = vadd.f32 %v3676, %v3736
  %v3738 = vpop.f32.mrb[0].mxu0
  %v3739 = vadd.f32 %v3676, %v3738
  %v3740 = vpop.f32.mrb[0].mxu0
  %v3741 = vadd.f32 %v3680, %v3740
  %v3742 = vpop.f32.mrb[0].mxu0
  %v3743 = vadd.f32 %v3680, %v3742
  %3744 = vmatprep.mubr.bf16.mxu0 0
  %3745 = vmatmul.mubr.bf16.gmra.mrb[0].mxu0 %v3699
  %v3746 = vpop.f32.mrb[0].mxu0
  %v3747 = vadd.f32 %v3684, %v3746
  %v3748 = vpop.f32.mrb[0].mxu0
  %v3749 = vadd.f32 %v3684, %v3748
  %v3750 = vpop.f32.mrb[0].mxu0
  %v3751 = vadd.f32 %v3688, %v3750
  %v3752 = vpop.f32.mrb[0].mxu0
  %v3753 = vadd.f32 %v3688, %v3752
  %3754 = vdwg.mxu0
  %3755 = vmatprep.subr.bf16.mxu0 %v2262
  %3756 = vmatpush1.bf16.msra.mxu0 %v2261
  %3757 = vmatprep.subr.bf16.mxu0 %v2294
  %3758 = vmatpush1.bf16.msra.mxu0 %v2293
  %3759 = vmatprep.subr.bf16.mxu0 %v2711
  %3760 = vmatpush1.bf16.msra.mxu0 %v2710
  %3761 = vmatprep.subr.bf16.mxu0 %v2743
  %3762 = vmatpush1.bf16.msra.mxu0 %v2742
  %3763 = vmatprep.subr.bf16.mxu0 %v3160
  %3764 = vmatpush1.bf16.msra.mxu0 %v3159
  %3765 = vmatprep.subr.bf16.mxu0 %v3192
  %3766 = vmatpush1.bf16.msra.mxu0 %v3191
  %3767 = vmatprep.subr.bf16.mxu0 %v3609
  %3768 = vmatpush1.bf16.msra.mxu0 %v3608
  %3769 = vmatprep.subr.bf16.mxu0 %v3641
  %3770 = vmatpush1.bf16.msra.mxu0 %v3640
  %3771 = vmatprep.subr.bf16.mxu0 0
  %3772 = vmatpush1.bf16.msra.mxu0 0
  %3773 = vmatprep.subr.bf16.mxu0 0
  %3774 = vmatpush1.bf16.msra.mxu0 0
  %3775 = vmatprep.subr.bf16.mxu0 0
  %3776 = vmatpush1.bf16.msra.mxu0 0
  %3777 = vmatprep.subr.bf16.mxu0 0
  %3778 = vmatpush1.bf16.msra.mxu0 0
  %3779 = vmatprep.subr.bf16.mxu0 0
  %3780 = vmatpush1.bf16.msra.mxu0 0
  %3781 = vmatprep.subr.bf16.mxu0 0
  %3782 = vmatpush1.bf16.msra.mxu0 0
  %3783 = vmatprep.subr.bf16.mxu0 0
  %3784 = vmatpush1.bf16.msra.mxu0 0
  %3785 = vmatprep.subr.bf16.mxu0 0
  %3786 = vmatpush1.bf16.msra.mxu0 0
  %3787 = vmatprep.mubr.bf16.mxu0 0
  %3788 = vmatmul.mubr.bf16.gmra.mrb[0].mxu0 %v3698
  %v3789 = vpop.f32.mrb[0].mxu0
  %v3790 = vadd.f32 %v3676, %v3789
  %v3791 = vpop.f32.mrb[0].mxu0
  %v3792 = vadd.f32 %v3676, %v3791
  %v3793 = vpop.f32.mrb[0].mxu0
  %v3794 = vadd.f32 %v3680, %v3793
  %v3795 = vpop.f32.mrb[0].mxu0
  %v3796 = vadd.f32 %v3680, %v3795
  %3797 = vmatprep.mubr.bf16.mxu0 0
  %3798 = vmatmul.mubr.bf16.gmra.mrb[0].mxu0 %v3699
  %v3799 = vpop.f32.mrb[0].mxu0
  %v3800 = vadd.f32 %v3684, %v3799
  %v3801 = vpop.f32.mrb[0].mxu0
  %v3802 = vadd.f32 %v3684, %v3801
  %v3803 = vpop.f32.mrb[0].mxu0
  %v3804 = vadd.f32 %v3688, %v3803
  %v3805 = vpop.f32.mrb[0].mxu0
  %v3806 = vadd.f32 %v3688, %v3805
  %3807 = vdwg.mxu0
  %3808 = vmatprep.subr.bf16.mxu0 %v2264
  %3809 = vmatpush1.bf16.msra.mxu0 %v2263
  %3810 = vmatprep.subr.bf16.mxu0 %v2296
  %3811 = vmatpush1.bf16.msra.mxu0 %v2295
  %3812 = vmatprep.subr.bf16.mxu0 %v2713
  %3813 = vmatpush1.bf16.msra.mxu0 %v2712
  %3814 = vmatprep.subr.bf16.mxu0 %v2745
  %3815 = vmatpush1.bf16.msra.mxu0 %v2744
  %3816 = vmatprep.subr.bf16.mxu0 %v3162
  %3817 = vmatpush1.bf16.msra.mxu0 %v3161
  %3818 = vmatprep.subr.bf16.mxu0 %v3194
  %3819 = vmatpush1.bf16.msra.mxu0 %v3193
  %3820 = vmatprep.subr.bf16.mxu0 %v3611
  %3821 = vmatpush1.bf16.msra.mxu0 %v3610
  %3822 = vmatprep.subr.bf16.mxu0 %v3643
  %3823 = vmatpush1.bf16.msra.mxu0 %v3642
  %3824 = vmatprep.subr.bf16.mxu0 0
  %3825 = vmatpush1.bf16.msra.mxu0 0
  %3826 = vmatprep.subr.bf16.mxu0 0
  %3827 = vmatpush1.bf16.msra.mxu0 0
  %3828 = vmatprep.subr.bf16.mxu0 0
  %3829 = vmatpush1.bf16.msra.mxu0 0
  %3830 = vmatprep.subr.bf16.mxu0 0
  %3831 = vmatpush1.bf16.msra.mxu0 0
  %3832 = vmatprep.subr.bf16.mxu0 0
  %3833 = vmatpush1.bf16.msra.mxu0 0
  %3834 = vmatprep.subr.bf16.mxu0 0
  %3835 = vmatpush1.bf16.msra.mxu0 0
  %3836 = vmatprep.subr.bf16.mxu0 0
  %3837 = vmatpush1.bf16.msra.mxu0 0
  %3838 = vmatprep.subr.bf16.mxu0 0
  %3839 = vmatpush1.bf16.msra.mxu0 0
  %3840 = vmatprep.mubr.bf16.mxu0 0
  %3841 = vmatmul.mubr.bf16.gmra.mrb[0].mxu0 %v3698
  %v3842 = vpop.f32.mrb[0].mxu0
  %v3843 = vadd.f32 %v3676, %v3842
  %v3844 = vpop.f32.mrb[0].mxu0
  %v3845 = vadd.f32 %v3676, %v3844
  %v3846 = vpop.f32.mrb[0].mxu0
  %v3847 = vadd.f32 %v3680, %v3846
  %v3848 = vpop.f32.mrb[0].mxu0
  %v3849 = vadd.f32 %v3680, %v3848
  %3850 = vmatprep.mubr.bf16.mxu0 0
  %3851 = vmatmul.mubr.bf16.gmra.mrb[0].mxu0 %v3699
  %v3852 = vpop.f32.mrb[0].mxu0
  %v3853 = vadd.f32 %v3684, %v3852
  %v3854 = vpop.f32.mrb[0].mxu0
  %v3855 = vadd.f32 %v3684, %v3854
  %v3856 = vpop.f32.mrb[0].mxu0
  %v3857 = vadd.f32 %v3688, %v3856
  %v3858 = vpop.f32.mrb[0].mxu0
  %v3859 = vadd.f32 %v3688, %v3858
  %3860 = vdwg.mxu0
  %3861 = vmatprep.subr.bf16.mxu0 %v2266
  %3862 = vmatpush1.bf16.msra.mxu0 %v2265
  %3863 = vmatprep.subr.bf16.mxu0 %v2298
  %3864 = vmatpush1.bf16.msra.mxu0 %v2297
  %3865 = vmatprep.subr.bf16.mxu0 %v2715
  %3866 = vmatpush1.bf16.msra.mxu0 %v2714
  %3867 = vmatprep.subr.bf16.mxu0 %v2747
  %3868 = vmatpush1.bf16.msra.mxu0 %v2746
  %3869 = vmatprep.subr.bf16.mxu0 %v3164
  %3870 = vmatpush1.bf16.msra.mxu0 %v3163
  %3871 = vmatprep.subr.bf16.mxu0 %v3196
  %3872 = vmatpush1.bf16.msra.mxu0 %v3195
  %3873 = vmatprep.subr.bf16.mxu0 %v3613
  %3874 = vmatpush1.bf16.msra.mxu0 %v3612
  %3875 = vmatprep.subr.bf16.mxu0 %v3645
  %3876 = vmatpush1.bf16.msra.mxu0 %v3644
  %3877 = vmatprep.subr.bf16.mxu0 0
  %3878 = vmatpush1.bf16.msra.mxu0 0
  %3879 = vmatprep.subr.bf16.mxu0 0
  %3880 = vmatpush1.bf16.msra.mxu0 0
  %3881 = vmatprep.subr.bf16.mxu0 0
  %3882 = vmatpush1.bf16.msra.mxu0 0
  %3883 = vmatprep.subr.bf16.mxu0 0
  %3884 = vmatpush1.bf16.msra.mxu0 0
  %3885 = vmatprep.subr.bf16.mxu0 0
  %3886 = vmatpush1.bf16.msra.mxu0 0
  %3887 = vmatprep.subr.bf16.mxu0 0
  %3888 = vmatpush1.bf16.msra.mxu0 0
  %3889 = vmatprep.subr.bf16.mxu0 0
  %3890 = vmatpush1.bf16.msra.mxu0 0
  %3891 = vmatprep.subr.bf16.mxu0 0
  %3892 = vmatpush1.bf16.msra.mxu0 0
  %3893 = vmatprep.mubr.bf16.mxu0 0
  %3894 = vmatmul.mubr.bf16.gmra.mrb[0].mxu0 %v3698
  %v3895 = vpop.f32.mrb[0].mxu0
  %v3896 = vadd.f32 %v3676, %v3895
  %v3897 = vpop.f32.mrb[0].mxu0
  %v3898 = vadd.f32 %v3676, %v3897
  %v3899 = vpop.f32.mrb[0].mxu0
  %v3900 = vadd.f32 %v3680, %v3899
  %v3901 = vpop.f32.mrb[0].mxu0
  %v3902 = vadd.f32 %v3680, %v3901
  %3903 = vmatprep.mubr.bf16.mxu0 0
  %3904 = vmatmul.mubr.bf16.gmra.mrb[0].mxu0 %v3699
  %v3905 = vpop.f32.mrb[0].mxu0
  %v3906 = vadd.f32 %v3684, %v3905
  %v3907 = vpop.f32.mrb[0].mxu0
  %v3908 = vadd.f32 %v3684, %v3907
  %v3909 = vpop.f32.mrb[0].mxu0
  %v3910 = vadd.f32 %v3688, %v3909
  %v3911 = vpop.f32.mrb[0].mxu0
  %v3912 = vadd.f32 %v3688, %v3911
  %3913 = vdwg.mxu0
  %3914 = vmatprep.subr.bf16.mxu0 %v2268
  %3915 = vmatpush1.bf16.msra.mxu0 %v2267
  %3916 = vmatprep.subr.bf16.mxu0 %v2300
  %3917 = vmatpush1.bf16.msra.mxu0 %v2299
  %3918 = vmatprep.subr.bf16.mxu0 %v2717
  %3919 = vmatpush1.bf16.msra.mxu0 %v2716
  %3920 = vmatprep.subr.bf16.mxu0 %v2749
  %3921 = vmatpush1.bf16.msra.mxu0 %v2748
  %3922 = vmatprep.subr.bf16.mxu0 %v3166
  %3923 = vmatpush1.bf16.msra.mxu0 %v3165
  %3924 = vmatprep.subr.bf16.mxu0 %v3198
  %3925 = vmatpush1.bf16.msra.mxu0 %v3197
  %3926 = vmatprep.subr.bf16.mxu0 %v3615
  %3927 = vmatpush1.bf16.msra.mxu0 %v3614
  %3928 = vmatprep.subr.bf16.mxu0 %v3647
  %3929 = vmatpush1.bf16.msra.mxu0 %v3646
  %3930 = vmatprep.subr.bf16.mxu0 0
  %3931 = vmatpush1.bf16.msra.mxu0 0
  %3932 = vmatprep.subr.bf16.mxu0 0
  %3933 = vmatpush1.bf16.msra.mxu0 0
  %3934 = vmatprep.subr.bf16.mxu0 0
  %3935 = vmatpush1.bf16.msra.mxu0 0
  %3936 = vmatprep.subr.bf16.mxu0 0
  %3937 = vmatpush1.bf16.msra.mxu0 0
  %3938 = vmatprep.subr.bf16.mxu0 0
  %3939 = vmatpush1.bf16.msra.mxu0 0
  %3940 = vmatprep.subr.bf16.mxu0 0
  %3941 = vmatpush1.bf16.msra.mxu0 0
  %3942 = vmatprep.subr.bf16.mxu0 0
  %3943 = vmatpush1.bf16.msra.mxu0 0
  %3944 = vmatprep.subr.bf16.mxu0 0
  %3945 = vmatpush1.bf16.msra.mxu0 0
  %3946 = vmatprep.mubr.bf16.mxu0 0
  %3947 = vmatmul.mubr.bf16.gmra.mrb[0].mxu0 %v3698
  %v3948 = vpop.f32.mrb[0].mxu0
  %v3949 = vadd.f32 %v3676, %v3948
  %v3950 = vpop.f32.mrb[0].mxu0
  %v3951 = vadd.f32 %v3676, %v3950
  %v3952 = vpop.f32.mrb[0].mxu0
  %v3953 = vadd.f32 %v3680, %v3952
  %v3954 = vpop.f32.mrb[0].mxu0
  %v3955 = vadd.f32 %v3680, %v3954
  %3956 = vmatprep.mubr.bf16.mxu0 0
  %3957 = vmatmul.mubr.bf16.gmra.mrb[0].mxu0 %v3699
  %v3958 = vpop.f32.mrb[0].mxu0
  %v3959 = vadd.f32 %v3684, %v3958
  %v3960 = vpop.f32.mrb[0].mxu0
  %v3961 = vadd.f32 %v3684, %v3960
  %v3962 = vpop.f32.mrb[0].mxu0
  %v3963 = vadd.f32 %v3688, %v3962
  %v3964 = vpop.f32.mrb[0].mxu0
  %v3965 = vadd.f32 %v3688, %v3964
  %3966 = vdwg.mxu0
  %3967 = vmatprep.subr.bf16.mxu0 %v2270
  %3968 = vmatpush1.bf16.msra.mxu0 %v2269
  %3969 = vmatprep.subr.bf16.mxu0 %v2302
  %3970 = vmatpush1.bf16.msra.mxu0 %v2301
  %3971 = vmatprep.subr.bf16.mxu0 %v2719
  %3972 = vmatpush1.bf16.msra.mxu0 %v2718
  %3973 = vmatprep.subr.bf16.mxu0 %v2751
  %3974 = vmatpush1.bf16.msra.mxu0 %v2750
  %3975 = vmatprep.subr.bf16.mxu0 %v3168
  %3976 = vmatpush1.bf16.msra.mxu0 %v3167
  %3977 = vmatprep.subr.bf16.mxu0 %v3200
  %3978 = vmatpush1.bf16.msra.mxu0 %v3199
  %3979 = vmatprep.subr.bf16.mxu0 %v3617
  %3980 = vmatpush1.bf16.msra.mxu0 %v3616
  %3981 = vmatprep.subr.bf16.mxu0 %v3649
  %3982 = vmatpush1.bf16.msra.mxu0 %v3648
  %3983 = vmatprep.subr.bf16.mxu0 0
  %3984 = vmatpush1.bf16.msra.mxu0 0
  %3985 = vmatprep.subr.bf16.mxu0 0
  %3986 = vmatpush1.bf16.msra.mxu0 0
  %3987 = vmatprep.subr.bf16.mxu0 0
  %3988 = vmatpush1.bf16.msra.mxu0 0
  %3989 = vmatprep.subr.bf16.mxu0 0
  %3990 = vmatpush1.bf16.msra.mxu0 0
  %3991 = vmatprep.subr.bf16.mxu0 0
  %3992 = vmatpush1.bf16.msra.mxu0 0
  %3993 = vmatprep.subr.bf16.mxu0 0
  %3994 = vmatpush1.bf16.msra.mxu0 0
  %3995 = vmatprep.subr.bf16.mxu0 0
  %3996 = vmatpush1.bf16.msra.mxu0 0
  %3997 = vmatprep.subr.bf16.mxu0 0
  %3998 = vmatpush1.bf16.msra.mxu0 0
  %3999 = vmatprep.mubr.bf16.mxu0 0
  %4000 = vmatmul.mubr.bf16.gmra.mrb[0].mxu0 %v3698
  %v4001 = vpop.f32.mrb[0].mxu0
  %v4002 = vadd.f32 %v3676, %v4001
  %v4003 = vpop.f32.mrb[0].mxu0
  %v4004 = vadd.f32 %v3676, %v4003
  %v4005 = vpop.f32.mrb[0].mxu0
  %v4006 = vadd.f32 %v3680, %v4005
  %v4007 = vpop.f32.mrb[0].mxu0
  %v4008 = vadd.f32 %v3680, %v4007
  %4009 = vmatprep.mubr.bf16.mxu0 0
  %4010 = vmatmul.mubr.bf16.gmra.mrb[0].mxu0 %v3699
  %v4011 = vpop.f32.mrb[0].mxu0
  %v4012 = vadd.f32 %v3684, %v4011
  %v4013 = vpop.f32.mrb[0].mxu0
  %v4014 = vadd.f32 %v3684, %v4013
  %v4015 = vpop.f32.mrb[0].mxu0
  %v4016 = vadd.f32 %v3688, %v4015
  %v4017 = vpop.f32.mrb[0].mxu0
  %v4018 = vadd.f32 %v3688, %v4017
  %4019 = vdwg.mxu0
  %4020 = vmatprep.subr.bf16.mxu0 %v2272
  %4021 = vmatpush1.bf16.msra.mxu0 %v2271
  %4022 = vmatprep.subr.bf16.mxu0 %v2304
  %4023 = vmatpush1.bf16.msra.mxu0 %v2303
  %4024 = vmatprep.subr.bf16.mxu0 %v2721
  %4025 = vmatpush1.bf16.msra.mxu0 %v2720
  %4026 = vmatprep.subr.bf16.mxu0 %v2753
  %4027 = vmatpush1.bf16.msra.mxu0 %v2752
  %4028 = vmatprep.subr.bf16.mxu0 %v3170
  %4029 = vmatpush1.bf16.msra.mxu0 %v3169
  %4030 = vmatprep.subr.bf16.mxu0 %v3202
  %4031 = vmatpush1.bf16.msra.mxu0 %v3201
  %4032 = vmatprep.subr.bf16.mxu0 %v3619
  %4033 = vmatpush1.bf16.msra.mxu0 %v3618
  %4034 = vmatprep.subr.bf16.mxu0 %v3651
  %4035 = vmatpush1.bf16.msra.mxu0 %v3650
  %4036 = vmatprep.subr.bf16.mxu0 0
  %4037 = vmatpush1.bf16.msra.mxu0 0
  %4038 = vmatprep.subr.bf16.mxu0 0
  %4039 = vmatpush1.bf16.msra.mxu0 0
  %4040 = vmatprep.subr.bf16.mxu0 0
  %4041 = vmatpush1.bf16.msra.mxu0 0
  %4042 = vmatprep.subr.bf16.mxu0 0
  %4043 = vmatpush1.bf16.msra.mxu0 0
  %4044 = vmatprep.subr.bf16.mxu0 0
  %4045 = vmatpush1.bf16.msra.mxu0 0
  %4046 = vmatprep.subr.bf16.mxu0 0
  %4047 = vmatpush1.bf16.msra.mxu0 0
  %4048 = vmatprep.subr.bf16.mxu0 0
  %4049 = vmatpush1.bf16.msra.mxu0 0
  %4050 = vmatprep.subr.bf16.mxu0 0
  %4051 = vmatpush1.bf16.msra.mxu0 0
  %4052 = vmatprep.mubr.bf16.mxu0 0
  %4053 = vmatmul.mubr.bf16.gmra.mrb[0].mxu0 %v3698
  %v4054 = vpop.f32.mrb[0].mxu0
  %v4055 = vadd.f32 %v3676, %v4054
  %v4056 = vpop.f32.mrb[0].mxu0
  %v4057 = vadd.f32 %v3676, %v4056
  %v4058 = vpop.f32.mrb[0].mxu0
  %v4059 = vadd.f32 %v3680, %v4058
  %v4060 = vpop.f32.mrb[0].mxu0
  %v4061 = vadd.f32 %v3680, %v4060
  %4062 = vmatprep.mubr.bf16.mxu0 0
  %4063 = vmatmul.mubr.bf16.gmra.mrb[0].mxu0 %v3699
  %v4064 = vpop.f32.mrb[0].mxu0
  %v4065 = vadd.f32 %v3684, %v4064
  %v4066 = vpop.f32.mrb[0].mxu0
  %v4067 = vadd.f32 %v3684, %v4066
  %v4068 = vpop.f32.mrb[0].mxu0
  %v4069 = vadd.f32 %v3688, %v4068
  %v4070 = vpop.f32.mrb[0].mxu0
  %v4071 = vadd.f32 %v3688, %v4070
  %4072 = vdwg.mxu0
  %4073 = vmatprep.subr.bf16.mxu0 %v2274
  %4074 = vmatpush1.bf16.msra.mxu0 %v2273
  %4075 = vmatprep.subr.bf16.mxu0 %v2306
  %4076 = vmatpush1.bf16.msra.mxu0 %v2305
  %4077 = vmatprep.subr.bf16.mxu0 %v2723
  %4078 = vmatpush1.bf16.msra.mxu0 %v2722
  %4079 = vmatprep.subr.bf16.mxu0 %v2755
  %4080 = vmatpush1.bf16.msra.mxu0 %v2754
  %4081 = vmatprep.subr.bf16.mxu0 %v3172
  %4082 = vmatpush1.bf16.msra.mxu0 %v3171
  %4083 = vmatprep.subr.bf16.mxu0 %v3204
  %4084 = vmatpush1.bf16.msra.mxu0 %v3203
  %4085 = vmatprep.subr.bf16.mxu0 %v3621
  %4086 = vmatpush1.bf16.msra.mxu0 %v3620
  %4087 = vmatprep.subr.bf16.mxu0 %v3653
  %4088 = vmatpush1.bf16.msra.mxu0 %v3652
  %4089 = vmatprep.subr.bf16.mxu0 0
  %4090 = vmatpush1.bf16.msra.mxu0 0
  %4091 = vmatprep.subr.bf16.mxu0 0
  %4092 = vmatpush1.bf16.msra.mxu0 0
  %4093 = vmatprep.subr.bf16.mxu0 0
  %4094 = vmatpush1.bf16.msra.mxu0 0
  %4095 = vmatprep.subr.bf16.mxu0 0
  %4096 = vmatpush1.bf16.msra.mxu0 0
  %4097 = vmatprep.subr.bf16.mxu0 0
  %4098 = vmatpush1.bf16.msra.mxu0 0
  %4099 = vmatprep.subr.bf16.mxu0 0
  %4100 = vmatpush1.bf16.msra.mxu0 0
  %4101 = vmatprep.subr.bf16.mxu0 0
  %4102 = vmatpush1.bf16.msra.mxu0 0
  %4103 = vmatprep.subr.bf16.mxu0 0
  %4104 = vmatpush1.bf16.msra.mxu0 0
  %4105 = vmatprep.mubr.bf16.mxu0 0
  %4106 = vmatmul.mubr.bf16.gmra.mrb[0].mxu0 %v3698
  %v4107 = vpop.f32.mrb[0].mxu0
  %v4108 = vadd.f32 %v3676, %v4107
  %v4109 = vpop.f32.mrb[0].mxu0
  %v4110 = vadd.f32 %v3676, %v4109
  %v4111 = vpop.f32.mrb[0].mxu0
  %v4112 = vadd.f32 %v3680, %v4111
  %v4113 = vpop.f32.mrb[0].mxu0
  %v4114 = vadd.f32 %v3680, %v4113
  %4115 = vmatprep.mubr.bf16.mxu0 0
  %4116 = vmatmul.mubr.bf16.gmra.mrb[0].mxu0 %v3699
  %v4117 = vpop.f32.mrb[0].mxu0
  %v4118 = vadd.f32 %v3684, %v4117
  %v4119 = vpop.f32.mrb[0].mxu0
  %v4120 = vadd.f32 %v3684, %v4119
  %v4121 = vpop.f32.mrb[0].mxu0
  %v4122 = vadd.f32 %v3688, %v4121
  %v4123 = vpop.f32.mrb[0].mxu0
  %v4124 = vadd.f32 %v3688, %v4123
  %4125 = vdwg.mxu0
  %4126 = vmatprep.subr.bf16.mxu0 %v2276
  %4127 = vmatpush1.bf16.msra.mxu0 %v2275
  %4128 = vmatprep.subr.bf16.mxu0 %v2308
  %4129 = vmatpush1.bf16.msra.mxu0 %v2307
  %4130 = vmatprep.subr.bf16.mxu0 %v2725
  %4131 = vmatpush1.bf16.msra.mxu0 %v2724
  %4132 = vmatprep.subr.bf16.mxu0 %v2757
  %4133 = vmatpush1.bf16.msra.mxu0 %v2756
  %4134 = vmatprep.subr.bf16.mxu0 %v3174
  %4135 = vmatpush1.bf16.msra.mxu0 %v3173
  %4136 = vmatprep.subr.bf16.mxu0 %v3206
  %4137 = vmatpush1.bf16.msra.mxu0 %v3205
  %4138 = vmatprep.subr.bf16.mxu0 %v3623
  %4139 = vmatpush1.bf16.msra.mxu0 %v3622
  %4140 = vmatprep.subr.bf16.mxu0 %v3655
  %4141 = vmatpush1.bf16.msra.mxu0 %v3654
  %4142 = vmatprep.subr.bf16.mxu0 0
  %4143 = vmatpush1.bf16.msra.mxu0 0
  %4144 = vmatprep.subr.bf16.mxu0 0
  %4145 = vmatpush1.bf16.msra.mxu0 0
  %4146 = vmatprep.subr.bf16.mxu0 0
  %4147 = vmatpush1.bf16.msra.mxu0 0
  %4148 = vmatprep.subr.bf16.mxu0 0
  %4149 = vmatpush1.bf16.msra.mxu0 0
  %4150 = vmatprep.subr.bf16.mxu0 0
  %4151 = vmatpush1.bf16.msra.mxu0 0
  %4152 = vmatprep.subr.bf16.mxu0 0
  %4153 = vmatpush1.bf16.msra.mxu0 0
  %4154 = vmatprep.subr.bf16.mxu0 0
  %4155 = vmatpush1.bf16.msra.mxu0 0
  %4156 = vmatprep.subr.bf16.mxu0 0
  %4157 = vmatpush1.bf16.msra.mxu0 0
  %4158 = vmatprep.mubr.bf16.mxu0 0
  %4159 = vmatmul.mubr.bf16.gmra.mrb[0].mxu0 %v3698
  %v4160 = vpop.f32.mrb[0].mxu0
  %v4161 = vadd.f32 %v3676, %v4160
  %v4162 = vpop.f32.mrb[0].mxu0
  %v4163 = vadd.f32 %v3676, %v4162
  %v4164 = vpop.f32.mrb[0].mxu0
  %v4165 = vadd.f32 %v3680, %v4164
  %v4166 = vpop.f32.mrb[0].mxu0
  %v4167 = vadd.f32 %v3680, %v4166
  %4168 = vmatprep.mubr.bf16.mxu0 0
  %4169 = vmatmul.mubr.bf16.gmra.mrb[0].mxu0 %v3699
  %v4170 = vpop.f32.mrb[0].mxu0
  %v4171 = vadd.f32 %v3684, %v4170
  %v4172 = vpop.f32.mrb[0].mxu0
  %v4173 = vadd.f32 %v3684, %v4172
  %v4174 = vpop.f32.mrb[0].mxu0
  %v4175 = vadd.f32 %v3688, %v4174
  %v4176 = vpop.f32.mrb[0].mxu0
  %v4177 = vadd.f32 %v3688, %v4176
  %4178 = vdwg.mxu0
  %4179 = vmatprep.subr.bf16.mxu0 %v2278
  %4180 = vmatpush1.bf16.msra.mxu0 %v2277
  %4181 = vmatprep.subr.bf16.mxu0 %v2310
  %4182 = vmatpush1.bf16.msra.mxu0 %v2309
  %4183 = vmatprep.subr.bf16.mxu0 %v2727
  %4184 = vmatpush1.bf16.msra.mxu0 %v2726
  %4185 = vmatprep.subr.bf16.mxu0 %v2759
  %4186 = vmatpush1.bf16.msra.mxu0 %v2758
  %4187 = vmatprep.subr.bf16.mxu0 %v3176
  %4188 = vmatpush1.bf16.msra.mxu0 %v3175
  %4189 = vmatprep.subr.bf16.mxu0 %v3208
  %4190 = vmatpush1.bf16.msra.mxu0 %v3207
  %4191 = vmatprep.subr.bf16.mxu0 %v3625
  %4192 = vmatpush1.bf16.msra.mxu0 %v3624
  %4193 = vmatprep.subr.bf16.mxu0 %v3657
  %4194 = vmatpush1.bf16.msra.mxu0 %v3656
  %4195 = vmatprep.subr.bf16.mxu0 0
  %4196 = vmatpush1.bf16.msra.mxu0 0
  %4197 = vmatprep.subr.bf16.mxu0 0
  %4198 = vmatpush1.bf16.msra.mxu0 0
  %4199 = vmatprep.subr.bf16.mxu0 0
  %4200 = vmatpush1.bf16.msra.mxu0 0
  %4201 = vmatprep.subr.bf16.mxu0 0
  %4202 = vmatpush1.bf16.msra.mxu0 0
  %4203 = vmatprep.subr.bf16.mxu0 0
  %4204 = vmatpush1.bf16.msra.mxu0 0
  %4205 = vmatprep.subr.bf16.mxu0 0
  %4206 = vmatpush1.bf16.msra.mxu0 0
  %4207 = vmatprep.subr.bf16.mxu0 0
  %4208 = vmatpush1.bf16.msra.mxu0 0
  %4209 = vmatprep.subr.bf16.mxu0 0
  %4210 = vmatpush1.bf16.msra.mxu0 0
  %4211 = vmatprep.mubr.bf16.mxu0 0
  %4212 = vmatmul.mubr.bf16.gmra.mrb[0].mxu0 %v3698
  %v4213 = vpop.f32.mrb[0].mxu0
  %v4214 = vadd.f32 %v3676, %v4213
  %v4215 = vpop.f32.mrb[0].mxu0
  %v4216 = vadd.f32 %v3676, %v4215
  %v4217 = vpop.f32.mrb[0].mxu0
  %v4218 = vadd.f32 %v3680, %v4217
  %v4219 = vpop.f32.mrb[0].mxu0
  %v4220 = vadd.f32 %v3680, %v4219
  %4221 = vmatprep.mubr.bf16.mxu0 0
  %4222 = vmatmul.mubr.bf16.gmra.mrb[0].mxu0 %v3699
  %v4223 = vpop.f32.mrb[0].mxu0
  %v4224 = vadd.f32 %v3684, %v4223
  %v4225 = vpop.f32.mrb[0].mxu0
  %v4226 = vadd.f32 %v3684, %v4225
  %v4227 = vpop.f32.mrb[0].mxu0
  %v4228 = vadd.f32 %v3688, %v4227
  %v4229 = vpop.f32.mrb[0].mxu0
  %v4230 = vadd.f32 %v3688, %v4229
  %4231 = vdwg.mxu0
  %4232 = vmatprep.subr.bf16.mxu0 %v2280
  %4233 = vmatpush1.bf16.msra.mxu0 %v2279
  %4234 = vmatprep.subr.bf16.mxu0 %v2312
  %4235 = vmatpush1.bf16.msra.mxu0 %v2311
  %4236 = vmatprep.subr.bf16.mxu0 %v2729
  %4237 = vmatpush1.bf16.msra.mxu0 %v2728
  %4238 = vmatprep.subr.bf16.mxu0 %v2761
  %4239 = vmatpush1.bf16.msra.mxu0 %v2760
  %4240 = vmatprep.subr.bf16.mxu0 %v3178
  %4241 = vmatpush1.bf16.msra.mxu0 %v3177
  %4242 = vmatprep.subr.bf16.mxu0 %v3210
  %4243 = vmatpush1.bf16.msra.mxu0 %v3209
  %4244 = vmatprep.subr.bf16.mxu0 %v3627
  %4245 = vmatpush1.bf16.msra.mxu0 %v3626
  %4246 = vmatprep.subr.bf16.mxu0 %v3659
  %4247 = vmatpush1.bf16.msra.mxu0 %v3658
  %4248 = vmatprep.subr.bf16.mxu0 0
  %4249 = vmatpush1.bf16.msra.mxu0 0
  %4250 = vmatprep.subr.bf16.mxu0 0
  %4251 = vmatpush1.bf16.msra.mxu0 0
  %4252 = vmatprep.subr.bf16.mxu0 0
  %4253 = vmatpush1.bf16.msra.mxu0 0
  %4254 = vmatprep.subr.bf16.mxu0 0
  %4255 = vmatpush1.bf16.msra.mxu0 0
  %4256 = vmatprep.subr.bf16.mxu0 0
  %4257 = vmatpush1.bf16.msra.mxu0 0
  %4258 = vmatprep.subr.bf16.mxu0 0
  %4259 = vmatpush1.bf16.msra.mxu0 0
  %4260 = vmatprep.subr.bf16.mxu0 0
  %4261 = vmatpush1.bf16.msra.mxu0 0
  %4262 = vmatprep.subr.bf16.mxu0 0
  %4263 = vmatpush1.bf16.msra.mxu0 0
  %4264 = vmatprep.mubr.bf16.mxu0 0
  %4265 = vmatmul.mubr.bf16.gmra.mrb[0].mxu0 %v3698
  %v4266 = vpop.f32.mrb[0].mxu0
  %v4267 = vadd.f32 %v3676, %v4266
  %v4268 = vpop.f32.mrb[0].mxu0
  %v4269 = vadd.f32 %v3676, %v4268
  %v4270 = vpop.f32.mrb[0].mxu0
  %v4271 = vadd.f32 %v3680, %v4270
  %v4272 = vpop.f32.mrb[0].mxu0
  %v4273 = vadd.f32 %v3680, %v4272
  %4274 = vmatprep.mubr.bf16.mxu0 0
  %4275 = vmatmul.mubr.bf16.gmra.mrb[0].mxu0 %v3699
  %v4276 = vpop.f32.mrb[0].mxu0
  %v4277 = vadd.f32 %v3684, %v4276
  %v4278 = vpop.f32.mrb[0].mxu0
  %v4279 = vadd.f32 %v3684, %v4278
  %v4280 = vpop.f32.mrb[0].mxu0
  %v4281 = vadd.f32 %v3688, %v4280
  %v4282 = vpop.f32.mrb[0].mxu0
  %v4283 = vadd.f32 %v3688, %v4282
  %4284 = vdwg.mxu0
  %4285 = vmatprep.subr.bf16.mxu0 %v2282
  %4286 = vmatpush1.bf16.msra.mxu0 %v2281
  %4287 = vmatprep.subr.bf16.mxu0 %v2314
  %4288 = vmatpush1.bf16.msra.mxu0 %v2313
  %4289 = vmatprep.subr.bf16.mxu0 %v2731
  %4290 = vmatpush1.bf16.msra.mxu0 %v2730
  %4291 = vmatprep.subr.bf16.mxu0 %v2763
  %4292 = vmatpush1.bf16.msra.mxu0 %v2762
  %4293 = vmatprep.subr.bf16.mxu0 %v3180
  %4294 = vmatpush1.bf16.msra.mxu0 %v3179
  %4295 = vmatprep.subr.bf16.mxu0 %v3212
  %4296 = vmatpush1.bf16.msra.mxu0 %v3211
  %4297 = vmatprep.subr.bf16.mxu0 %v3629
  %4298 = vmatpush1.bf16.msra.mxu0 %v3628
  %4299 = vmatprep.subr.bf16.mxu0 %v3661
  %4300 = vmatpush1.bf16.msra.mxu0 %v3660
  %4301 = vmatprep.subr.bf16.mxu0 0
  %4302 = vmatpush1.bf16.msra.mxu0 0
  %4303 = vmatprep.subr.bf16.mxu0 0
  %4304 = vmatpush1.bf16.msra.mxu0 0
  %4305 = vmatprep.subr.bf16.mxu0 0
  %4306 = vmatpush1.bf16.msra.mxu0 0
  %4307 = vmatprep.subr.bf16.mxu0 0
  %4308 = vmatpush1.bf16.msra.mxu0 0
  %4309 = vmatprep.subr.bf16.mxu0 0
  %4310 = vmatpush1.bf16.msra.mxu0 0
  %4311 = vmatprep.subr.bf16.mxu0 0
  %4312 = vmatpush1.bf16.msra.mxu0 0
  %4313 = vmatprep.subr.bf16.mxu0 0
  %4314 = vmatpush1.bf16.msra.mxu0 0
  %4315 = vmatprep.subr.bf16.mxu0 0
  %4316 = vmatpush1.bf16.msra.mxu0 0
  %4317 = vmatprep.mubr.bf16.mxu0 0
  %4318 = vmatmul.mubr.bf16.gmra.mrb[0].mxu0 %v3698
  %v4319 = vpop.f32.mrb[0].mxu0
  %v4320 = vadd.f32 %v3676, %v4319
  %v4321 = vpop.f32.mrb[0].mxu0
  %v4322 = vadd.f32 %v3676, %v4321
  %v4323 = vpop.f32.mrb[0].mxu0
  %v4324 = vadd.f32 %v3680, %v4323
  %v4325 = vpop.f32.mrb[0].mxu0
  %v4326 = vadd.f32 %v3680, %v4325
  %4327 = vmatprep.mubr.bf16.mxu0 0
  %4328 = vmatmul.mubr.bf16.gmra.mrb[0].mxu0 %v3699
  %v4329 = vpop.f32.mrb[0].mxu0
  %v4330 = vadd.f32 %v3684, %v4329
  %v4331 = vpop.f32.mrb[0].mxu0
  %v4332 = vadd.f32 %v3684, %v4331
  %v4333 = vpop.f32.mrb[0].mxu0
  %v4334 = vadd.f32 %v3688, %v4333
  %v4335 = vpop.f32.mrb[0].mxu0
  %v4336 = vadd.f32 %v3688, %v4335
  %4337 = vdwg.mxu0
  %4338 = vmatprep.subr.bf16.mxu0 %v2284
  %4339 = vmatpush1.bf16.msra.mxu0 %v2283
  %4340 = vmatprep.subr.bf16.mxu0 %v2316
  %4341 = vmatpush1.bf16.msra.mxu0 %v2315
  %4342 = vmatprep.subr.bf16.mxu0 %v2733
  %4343 = vmatpush1.bf16.msra.mxu0 %v2732
  %4344 = vmatprep.subr.bf16.mxu0 %v2765
  %4345 = vmatpush1.bf16.msra.mxu0 %v2764
  %4346 = vmatprep.subr.bf16.mxu0 %v3182
  %4347 = vmatpush1.bf16.msra.mxu0 %v3181
  %4348 = vmatprep.subr.bf16.mxu0 %v3214
  %4349 = vmatpush1.bf16.msra.mxu0 %v3213
  %4350 = vmatprep.subr.bf16.mxu0 %v3631
  %4351 = vmatpush1.bf16.msra.mxu0 %v3630
  %4352 = vmatprep.subr.bf16.mxu0 %v3663
  %4353 = vmatpush1.bf16.msra.mxu0 %v3662
  %4354 = vmatprep.subr.bf16.mxu0 0
  %4355 = vmatpush1.bf16.msra.mxu0 0
  %4356 = vmatprep.subr.bf16.mxu0 0
  %4357 = vmatpush1.bf16.msra.mxu0 0
  %4358 = vmatprep.subr.bf16.mxu0 0
  %4359 = vmatpush1.bf16.msra.mxu0 0
  %4360 = vmatprep.subr.bf16.mxu0 0
  %4361 = vmatpush1.bf16.msra.mxu0 0
  %4362 = vmatprep.subr.bf16.mxu0 0
  %4363 = vmatpush1.bf16.msra.mxu0 0
  %4364 = vmatprep.subr.bf16.mxu0 0
  %4365 = vmatpush1.bf16.msra.mxu0 0
  %4366 = vmatprep.subr.bf16.mxu0 0
  %4367 = vmatpush1.bf16.msra.mxu0 0
  %4368 = vmatprep.subr.bf16.mxu0 0
  %4369 = vmatpush1.bf16.msra.mxu0 0
  %4370 = vmatprep.mubr.bf16.mxu0 0
  %4371 = vmatmul.mubr.bf16.gmra.mrb[0].mxu0 %v3698
  %v4372 = vpop.f32.mrb[0].mxu0
  %v4373 = vadd.f32 %v3676, %v4372
  %v4374 = vpop.f32.mrb[0].mxu0
  %v4375 = vadd.f32 %v3676, %v4374
  %v4376 = vpop.f32.mrb[0].mxu0
  %v4377 = vadd.f32 %v3680, %v4376
  %v4378 = vpop.f32.mrb[0].mxu0
  %v4379 = vadd.f32 %v3680, %v4378
  %4380 = vmatprep.mubr.bf16.mxu0 0
  %4381 = vmatmul.mubr.bf16.gmra.mrb[0].mxu0 %v3699
  %v4382 = vpop.f32.mrb[0].mxu0
  %v4383 = vadd.f32 %v3684, %v4382
  %v4384 = vpop.f32.mrb[0].mxu0
  %v4385 = vadd.f32 %v3684, %v4384
  %v4386 = vpop.f32.mrb[0].mxu0
  %v4387 = vadd.f32 %v3688, %v4386
  %v4388 = vpop.f32.mrb[0].mxu0
  %v4389 = vadd.f32 %v3688, %v4388
  %4390 = vdwg.mxu0
  %4391 = vmatprep.subr.bf16.mxu0 %v2286
  %4392 = vmatpush1.bf16.msra.mxu0 %v2285
  %4393 = vmatprep.subr.bf16.mxu0 %v2318
  %4394 = vmatpush1.bf16.msra.mxu0 %v2317
  %4395 = vmatprep.subr.bf16.mxu0 %v2735
  %4396 = vmatpush1.bf16.msra.mxu0 %v2734
  %4397 = vmatprep.subr.bf16.mxu0 %v2767
  %4398 = vmatpush1.bf16.msra.mxu0 %v2766
  %4399 = vmatprep.subr.bf16.mxu0 %v3184
  %4400 = vmatpush1.bf16.msra.mxu0 %v3183
  %4401 = vmatprep.subr.bf16.mxu0 %v3216
  %4402 = vmatpush1.bf16.msra.mxu0 %v3215
  %4403 = vmatprep.subr.bf16.mxu0 %v3633
  %4404 = vmatpush1.bf16.msra.mxu0 %v3632
  %4405 = vmatprep.subr.bf16.mxu0 %v3665
  %4406 = vmatpush1.bf16.msra.mxu0 %v3664
  %4407 = vmatprep.subr.bf16.mxu0 0
  %4408 = vmatpush1.bf16.msra.mxu0 0
  %4409 = vmatprep.subr.bf16.mxu0 0
  %4410 = vmatpush1.bf16.msra.mxu0 0
  %4411 = vmatprep.subr.bf16.mxu0 0
  %4412 = vmatpush1.bf16.msra.mxu0 0
  %4413 = vmatprep.subr.bf16.mxu0 0
  %4414 = vmatpush1.bf16.msra.mxu0 0
  %4415 = vmatprep.subr.bf16.mxu0 0
  %4416 = vmatpush1.bf16.msra.mxu0 0
  %4417 = vmatprep.subr.bf16.mxu0 0
  %4418 = vmatpush1.bf16.msra.mxu0 0
  %4419 = vmatprep.subr.bf16.mxu0 0
  %4420 = vmatpush1.bf16.msra.mxu0 0
  %4421 = vmatprep.subr.bf16.mxu0 0
  %4422 = vmatpush1.bf16.msra.mxu0 0
  %4423 = vmatprep.mubr.bf16.mxu0 0
  %4424 = vmatmul.mubr.bf16.gmra.mrb[0].mxu0 %v3698
  %v4425 = vpop.f32.mrb[0].mxu0
  %v4426 = vadd.f32 %v3676, %v4425
  %v4427 = vpop.f32.mrb[0].mxu0
  %v4428 = vadd.f32 %v3676, %v4427
  %v4429 = vpop.f32.mrb[0].mxu0
  %v4430 = vadd.f32 %v3680, %v4429
  %v4431 = vpop.f32.mrb[0].mxu0
  %v4432 = vadd.f32 %v3680, %v4431
  %4433 = vmatprep.mubr.bf16.mxu0 0
  %4434 = vmatmul.mubr.bf16.gmra.mrb[0].mxu0 %v3699
  %v4435 = vpop.f32.mrb[0].mxu0
  %v4436 = vadd.f32 %v3684, %v4435
  %v4437 = vpop.f32.mrb[0].mxu0
  %v4438 = vadd.f32 %v3684, %v4437
  %v4439 = vpop.f32.mrb[0].mxu0
  %v4440 = vadd.f32 %v3688, %v4439
  %v4441 = vpop.f32.mrb[0].mxu0
  %v4442 = vadd.f32 %v3688, %v4441
  %4443 = vdwg.mxu0
  %4444 = vmatprep.subr.bf16.mxu0 %v2288
  %4445 = vmatpush1.bf16.msra.mxu0 %v2287
  %4446 = vmatprep.subr.bf16.mxu0 %v2320
  %4447 = vmatpush1.bf16.msra.mxu0 %v2319
  %4448 = vmatprep.subr.bf16.mxu0 %v2737
  %4449 = vmatpush1.bf16.msra.mxu0 %v2736
  %4450 = vmatprep.subr.bf16.mxu0 %v2769
  %4451 = vmatpush1.bf16.msra.mxu0 %v2768
  %4452 = vmatprep.subr.bf16.mxu0 %v3186
  %4453 = vmatpush1.bf16.msra.mxu0 %v3185
  %4454 = vmatprep.subr.bf16.mxu0 %v3218
  %4455 = vmatpush1.bf16.msra.mxu0 %v3217
  %4456 = vmatprep.subr.bf16.mxu0 %v3635
  %4457 = vmatpush1.bf16.msra.mxu0 %v3634
  %4458 = vmatprep.subr.bf16.mxu0 %v3667
  %4459 = vmatpush1.bf16.msra.mxu0 %v3666
  %4460 = vmatprep.subr.bf16.mxu0 0
  %4461 = vmatpush1.bf16.msra.mxu0 0
  %4462 = vmatprep.subr.bf16.mxu0 0
  %4463 = vmatpush1.bf16.msra.mxu0 0
  %4464 = vmatprep.subr.bf16.mxu0 0
  %4465 = vmatpush1.bf16.msra.mxu0 0
  %4466 = vmatprep.subr.bf16.mxu0 0
  %4467 = vmatpush1.bf16.msra.mxu0 0
  %4468 = vmatprep.subr.bf16.mxu0 0
  %4469 = vmatpush1.bf16.msra.mxu0 0
  %4470 = vmatprep.subr.bf16.mxu0 0
  %4471 = vmatpush1.bf16.msra.mxu0 0
  %4472 = vmatprep.subr.bf16.mxu0 0
  %4473 = vmatpush1.bf16.msra.mxu0 0
  %4474 = vmatprep.subr.bf16.mxu0 0
  %4475 = vmatpush1.bf16.msra.mxu0 0
  %4476 = vmatprep.mubr.bf16.mxu0 0
  %4477 = vmatmul.mubr.bf16.gmra.mrb[0].mxu0 %v3698
  %v4478 = vpop.f32.mrb[0].mxu0
  %v4479 = vadd.f32 %v3676, %v4478
  %v4480 = vpop.f32.mrb[0].mxu0
  %v4481 = vadd.f32 %v3676, %v4480
  %v4482 = vpop.f32.mrb[0].mxu0
  %v4483 = vadd.f32 %v3680, %v4482
  %v4484 = vpop.f32.mrb[0].mxu0
  %v4485 = vadd.f32 %v3680, %v4484
  %4486 = vmatprep.mubr.bf16.mxu0 0
  %4487 = vmatmul.mubr.bf16.gmra.mrb[0].mxu0 %v3699
  %v4488 = vpop.f32.mrb[0].mxu0
  %v4489 = vadd.f32 %v3684, %v4488
  %v4490 = vpop.f32.mrb[0].mxu0
  %v4491 = vadd.f32 %v3684, %v4490
  %v4492 = vpop.f32.mrb[0].mxu0
  %v4493 = vadd.f32 %v3688, %v4492
  %v4494 = vpop.f32.mrb[0].mxu0
  %v4495 = vadd.f32 %v3688, %v4494
  %4496 = vdwg.mxu0
  %4497 = vmatprep.subr.bf16.mxu0 %v2290
  %4498 = vmatpush1.bf16.msra.mxu0 %v2289
  %4499 = vmatprep.subr.bf16.mxu0 %v2322
  %4500 = vmatpush1.bf16.msra.mxu0 %v2321
  %4501 = vmatprep.subr.bf16.mxu0 %v2739
  %4502 = vmatpush1.bf16.msra.mxu0 %v2738
  %4503 = vmatprep.subr.bf16.mxu0 %v2771
  %4504 = vmatpush1.bf16.msra.mxu0 %v2770
  %4505 = vmatprep.subr.bf16.mxu0 %v3188
  %4506 = vmatpush1.bf16.msra.mxu0 %v3187
  %4507 = vmatprep.subr.bf16.mxu0 %v3220
  %4508 = vmatpush1.bf16.msra.mxu0 %v3219
  %4509 = vmatprep.subr.bf16.mxu0 %v3637
  %4510 = vmatpush1.bf16.msra.mxu0 %v3636
  %4511 = vmatprep.subr.bf16.mxu0 %v3669
  %4512 = vmatpush1.bf16.msra.mxu0 %v3668
  %4513 = vmatprep.subr.bf16.mxu0 0
  %4514 = vmatpush1.bf16.msra.mxu0 0
  %4515 = vmatprep.subr.bf16.mxu0 0
  %4516 = vmatpush1.bf16.msra.mxu0 0
  %4517 = vmatprep.subr.bf16.mxu0 0
  %4518 = vmatpush1.bf16.msra.mxu0 0
  %4519 = vmatprep.subr.bf16.mxu0 0
  %4520 = vmatpush1.bf16.msra.mxu0 0
  %4521 = vmatprep.subr.bf16.mxu0 0
  %4522 = vmatpush1.bf16.msra.mxu0 0
  %4523 = vmatprep.subr.bf16.mxu0 0
  %4524 = vmatpush1.bf16.msra.mxu0 0
  %4525 = vmatprep.subr.bf16.mxu0 0
  %4526 = vmatpush1.bf16.msra.mxu0 0
  %4527 = vmatprep.subr.bf16.mxu0 0
  %4528 = vmatpush1.bf16.msra.mxu0 0
  %4529 = vmatprep.mubr.bf16.mxu0 0
  %4530 = vmatmul.mubr.bf16.gmra.mrb[0].mxu0 %v3698
  %v4531 = vpop.f32.mrb[0].mxu0
  %v4532 = vadd.f32 %v3676, %v4531
  %v4533 = vpop.f32.mrb[0].mxu0
  %v4534 = vadd.f32 %v3676, %v4533
  %v4535 = vpop.f32.mrb[0].mxu0
  %v4536 = vadd.f32 %v3680, %v4535
  %v4537 = vpop.f32.mrb[0].mxu0
  %v4538 = vadd.f32 %v3680, %v4537
  %4539 = vmatprep.mubr.bf16.mxu0 0
  %4540 = vmatmul.mubr.bf16.gmra.mrb[0].mxu0 %v3699
  %v4541 = vpop.f32.mrb[0].mxu0
  %v4542 = vadd.f32 %v3684, %v4541
  %v4543 = vpop.f32.mrb[0].mxu0
  %v4544 = vadd.f32 %v3684, %v4543
  %v4545 = vpop.f32.mrb[0].mxu0
  %v4546 = vadd.f32 %v3688, %v4545
  %v4547 = vpop.f32.mrb[0].mxu0
  %v4548 = vadd.f32 %v3688, %v4547
  %4549 = vdwg.mxu0
  %v4550 = vmul.f32 %v3737, 0.1
  %v4551 = vmul.f32 %v3739, 0.1
  %v4552 = vmul.f32 %v3790, 0.1
  %v4553 = vmul.f32 %v3792, 0.1
  %v4554 = vmul.f32 %v3843, 0.1
  %v4555 = vmul.f32 %v3845, 0.1
  %v4556 = vmul.f32 %v3896, 0.1
  %v4557 = vmul.f32 %v3898, 0.1
  %v4558 = vmul.f32 %v3949, 0.1
  %v4559 = vmul.f32 %v3951, 0.1
  %v4560 = vmul.f32 %v4002, 0.1
  %v4561 = vmul.f32 %v4004, 0.1
  %v4562 = vmul.f32 %v4055, 0.1
  %v4563 = vmul.f32 %v4057, 0.1
  %v4564 = vmul.f32 %v4108, 0.1
  %v4565 = vmul.f32 %v4110, 0.1
  %v4566 = vmul.f32 %v4161, 0.1
  %v4567 = vmul.f32 %v4163, 0.1
  %v4568 = vmul.f32 %v4214, 0.1
  %v4569 = vmul.f32 %v4216, 0.1
  %v4570 = vmul.f32 %v4267, 0.1
  %v4571 = vmul.f32 %v4269, 0.1
  %v4572 = vmul.f32 %v4320, 0.1
  %v4573 = vmul.f32 %v4322, 0.1
  %v4574 = vmul.f32 %v4373, 0.1
  %v4575 = vmul.f32 %v4375, 0.1
  %v4576 = vmul.f32 %v4426, 0.1
  %v4577 = vmul.f32 %v4428, 0.1
  %v4578 = vmul.f32 %v4479, 0.1
  %v4579 = vmul.f32 %v4481, 0.1
  %v4580 = vmul.f32 %v4532, 0.1
  %v4581 = vmul.f32 %v4534, 0.1
  %v4582 = vmul.f32 %v3741, 0.1
  %v4583 = vmul.f32 %v3743, 0.1
  %v4584 = vmul.f32 %v3794, 0.1
  %v4585 = vmul.f32 %v3796, 0.1
  %v4586 = vmul.f32 %v3847, 0.1
  %v4587 = vmul.f32 %v3849, 0.1
  %v4588 = vmul.f32 %v3900, 0.1
  %v4589 = vmul.f32 %v3902, 0.1
  %v4590 = vmul.f32 %v3953, 0.1
  %v4591 = vmul.f32 %v3955, 0.1
  %v4592 = vmul.f32 %v4006, 0.1
  %v4593 = vmul.f32 %v4008, 0.1
  %v4594 = vmul.f32 %v4059, 0.1
  %v4595 = vmul.f32 %v4061, 0.1
  %v4596 = vmul.f32 %v4112, 0.1
  %v4597 = vmul.f32 %v4114, 0.1
  %v4598 = vmul.f32 %v4165, 0.1
  %v4599 = vmul.f32 %v4167, 0.1
  %v4600 = vmul.f32 %v4218, 0.1
  %v4601 = vmul.f32 %v4220, 0.1
  %v4602 = vmul.f32 %v4271, 0.1
  %v4603 = vmul.f32 %v4273, 0.1
  %v4604 = vmul.f32 %v4324, 0.1
  %v4605 = vmul.f32 %v4326, 0.1
  %v4606 = vmul.f32 %v4377, 0.1
  %v4607 = vmul.f32 %v4379, 0.1
  %v4608 = vmul.f32 %v4430, 0.1
  %v4609 = vmul.f32 %v4432, 0.1
  %v4610 = vmul.f32 %v4483, 0.1
  %v4611 = vmul.f32 %v4485, 0.1
  %v4612 = vmul.f32 %v4536, 0.1
  %v4613 = vmul.f32 %v4538, 0.1
  %v4614 = vmul.f32 %v3747, 0.1
  %v4615 = vmul.f32 %v3749, 0.1
  %v4616 = vmul.f32 %v3800, 0.1
  %v4617 = vmul.f32 %v3802, 0.1
  %v4618 = vmul.f32 %v3853, 0.1
  %v4619 = vmul.f32 %v3855, 0.1
  %v4620 = vmul.f32 %v3906, 0.1
  %v4621 = vmul.f32 %v3908, 0.1
  %v4622 = vmul.f32 %v3959, 0.1
  %v4623 = vmul.f32 %v3961, 0.1
  %v4624 = vmul.f32 %v4012, 0.1
  %v4625 = vmul.f32 %v4014, 0.1
  %v4626 = vmul.f32 %v4065, 0.1
  %v4627 = vmul.f32 %v4067, 0.1
  %v4628 = vmul.f32 %v4118, 0.1
  %v4629 = vmul.f32 %v4120, 0.1
  %v4630 = vmul.f32 %v4171, 0.1
  %v4631 = vmul.f32 %v4173, 0.1
  %v4632 = vmul.f32 %v4224, 0.1
  %v4633 = vmul.f32 %v4226, 0.1
  %v4634 = vmul.f32 %v4277, 0.1
  %v4635 = vmul.f32 %v4279, 0.1
  %v4636 = vmul.f32 %v4330, 0.1
  %v4637 = vmul.f32 %v4332, 0.1
  %v4638 = vmul.f32 %v4383, 0.1
  %v4639 = vmul.f32 %v4385, 0.1
  %v4640 = vmul.f32 %v4436, 0.1
  %v4641 = vmul.f32 %v4438, 0.1
  %v4642 = vmul.f32 %v4489, 0.1
  %v4643 = vmul.f32 %v4491, 0.1
  %v4644 = vmul.f32 %v4542, 0.1
  %v4645 = vmul.f32 %v4544, 0.1
  %v4646 = vmul.f32 %v3751, 0.1
  %v4647 = vmul.f32 %v3753, 0.1
  %v4648 = vmul.f32 %v3804, 0.1
  %v4649 = vmul.f32 %v3806, 0.1
  %v4650 = vmul.f32 %v3857, 0.1
  %v4651 = vmul.f32 %v3859, 0.1
  %v4652 = vmul.f32 %v3910, 0.1
  %v4653 = vmul.f32 %v3912, 0.1
  %v4654 = vmul.f32 %v3963, 0.1
  %v4655 = vmul.f32 %v3965, 0.1
  %v4656 = vmul.f32 %v4016, 0.1
  %v4657 = vmul.f32 %v4018, 0.1
  %v4658 = vmul.f32 %v4069, 0.1
  %v4659 = vmul.f32 %v4071, 0.1
  %v4660 = vmul.f32 %v4122, 0.1
  %v4661 = vmul.f32 %v4124, 0.1
  %v4662 = vmul.f32 %v4175, 0.1
  %v4663 = vmul.f32 %v4177, 0.1
  %v4664 = vmul.f32 %v4228, 0.1
  %v4665 = vmul.f32 %v4230, 0.1
  %v4666 = vmul.f32 %v4281, 0.1
  %v4667 = vmul.f32 %v4283, 0.1
  %v4668 = vmul.f32 %v4334, 0.1
  %v4669 = vmul.f32 %v4336, 0.1
  %v4670 = vmul.f32 %v4387, 0.1
  %v4671 = vmul.f32 %v4389, 0.1
  %v4672 = vmul.f32 %v4440, 0.1
  %v4673 = vmul.f32 %v4442, 0.1
  %v4674 = vmul.f32 %v4493, 0.1
  %v4675 = vmul.f32 %v4495, 0.1
  %v4676 = vmul.f32 %v4546, 0.1
  %v4677 = vmul.f32 %v4548, 0.1
  %v4678 = vmax.f32 %v3737, %v4550
  %v4679 = vmax.f32 %v3739, %v4551
  %v4680 = vmax.f32 %v3790, %v4552
  %v4681 = vmax.f32 %v3792, %v4553
  %v4682 = vmax.f32 %v3843, %v4554
  %v4683 = vmax.f32 %v3845, %v4555
  %v4684 = vmax.f32 %v3896, %v4556
  %v4685 = vmax.f32 %v3898, %v4557
  %v4686 = vmax.f32 %v3949, %v4558
  %v4687 = vmax.f32 %v3951, %v4559
  %v4688 = vmax.f32 %v4002, %v4560
  %v4689 = vmax.f32 %v4004, %v4561
  %v4690 = vmax.f32 %v4055, %v4562
  %v4691 = vmax.f32 %v4057, %v4563
  %v4692 = vmax.f32 %v4108, %v4564
  %v4693 = vmax.f32 %v4110, %v4565
  %v4694 = vmax.f32 %v4161, %v4566
  %v4695 = vmax.f32 %v4163, %v4567
  %v4696 = vmax.f32 %v4214, %v4568
  %v4697 = vmax.f32 %v4216, %v4569
  %v4698 = vmax.f32 %v4267, %v4570
  %v4699 = vmax.f32 %v4269, %v4571
  %v4700 = vmax.f32 %v4320, %v4572
  %v4701 = vmax.f32 %v4322, %v4573
  %v4702 = vmax.f32 %v4373, %v4574
  %v4703 = vmax.f32 %v4375, %v4575
  %v4704 = vmax.f32 %v4426, %v4576
  %v4705 = vmax.f32 %v4428, %v4577
  %v4706 = vmax.f32 %v4479, %v4578
  %v4707 = vmax.f32 %v4481, %v4579
  %v4708 = vmax.f32 %v4532, %v4580
  %v4709 = vmax.f32 %v4534, %v4581
  %v4710 = vmax.f32 %v3741, %v4582
  %v4711 = vmax.f32 %v3743, %v4583
  %v4712 = vmax.f32 %v3794, %v4584
  %v4713 = vmax.f32 %v3796, %v4585
  %v4714 = vmax.f32 %v3847, %v4586
  %v4715 = vmax.f32 %v3849, %v4587
  %v4716 = vmax.f32 %v3900, %v4588
  %v4717 = vmax.f32 %v3902, %v4589
  %v4718 = vmax.f32 %v3953, %v4590
  %v4719 = vmax.f32 %v3955, %v4591
  %v4720 = vmax.f32 %v4006, %v4592
  %v4721 = vmax.f32 %v4008, %v4593
  %v4722 = vmax.f32 %v4059, %v4594
  %v4723 = vmax.f32 %v4061, %v4595
  %v4724 = vmax.f32 %v4112, %v4596
  %v4725 = vmax.f32 %v4114, %v4597
  %v4726 = vmax.f32 %v4165, %v4598
  %v4727 = vmax.f32 %v4167, %v4599
  %v4728 = vmax.f32 %v4218, %v4600
  %v4729 = vmax.f32 %v4220, %v4601
  %v4730 = vmax.f32 %v4271, %v4602
  %v4731 = vmax.f32 %v4273, %v4603
  %v4732 = vmax.f32 %v4324, %v4604
  %v4733 = vmax.f32 %v4326, %v4605
  %v4734 = vmax.f32 %v4377, %v4606
  %v4735 = vmax.f32 %v4379, %v4607
  %v4736 = vmax.f32 %v4430, %v4608
  %v4737 = vmax.f32 %v4432, %v4609
  %v4738 = vmax.f32 %v4483, %v4610
  %v4739 = vmax.f32 %v4485, %v4611
  %v4740 = vmax.f32 %v4536, %v4612
  %v4741 = vmax.f32 %v4538, %v4613
  %v4742 = vmax.f32 %v3747, %v4614
  %v4743 = vmax.f32 %v3749, %v4615
  %v4744 = vmax.f32 %v3800, %v4616
  %v4745 = vmax.f32 %v3802, %v4617
  %v4746 = vmax.f32 %v3853, %v4618
  %v4747 = vmax.f32 %v3855, %v4619
  %v4748 = vmax.f32 %v3906, %v4620
  %v4749 = vmax.f32 %v3908, %v4621
  %v4750 = vmax.f32 %v3959, %v4622
  %v4751 = vmax.f32 %v3961, %v4623
  %v4752 = vmax.f32 %v4012, %v4624
  %v4753 = vmax.f32 %v4014, %v4625
  %v4754 = vmax.f32 %v4065, %v4626
  %v4755 = vmax.f32 %v4067, %v4627
  %v4756 = vmax.f32 %v4118, %v4628
  %v4757 = vmax.f32 %v4120, %v4629
  %v4758 = vmax.f32 %v4171, %v4630
  %v4759 = vmax.f32 %v4173, %v4631
  %v4760 = vmax.f32 %v4224, %v4632
  %v4761 = vmax.f32 %v4226, %v4633
  %v4762 = vmax.f32 %v4277, %v4634
  %v4763 = vmax.f32 %v4279, %v4635
  %v4764 = vmax.f32 %v4330, %v4636
  %v4765 = vmax.f32 %v4332, %v4637
  %v4766 = vmax.f32 %v4383, %v4638
  %v4767 = vmax.f32 %v4385, %v4639
  %v4768 = vmax.f32 %v4436, %v4640
  %v4769 = vmax.f32 %v4438, %v4641
  %v4770 = vmax.f32 %v4489, %v4642
  %v4771 = vmax.f32 %v4491, %v4643
  %v4772 = vmax.f32 %v4542, %v4644
  %v4773 = vmax.f32 %v4544, %v4645
  %v4774 = vmax.f32 %v3751, %v4646
  %v4775 = vmax.f32 %v3753, %v4647
  %v4776 = vmax.f32 %v3804, %v4648
  %v4777 = vmax.f32 %v3806, %v4649
  %v4778 = vmax.f32 %v3857, %v4650
  %v4779 = vmax.f32 %v3859, %v4651
  %v4780 = vmax.f32 %v3910, %v4652
  %v4781 = vmax.f32 %v3912, %v4653
  %v4782 = vmax.f32 %v3963, %v4654
  %v4783 = vmax.f32 %v3965, %v4655
  %v4784 = vmax.f32 %v4016, %v4656
  %v4785 = vmax.f32 %v4018, %v4657
  %v4786 = vmax.f32 %v4069, %v4658
  %v4787 = vmax.f32 %v4071, %v4659
  %v4788 = vmax.f32 %v4122, %v4660
  %v4789 = vmax.f32 %v4124, %v4661
  %v4790 = vmax.f32 %v4175, %v4662
  %v4791 = vmax.f32 %v4177, %v4663
  %v4792 = vmax.f32 %v4228, %v4664
  %v4793 = vmax.f32 %v4230, %v4665
  %v4794 = vmax.f32 %v4281, %v4666
  %v4795 = vmax.f32 %v4283, %v4667
  %v4796 = vmax.f32 %v4334, %v4668
  %v4797 = vmax.f32 %v4336, %v4669
  %v4798 = vmax.f32 %v4387, %v4670
  %v4799 = vmax.f32 %v4389, %v4671
  %v4800 = vmax.f32 %v4440, %v4672
  %v4801 = vmax.f32 %v4442, %v4673
  %v4802 = vmax.f32 %v4493, %v4674
  %v4803 = vmax.f32 %v4495, %v4675
  %v4804 = vmax.f32 %v4546, %v4676
  %v4805 = vmax.f32 %v4548, %v4677
  %v4810 = vlaneseq
  %v4811 = vshrl.u32 %v4810, 7
  %v4812 = vsub.s32 0, %v4811
  %v4813 = vrot.slane %v2255, %v4812
  %v4814 = vlaneseq
  %v4815 = vshrl.u32 %v4814, 7
  %v4816 = vsub.s32 1, %v4815
  %v4817 = vrot.slane %v2255, %v4816
  %v4818 = vlaneseq
  %v4819 = vshrl.u32 %v4818, 7
  %v4820 = vsub.s32 2, %v4819
  %v4821 = vrot.slane %v2255, %v4820
  %v4822 = vlaneseq
  %v4823 = vshrl.u32 %v4822, 7
  %v4824 = vsub.s32 3, %v4823
  %v4825 = vrot.slane %v2255, %v4824
  %v4826 = vlaneseq
  %v4827 = vshrl.u32 %v4826, 7
  %v4828 = vsub.s32 4, %v4827
  %v4829 = vrot.slane %v2255, %v4828
  %v4830 = vlaneseq
  %v4831 = vshrl.u32 %v4830, 7
  %v4832 = vsub.s32 5, %v4831
  %v4833 = vrot.slane %v2255, %v4832
  %v4834 = vlaneseq
  %v4835 = vshrl.u32 %v4834, 7
  %v4836 = vsub.s32 6, %v4835
  %v4837 = vrot.slane %v2255, %v4836
  %v4838 = vlaneseq
  %v4839 = vshrl.u32 %v4838, 7
  %v4840 = vsub.s32 7, %v4839
  %v4841 = vrot.slane %v2255, %v4840
  %v4842 = vlaneseq
  %v4843 = vshrl.u32 %v4842, 7
  %v4844 = vsub.s32 0, %v4843
  %v4845 = vrot.slane %v2256, %v4844
  %v4846 = vlaneseq
  %v4847 = vshrl.u32 %v4846, 7
  %v4848 = vsub.s32 1, %v4847
  %v4849 = vrot.slane %v2256, %v4848
  %v4850 = vlaneseq
  %v4851 = vshrl.u32 %v4850, 7
  %v4852 = vsub.s32 2, %v4851
  %v4853 = vrot.slane %v2256, %v4852
  %v4854 = vlaneseq
  %v4855 = vshrl.u32 %v4854, 7
  %v4856 = vsub.s32 3, %v4855
  %v4857 = vrot.slane %v2256, %v4856
  %v4858 = vlaneseq
  %v4859 = vshrl.u32 %v4858, 7
  %v4860 = vsub.s32 4, %v4859
  %v4861 = vrot.slane %v2256, %v4860
  %v4862 = vlaneseq
  %v4863 = vshrl.u32 %v4862, 7
  %v4864 = vsub.s32 5, %v4863
  %v4865 = vrot.slane %v2256, %v4864
  %v4866 = vlaneseq
  %v4867 = vshrl.u32 %v4866, 7
  %v4868 = vsub.s32 6, %v4867
  %v4869 = vrot.slane %v2256, %v4868
  %v4870 = vlaneseq
  %v4871 = vshrl.u32 %v4870, 7
  %v4872 = vsub.s32 7, %v4871
  %v4873 = vrot.slane %v2256, %v4872
  %v4874 = vlaneseq
  %v4875 = vshrl.u32 %v4874, 7
  %v4876 = vsub.s32 0, %v4875
  %v4877 = vrot.slane %v2257, %v4876
  %v4878 = vlaneseq
  %v4879 = vshrl.u32 %v4878, 7
  %v4880 = vsub.s32 1, %v4879
  %v4881 = vrot.slane %v2257, %v4880
  %v4882 = vlaneseq
  %v4883 = vshrl.u32 %v4882, 7
  %v4884 = vsub.s32 2, %v4883
  %v4885 = vrot.slane %v2257, %v4884
  %v4886 = vlaneseq
  %v4887 = vshrl.u32 %v4886, 7
  %v4888 = vsub.s32 3, %v4887
  %v4889 = vrot.slane %v2257, %v4888
  %v4890 = vlaneseq
  %v4891 = vshrl.u32 %v4890, 7
  %v4892 = vsub.s32 4, %v4891
  %v4893 = vrot.slane %v2257, %v4892
  %v4894 = vlaneseq
  %v4895 = vshrl.u32 %v4894, 7
  %v4896 = vsub.s32 5, %v4895
  %v4897 = vrot.slane %v2257, %v4896
  %v4898 = vlaneseq
  %v4899 = vshrl.u32 %v4898, 7
  %v4900 = vsub.s32 6, %v4899
  %v4901 = vrot.slane %v2257, %v4900
  %v4902 = vlaneseq
  %v4903 = vshrl.u32 %v4902, 7
  %v4904 = vsub.s32 7, %v4903
  %v4905 = vrot.slane %v2257, %v4904
  %v4906 = vlaneseq
  %v4907 = vshrl.u32 %v4906, 7
  %v4908 = vsub.s32 0, %v4907
  %v4909 = vrot.slane %v2258, %v4908
  %v4910 = vlaneseq
  %v4911 = vshrl.u32 %v4910, 7
  %v4912 = vsub.s32 1, %v4911
  %v4913 = vrot.slane %v2258, %v4912
  %v4914 = vlaneseq
  %v4915 = vshrl.u32 %v4914, 7
  %v4916 = vsub.s32 2, %v4915
  %v4917 = vrot.slane %v2258, %v4916
  %v4918 = vlaneseq
  %v4919 = vshrl.u32 %v4918, 7
  %v4920 = vsub.s32 3, %v4919
  %v4921 = vrot.slane %v2258, %v4920
  %v4922 = vlaneseq
  %v4923 = vshrl.u32 %v4922, 7
  %v4924 = vsub.s32 4, %v4923
  %v4925 = vrot.slane %v2258, %v4924
  %v4926 = vlaneseq
  %v4927 = vshrl.u32 %v4926, 7
  %v4928 = vsub.s32 5, %v4927
  %v4929 = vrot.slane %v2258, %v4928
  %v4930 = vlaneseq
  %v4931 = vshrl.u32 %v4930, 7
  %v4932 = vsub.s32 6, %v4931
  %v4933 = vrot.slane %v2258, %v4932
  %v4934 = vlaneseq
  %v4935 = vshrl.u32 %v4934, 7
  %v4936 = vsub.s32 7, %v4935
  %v4937 = vrot.slane %v2258, %v4936
  %v4970 = vmul.f32 %v4678, %v4813
  %v4971 = vmul.f32 %v4679, %v4817
  %v4972 = vmul.f32 %v4680, %v4821
  %v4973 = vmul.f32 %v4681, %v4825
  %v4974 = vmul.f32 %v4682, %v4829
  %v4975 = vmul.f32 %v4683, %v4833
  %v4976 = vmul.f32 %v4684, %v4837
  %v4977 = vmul.f32 %v4685, %v4841
  %v4978 = vmul.f32 %v4686, %v4845
  %v4979 = vmul.f32 %v4687, %v4849
  %v4980 = vmul.f32 %v4688, %v4853
  %v4981 = vmul.f32 %v4689, %v4857
  %v4982 = vmul.f32 %v4690, %v4861
  %v4983 = vmul.f32 %v4691, %v4865
  %v4984 = vmul.f32 %v4692, %v4869
  %v4985 = vmul.f32 %v4693, %v4873
  %v4986 = vmul.f32 %v4694, %v4877
  %v4987 = vmul.f32 %v4695, %v4881
  %v4988 = vmul.f32 %v4696, %v4885
  %v4989 = vmul.f32 %v4697, %v4889
  %v4990 = vmul.f32 %v4698, %v4893
  %v4991 = vmul.f32 %v4699, %v4897
  %v4992 = vmul.f32 %v4700, %v4901
  %v4993 = vmul.f32 %v4701, %v4905
  %v4994 = vmul.f32 %v4702, %v4909
  %v4995 = vmul.f32 %v4703, %v4913
  %v4996 = vmul.f32 %v4704, %v4917
  %v4997 = vmul.f32 %v4705, %v4921
  %v4998 = vmul.f32 %v4706, %v4925
  %v4999 = vmul.f32 %v4707, %v4929
  %v5000 = vmul.f32 %v4708, %v4933
  %v5001 = vmul.f32 %v4709, %v4937
  %v5002 = vmul.f32 %v4710, %v4813
  %v5003 = vmul.f32 %v4711, %v4817
  %v5004 = vmul.f32 %v4712, %v4821
  %v5005 = vmul.f32 %v4713, %v4825
  %v5006 = vmul.f32 %v4714, %v4829
  %v5007 = vmul.f32 %v4715, %v4833
  %v5008 = vmul.f32 %v4716, %v4837
  %v5009 = vmul.f32 %v4717, %v4841
  %v5010 = vmul.f32 %v4718, %v4845
  %v5011 = vmul.f32 %v4719, %v4849
  %v5012 = vmul.f32 %v4720, %v4853
  %v5013 = vmul.f32 %v4721, %v4857
  %v5014 = vmul.f32 %v4722, %v4861
  %v5015 = vmul.f32 %v4723, %v4865
  %v5016 = vmul.f32 %v4724, %v4869
  %v5017 = vmul.f32 %v4725, %v4873
  %v5018 = vmul.f32 %v4726, %v4877
  %v5019 = vmul.f32 %v4727, %v4881
  %v5020 = vmul.f32 %v4728, %v4885
  %v5021 = vmul.f32 %v4729, %v4889
  %v5022 = vmul.f32 %v4730, %v4893
  %v5023 = vmul.f32 %v4731, %v4897
  %v5024 = vmul.f32 %v4732, %v4901
  %v5025 = vmul.f32 %v4733, %v4905
  %v5026 = vmul.f32 %v4734, %v4909
  %v5027 = vmul.f32 %v4735, %v4913
  %v5028 = vmul.f32 %v4736, %v4917
  %v5029 = vmul.f32 %v4737, %v4921
  %v5030 = vmul.f32 %v4738, %v4925
  %v5031 = vmul.f32 %v4739, %v4929
  %v5032 = vmul.f32 %v4740, %v4933
  %v5033 = vmul.f32 %v4741, %v4937
  %v5034 = vmul.f32 %v4742, %v4813
  %v5035 = vmul.f32 %v4743, %v4817
  %v5036 = vmul.f32 %v4744, %v4821
  %v5037 = vmul.f32 %v4745, %v4825
  %v5038 = vmul.f32 %v4746, %v4829
  %v5039 = vmul.f32 %v4747, %v4833
  %v5040 = vmul.f32 %v4748, %v4837
  %v5041 = vmul.f32 %v4749, %v4841
  %v5042 = vmul.f32 %v4750, %v4845
  %v5043 = vmul.f32 %v4751, %v4849
  %v5044 = vmul.f32 %v4752, %v4853
  %v5045 = vmul.f32 %v4753, %v4857
  %v5046 = vmul.f32 %v4754, %v4861
  %v5047 = vmul.f32 %v4755, %v4865
  %v5048 = vmul.f32 %v4756, %v4869
  %v5049 = vmul.f32 %v4757, %v4873
  %v5050 = vmul.f32 %v4758, %v4877
  %v5051 = vmul.f32 %v4759, %v4881
  %v5052 = vmul.f32 %v4760, %v4885
  %v5053 = vmul.f32 %v4761, %v4889
  %v5054 = vmul.f32 %v4762, %v4893
  %v5055 = vmul.f32 %v4763, %v4897
  %v5056 = vmul.f32 %v4764, %v4901
  %v5057 = vmul.f32 %v4765, %v4905
  %v5058 = vmul.f32 %v4766, %v4909
  %v5059 = vmul.f32 %v4767, %v4913
  %v5060 = vmul.f32 %v4768, %v4917
  %v5061 = vmul.f32 %v4769, %v4921
  %v5062 = vmul.f32 %v4770, %v4925
  %v5063 = vmul.f32 %v4771, %v4929
  %v5064 = vmul.f32 %v4772, %v4933
  %v5065 = vmul.f32 %v4773, %v4937
  %v5066 = vmul.f32 %v4774, %v4813
  %v5067 = vmul.f32 %v4775, %v4817
  %v5068 = vmul.f32 %v4776, %v4821
  %v5069 = vmul.f32 %v4777, %v4825
  %v5070 = vmul.f32 %v4778, %v4829
  %v5071 = vmul.f32 %v4779, %v4833
  %v5072 = vmul.f32 %v4780, %v4837
  %v5073 = vmul.f32 %v4781, %v4841
  %v5074 = vmul.f32 %v4782, %v4845
  %v5075 = vmul.f32 %v4783, %v4849
  %v5076 = vmul.f32 %v4784, %v4853
  %v5077 = vmul.f32 %v4785, %v4857
  %v5078 = vmul.f32 %v4786, %v4861
  %v5079 = vmul.f32 %v4787, %v4865
  %v5080 = vmul.f32 %v4788, %v4869
  %v5081 = vmul.f32 %v4789, %v4873
  %v5082 = vmul.f32 %v4790, %v4877
  %v5083 = vmul.f32 %v4791, %v4881
  %v5084 = vmul.f32 %v4792, %v4885
  %v5085 = vmul.f32 %v4793, %v4889
  %v5086 = vmul.f32 %v4794, %v4893
  %v5087 = vmul.f32 %v4795, %v4897
  %v5088 = vmul.f32 %v4796, %v4901
  %v5089 = vmul.f32 %v4797, %v4905
  %v5090 = vmul.f32 %v4798, %v4909
  %v5091 = vmul.f32 %v4799, %v4913
  %v5092 = vmul.f32 %v4800, %v4917
  %v5093 = vmul.f32 %v4801, %v4921
  %v5094 = vmul.f32 %v4802, %v4925
  %v5095 = vmul.f32 %v4803, %v4929
  %v5096 = vmul.f32 %v4804, %v4933
  %v5097 = vmul.f32 %v4805, %v4937
  %5098 = vrot.lane.b32.xlu0 %v4970, 26
  %v5099 = vpop.permute.xlu0 %5098
  %5100 = vrot.lane.b32.xlu0 %v5002, 26
  %v5101 = vpop.permute.xlu0 %5100
  %5102 = vrot.lane.b32.xlu0 %v5034, 26
  %v5103 = vpop.permute.xlu0 %5102
  %5104 = vrot.lane.b32.xlu0 %v5066, 26
  %v5105 = vpop.permute.xlu0 %5104
  %5106 = vrot.lane.b32.xlu0 %v4971, 26
  %v5107 = vpop.permute.xlu0 %5106
  %5108 = vrot.lane.b32.xlu0 %v5003, 26
  %v5109 = vpop.permute.xlu0 %5108
  %5110 = vrot.lane.b32.xlu0 %v5035, 26
  %v5111 = vpop.permute.xlu0 %5110
  %5112 = vrot.lane.b32.xlu0 %v5067, 26
  %v5113 = vpop.permute.xlu0 %5112
  %5114 = vrot.lane.b32.xlu0 %v4972, 26
  %v5115 = vpop.permute.xlu0 %5114
  %5116 = vrot.lane.b32.xlu0 %v5004, 26
  %v5117 = vpop.permute.xlu0 %5116
  %5118 = vrot.lane.b32.xlu0 %v5036, 26
  %v5119 = vpop.permute.xlu0 %5118
  %5120 = vrot.lane.b32.xlu0 %v5068, 26
  %v5121 = vpop.permute.xlu0 %5120
  %5122 = vrot.lane.b32.xlu0 %v4973, 26
  %v5123 = vpop.permute.xlu0 %5122
  %5124 = vrot.lane.b32.xlu0 %v5005, 26
  %v5125 = vpop.permute.xlu0 %5124
  %5126 = vrot.lane.b32.xlu0 %v5037, 26
  %v5127 = vpop.permute.xlu0 %5126
  %5128 = vrot.lane.b32.xlu0 %v5069, 26
  %v5129 = vpop.permute.xlu0 %5128
  %5130 = vrot.lane.b32.xlu0 %v4974, 26
  %v5131 = vpop.permute.xlu0 %5130
  %5132 = vrot.lane.b32.xlu0 %v5006, 26
  %v5133 = vpop.permute.xlu0 %5132
  %5134 = vrot.lane.b32.xlu0 %v5038, 26
  %v5135 = vpop.permute.xlu0 %5134
  %5136 = vrot.lane.b32.xlu0 %v5070, 26
  %v5137 = vpop.permute.xlu0 %5136
  %5138 = vrot.lane.b32.xlu0 %v4975, 26
  %v5139 = vpop.permute.xlu0 %5138
  %5140 = vrot.lane.b32.xlu0 %v5007, 26
  %v5141 = vpop.permute.xlu0 %5140
  %5142 = vrot.lane.b32.xlu0 %v5039, 26
  %v5143 = vpop.permute.xlu0 %5142
  %5144 = vrot.lane.b32.xlu0 %v5071, 26
  %v5145 = vpop.permute.xlu0 %5144
  %5146 = vrot.lane.b32.xlu0 %v4976, 26
  %v5147 = vpop.permute.xlu0 %5146
  %5148 = vrot.lane.b32.xlu0 %v5008, 26
  %v5149 = vpop.permute.xlu0 %5148
  %5150 = vrot.lane.b32.xlu0 %v5040, 26
  %v5151 = vpop.permute.xlu0 %5150
  %5152 = vrot.lane.b32.xlu0 %v5072, 26
  %v5153 = vpop.permute.xlu0 %5152
  %5154 = vrot.lane.b32.xlu0 %v4977, 26
  %v5155 = vpop.permute.xlu0 %5154
  %5156 = vrot.lane.b32.xlu0 %v5009, 26
  %v5157 = vpop.permute.xlu0 %5156
  %5158 = vrot.lane.b32.xlu0 %v5041, 26
  %v5159 = vpop.permute.xlu0 %5158
  %5160 = vrot.lane.b32.xlu0 %v5073, 26
  %v5161 = vpop.permute.xlu0 %5160
  %5162 = vrot.lane.b32.xlu0 %v4978, 26
  %v5163 = vpop.permute.xlu0 %5162
  %5164 = vrot.lane.b32.xlu0 %v5010, 26
  %v5165 = vpop.permute.xlu0 %5164
  %5166 = vrot.lane.b32.xlu0 %v5042, 26
  %v5167 = vpop.permute.xlu0 %5166
  %5168 = vrot.lane.b32.xlu0 %v5074, 26
  %v5169 = vpop.permute.xlu0 %5168
  %5170 = vrot.lane.b32.xlu0 %v4979, 26
  %v5171 = vpop.permute.xlu0 %5170
  %5172 = vrot.lane.b32.xlu0 %v5011, 26
  %v5173 = vpop.permute.xlu0 %5172
  %5174 = vrot.lane.b32.xlu0 %v5043, 26
  %v5175 = vpop.permute.xlu0 %5174
  %5176 = vrot.lane.b32.xlu0 %v5075, 26
  %v5177 = vpop.permute.xlu0 %5176
  %5178 = vrot.lane.b32.xlu0 %v4980, 26
  %v5179 = vpop.permute.xlu0 %5178
  %5180 = vrot.lane.b32.xlu0 %v5012, 26
  %v5181 = vpop.permute.xlu0 %5180
  %5182 = vrot.lane.b32.xlu0 %v5044, 26
  %v5183 = vpop.permute.xlu0 %5182
  %5184 = vrot.lane.b32.xlu0 %v5076, 26
  %v5185 = vpop.permute.xlu0 %5184
  %5186 = vrot.lane.b32.xlu0 %v4981, 26
  %v5187 = vpop.permute.xlu0 %5186
  %5188 = vrot.lane.b32.xlu0 %v5013, 26
  %v5189 = vpop.permute.xlu0 %5188
  %5190 = vrot.lane.b32.xlu0 %v5045, 26
  %v5191 = vpop.permute.xlu0 %5190
  %5192 = vrot.lane.b32.xlu0 %v5077, 26
  %v5193 = vpop.permute.xlu0 %5192
  %5194 = vrot.lane.b32.xlu0 %v4982, 26
  %v5195 = vpop.permute.xlu0 %5194
  %5196 = vrot.lane.b32.xlu0 %v5014, 26
  %v5197 = vpop.permute.xlu0 %5196
  %5198 = vrot.lane.b32.xlu0 %v5046, 26
  %v5199 = vpop.permute.xlu0 %5198
  %5200 = vrot.lane.b32.xlu0 %v5078, 26
  %v5201 = vpop.permute.xlu0 %5200
  %5202 = vrot.lane.b32.xlu0 %v4983, 26
  %v5203 = vpop.permute.xlu0 %5202
  %5204 = vrot.lane.b32.xlu0 %v5015, 26
  %v5205 = vpop.permute.xlu0 %5204
  %5206 = vrot.lane.b32.xlu0 %v5047, 26
  %v5207 = vpop.permute.xlu0 %5206
  %5208 = vrot.lane.b32.xlu0 %v5079, 26
  %v5209 = vpop.permute.xlu0 %5208
  %5210 = vrot.lane.b32.xlu0 %v4984, 26
  %v5211 = vpop.permute.xlu0 %5210
  %5212 = vrot.lane.b32.xlu0 %v5016, 26
  %v5213 = vpop.permute.xlu0 %5212
  %5214 = vrot.lane.b32.xlu0 %v5048, 26
  %v5215 = vpop.permute.xlu0 %5214
  %5216 = vrot.lane.b32.xlu0 %v5080, 26
  %v5217 = vpop.permute.xlu0 %5216
  %5218 = vrot.lane.b32.xlu0 %v4985, 26
  %v5219 = vpop.permute.xlu0 %5218
  %5220 = vrot.lane.b32.xlu0 %v5017, 26
  %v5221 = vpop.permute.xlu0 %5220
  %5222 = vrot.lane.b32.xlu0 %v5049, 26
  %v5223 = vpop.permute.xlu0 %5222
  %5224 = vrot.lane.b32.xlu0 %v5081, 26
  %v5225 = vpop.permute.xlu0 %5224
  %5226 = vrot.lane.b32.xlu0 %v4986, 26
  %v5227 = vpop.permute.xlu0 %5226
  %5228 = vrot.lane.b32.xlu0 %v5018, 26
  %v5229 = vpop.permute.xlu0 %5228
  %5230 = vrot.lane.b32.xlu0 %v5050, 26
  %v5231 = vpop.permute.xlu0 %5230
  %5232 = vrot.lane.b32.xlu0 %v5082, 26
  %v5233 = vpop.permute.xlu0 %5232
  %5234 = vrot.lane.b32.xlu0 %v4987, 26
  %v5235 = vpop.permute.xlu0 %5234
  %5236 = vrot.lane.b32.xlu0 %v5019, 26
  %v5237 = vpop.permute.xlu0 %5236
  %5238 = vrot.lane.b32.xlu0 %v5051, 26
  %v5239 = vpop.permute.xlu0 %5238
  %5240 = vrot.lane.b32.xlu0 %v5083, 26
  %v5241 = vpop.permute.xlu0 %5240
  %5242 = vrot.lane.b32.xlu0 %v4988, 26
  %v5243 = vpop.permute.xlu0 %5242
  %5244 = vrot.lane.b32.xlu0 %v5020, 26
  %v5245 = vpop.permute.xlu0 %5244
  %5246 = vrot.lane.b32.xlu0 %v5052, 26
  %v5247 = vpop.permute.xlu0 %5246
  %5248 = vrot.lane.b32.xlu0 %v5084, 26
  %v5249 = vpop.permute.xlu0 %5248
  %5250 = vrot.lane.b32.xlu0 %v4989, 26
  %v5251 = vpop.permute.xlu0 %5250
  %5252 = vrot.lane.b32.xlu0 %v5021, 26
  %v5253 = vpop.permute.xlu0 %5252
  %5254 = vrot.lane.b32.xlu0 %v5053, 26
  %v5255 = vpop.permute.xlu0 %5254
  %5256 = vrot.lane.b32.xlu0 %v5085, 26
  %v5257 = vpop.permute.xlu0 %5256
  %5258 = vrot.lane.b32.xlu0 %v4990, 26
  %v5259 = vpop.permute.xlu0 %5258
  %5260 = vrot.lane.b32.xlu0 %v5022, 26
  %v5261 = vpop.permute.xlu0 %5260
  %5262 = vrot.lane.b32.xlu0 %v5054, 26
  %v5263 = vpop.permute.xlu0 %5262
  %5264 = vrot.lane.b32.xlu0 %v5086, 26
  %v5265 = vpop.permute.xlu0 %5264
  %5266 = vrot.lane.b32.xlu0 %v4991, 26
  %v5267 = vpop.permute.xlu0 %5266
  %5268 = vrot.lane.b32.xlu0 %v5023, 26
  %v5269 = vpop.permute.xlu0 %5268
  %5270 = vrot.lane.b32.xlu0 %v5055, 26
  %v5271 = vpop.permute.xlu0 %5270
  %5272 = vrot.lane.b32.xlu0 %v5087, 26
  %v5273 = vpop.permute.xlu0 %5272
  %5274 = vrot.lane.b32.xlu0 %v4992, 26
  %v5275 = vpop.permute.xlu0 %5274
  %5276 = vrot.lane.b32.xlu0 %v5024, 26
  %v5277 = vpop.permute.xlu0 %5276
  %5278 = vrot.lane.b32.xlu0 %v5056, 26
  %v5279 = vpop.permute.xlu0 %5278
  %5280 = vrot.lane.b32.xlu0 %v5088, 26
  %v5281 = vpop.permute.xlu0 %5280
  %5282 = vrot.lane.b32.xlu0 %v4993, 26
  %v5283 = vpop.permute.xlu0 %5282
  %5284 = vrot.lane.b32.xlu0 %v5025, 26
  %v5285 = vpop.permute.xlu0 %5284
  %5286 = vrot.lane.b32.xlu0 %v5057, 26
  %v5287 = vpop.permute.xlu0 %5286
  %5288 = vrot.lane.b32.xlu0 %v5089, 26
  %v5289 = vpop.permute.xlu0 %5288
  %5290 = vrot.lane.b32.xlu0 %v4994, 26
  %v5291 = vpop.permute.xlu0 %5290
  %5292 = vrot.lane.b32.xlu0 %v5026, 26
  %v5293 = vpop.permute.xlu0 %5292
  %5294 = vrot.lane.b32.xlu0 %v5058, 26
  %v5295 = vpop.permute.xlu0 %5294
  %5296 = vrot.lane.b32.xlu0 %v5090, 26
  %v5297 = vpop.permute.xlu0 %5296
  %5298 = vrot.lane.b32.xlu0 %v4995, 26
  %v5299 = vpop.permute.xlu0 %5298
  %5300 = vrot.lane.b32.xlu0 %v5027, 26
  %v5301 = vpop.permute.xlu0 %5300
  %5302 = vrot.lane.b32.xlu0 %v5059, 26
  %v5303 = vpop.permute.xlu0 %5302
  %5304 = vrot.lane.b32.xlu0 %v5091, 26
  %v5305 = vpop.permute.xlu0 %5304
  %5306 = vrot.lane.b32.xlu0 %v4996, 26
  %v5307 = vpop.permute.xlu0 %5306
  %5308 = vrot.lane.b32.xlu0 %v5028, 26
  %v5309 = vpop.permute.xlu0 %5308
  %5310 = vrot.lane.b32.xlu0 %v5060, 26
  %v5311 = vpop.permute.xlu0 %5310
  %5312 = vrot.lane.b32.xlu0 %v5092, 26
  %v5313 = vpop.permute.xlu0 %5312
  %5314 = vrot.lane.b32.xlu0 %v4997, 26
  %v5315 = vpop.permute.xlu0 %5314
  %5316 = vrot.lane.b32.xlu0 %v5029, 26
  %v5317 = vpop.permute.xlu0 %5316
  %5318 = vrot.lane.b32.xlu0 %v5061, 26
  %v5319 = vpop.permute.xlu0 %5318
  %5320 = vrot.lane.b32.xlu0 %v5093, 26
  %v5321 = vpop.permute.xlu0 %5320
  %5322 = vrot.lane.b32.xlu0 %v4998, 26
  %v5323 = vpop.permute.xlu0 %5322
  %5324 = vrot.lane.b32.xlu0 %v5030, 26
  %v5325 = vpop.permute.xlu0 %5324
  %5326 = vrot.lane.b32.xlu0 %v5062, 26
  %v5327 = vpop.permute.xlu0 %5326
  %5328 = vrot.lane.b32.xlu0 %v5094, 26
  %v5329 = vpop.permute.xlu0 %5328
  %5330 = vrot.lane.b32.xlu0 %v4999, 26
  %v5331 = vpop.permute.xlu0 %5330
  %5332 = vrot.lane.b32.xlu0 %v5031, 26
  %v5333 = vpop.permute.xlu0 %5332
  %5334 = vrot.lane.b32.xlu0 %v5063, 26
  %v5335 = vpop.permute.xlu0 %5334
  %5336 = vrot.lane.b32.xlu0 %v5095, 26
  %v5337 = vpop.permute.xlu0 %5336
  %5338 = vrot.lane.b32.xlu0 %v5000, 26
  %v5339 = vpop.permute.xlu0 %5338
  %5340 = vrot.lane.b32.xlu0 %v5032, 26
  %v5341 = vpop.permute.xlu0 %5340
  %5342 = vrot.lane.b32.xlu0 %v5064, 26
  %v5343 = vpop.permute.xlu0 %5342
  %5344 = vrot.lane.b32.xlu0 %v5096, 26
  %v5345 = vpop.permute.xlu0 %5344
  %5346 = vrot.lane.b32.xlu0 %v5001, 26
  %v5347 = vpop.permute.xlu0 %5346
  %5348 = vrot.lane.b32.xlu0 %v5033, 26
  %v5349 = vpop.permute.xlu0 %5348
  %5350 = vrot.lane.b32.xlu0 %v5065, 26
  %v5351 = vpop.permute.xlu0 %5350
  %5352 = vrot.lane.b32.xlu0 %v5097, 26
  %v5353 = vpop.permute.xlu0 %5352
  %v5354 = vsel %vm276, %v5339, %v5347
  %v5355 = vsel %vm276, %v5341, %v5349
  %v5356 = vsel %vm276, %v5343, %v5351
  %v5357 = vsel %vm276, %v5345, %v5353
  %v5358 = vsel %vm276, %v5331, %v5339
  %v5359 = vsel %vm276, %v5333, %v5341
  %v5360 = vsel %vm276, %v5335, %v5343
  %v5361 = vsel %vm276, %v5337, %v5345
  %v5362 = vsel %vm276, %v5323, %v5331
  %v5363 = vsel %vm276, %v5325, %v5333
  %v5364 = vsel %vm276, %v5327, %v5335
  %v5365 = vsel %vm276, %v5329, %v5337
  %v5366 = vsel %vm276, %v5315, %v5323
  %v5367 = vsel %vm276, %v5317, %v5325
  %v5368 = vsel %vm276, %v5319, %v5327
  %v5369 = vsel %vm276, %v5321, %v5329
  %v5370 = vsel %vm276, %v5307, %v5315
  %v5371 = vsel %vm276, %v5309, %v5317
  %v5372 = vsel %vm276, %v5311, %v5319
  %v5373 = vsel %vm276, %v5313, %v5321
  %v5374 = vsel %vm276, %v5299, %v5307
  %v5375 = vsel %vm276, %v5301, %v5309
  %v5376 = vsel %vm276, %v5303, %v5311
  %v5377 = vsel %vm276, %v5305, %v5313
  %v5378 = vsel %vm276, %v5291, %v5299
  %v5379 = vsel %vm276, %v5293, %v5301
  %v5380 = vsel %vm276, %v5295, %v5303
  %v5381 = vsel %vm276, %v5297, %v5305
  %v5382 = vsel %vm276, %v5283, %v5291
  %v5383 = vsel %vm276, %v5285, %v5293
  %v5384 = vsel %vm276, %v5287, %v5295
  %v5385 = vsel %vm276, %v5289, %v5297
  %v5386 = vsel %vm276, %v5275, %v5283
  %v5387 = vsel %vm276, %v5277, %v5285
  %v5388 = vsel %vm276, %v5279, %v5287
  %v5389 = vsel %vm276, %v5281, %v5289
  %v5390 = vsel %vm276, %v5267, %v5275
  %v5391 = vsel %vm276, %v5269, %v5277
  %v5392 = vsel %vm276, %v5271, %v5279
  %v5393 = vsel %vm276, %v5273, %v5281
  %v5394 = vsel %vm276, %v5259, %v5267
  %v5395 = vsel %vm276, %v5261, %v5269
  %v5396 = vsel %vm276, %v5263, %v5271
  %v5397 = vsel %vm276, %v5265, %v5273
  %v5398 = vsel %vm276, %v5251, %v5259
  %v5399 = vsel %vm276, %v5253, %v5261
  %v5400 = vsel %vm276, %v5255, %v5263
  %v5401 = vsel %vm276, %v5257, %v5265
  %v5402 = vsel %vm276, %v5243, %v5251
  %v5403 = vsel %vm276, %v5245, %v5253
  %v5404 = vsel %vm276, %v5247, %v5255
  %v5405 = vsel %vm276, %v5249, %v5257
  %v5406 = vsel %vm276, %v5235, %v5243
  %v5407 = vsel %vm276, %v5237, %v5245
  %v5408 = vsel %vm276, %v5239, %v5247
  %v5409 = vsel %vm276, %v5241, %v5249
  %v5410 = vsel %vm276, %v5227, %v5235
  %v5411 = vsel %vm276, %v5229, %v5237
  %v5412 = vsel %vm276, %v5231, %v5239
  %v5413 = vsel %vm276, %v5233, %v5241
  %v5414 = vsel %vm276, %v5219, %v5227
  %v5415 = vsel %vm276, %v5221, %v5229
  %v5416 = vsel %vm276, %v5223, %v5231
  %v5417 = vsel %vm276, %v5225, %v5233
  %v5418 = vsel %vm276, %v5211, %v5219
  %v5419 = vsel %vm276, %v5213, %v5221
  %v5420 = vsel %vm276, %v5215, %v5223
  %v5421 = vsel %vm276, %v5217, %v5225
  %v5422 = vsel %vm276, %v5203, %v5211
  %v5423 = vsel %vm276, %v5205, %v5213
  %v5424 = vsel %vm276, %v5207, %v5215
  %v5425 = vsel %vm276, %v5209, %v5217
  %v5426 = vsel %vm276, %v5195, %v5203
  %v5427 = vsel %vm276, %v5197, %v5205
  %v5428 = vsel %vm276, %v5199, %v5207
  %v5429 = vsel %vm276, %v5201, %v5209
  %v5430 = vsel %vm276, %v5187, %v5195
  %v5431 = vsel %vm276, %v5189, %v5197
  %v5432 = vsel %vm276, %v5191, %v5199
  %v5433 = vsel %vm276, %v5193, %v5201
  %v5434 = vsel %vm276, %v5179, %v5187
  %v5435 = vsel %vm276, %v5181, %v5189
  %v5436 = vsel %vm276, %v5183, %v5191
  %v5437 = vsel %vm276, %v5185, %v5193
  %v5438 = vsel %vm276, %v5171, %v5179
  %v5439 = vsel %vm276, %v5173, %v5181
  %v5440 = vsel %vm276, %v5175, %v5183
  %v5441 = vsel %vm276, %v5177, %v5185
  %v5442 = vsel %vm276, %v5163, %v5171
  %v5443 = vsel %vm276, %v5165, %v5173
  %v5444 = vsel %vm276, %v5167, %v5175
  %v5445 = vsel %vm276, %v5169, %v5177
  %v5446 = vsel %vm276, %v5155, %v5163
  %v5447 = vsel %vm276, %v5157, %v5165
  %v5448 = vsel %vm276, %v5159, %v5167
  %v5449 = vsel %vm276, %v5161, %v5169
  %v5450 = vsel %vm276, %v5147, %v5155
  %v5451 = vsel %vm276, %v5149, %v5157
  %v5452 = vsel %vm276, %v5151, %v5159
  %v5453 = vsel %vm276, %v5153, %v5161
  %v5454 = vsel %vm276, %v5139, %v5147
  %v5455 = vsel %vm276, %v5141, %v5149
  %v5456 = vsel %vm276, %v5143, %v5151
  %v5457 = vsel %vm276, %v5145, %v5153
  %v5458 = vsel %vm276, %v5131, %v5139
  %v5459 = vsel %vm276, %v5133, %v5141
  %v5460 = vsel %vm276, %v5135, %v5143
  %v5461 = vsel %vm276, %v5137, %v5145
  %v5462 = vsel %vm276, %v5123, %v5131
  %v5463 = vsel %vm276, %v5125, %v5133
  %v5464 = vsel %vm276, %v5127, %v5135
  %v5465 = vsel %vm276, %v5129, %v5137
  %v5466 = vsel %vm276, %v5115, %v5123
  %v5467 = vsel %vm276, %v5117, %v5125
  %v5468 = vsel %vm276, %v5119, %v5127
  %v5469 = vsel %vm276, %v5121, %v5129
  %v5470 = vsel %vm276, %v5107, %v5115
  %v5471 = vsel %vm276, %v5109, %v5117
  %v5472 = vsel %vm276, %v5111, %v5119
  %v5473 = vsel %vm276, %v5113, %v5121
  %v5474 = vsel %vm276, %v5099, %v5107
  %v5475 = vsel %vm276, %v5101, %v5109
  %v5476 = vsel %vm276, %v5103, %v5111
  %v5477 = vsel %vm276, %v5105, %v5113
  %v5478 = vsel %vm276, %v5347, %v5099
  %v5479 = vsel %vm276, %v5349, %v5101
  %v5480 = vsel %vm276, %v5351, %v5103
  %v5481 = vsel %vm276, %v5353, %v5105
  %v5482 = vpack.c.bf16 %v5479, %v5478
  %v5483 = vpack.c.bf16 %v5475, %v5474
  %v5484 = vpack.c.bf16 %v5471, %v5470
  %v5485 = vpack.c.bf16 %v5467, %v5466
  %v5486 = vpack.c.bf16 %v5463, %v5462
  %v5487 = vpack.c.bf16 %v5459, %v5458
  %v5488 = vpack.c.bf16 %v5455, %v5454
  %v5489 = vpack.c.bf16 %v5451, %v5450
  %v5490 = vpack.c.bf16 %v5447, %v5446
  %v5491 = vpack.c.bf16 %v5443, %v5442
  %v5492 = vpack.c.bf16 %v5439, %v5438
  %v5493 = vpack.c.bf16 %v5435, %v5434
  %v5494 = vpack.c.bf16 %v5431, %v5430
  %v5495 = vpack.c.bf16 %v5427, %v5426
  %v5496 = vpack.c.bf16 %v5423, %v5422
  %v5497 = vpack.c.bf16 %v5419, %v5418
  %v5498 = vpack.c.bf16 %v5415, %v5414
  %v5499 = vpack.c.bf16 %v5411, %v5410
  %v5500 = vpack.c.bf16 %v5407, %v5406
  %v5501 = vpack.c.bf16 %v5403, %v5402
  %v5502 = vpack.c.bf16 %v5399, %v5398
  %v5503 = vpack.c.bf16 %v5395, %v5394
  %v5504 = vpack.c.bf16 %v5391, %v5390
  %v5505 = vpack.c.bf16 %v5387, %v5386
  %v5506 = vpack.c.bf16 %v5383, %v5382
  %v5507 = vpack.c.bf16 %v5379, %v5378
  %v5508 = vpack.c.bf16 %v5375, %v5374
  %v5509 = vpack.c.bf16 %v5371, %v5370
  %v5510 = vpack.c.bf16 %v5367, %v5366
  %v5511 = vpack.c.bf16 %v5363, %v5362
  %v5512 = vpack.c.bf16 %v5359, %v5358
  %v5513 = vpack.c.bf16 %v5355, %v5354
  %v5514 = vpack.c.bf16 %v5481, %v5480
  %v5515 = vpack.c.bf16 %v5477, %v5476
  %v5516 = vpack.c.bf16 %v5473, %v5472
  %v5517 = vpack.c.bf16 %v5469, %v5468
  %v5518 = vpack.c.bf16 %v5465, %v5464
  %v5519 = vpack.c.bf16 %v5461, %v5460
  %v5520 = vpack.c.bf16 %v5457, %v5456
  %v5521 = vpack.c.bf16 %v5453, %v5452
  %v5522 = vpack.c.bf16 %v5449, %v5448
  %v5523 = vpack.c.bf16 %v5445, %v5444
  %v5524 = vpack.c.bf16 %v5441, %v5440
  %v5525 = vpack.c.bf16 %v5437, %v5436
  %v5526 = vpack.c.bf16 %v5433, %v5432
  %v5527 = vpack.c.bf16 %v5429, %v5428
  %v5528 = vpack.c.bf16 %v5425, %v5424
  %v5529 = vpack.c.bf16 %v5421, %v5420
  %v5530 = vpack.c.bf16 %v5417, %v5416
  %v5531 = vpack.c.bf16 %v5413, %v5412
  %v5532 = vpack.c.bf16 %v5409, %v5408
  %v5533 = vpack.c.bf16 %v5405, %v5404
  %v5534 = vpack.c.bf16 %v5401, %v5400
  %v5535 = vpack.c.bf16 %v5397, %v5396
  %v5536 = vpack.c.bf16 %v5393, %v5392
  %v5537 = vpack.c.bf16 %v5389, %v5388
  %v5538 = vpack.c.bf16 %v5385, %v5384
  %v5539 = vpack.c.bf16 %v5381, %v5380
  %v5540 = vpack.c.bf16 %v5377, %v5376
  %v5541 = vpack.c.bf16 %v5373, %v5372
  %v5542 = vpack.c.bf16 %v5369, %v5368
  %v5543 = vpack.c.bf16 %v5365, %v5364
  %v5544 = vpack.c.bf16 %v5361, %v5360
  %v5545 = vpack.c.bf16 %v5357, %v5356
  %5546 = vrot.lane.b32.xlu0 %v4970, 25
  %v5547 = vpop.permute.xlu0 %5546
  %5548 = vrot.lane.b32.xlu0 %v5002, 25
  %v5549 = vpop.permute.xlu0 %5548
  %5550 = vrot.lane.b32.xlu0 %v5034, 25
  %v5551 = vpop.permute.xlu0 %5550
  %5552 = vrot.lane.b32.xlu0 %v5066, 25
  %v5553 = vpop.permute.xlu0 %5552
  %5554 = vrot.lane.b32.xlu0 %v4971, 25
  %v5555 = vpop.permute.xlu0 %5554
  %5556 = vrot.lane.b32.xlu0 %v5003, 25
  %v5557 = vpop.permute.xlu0 %5556
  %5558 = vrot.lane.b32.xlu0 %v5035, 25
  %v5559 = vpop.permute.xlu0 %5558
  %5560 = vrot.lane.b32.xlu0 %v5067, 25
  %v5561 = vpop.permute.xlu0 %5560
  %5562 = vrot.lane.b32.xlu0 %v4972, 25
  %v5563 = vpop.permute.xlu0 %5562
  %5564 = vrot.lane.b32.xlu0 %v5004, 25
  %v5565 = vpop.permute.xlu0 %5564
  %5566 = vrot.lane.b32.xlu0 %v5036, 25
  %v5567 = vpop.permute.xlu0 %5566
  %5568 = vrot.lane.b32.xlu0 %v5068, 25
  %v5569 = vpop.permute.xlu0 %5568
  %5570 = vrot.lane.b32.xlu0 %v4973, 25
  %v5571 = vpop.permute.xlu0 %5570
  %5572 = vrot.lane.b32.xlu0 %v5005, 25
  %v5573 = vpop.permute.xlu0 %5572
  %5574 = vrot.lane.b32.xlu0 %v5037, 25
  %v5575 = vpop.permute.xlu0 %5574
  %5576 = vrot.lane.b32.xlu0 %v5069, 25
  %v5577 = vpop.permute.xlu0 %5576
  %5578 = vrot.lane.b32.xlu0 %v4974, 25
  %v5579 = vpop.permute.xlu0 %5578
  %5580 = vrot.lane.b32.xlu0 %v5006, 25
  %v5581 = vpop.permute.xlu0 %5580
  %5582 = vrot.lane.b32.xlu0 %v5038, 25
  %v5583 = vpop.permute.xlu0 %5582
  %5584 = vrot.lane.b32.xlu0 %v5070, 25
  %v5585 = vpop.permute.xlu0 %5584
  %5586 = vrot.lane.b32.xlu0 %v4975, 25
  %v5587 = vpop.permute.xlu0 %5586
  %5588 = vrot.lane.b32.xlu0 %v5007, 25
  %v5589 = vpop.permute.xlu0 %5588
  %5590 = vrot.lane.b32.xlu0 %v5039, 25
  %v5591 = vpop.permute.xlu0 %5590
  %5592 = vrot.lane.b32.xlu0 %v5071, 25
  %v5593 = vpop.permute.xlu0 %5592
  %5594 = vrot.lane.b32.xlu0 %v4976, 25
  %v5595 = vpop.permute.xlu0 %5594
  %5596 = vrot.lane.b32.xlu0 %v5008, 25
  %v5597 = vpop.permute.xlu0 %5596
  %5598 = vrot.lane.b32.xlu0 %v5040, 25
  %v5599 = vpop.permute.xlu0 %5598
  %5600 = vrot.lane.b32.xlu0 %v5072, 25
  %v5601 = vpop.permute.xlu0 %5600
  %5602 = vrot.lane.b32.xlu0 %v4977, 25
  %v5603 = vpop.permute.xlu0 %5602
  %5604 = vrot.lane.b32.xlu0 %v5009, 25
  %v5605 = vpop.permute.xlu0 %5604
  %5606 = vrot.lane.b32.xlu0 %v5041, 25
  %v5607 = vpop.permute.xlu0 %5606
  %5608 = vrot.lane.b32.xlu0 %v5073, 25
  %v5609 = vpop.permute.xlu0 %5608
  %5610 = vrot.lane.b32.xlu0 %v4978, 25
  %v5611 = vpop.permute.xlu0 %5610
  %5612 = vrot.lane.b32.xlu0 %v5010, 25
  %v5613 = vpop.permute.xlu0 %5612
  %5614 = vrot.lane.b32.xlu0 %v5042, 25
  %v5615 = vpop.permute.xlu0 %5614
  %5616 = vrot.lane.b32.xlu0 %v5074, 25
  %v5617 = vpop.permute.xlu0 %5616
  %5618 = vrot.lane.b32.xlu0 %v4979, 25
  %v5619 = vpop.permute.xlu0 %5618
  %5620 = vrot.lane.b32.xlu0 %v5011, 25
  %v5621 = vpop.permute.xlu0 %5620
  %5622 = vrot.lane.b32.xlu0 %v5043, 25
  %v5623 = vpop.permute.xlu0 %5622
  %5624 = vrot.lane.b32.xlu0 %v5075, 25
  %v5625 = vpop.permute.xlu0 %5624
  %5626 = vrot.lane.b32.xlu0 %v4980, 25
  %v5627 = vpop.permute.xlu0 %5626
  %5628 = vrot.lane.b32.xlu0 %v5012, 25
  %v5629 = vpop.permute.xlu0 %5628
  %5630 = vrot.lane.b32.xlu0 %v5044, 25
  %v5631 = vpop.permute.xlu0 %5630
  %5632 = vrot.lane.b32.xlu0 %v5076, 25
  %v5633 = vpop.permute.xlu0 %5632
  %5634 = vrot.lane.b32.xlu0 %v4981, 25
  %v5635 = vpop.permute.xlu0 %5634
  %5636 = vrot.lane.b32.xlu0 %v5013, 25
  %v5637 = vpop.permute.xlu0 %5636
  %5638 = vrot.lane.b32.xlu0 %v5045, 25
  %v5639 = vpop.permute.xlu0 %5638
  %5640 = vrot.lane.b32.xlu0 %v5077, 25
  %v5641 = vpop.permute.xlu0 %5640
  %5642 = vrot.lane.b32.xlu0 %v4982, 25
  %v5643 = vpop.permute.xlu0 %5642
  %5644 = vrot.lane.b32.xlu0 %v5014, 25
  %v5645 = vpop.permute.xlu0 %5644
  %5646 = vrot.lane.b32.xlu0 %v5046, 25
  %v5647 = vpop.permute.xlu0 %5646
  %5648 = vrot.lane.b32.xlu0 %v5078, 25
  %v5649 = vpop.permute.xlu0 %5648
  %5650 = vrot.lane.b32.xlu0 %v4983, 25
  %v5651 = vpop.permute.xlu0 %5650
  %5652 = vrot.lane.b32.xlu0 %v5015, 25
  %v5653 = vpop.permute.xlu0 %5652
  %5654 = vrot.lane.b32.xlu0 %v5047, 25
  %v5655 = vpop.permute.xlu0 %5654
  %5656 = vrot.lane.b32.xlu0 %v5079, 25
  %v5657 = vpop.permute.xlu0 %5656
  %5658 = vrot.lane.b32.xlu0 %v4984, 25
  %v5659 = vpop.permute.xlu0 %5658
  %5660 = vrot.lane.b32.xlu0 %v5016, 25
  %v5661 = vpop.permute.xlu0 %5660
  %5662 = vrot.lane.b32.xlu0 %v5048, 25
  %v5663 = vpop.permute.xlu0 %5662
  %5664 = vrot.lane.b32.xlu0 %v5080, 25
  %v5665 = vpop.permute.xlu0 %5664
  %5666 = vrot.lane.b32.xlu0 %v4985, 25
  %v5667 = vpop.permute.xlu0 %5666
  %5668 = vrot.lane.b32.xlu0 %v5017, 25
  %v5669 = vpop.permute.xlu0 %5668
  %5670 = vrot.lane.b32.xlu0 %v5049, 25
  %v5671 = vpop.permute.xlu0 %5670
  %5672 = vrot.lane.b32.xlu0 %v5081, 25
  %v5673 = vpop.permute.xlu0 %5672
  %5674 = vrot.lane.b32.xlu0 %v4986, 25
  %v5675 = vpop.permute.xlu0 %5674
  %5676 = vrot.lane.b32.xlu0 %v5018, 25
  %v5677 = vpop.permute.xlu0 %5676
  %5678 = vrot.lane.b32.xlu0 %v5050, 25
  %v5679 = vpop.permute.xlu0 %5678
  %5680 = vrot.lane.b32.xlu0 %v5082, 25
  %v5681 = vpop.permute.xlu0 %5680
  %5682 = vrot.lane.b32.xlu0 %v4987, 25
  %v5683 = vpop.permute.xlu0 %5682
  %5684 = vrot.lane.b32.xlu0 %v5019, 25
  %v5685 = vpop.permute.xlu0 %5684
  %5686 = vrot.lane.b32.xlu0 %v5051, 25
  %v5687 = vpop.permute.xlu0 %5686
  %5688 = vrot.lane.b32.xlu0 %v5083, 25
  %v5689 = vpop.permute.xlu0 %5688
  %5690 = vrot.lane.b32.xlu0 %v4988, 25
  %v5691 = vpop.permute.xlu0 %5690
  %5692 = vrot.lane.b32.xlu0 %v5020, 25
  %v5693 = vpop.permute.xlu0 %5692
  %5694 = vrot.lane.b32.xlu0 %v5052, 25
  %v5695 = vpop.permute.xlu0 %5694
  %5696 = vrot.lane.b32.xlu0 %v5084, 25
  %v5697 = vpop.permute.xlu0 %5696
  %5698 = vrot.lane.b32.xlu0 %v4989, 25
  %v5699 = vpop.permute.xlu0 %5698
  %5700 = vrot.lane.b32.xlu0 %v5021, 25
  %v5701 = vpop.permute.xlu0 %5700
  %5702 = vrot.lane.b32.xlu0 %v5053, 25
  %v5703 = vpop.permute.xlu0 %5702
  %5704 = vrot.lane.b32.xlu0 %v5085, 25
  %v5705 = vpop.permute.xlu0 %5704
  %5706 = vrot.lane.b32.xlu0 %v4990, 25
  %v5707 = vpop.permute.xlu0 %5706
  %5708 = vrot.lane.b32.xlu0 %v5022, 25
  %v5709 = vpop.permute.xlu0 %5708
  %5710 = vrot.lane.b32.xlu0 %v5054, 25
  %v5711 = vpop.permute.xlu0 %5710
  %5712 = vrot.lane.b32.xlu0 %v5086, 25
  %v5713 = vpop.permute.xlu0 %5712
  %5714 = vrot.lane.b32.xlu0 %v4991, 25
  %v5715 = vpop.permute.xlu0 %5714
  %5716 = vrot.lane.b32.xlu0 %v5023, 25
  %v5717 = vpop.permute.xlu0 %5716
  %5718 = vrot.lane.b32.xlu0 %v5055, 25
  %v5719 = vpop.permute.xlu0 %5718
  %5720 = vrot.lane.b32.xlu0 %v5087, 25
  %v5721 = vpop.permute.xlu0 %5720
  %5722 = vrot.lane.b32.xlu0 %v4992, 25
  %v5723 = vpop.permute.xlu0 %5722
  %5724 = vrot.lane.b32.xlu0 %v5024, 25
  %v5725 = vpop.permute.xlu0 %5724
  %5726 = vrot.lane.b32.xlu0 %v5056, 25
  %v5727 = vpop.permute.xlu0 %5726
  %5728 = vrot.lane.b32.xlu0 %v5088, 25
  %v5729 = vpop.permute.xlu0 %5728
  %5730 = vrot.lane.b32.xlu0 %v4993, 25
  %v5731 = vpop.permute.xlu0 %5730
  %5732 = vrot.lane.b32.xlu0 %v5025, 25
  %v5733 = vpop.permute.xlu0 %5732
  %5734 = vrot.lane.b32.xlu0 %v5057, 25
  %v5735 = vpop.permute.xlu0 %5734
  %5736 = vrot.lane.b32.xlu0 %v5089, 25
  %v5737 = vpop.permute.xlu0 %5736
  %5738 = vrot.lane.b32.xlu0 %v4994, 25
  %v5739 = vpop.permute.xlu0 %5738
  %5740 = vrot.lane.b32.xlu0 %v5026, 25
  %v5741 = vpop.permute.xlu0 %5740
  %5742 = vrot.lane.b32.xlu0 %v5058, 25
  %v5743 = vpop.permute.xlu0 %5742
  %5744 = vrot.lane.b32.xlu0 %v5090, 25
  %v5745 = vpop.permute.xlu0 %5744
  %5746 = vrot.lane.b32.xlu0 %v4995, 25
  %v5747 = vpop.permute.xlu0 %5746
  %5748 = vrot.lane.b32.xlu0 %v5027, 25
  %v5749 = vpop.permute.xlu0 %5748
  %5750 = vrot.lane.b32.xlu0 %v5059, 25
  %v5751 = vpop.permute.xlu0 %5750
  %5752 = vrot.lane.b32.xlu0 %v5091, 25
  %v5753 = vpop.permute.xlu0 %5752
  %5754 = vrot.lane.b32.xlu0 %v4996, 25
  %v5755 = vpop.permute.xlu0 %5754
  %5756 = vrot.lane.b32.xlu0 %v5028, 25
  %v5757 = vpop.permute.xlu0 %5756
  %5758 = vrot.lane.b32.xlu0 %v5060, 25
  %v5759 = vpop.permute.xlu0 %5758
  %5760 = vrot.lane.b32.xlu0 %v5092, 25
  %v5761 = vpop.permute.xlu0 %5760
  %5762 = vrot.lane.b32.xlu0 %v4997, 25
  %v5763 = vpop.permute.xlu0 %5762
  %5764 = vrot.lane.b32.xlu0 %v5029, 25
  %v5765 = vpop.permute.xlu0 %5764
  %5766 = vrot.lane.b32.xlu0 %v5061, 25
  %v5767 = vpop.permute.xlu0 %5766
  %5768 = vrot.lane.b32.xlu0 %v5093, 25
  %v5769 = vpop.permute.xlu0 %5768
  %5770 = vrot.lane.b32.xlu0 %v4998, 25
  %v5771 = vpop.permute.xlu0 %5770
  %5772 = vrot.lane.b32.xlu0 %v5030, 25
  %v5773 = vpop.permute.xlu0 %5772
  %5774 = vrot.lane.b32.xlu0 %v5062, 25
  %v5775 = vpop.permute.xlu0 %5774
  %5776 = vrot.lane.b32.xlu0 %v5094, 25
  %v5777 = vpop.permute.xlu0 %5776
  %5778 = vrot.lane.b32.xlu0 %v4999, 25
  %v5779 = vpop.permute.xlu0 %5778
  %5780 = vrot.lane.b32.xlu0 %v5031, 25
  %v5781 = vpop.permute.xlu0 %5780
  %5782 = vrot.lane.b32.xlu0 %v5063, 25
  %v5783 = vpop.permute.xlu0 %5782
  %5784 = vrot.lane.b32.xlu0 %v5095, 25
  %v5785 = vpop.permute.xlu0 %5784
  %5786 = vrot.lane.b32.xlu0 %v5000, 25
  %v5787 = vpop.permute.xlu0 %5786
  %5788 = vrot.lane.b32.xlu0 %v5032, 25
  %v5789 = vpop.permute.xlu0 %5788
  %5790 = vrot.lane.b32.xlu0 %v5064, 25
  %v5791 = vpop.permute.xlu0 %5790
  %5792 = vrot.lane.b32.xlu0 %v5096, 25
  %v5793 = vpop.permute.xlu0 %5792
  %5794 = vrot.lane.b32.xlu0 %v5001, 25
  %v5795 = vpop.permute.xlu0 %5794
  %5796 = vrot.lane.b32.xlu0 %v5033, 25
  %v5797 = vpop.permute.xlu0 %5796
  %5798 = vrot.lane.b32.xlu0 %v5065, 25
  %v5799 = vpop.permute.xlu0 %5798
  %5800 = vrot.lane.b32.xlu0 %v5097, 25
  %v5801 = vpop.permute.xlu0 %5800
  %v5802 = vsel %vm649, %v5787, %v5795
  %v5803 = vsel %vm649, %v5789, %v5797
  %v5804 = vsel %vm649, %v5791, %v5799
  %v5805 = vsel %vm649, %v5793, %v5801
  %v5806 = vsel %vm649, %v5779, %v5787
  %v5807 = vsel %vm649, %v5781, %v5789
  %v5808 = vsel %vm649, %v5783, %v5791
  %v5809 = vsel %vm649, %v5785, %v5793
  %v5810 = vsel %vm649, %v5771, %v5779
  %v5811 = vsel %vm649, %v5773, %v5781
  %v5812 = vsel %vm649, %v5775, %v5783
  %v5813 = vsel %vm649, %v5777, %v5785
  %v5814 = vsel %vm649, %v5763, %v5771
  %v5815 = vsel %vm649, %v5765, %v5773
  %v5816 = vsel %vm649, %v5767, %v5775
  %v5817 = vsel %vm649, %v5769, %v5777
  %v5818 = vsel %vm649, %v5755, %v5763
  %v5819 = vsel %vm649, %v5757, %v5765
  %v5820 = vsel %vm649, %v5759, %v5767
  %v5821 = vsel %vm649, %v5761, %v5769
  %v5822 = vsel %vm649, %v5747, %v5755
  %v5823 = vsel %vm649, %v5749, %v5757
  %v5824 = vsel %vm649, %v5751, %v5759
  %v5825 = vsel %vm649, %v5753, %v5761
  %v5826 = vsel %vm649, %v5739, %v5747
  %v5827 = vsel %vm649, %v5741, %v5749
  %v5828 = vsel %vm649, %v5743, %v5751
  %v5829 = vsel %vm649, %v5745, %v5753
  %v5830 = vsel %vm649, %v5731, %v5739
  %v5831 = vsel %vm649, %v5733, %v5741
  %v5832 = vsel %vm649, %v5735, %v5743
  %v5833 = vsel %vm649, %v5737, %v5745
  %v5834 = vsel %vm649, %v5723, %v5731
  %v5835 = vsel %vm649, %v5725, %v5733
  %v5836 = vsel %vm649, %v5727, %v5735
  %v5837 = vsel %vm649, %v5729, %v5737
  %v5838 = vsel %vm649, %v5715, %v5723
  %v5839 = vsel %vm649, %v5717, %v5725
  %v5840 = vsel %vm649, %v5719, %v5727
  %v5841 = vsel %vm649, %v5721, %v5729
  %v5842 = vsel %vm649, %v5707, %v5715
  %v5843 = vsel %vm649, %v5709, %v5717
  %v5844 = vsel %vm649, %v5711, %v5719
  %v5845 = vsel %vm649, %v5713, %v5721
  %v5846 = vsel %vm649, %v5699, %v5707
  %v5847 = vsel %vm649, %v5701, %v5709
  %v5848 = vsel %vm649, %v5703, %v5711
  %v5849 = vsel %vm649, %v5705, %v5713
  %v5850 = vsel %vm649, %v5691, %v5699
  %v5851 = vsel %vm649, %v5693, %v5701
  %v5852 = vsel %vm649, %v5695, %v5703
  %v5853 = vsel %vm649, %v5697, %v5705
  %v5854 = vsel %vm649, %v5683, %v5691
  %v5855 = vsel %vm649, %v5685, %v5693
  %v5856 = vsel %vm649, %v5687, %v5695
  %v5857 = vsel %vm649, %v5689, %v5697
  %v5858 = vsel %vm649, %v5675, %v5683
  %v5859 = vsel %vm649, %v5677, %v5685
  %v5860 = vsel %vm649, %v5679, %v5687
  %v5861 = vsel %vm649, %v5681, %v5689
  %v5862 = vsel %vm649, %v5667, %v5675
  %v5863 = vsel %vm649, %v5669, %v5677
  %v5864 = vsel %vm649, %v5671, %v5679
  %v5865 = vsel %vm649, %v5673, %v5681
  %v5866 = vsel %vm649, %v5659, %v5667
  %v5867 = vsel %vm649, %v5661, %v5669
  %v5868 = vsel %vm649, %v5663, %v5671
  %v5869 = vsel %vm649, %v5665, %v5673
  %v5870 = vsel %vm649, %v5651, %v5659
  %v5871 = vsel %vm649, %v5653, %v5661
  %v5872 = vsel %vm649, %v5655, %v5663
  %v5873 = vsel %vm649, %v5657, %v5665
  %v5874 = vsel %vm649, %v5643, %v5651
  %v5875 = vsel %vm649, %v5645, %v5653
  %v5876 = vsel %vm649, %v5647, %v5655
  %v5877 = vsel %vm649, %v5649, %v5657
  %v5878 = vsel %vm649, %v5635, %v5643
  %v5879 = vsel %vm649, %v5637, %v5645
  %v5880 = vsel %vm649, %v5639, %v5647
  %v5881 = vsel %vm649, %v5641, %v5649
  %v5882 = vsel %vm649, %v5627, %v5635
  %v5883 = vsel %vm649, %v5629, %v5637
  %v5884 = vsel %vm649, %v5631, %v5639
  %v5885 = vsel %vm649, %v5633, %v5641
  %v5886 = vsel %vm649, %v5619, %v5627
  %v5887 = vsel %vm649, %v5621, %v5629
  %v5888 = vsel %vm649, %v5623, %v5631
  %v5889 = vsel %vm649, %v5625, %v5633
  %v5890 = vsel %vm649, %v5611, %v5619
  %v5891 = vsel %vm649, %v5613, %v5621
  %v5892 = vsel %vm649, %v5615, %v5623
  %v5893 = vsel %vm649, %v5617, %v5625
  %v5894 = vsel %vm649, %v5603, %v5611
  %v5895 = vsel %vm649, %v5605, %v5613
  %v5896 = vsel %vm649, %v5607, %v5615
  %v5897 = vsel %vm649, %v5609, %v5617
  %v5898 = vsel %vm649, %v5595, %v5603
  %v5899 = vsel %vm649, %v5597, %v5605
  %v5900 = vsel %vm649, %v5599, %v5607
  %v5901 = vsel %vm649, %v5601, %v5609
  %v5902 = vsel %vm649, %v5587, %v5595
  %v5903 = vsel %vm649, %v5589, %v5597
  %v5904 = vsel %vm649, %v5591, %v5599
  %v5905 = vsel %vm649, %v5593, %v5601
  %v5906 = vsel %vm649, %v5579, %v5587
  %v5907 = vsel %vm649, %v5581, %v5589
  %v5908 = vsel %vm649, %v5583, %v5591
  %v5909 = vsel %vm649, %v5585, %v5593
  %v5910 = vsel %vm649, %v5571, %v5579
  %v5911 = vsel %vm649, %v5573, %v5581
  %v5912 = vsel %vm649, %v5575, %v5583
  %v5913 = vsel %vm649, %v5577, %v5585
  %v5914 = vsel %vm649, %v5563, %v5571
  %v5915 = vsel %vm649, %v5565, %v5573
  %v5916 = vsel %vm649, %v5567, %v5575
  %v5917 = vsel %vm649, %v5569, %v5577
  %v5918 = vsel %vm649, %v5555, %v5563
  %v5919 = vsel %vm649, %v5557, %v5565
  %v5920 = vsel %vm649, %v5559, %v5567
  %v5921 = vsel %vm649, %v5561, %v5569
  %v5922 = vsel %vm649, %v5547, %v5555
  %v5923 = vsel %vm649, %v5549, %v5557
  %v5924 = vsel %vm649, %v5551, %v5559
  %v5925 = vsel %vm649, %v5553, %v5561
  %v5926 = vsel %vm649, %v5795, %v5547
  %v5927 = vsel %vm649, %v5797, %v5549
  %v5928 = vsel %vm649, %v5799, %v5551
  %v5929 = vsel %vm649, %v5801, %v5553
  %v5930 = vpack.c.bf16 %v5927, %v5926
  %v5931 = vpack.c.bf16 %v5923, %v5922
  %v5932 = vpack.c.bf16 %v5919, %v5918
  %v5933 = vpack.c.bf16 %v5915, %v5914
  %v5934 = vpack.c.bf16 %v5911, %v5910
  %v5935 = vpack.c.bf16 %v5907, %v5906
  %v5936 = vpack.c.bf16 %v5903, %v5902
  %v5937 = vpack.c.bf16 %v5899, %v5898
  %v5938 = vpack.c.bf16 %v5895, %v5894
  %v5939 = vpack.c.bf16 %v5891, %v5890
  %v5940 = vpack.c.bf16 %v5887, %v5886
  %v5941 = vpack.c.bf16 %v5883, %v5882
  %v5942 = vpack.c.bf16 %v5879, %v5878
  %v5943 = vpack.c.bf16 %v5875, %v5874
  %v5944 = vpack.c.bf16 %v5871, %v5870
  %v5945 = vpack.c.bf16 %v5867, %v5866
  %v5946 = vpack.c.bf16 %v5863, %v5862
  %v5947 = vpack.c.bf16 %v5859, %v5858
  %v5948 = vpack.c.bf16 %v5855, %v5854
  %v5949 = vpack.c.bf16 %v5851, %v5850
  %v5950 = vpack.c.bf16 %v5847, %v5846
  %v5951 = vpack.c.bf16 %v5843, %v5842
  %v5952 = vpack.c.bf16 %v5839, %v5838
  %v5953 = vpack.c.bf16 %v5835, %v5834
  %v5954 = vpack.c.bf16 %v5831, %v5830
  %v5955 = vpack.c.bf16 %v5827, %v5826
  %v5956 = vpack.c.bf16 %v5823, %v5822
  %v5957 = vpack.c.bf16 %v5819, %v5818
  %v5958 = vpack.c.bf16 %v5815, %v5814
  %v5959 = vpack.c.bf16 %v5811, %v5810
  %v5960 = vpack.c.bf16 %v5807, %v5806
  %v5961 = vpack.c.bf16 %v5803, %v5802
  %v5962 = vpack.c.bf16 %v5929, %v5928
  %v5963 = vpack.c.bf16 %v5925, %v5924
  %v5964 = vpack.c.bf16 %v5921, %v5920
  %v5965 = vpack.c.bf16 %v5917, %v5916
  %v5966 = vpack.c.bf16 %v5913, %v5912
  %v5967 = vpack.c.bf16 %v5909, %v5908
  %v5968 = vpack.c.bf16 %v5905, %v5904
  %v5969 = vpack.c.bf16 %v5901, %v5900
  %v5970 = vpack.c.bf16 %v5897, %v5896
  %v5971 = vpack.c.bf16 %v5893, %v5892
  %v5972 = vpack.c.bf16 %v5889, %v5888
  %v5973 = vpack.c.bf16 %v5885, %v5884
  %v5974 = vpack.c.bf16 %v5881, %v5880
  %v5975 = vpack.c.bf16 %v5877, %v5876
  %v5976 = vpack.c.bf16 %v5873, %v5872
  %v5977 = vpack.c.bf16 %v5869, %v5868
  %v5978 = vpack.c.bf16 %v5865, %v5864
  %v5979 = vpack.c.bf16 %v5861, %v5860
  %v5980 = vpack.c.bf16 %v5857, %v5856
  %v5981 = vpack.c.bf16 %v5853, %v5852
  %v5982 = vpack.c.bf16 %v5849, %v5848
  %v5983 = vpack.c.bf16 %v5845, %v5844
  %v5984 = vpack.c.bf16 %v5841, %v5840
  %v5985 = vpack.c.bf16 %v5837, %v5836
  %v5986 = vpack.c.bf16 %v5833, %v5832
  %v5987 = vpack.c.bf16 %v5829, %v5828
  %v5988 = vpack.c.bf16 %v5825, %v5824
  %v5989 = vpack.c.bf16 %v5821, %v5820
  %v5990 = vpack.c.bf16 %v5817, %v5816
  %v5991 = vpack.c.bf16 %v5813, %v5812
  %v5992 = vpack.c.bf16 %v5809, %v5808
  %v5993 = vpack.c.bf16 %v5805, %v5804
  %5994 = vrot.lane.b32.xlu0 %v4970, 1
  %v5995 = vpop.permute.xlu0 %5994
  %5996 = vrot.lane.b32.xlu0 %v5002, 1
  %v5997 = vpop.permute.xlu0 %5996
  %5998 = vrot.lane.b32.xlu0 %v5034, 1
  %v5999 = vpop.permute.xlu0 %5998
  %6000 = vrot.lane.b32.xlu0 %v5066, 1
  %v6001 = vpop.permute.xlu0 %6000
  %6002 = vrot.lane.b32.xlu0 %v4971, 1
  %v6003 = vpop.permute.xlu0 %6002
  %6004 = vrot.lane.b32.xlu0 %v5003, 1
  %v6005 = vpop.permute.xlu0 %6004
  %6006 = vrot.lane.b32.xlu0 %v5035, 1
  %v6007 = vpop.permute.xlu0 %6006
  %6008 = vrot.lane.b32.xlu0 %v5067, 1
  %v6009 = vpop.permute.xlu0 %6008
  %6010 = vrot.lane.b32.xlu0 %v4972, 1
  %v6011 = vpop.permute.xlu0 %6010
  %6012 = vrot.lane.b32.xlu0 %v5004, 1
  %v6013 = vpop.permute.xlu0 %6012
  %6014 = vrot.lane.b32.xlu0 %v5036, 1
  %v6015 = vpop.permute.xlu0 %6014
  %6016 = vrot.lane.b32.xlu0 %v5068, 1
  %v6017 = vpop.permute.xlu0 %6016
  %6018 = vrot.lane.b32.xlu0 %v4973, 1
  %v6019 = vpop.permute.xlu0 %6018
  %6020 = vrot.lane.b32.xlu0 %v5005, 1
  %v6021 = vpop.permute.xlu0 %6020
  %6022 = vrot.lane.b32.xlu0 %v5037, 1
  %v6023 = vpop.permute.xlu0 %6022
  %6024 = vrot.lane.b32.xlu0 %v5069, 1
  %v6025 = vpop.permute.xlu0 %6024
  %6026 = vrot.lane.b32.xlu0 %v4974, 1
  %v6027 = vpop.permute.xlu0 %6026
  %6028 = vrot.lane.b32.xlu0 %v5006, 1
  %v6029 = vpop.permute.xlu0 %6028
  %6030 = vrot.lane.b32.xlu0 %v5038, 1
  %v6031 = vpop.permute.xlu0 %6030
  %6032 = vrot.lane.b32.xlu0 %v5070, 1
  %v6033 = vpop.permute.xlu0 %6032
  %6034 = vrot.lane.b32.xlu0 %v4975, 1
  %v6035 = vpop.permute.xlu0 %6034
  %6036 = vrot.lane.b32.xlu0 %v5007, 1
  %v6037 = vpop.permute.xlu0 %6036
  %6038 = vrot.lane.b32.xlu0 %v5039, 1
  %v6039 = vpop.permute.xlu0 %6038
  %6040 = vrot.lane.b32.xlu0 %v5071, 1
  %v6041 = vpop.permute.xlu0 %6040
  %6042 = vrot.lane.b32.xlu0 %v4976, 1
  %v6043 = vpop.permute.xlu0 %6042
  %6044 = vrot.lane.b32.xlu0 %v5008, 1
  %v6045 = vpop.permute.xlu0 %6044
  %6046 = vrot.lane.b32.xlu0 %v5040, 1
  %v6047 = vpop.permute.xlu0 %6046
  %6048 = vrot.lane.b32.xlu0 %v5072, 1
  %v6049 = vpop.permute.xlu0 %6048
  %6050 = vrot.lane.b32.xlu0 %v4977, 1
  %v6051 = vpop.permute.xlu0 %6050
  %6052 = vrot.lane.b32.xlu0 %v5009, 1
  %v6053 = vpop.permute.xlu0 %6052
  %6054 = vrot.lane.b32.xlu0 %v5041, 1
  %v6055 = vpop.permute.xlu0 %6054
  %6056 = vrot.lane.b32.xlu0 %v5073, 1
  %v6057 = vpop.permute.xlu0 %6056
  %6058 = vrot.lane.b32.xlu0 %v4978, 1
  %v6059 = vpop.permute.xlu0 %6058
  %6060 = vrot.lane.b32.xlu0 %v5010, 1
  %v6061 = vpop.permute.xlu0 %6060
  %6062 = vrot.lane.b32.xlu0 %v5042, 1
  %v6063 = vpop.permute.xlu0 %6062
  %6064 = vrot.lane.b32.xlu0 %v5074, 1
  %v6065 = vpop.permute.xlu0 %6064
  %6066 = vrot.lane.b32.xlu0 %v4979, 1
  %v6067 = vpop.permute.xlu0 %6066
  %6068 = vrot.lane.b32.xlu0 %v5011, 1
  %v6069 = vpop.permute.xlu0 %6068
  %6070 = vrot.lane.b32.xlu0 %v5043, 1
  %v6071 = vpop.permute.xlu0 %6070
  %6072 = vrot.lane.b32.xlu0 %v5075, 1
  %v6073 = vpop.permute.xlu0 %6072
  %6074 = vrot.lane.b32.xlu0 %v4980, 1
  %v6075 = vpop.permute.xlu0 %6074
  %6076 = vrot.lane.b32.xlu0 %v5012, 1
  %v6077 = vpop.permute.xlu0 %6076
  %6078 = vrot.lane.b32.xlu0 %v5044, 1
  %v6079 = vpop.permute.xlu0 %6078
  %6080 = vrot.lane.b32.xlu0 %v5076, 1
  %v6081 = vpop.permute.xlu0 %6080
  %6082 = vrot.lane.b32.xlu0 %v4981, 1
  %v6083 = vpop.permute.xlu0 %6082
  %6084 = vrot.lane.b32.xlu0 %v5013, 1
  %v6085 = vpop.permute.xlu0 %6084
  %6086 = vrot.lane.b32.xlu0 %v5045, 1
  %v6087 = vpop.permute.xlu0 %6086
  %6088 = vrot.lane.b32.xlu0 %v5077, 1
  %v6089 = vpop.permute.xlu0 %6088
  %6090 = vrot.lane.b32.xlu0 %v4982, 1
  %v6091 = vpop.permute.xlu0 %6090
  %6092 = vrot.lane.b32.xlu0 %v5014, 1
  %v6093 = vpop.permute.xlu0 %6092
  %6094 = vrot.lane.b32.xlu0 %v5046, 1
  %v6095 = vpop.permute.xlu0 %6094
  %6096 = vrot.lane.b32.xlu0 %v5078, 1
  %v6097 = vpop.permute.xlu0 %6096
  %6098 = vrot.lane.b32.xlu0 %v4983, 1
  %v6099 = vpop.permute.xlu0 %6098
  %6100 = vrot.lane.b32.xlu0 %v5015, 1
  %v6101 = vpop.permute.xlu0 %6100
  %6102 = vrot.lane.b32.xlu0 %v5047, 1
  %v6103 = vpop.permute.xlu0 %6102
  %6104 = vrot.lane.b32.xlu0 %v5079, 1
  %v6105 = vpop.permute.xlu0 %6104
  %6106 = vrot.lane.b32.xlu0 %v4984, 1
  %v6107 = vpop.permute.xlu0 %6106
  %6108 = vrot.lane.b32.xlu0 %v5016, 1
  %v6109 = vpop.permute.xlu0 %6108
  %6110 = vrot.lane.b32.xlu0 %v5048, 1
  %v6111 = vpop.permute.xlu0 %6110
  %6112 = vrot.lane.b32.xlu0 %v5080, 1
  %v6113 = vpop.permute.xlu0 %6112
  %6114 = vrot.lane.b32.xlu0 %v4985, 1
  %v6115 = vpop.permute.xlu0 %6114
  %6116 = vrot.lane.b32.xlu0 %v5017, 1
  %v6117 = vpop.permute.xlu0 %6116
  %6118 = vrot.lane.b32.xlu0 %v5049, 1
  %v6119 = vpop.permute.xlu0 %6118
  %6120 = vrot.lane.b32.xlu0 %v5081, 1
  %v6121 = vpop.permute.xlu0 %6120
  %6122 = vrot.lane.b32.xlu0 %v4986, 1
  %v6123 = vpop.permute.xlu0 %6122
  %6124 = vrot.lane.b32.xlu0 %v5018, 1
  %v6125 = vpop.permute.xlu0 %6124
  %6126 = vrot.lane.b32.xlu0 %v5050, 1
  %v6127 = vpop.permute.xlu0 %6126
  %6128 = vrot.lane.b32.xlu0 %v5082, 1
  %v6129 = vpop.permute.xlu0 %6128
  %6130 = vrot.lane.b32.xlu0 %v4987, 1
  %v6131 = vpop.permute.xlu0 %6130
  %6132 = vrot.lane.b32.xlu0 %v5019, 1
  %v6133 = vpop.permute.xlu0 %6132
  %6134 = vrot.lane.b32.xlu0 %v5051, 1
  %v6135 = vpop.permute.xlu0 %6134
  %6136 = vrot.lane.b32.xlu0 %v5083, 1
  %v6137 = vpop.permute.xlu0 %6136
  %6138 = vrot.lane.b32.xlu0 %v4988, 1
  %v6139 = vpop.permute.xlu0 %6138
  %6140 = vrot.lane.b32.xlu0 %v5020, 1
  %v6141 = vpop.permute.xlu0 %6140
  %6142 = vrot.lane.b32.xlu0 %v5052, 1
  %v6143 = vpop.permute.xlu0 %6142
  %6144 = vrot.lane.b32.xlu0 %v5084, 1
  %v6145 = vpop.permute.xlu0 %6144
  %6146 = vrot.lane.b32.xlu0 %v4989, 1
  %v6147 = vpop.permute.xlu0 %6146
  %6148 = vrot.lane.b32.xlu0 %v5021, 1
  %v6149 = vpop.permute.xlu0 %6148
  %6150 = vrot.lane.b32.xlu0 %v5053, 1
  %v6151 = vpop.permute.xlu0 %6150
  %6152 = vrot.lane.b32.xlu0 %v5085, 1
  %v6153 = vpop.permute.xlu0 %6152
  %6154 = vrot.lane.b32.xlu0 %v4990, 1
  %v6155 = vpop.permute.xlu0 %6154
  %6156 = vrot.lane.b32.xlu0 %v5022, 1
  %v6157 = vpop.permute.xlu0 %6156
  %6158 = vrot.lane.b32.xlu0 %v5054, 1
  %v6159 = vpop.permute.xlu0 %6158
  %6160 = vrot.lane.b32.xlu0 %v5086, 1
  %v6161 = vpop.permute.xlu0 %6160
  %6162 = vrot.lane.b32.xlu0 %v4991, 1
  %v6163 = vpop.permute.xlu0 %6162
  %6164 = vrot.lane.b32.xlu0 %v5023, 1
  %v6165 = vpop.permute.xlu0 %6164
  %6166 = vrot.lane.b32.xlu0 %v5055, 1
  %v6167 = vpop.permute.xlu0 %6166
  %6168 = vrot.lane.b32.xlu0 %v5087, 1
  %v6169 = vpop.permute.xlu0 %6168
  %6170 = vrot.lane.b32.xlu0 %v4992, 1
  %v6171 = vpop.permute.xlu0 %6170
  %6172 = vrot.lane.b32.xlu0 %v5024, 1
  %v6173 = vpop.permute.xlu0 %6172
  %6174 = vrot.lane.b32.xlu0 %v5056, 1
  %v6175 = vpop.permute.xlu0 %6174
  %6176 = vrot.lane.b32.xlu0 %v5088, 1
  %v6177 = vpop.permute.xlu0 %6176
  %6178 = vrot.lane.b32.xlu0 %v4993, 1
  %v6179 = vpop.permute.xlu0 %6178
  %6180 = vrot.lane.b32.xlu0 %v5025, 1
  %v6181 = vpop.permute.xlu0 %6180
  %6182 = vrot.lane.b32.xlu0 %v5057, 1
  %v6183 = vpop.permute.xlu0 %6182
  %6184 = vrot.lane.b32.xlu0 %v5089, 1
  %v6185 = vpop.permute.xlu0 %6184
  %6186 = vrot.lane.b32.xlu0 %v4994, 1
  %v6187 = vpop.permute.xlu0 %6186
  %6188 = vrot.lane.b32.xlu0 %v5026, 1
  %v6189 = vpop.permute.xlu0 %6188
  %6190 = vrot.lane.b32.xlu0 %v5058, 1
  %v6191 = vpop.permute.xlu0 %6190
  %6192 = vrot.lane.b32.xlu0 %v5090, 1
  %v6193 = vpop.permute.xlu0 %6192
  %6194 = vrot.lane.b32.xlu0 %v4995, 1
  %v6195 = vpop.permute.xlu0 %6194
  %6196 = vrot.lane.b32.xlu0 %v5027, 1
  %v6197 = vpop.permute.xlu0 %6196
  %6198 = vrot.lane.b32.xlu0 %v5059, 1
  %v6199 = vpop.permute.xlu0 %6198
  %6200 = vrot.lane.b32.xlu0 %v5091, 1
  %v6201 = vpop.permute.xlu0 %6200
  %6202 = vrot.lane.b32.xlu0 %v4996, 1
  %v6203 = vpop.permute.xlu0 %6202
  %6204 = vrot.lane.b32.xlu0 %v5028, 1
  %v6205 = vpop.permute.xlu0 %6204
  %6206 = vrot.lane.b32.xlu0 %v5060, 1
  %v6207 = vpop.permute.xlu0 %6206
  %6208 = vrot.lane.b32.xlu0 %v5092, 1
  %v6209 = vpop.permute.xlu0 %6208
  %6210 = vrot.lane.b32.xlu0 %v4997, 1
  %v6211 = vpop.permute.xlu0 %6210
  %6212 = vrot.lane.b32.xlu0 %v5029, 1
  %v6213 = vpop.permute.xlu0 %6212
  %6214 = vrot.lane.b32.xlu0 %v5061, 1
  %v6215 = vpop.permute.xlu0 %6214
  %6216 = vrot.lane.b32.xlu0 %v5093, 1
  %v6217 = vpop.permute.xlu0 %6216
  %6218 = vrot.lane.b32.xlu0 %v4998, 1
  %v6219 = vpop.permute.xlu0 %6218
  %6220 = vrot.lane.b32.xlu0 %v5030, 1
  %v6221 = vpop.permute.xlu0 %6220
  %6222 = vrot.lane.b32.xlu0 %v5062, 1
  %v6223 = vpop.permute.xlu0 %6222
  %6224 = vrot.lane.b32.xlu0 %v5094, 1
  %v6225 = vpop.permute.xlu0 %6224
  %6226 = vrot.lane.b32.xlu0 %v4999, 1
  %v6227 = vpop.permute.xlu0 %6226
  %6228 = vrot.lane.b32.xlu0 %v5031, 1
  %v6229 = vpop.permute.xlu0 %6228
  %6230 = vrot.lane.b32.xlu0 %v5063, 1
  %v6231 = vpop.permute.xlu0 %6230
  %6232 = vrot.lane.b32.xlu0 %v5095, 1
  %v6233 = vpop.permute.xlu0 %6232
  %6234 = vrot.lane.b32.xlu0 %v5000, 1
  %v6235 = vpop.permute.xlu0 %6234
  %6236 = vrot.lane.b32.xlu0 %v5032, 1
  %v6237 = vpop.permute.xlu0 %6236
  %6238 = vrot.lane.b32.xlu0 %v5064, 1
  %v6239 = vpop.permute.xlu0 %6238
  %6240 = vrot.lane.b32.xlu0 %v5096, 1
  %v6241 = vpop.permute.xlu0 %6240
  %6242 = vrot.lane.b32.xlu0 %v5001, 1
  %v6243 = vpop.permute.xlu0 %6242
  %6244 = vrot.lane.b32.xlu0 %v5033, 1
  %v6245 = vpop.permute.xlu0 %6244
  %6246 = vrot.lane.b32.xlu0 %v5065, 1
  %v6247 = vpop.permute.xlu0 %6246
  %6248 = vrot.lane.b32.xlu0 %v5097, 1
  %v6249 = vpop.permute.xlu0 %6248
  %v6250 = vsel %vm1146, %v6235, %v6243
  %v6251 = vsel %vm1146, %v6237, %v6245
  %v6252 = vsel %vm1146, %v6239, %v6247
  %v6253 = vsel %vm1146, %v6241, %v6249
  %v6254 = vsel %vm1146, %v6227, %v6235
  %v6255 = vsel %vm1146, %v6229, %v6237
  %v6256 = vsel %vm1146, %v6231, %v6239
  %v6257 = vsel %vm1146, %v6233, %v6241
  %v6258 = vsel %vm1146, %v6219, %v6227
  %v6259 = vsel %vm1146, %v6221, %v6229
  %v6260 = vsel %vm1146, %v6223, %v6231
  %v6261 = vsel %vm1146, %v6225, %v6233
  %v6262 = vsel %vm1146, %v6211, %v6219
  %v6263 = vsel %vm1146, %v6213, %v6221
  %v6264 = vsel %vm1146, %v6215, %v6223
  %v6265 = vsel %vm1146, %v6217, %v6225
  %v6266 = vsel %vm1146, %v6203, %v6211
  %v6267 = vsel %vm1146, %v6205, %v6213
  %v6268 = vsel %vm1146, %v6207, %v6215
  %v6269 = vsel %vm1146, %v6209, %v6217
  %v6270 = vsel %vm1146, %v6195, %v6203
  %v6271 = vsel %vm1146, %v6197, %v6205
  %v6272 = vsel %vm1146, %v6199, %v6207
  %v6273 = vsel %vm1146, %v6201, %v6209
  %v6274 = vsel %vm1146, %v6187, %v6195
  %v6275 = vsel %vm1146, %v6189, %v6197
  %v6276 = vsel %vm1146, %v6191, %v6199
  %v6277 = vsel %vm1146, %v6193, %v6201
  %v6278 = vsel %vm1146, %v6179, %v6187
  %v6279 = vsel %vm1146, %v6181, %v6189
  %v6280 = vsel %vm1146, %v6183, %v6191
  %v6281 = vsel %vm1146, %v6185, %v6193
  %v6282 = vsel %vm1146, %v6171, %v6179
  %v6283 = vsel %vm1146, %v6173, %v6181
  %v6284 = vsel %vm1146, %v6175, %v6183
  %v6285 = vsel %vm1146, %v6177, %v6185
  %v6286 = vsel %vm1146, %v6163, %v6171
  %v6287 = vsel %vm1146, %v6165, %v6173
  %v6288 = vsel %vm1146, %v6167, %v6175
  %v6289 = vsel %vm1146, %v6169, %v6177
  %v6290 = vsel %vm1146, %v6155, %v6163
  %v6291 = vsel %vm1146, %v6157, %v6165
  %v6292 = vsel %vm1146, %v6159, %v6167
  %v6293 = vsel %vm1146, %v6161, %v6169
  %v6294 = vsel %vm1146, %v6147, %v6155
  %v6295 = vsel %vm1146, %v6149, %v6157
  %v6296 = vsel %vm1146, %v6151, %v6159
  %v6297 = vsel %vm1146, %v6153, %v6161
  %v6298 = vsel %vm1146, %v6139, %v6147
  %v6299 = vsel %vm1146, %v6141, %v6149
  %v6300 = vsel %vm1146, %v6143, %v6151
  %v6301 = vsel %vm1146, %v6145, %v6153
  %v6302 = vsel %vm1146, %v6131, %v6139
  %v6303 = vsel %vm1146, %v6133, %v6141
  %v6304 = vsel %vm1146, %v6135, %v6143
  %v6305 = vsel %vm1146, %v6137, %v6145
  %v6306 = vsel %vm1146, %v6123, %v6131
  %v6307 = vsel %vm1146, %v6125, %v6133
  %v6308 = vsel %vm1146, %v6127, %v6135
  %v6309 = vsel %vm1146, %v6129, %v6137
  %v6310 = vsel %vm1146, %v6115, %v6123
  %v6311 = vsel %vm1146, %v6117, %v6125
  %v6312 = vsel %vm1146, %v6119, %v6127
  %v6313 = vsel %vm1146, %v6121, %v6129
  %v6314 = vsel %vm1146, %v6107, %v6115
  %v6315 = vsel %vm1146, %v6109, %v6117
  %v6316 = vsel %vm1146, %v6111, %v6119
  %v6317 = vsel %vm1146, %v6113, %v6121
  %v6318 = vsel %vm1146, %v6099, %v6107
  %v6319 = vsel %vm1146, %v6101, %v6109
  %v6320 = vsel %vm1146, %v6103, %v6111
  %v6321 = vsel %vm1146, %v6105, %v6113
  %v6322 = vsel %vm1146, %v6091, %v6099
  %v6323 = vsel %vm1146, %v6093, %v6101
  %v6324 = vsel %vm1146, %v6095, %v6103
  %v6325 = vsel %vm1146, %v6097, %v6105
  %v6326 = vsel %vm1146, %v6083, %v6091
  %v6327 = vsel %vm1146, %v6085, %v6093
  %v6328 = vsel %vm1146, %v6087, %v6095
  %v6329 = vsel %vm1146, %v6089, %v6097
  %v6330 = vsel %vm1146, %v6075, %v6083
  %v6331 = vsel %vm1146, %v6077, %v6085
  %v6332 = vsel %vm1146, %v6079, %v6087
  %v6333 = vsel %vm1146, %v6081, %v6089
  %v6334 = vsel %vm1146, %v6067, %v6075
  %v6335 = vsel %vm1146, %v6069, %v6077
  %v6336 = vsel %vm1146, %v6071, %v6079
  %v6337 = vsel %vm1146, %v6073, %v6081
  %v6338 = vsel %vm1146, %v6059, %v6067
  %v6339 = vsel %vm1146, %v6061, %v6069
  %v6340 = vsel %vm1146, %v6063, %v6071
  %v6341 = vsel %vm1146, %v6065, %v6073
  %v6342 = vsel %vm1146, %v6051, %v6059
  %v6343 = vsel %vm1146, %v6053, %v6061
  %v6344 = vsel %vm1146, %v6055, %v6063
  %v6345 = vsel %vm1146, %v6057, %v6065
  %v6346 = vsel %vm1146, %v6043, %v6051
  %v6347 = vsel %vm1146, %v6045, %v6053
  %v6348 = vsel %vm1146, %v6047, %v6055
  %v6349 = vsel %vm1146, %v6049, %v6057
  %v6350 = vsel %vm1146, %v6035, %v6043
  %v6351 = vsel %vm1146, %v6037, %v6045
  %v6352 = vsel %vm1146, %v6039, %v6047
  %v6353 = vsel %vm1146, %v6041, %v6049
  %v6354 = vsel %vm1146, %v6027, %v6035
  %v6355 = vsel %vm1146, %v6029, %v6037
  %v6356 = vsel %vm1146, %v6031, %v6039
  %v6357 = vsel %vm1146, %v6033, %v6041
  %v6358 = vsel %vm1146, %v6019, %v6027
  %v6359 = vsel %vm1146, %v6021, %v6029
  %v6360 = vsel %vm1146, %v6023, %v6031
  %v6361 = vsel %vm1146, %v6025, %v6033
  %v6362 = vsel %vm1146, %v6011, %v6019
  %v6363 = vsel %vm1146, %v6013, %v6021
  %v6364 = vsel %vm1146, %v6015, %v6023
  %v6365 = vsel %vm1146, %v6017, %v6025
  %v6366 = vsel %vm1146, %v6003, %v6011
  %v6367 = vsel %vm1146, %v6005, %v6013
  %v6368 = vsel %vm1146, %v6007, %v6015
  %v6369 = vsel %vm1146, %v6009, %v6017
  %v6370 = vsel %vm1146, %v5995, %v6003
  %v6371 = vsel %vm1146, %v5997, %v6005
  %v6372 = vsel %vm1146, %v5999, %v6007
  %v6373 = vsel %vm1146, %v6001, %v6009
  %v6374 = vsel %vm1146, %v6243, %v5995
  %v6375 = vsel %vm1146, %v6245, %v5997
  %v6376 = vsel %vm1146, %v6247, %v5999
  %v6377 = vsel %vm1146, %v6249, %v6001
  %v6378 = vpack.c.bf16 %v6375, %v6374
  %v6379 = vpack.c.bf16 %v6371, %v6370
  %v6380 = vpack.c.bf16 %v6367, %v6366
  %v6381 = vpack.c.bf16 %v6363, %v6362
  %v6382 = vpack.c.bf16 %v6359, %v6358
  %v6383 = vpack.c.bf16 %v6355, %v6354
  %v6384 = vpack.c.bf16 %v6351, %v6350
  %v6385 = vpack.c.bf16 %v6347, %v6346
  %v6386 = vpack.c.bf16 %v6343, %v6342
  %v6387 = vpack.c.bf16 %v6339, %v6338
  %v6388 = vpack.c.bf16 %v6335, %v6334
  %v6389 = vpack.c.bf16 %v6331, %v6330
  %v6390 = vpack.c.bf16 %v6327, %v6326
  %v6391 = vpack.c.bf16 %v6323, %v6322
  %v6392 = vpack.c.bf16 %v6319, %v6318
  %v6393 = vpack.c.bf16 %v6315, %v6314
  %v6394 = vpack.c.bf16 %v6311, %v6310
  %v6395 = vpack.c.bf16 %v6307, %v6306
  %v6396 = vpack.c.bf16 %v6303, %v6302
  %v6397 = vpack.c.bf16 %v6299, %v6298
  %v6398 = vpack.c.bf16 %v6295, %v6294
  %v6399 = vpack.c.bf16 %v6291, %v6290
  %v6400 = vpack.c.bf16 %v6287, %v6286
  %v6401 = vpack.c.bf16 %v6283, %v6282
  %v6402 = vpack.c.bf16 %v6279, %v6278
  %v6403 = vpack.c.bf16 %v6275, %v6274
  %v6404 = vpack.c.bf16 %v6271, %v6270
  %v6405 = vpack.c.bf16 %v6267, %v6266
  %v6406 = vpack.c.bf16 %v6263, %v6262
  %v6407 = vpack.c.bf16 %v6259, %v6258
  %v6408 = vpack.c.bf16 %v6255, %v6254
  %v6409 = vpack.c.bf16 %v6251, %v6250
  %v6410 = vpack.c.bf16 %v6377, %v6376
  %v6411 = vpack.c.bf16 %v6373, %v6372
  %v6412 = vpack.c.bf16 %v6369, %v6368
  %v6413 = vpack.c.bf16 %v6365, %v6364
  %v6414 = vpack.c.bf16 %v6361, %v6360
  %v6415 = vpack.c.bf16 %v6357, %v6356
  %v6416 = vpack.c.bf16 %v6353, %v6352
  %v6417 = vpack.c.bf16 %v6349, %v6348
  %v6418 = vpack.c.bf16 %v6345, %v6344
  %v6419 = vpack.c.bf16 %v6341, %v6340
  %v6420 = vpack.c.bf16 %v6337, %v6336
  %v6421 = vpack.c.bf16 %v6333, %v6332
  %v6422 = vpack.c.bf16 %v6329, %v6328
  %v6423 = vpack.c.bf16 %v6325, %v6324
  %v6424 = vpack.c.bf16 %v6321, %v6320
  %v6425 = vpack.c.bf16 %v6317, %v6316
  %v6426 = vpack.c.bf16 %v6313, %v6312
  %v6427 = vpack.c.bf16 %v6309, %v6308
  %v6428 = vpack.c.bf16 %v6305, %v6304
  %v6429 = vpack.c.bf16 %v6301, %v6300
  %v6430 = vpack.c.bf16 %v6297, %v6296
  %v6431 = vpack.c.bf16 %v6293, %v6292
  %v6432 = vpack.c.bf16 %v6289, %v6288
  %v6433 = vpack.c.bf16 %v6285, %v6284
  %v6434 = vpack.c.bf16 %v6281, %v6280
  %v6435 = vpack.c.bf16 %v6277, %v6276
  %v6436 = vpack.c.bf16 %v6273, %v6272
  %v6437 = vpack.c.bf16 %v6269, %v6268
  %v6438 = vpack.c.bf16 %v6265, %v6264
  %v6439 = vpack.c.bf16 %v6261, %v6260
  %v6440 = vpack.c.bf16 %v6257, %v6256
  %v6441 = vpack.c.bf16 %v6253, %v6252
  %v6442 = vpack.c.bf16 %v5002, %v4970
  %v6443 = vpack.c.bf16 %v5003, %v4971
  %v6444 = vpack.c.bf16 %v5004, %v4972
  %v6445 = vpack.c.bf16 %v5005, %v4973
  %v6446 = vpack.c.bf16 %v5006, %v4974
  %v6447 = vpack.c.bf16 %v5007, %v4975
  %v6448 = vpack.c.bf16 %v5008, %v4976
  %v6449 = vpack.c.bf16 %v5009, %v4977
  %v6450 = vpack.c.bf16 %v5010, %v4978
  %v6451 = vpack.c.bf16 %v5011, %v4979
  %v6452 = vpack.c.bf16 %v5012, %v4980
  %v6453 = vpack.c.bf16 %v5013, %v4981
  %v6454 = vpack.c.bf16 %v5014, %v4982
  %v6455 = vpack.c.bf16 %v5015, %v4983
  %v6456 = vpack.c.bf16 %v5016, %v4984
  %v6457 = vpack.c.bf16 %v5017, %v4985
  %v6458 = vpack.c.bf16 %v5018, %v4986
  %v6459 = vpack.c.bf16 %v5019, %v4987
  %v6460 = vpack.c.bf16 %v5020, %v4988
  %v6461 = vpack.c.bf16 %v5021, %v4989
  %v6462 = vpack.c.bf16 %v5022, %v4990
  %v6463 = vpack.c.bf16 %v5023, %v4991
  %v6464 = vpack.c.bf16 %v5024, %v4992
  %v6465 = vpack.c.bf16 %v5025, %v4993
  %v6466 = vpack.c.bf16 %v5026, %v4994
  %v6467 = vpack.c.bf16 %v5027, %v4995
  %v6468 = vpack.c.bf16 %v5028, %v4996
  %v6469 = vpack.c.bf16 %v5029, %v4997
  %v6470 = vpack.c.bf16 %v5030, %v4998
  %v6471 = vpack.c.bf16 %v5031, %v4999
  %v6472 = vpack.c.bf16 %v5032, %v5000
  %v6473 = vpack.c.bf16 %v5033, %v5001
  %v6474 = vpack.c.bf16 %v5066, %v5034
  %v6475 = vpack.c.bf16 %v5067, %v5035
  %v6476 = vpack.c.bf16 %v5068, %v5036
  %v6477 = vpack.c.bf16 %v5069, %v5037
  %v6478 = vpack.c.bf16 %v5070, %v5038
  %v6479 = vpack.c.bf16 %v5071, %v5039
  %v6480 = vpack.c.bf16 %v5072, %v5040
  %v6481 = vpack.c.bf16 %v5073, %v5041
  %v6482 = vpack.c.bf16 %v5074, %v5042
  %v6483 = vpack.c.bf16 %v5075, %v5043
  %v6484 = vpack.c.bf16 %v5076, %v5044
  %v6485 = vpack.c.bf16 %v5077, %v5045
  %v6486 = vpack.c.bf16 %v5078, %v5046
  %v6487 = vpack.c.bf16 %v5079, %v5047
  %v6488 = vpack.c.bf16 %v5080, %v5048
  %v6489 = vpack.c.bf16 %v5081, %v5049
  %v6490 = vpack.c.bf16 %v5082, %v5050
  %v6491 = vpack.c.bf16 %v5083, %v5051
  %v6492 = vpack.c.bf16 %v5084, %v5052
  %v6493 = vpack.c.bf16 %v5085, %v5053
  %v6494 = vpack.c.bf16 %v5086, %v5054
  %v6495 = vpack.c.bf16 %v5087, %v5055
  %v6496 = vpack.c.bf16 %v5088, %v5056
  %v6497 = vpack.c.bf16 %v5089, %v5057
  %v6498 = vpack.c.bf16 %v5090, %v5058
  %v6499 = vpack.c.bf16 %v5091, %v5059
  %v6500 = vpack.c.bf16 %v5092, %v5060
  %v6501 = vpack.c.bf16 %v5093, %v5061
  %v6502 = vpack.c.bf16 %v5094, %v5062
  %v6503 = vpack.c.bf16 %v5095, %v5063
  %v6504 = vpack.c.bf16 %v5096, %v5064
  %v6505 = vpack.c.bf16 %v5097, %v5065
  %v6506 = vld [vmem:[%s5] sm:$0xf]
  %v6507 = vld [vmem:[%s5 + $0x4] sm:$0xf]
  %v6508 = vld [vmem:[%s5 + $0x8] sm:$0xf]
  %v6509 = vld [vmem:[%s5 + $0xc] sm:$0xf]
  %6510 = vset.pattern.permute.xlu0 2
  %6511 = vperm.xlu0 %6510, %v42
  %v6512 = vpop.permute.xlu0 %6511
  %6514 = vset.pattern.permute.xlu0 2
  %6515 = vperm.xlu0 %6514, %v43
  %v6516 = vpop.permute.xlu0 %6515
  %6518 = vset.pattern.permute.xlu0 2
  %6519 = vperm.xlu0 %6518, %v44
  %v6520 = vpop.permute.xlu0 %6519
  %6522 = vset.pattern.permute.xlu0 2
  %6523 = vperm.xlu0 %6522, %v45
  %v6524 = vpop.permute.xlu0 %6523
  %v6530 = vunpack.c.l.b16 %v6506
  %v6531 = vunpack.c.l.b16 %v6507
  %v6532 = vunpack.c.l.b16 %v6508
  %v6533 = vunpack.c.l.b16 %v6509
  %v6534 = vpack.c.b16 %v6531, %v6530
  %v6535 = vpack.c.b16 %v6533, %v6532
  %6538 = vmatprep.subr.bf16.mxu0 %v5483
  %6539 = vmatpush1.bf16.msra.mxu0 %v5482
  %6540 = vmatprep.subr.bf16.mxu0 %v5515
  %6541 = vmatpush1.bf16.msra.mxu0 %v5514
  %6542 = vmatprep.subr.bf16.mxu0 %v5931
  %6543 = vmatpush1.bf16.msra.mxu0 %v5930
  %6544 = vmatprep.subr.bf16.mxu0 %v5963
  %6545 = vmatpush1.bf16.msra.mxu0 %v5962
  %6546 = vmatprep.subr.bf16.mxu0 %v6379
  %6547 = vmatpush1.bf16.msra.mxu0 %v6378
  %6548 = vmatprep.subr.bf16.mxu0 %v6411
  %6549 = vmatpush1.bf16.msra.mxu0 %v6410
  %6550 = vmatprep.subr.bf16.mxu0 %v6443
  %6551 = vmatpush1.bf16.msra.mxu0 %v6442
  %6552 = vmatprep.subr.bf16.mxu0 %v6475
  %6553 = vmatpush1.bf16.msra.mxu0 %v6474
  %6554 = vmatprep.subr.bf16.mxu0 0
  %6555 = vmatpush1.bf16.msra.mxu0 0
  %6556 = vmatprep.subr.bf16.mxu0 0
  %6557 = vmatpush1.bf16.msra.mxu0 0
  %6558 = vmatprep.subr.bf16.mxu0 0
  %6559 = vmatpush1.bf16.msra.mxu0 0
  %6560 = vmatprep.subr.bf16.mxu0 0
  %6561 = vmatpush1.bf16.msra.mxu0 0
  %6562 = vmatprep.subr.bf16.mxu0 0
  %6563 = vmatpush1.bf16.msra.mxu0 0
  %6564 = vmatprep.subr.bf16.mxu0 0
  %6565 = vmatpush1.bf16.msra.mxu0 0
  %6566 = vmatprep.subr.bf16.mxu0 0
  %6567 = vmatpush1.bf16.msra.mxu0 0
  %6568 = vmatprep.subr.bf16.mxu0 0
  %6569 = vmatpush1.bf16.msra.mxu0 0
  %6570 = vmatprep.mubr.bf16.mxu0 0
  %6571 = vmatmul.mubr.bf16.gmra.mrb[0].mxu0 %v6534
  %v6572 = vpop.f32.mrb[0].mxu0
  %v6573 = vadd.f32 %v6512, %v6572
  %v6574 = vpop.f32.mrb[0].mxu0
  %v6575 = vadd.f32 %v6512, %v6574
  %v6576 = vpop.f32.mrb[0].mxu0
  %v6577 = vadd.f32 %v6516, %v6576
  %v6578 = vpop.f32.mrb[0].mxu0
  %v6579 = vadd.f32 %v6516, %v6578
  %6580 = vmatprep.mubr.bf16.mxu0 0
  %6581 = vmatmul.mubr.bf16.gmra.mrb[0].mxu0 %v6535
  %v6582 = vpop.f32.mrb[0].mxu0
  %v6583 = vadd.f32 %v6520, %v6582
  %v6584 = vpop.f32.mrb[0].mxu0
  %v6585 = vadd.f32 %v6520, %v6584
  %v6586 = vpop.f32.mrb[0].mxu0
  %v6587 = vadd.f32 %v6524, %v6586
  %v6588 = vpop.f32.mrb[0].mxu0
  %v6589 = vadd.f32 %v6524, %v6588
  %6590 = vdwg.mxu0
  %6591 = vmatprep.subr.bf16.mxu0 %v5485
  %6592 = vmatpush1.bf16.msra.mxu0 %v5484
  %6593 = vmatprep.subr.bf16.mxu0 %v5517
  %6594 = vmatpush1.bf16.msra.mxu0 %v5516
  %6595 = vmatprep.subr.bf16.mxu0 %v5933
  %6596 = vmatpush1.bf16.msra.mxu0 %v5932
  %6597 = vmatprep.subr.bf16.mxu0 %v5965
  %6598 = vmatpush1.bf16.msra.mxu0 %v5964
  %6599 = vmatprep.subr.bf16.mxu0 %v6381
  %6600 = vmatpush1.bf16.msra.mxu0 %v6380
  %6601 = vmatprep.subr.bf16.mxu0 %v6413
  %6602 = vmatpush1.bf16.msra.mxu0 %v6412
  %6603 = vmatprep.subr.bf16.mxu0 %v6445
  %6604 = vmatpush1.bf16.msra.mxu0 %v6444
  %6605 = vmatprep.subr.bf16.mxu0 %v6477
  %6606 = vmatpush1.bf16.msra.mxu0 %v6476
  %6607 = vmatprep.subr.bf16.mxu0 0
  %6608 = vmatpush1.bf16.msra.mxu0 0
  %6609 = vmatprep.subr.bf16.mxu0 0
  %6610 = vmatpush1.bf16.msra.mxu0 0
  %6611 = vmatprep.subr.bf16.mxu0 0
  %6612 = vmatpush1.bf16.msra.mxu0 0
  %6613 = vmatprep.subr.bf16.mxu0 0
  %6614 = vmatpush1.bf16.msra.mxu0 0
  %6615 = vmatprep.subr.bf16.mxu0 0
  %6616 = vmatpush1.bf16.msra.mxu0 0
  %6617 = vmatprep.subr.bf16.mxu0 0
  %6618 = vmatpush1.bf16.msra.mxu0 0
  %6619 = vmatprep.subr.bf16.mxu0 0
  %6620 = vmatpush1.bf16.msra.mxu0 0
  %6621 = vmatprep.subr.bf16.mxu0 0
  %6622 = vmatpush1.bf16.msra.mxu0 0
  %6623 = vmatprep.mubr.bf16.mxu0 0
  %6624 = vmatmul.mubr.bf16.gmra.mrb[0].mxu0 %v6534
  %v6625 = vpop.f32.mrb[0].mxu0
  %v6626 = vadd.f32 %v6512, %v6625
  %v6627 = vpop.f32.mrb[0].mxu0
  %v6628 = vadd.f32 %v6512, %v6627
  %v6629 = vpop.f32.mrb[0].mxu0
  %v6630 = vadd.f32 %v6516, %v6629
  %v6631 = vpop.f32.mrb[0].mxu0
  %v6632 = vadd.f32 %v6516, %v6631
  %6633 = vmatprep.mubr.bf16.mxu0 0
  %6634 = vmatmul.mubr.bf16.gmra.mrb[0].mxu0 %v6535
  %v6635 = vpop.f32.mrb[0].mxu0
  %v6636 = vadd.f32 %v6520, %v6635
  %v6637 = vpop.f32.mrb[0].mxu0
  %v6638 = vadd.f32 %v6520, %v6637
  %v6639 = vpop.f32.mrb[0].mxu0
  %v6640 = vadd.f32 %v6524, %v6639
  %v6641 = vpop.f32.mrb[0].mxu0
  %v6642 = vadd.f32 %v6524, %v6641
  %6643 = vdwg.mxu0
  %6644 = vmatprep.subr.bf16.mxu0 %v5487
  %6645 = vmatpush1.bf16.msra.mxu0 %v5486
  %6646 = vmatprep.subr.bf16.mxu0 %v5519
  %6647 = vmatpush1.bf16.msra.mxu0 %v5518
  %6648 = vmatprep.subr.bf16.mxu0 %v5935
  %6649 = vmatpush1.bf16.msra.mxu0 %v5934
  %6650 = vmatprep.subr.bf16.mxu0 %v5967
  %6651 = vmatpush1.bf16.msra.mxu0 %v5966
  %6652 = vmatprep.subr.bf16.mxu0 %v6383
  %6653 = vmatpush1.bf16.msra.mxu0 %v6382
  %6654 = vmatprep.subr.bf16.mxu0 %v6415
  %6655 = vmatpush1.bf16.msra.mxu0 %v6414
  %6656 = vmatprep.subr.bf16.mxu0 %v6447
  %6657 = vmatpush1.bf16.msra.mxu0 %v6446
  %6658 = vmatprep.subr.bf16.mxu0 %v6479
  %6659 = vmatpush1.bf16.msra.mxu0 %v6478
  %6660 = vmatprep.subr.bf16.mxu0 0
  %6661 = vmatpush1.bf16.msra.mxu0 0
  %6662 = vmatprep.subr.bf16.mxu0 0
  %6663 = vmatpush1.bf16.msra.mxu0 0
  %6664 = vmatprep.subr.bf16.mxu0 0
  %6665 = vmatpush1.bf16.msra.mxu0 0
  %6666 = vmatprep.subr.bf16.mxu0 0
  %6667 = vmatpush1.bf16.msra.mxu0 0
  %6668 = vmatprep.subr.bf16.mxu0 0
  %6669 = vmatpush1.bf16.msra.mxu0 0
  %6670 = vmatprep.subr.bf16.mxu0 0
  %6671 = vmatpush1.bf16.msra.mxu0 0
  %6672 = vmatprep.subr.bf16.mxu0 0
  %6673 = vmatpush1.bf16.msra.mxu0 0
  %6674 = vmatprep.subr.bf16.mxu0 0
  %6675 = vmatpush1.bf16.msra.mxu0 0
  %6676 = vmatprep.mubr.bf16.mxu0 0
  %6677 = vmatmul.mubr.bf16.gmra.mrb[0].mxu0 %v6534
  %v6678 = vpop.f32.mrb[0].mxu0
  %v6679 = vadd.f32 %v6512, %v6678
  %v6680 = vpop.f32.mrb[0].mxu0
  %v6681 = vadd.f32 %v6512, %v6680
  %v6682 = vpop.f32.mrb[0].mxu0
  %v6683 = vadd.f32 %v6516, %v6682
  %v6684 = vpop.f32.mrb[0].mxu0
  %v6685 = vadd.f32 %v6516, %v6684
  %6686 = vmatprep.mubr.bf16.mxu0 0
  %6687 = vmatmul.mubr.bf16.gmra.mrb[0].mxu0 %v6535
  %v6688 = vpop.f32.mrb[0].mxu0
  %v6689 = vadd.f32 %v6520, %v6688
  %v6690 = vpop.f32.mrb[0].mxu0
  %v6691 = vadd.f32 %v6520, %v6690
  %v6692 = vpop.f32.mrb[0].mxu0
  %v6693 = vadd.f32 %v6524, %v6692
  %v6694 = vpop.f32.mrb[0].mxu0
  %v6695 = vadd.f32 %v6524, %v6694
  %6696 = vdwg.mxu0
  %6697 = vmatprep.subr.bf16.mxu0 %v5489
  %6698 = vmatpush1.bf16.msra.mxu0 %v5488
  %6699 = vmatprep.subr.bf16.mxu0 %v5521
  %6700 = vmatpush1.bf16.msra.mxu0 %v5520
  %6701 = vmatprep.subr.bf16.mxu0 %v5937
  %6702 = vmatpush1.bf16.msra.mxu0 %v5936
  %6703 = vmatprep.subr.bf16.mxu0 %v5969
  %6704 = vmatpush1.bf16.msra.mxu0 %v5968
  %6705 = vmatprep.subr.bf16.mxu0 %v6385
  %6706 = vmatpush1.bf16.msra.mxu0 %v6384
  %6707 = vmatprep.subr.bf16.mxu0 %v6417
  %6708 = vmatpush1.bf16.msra.mxu0 %v6416
  %6709 = vmatprep.subr.bf16.mxu0 %v6449
  %6710 = vmatpush1.bf16.msra.mxu0 %v6448
  %6711 = vmatprep.subr.bf16.mxu0 %v6481
  %6712 = vmatpush1.bf16.msra.mxu0 %v6480
  %6713 = vmatprep.subr.bf16.mxu0 0
  %6714 = vmatpush1.bf16.msra.mxu0 0
  %6715 = vmatprep.subr.bf16.mxu0 0
  %6716 = vmatpush1.bf16.msra.mxu0 0
  %6717 = vmatprep.subr.bf16.mxu0 0
  %6718 = vmatpush1.bf16.msra.mxu0 0
  %6719 = vmatprep.subr.bf16.mxu0 0
  %6720 = vmatpush1.bf16.msra.mxu0 0
  %6721 = vmatprep.subr.bf16.mxu0 0
  %6722 = vmatpush1.bf16.msra.mxu0 0
  %6723 = vmatprep.subr.bf16.mxu0 0
  %6724 = vmatpush1.bf16.msra.mxu0 0
  %6725 = vmatprep.subr.bf16.mxu0 0
  %6726 = vmatpush1.bf16.msra.mxu0 0
  %6727 = vmatprep.subr.bf16.mxu0 0
  %6728 = vmatpush1.bf16.msra.mxu0 0
  %6729 = vmatprep.mubr.bf16.mxu0 0
  %6730 = vmatmul.mubr.bf16.gmra.mrb[0].mxu0 %v6534
  %v6731 = vpop.f32.mrb[0].mxu0
  %v6732 = vadd.f32 %v6512, %v6731
  %v6733 = vpop.f32.mrb[0].mxu0
  %v6734 = vadd.f32 %v6512, %v6733
  %v6735 = vpop.f32.mrb[0].mxu0
  %v6736 = vadd.f32 %v6516, %v6735
  %v6737 = vpop.f32.mrb[0].mxu0
  %v6738 = vadd.f32 %v6516, %v6737
  %6739 = vmatprep.mubr.bf16.mxu0 0
  %6740 = vmatmul.mubr.bf16.gmra.mrb[0].mxu0 %v6535
  %v6741 = vpop.f32.mrb[0].mxu0
  %v6742 = vadd.f32 %v6520, %v6741
  %v6743 = vpop.f32.mrb[0].mxu0
  %v6744 = vadd.f32 %v6520, %v6743
  %v6745 = vpop.f32.mrb[0].mxu0
  %v6746 = vadd.f32 %v6524, %v6745
  %v6747 = vpop.f32.mrb[0].mxu0
  %v6748 = vadd.f32 %v6524, %v6747
  %6749 = vdwg.mxu0
  %6750 = vmatprep.subr.bf16.mxu0 %v5491
  %6751 = vmatpush1.bf16.msra.mxu0 %v5490
  %6752 = vmatprep.subr.bf16.mxu0 %v5523
  %6753 = vmatpush1.bf16.msra.mxu0 %v5522
  %6754 = vmatprep.subr.bf16.mxu0 %v5939
  %6755 = vmatpush1.bf16.msra.mxu0 %v5938
  %6756 = vmatprep.subr.bf16.mxu0 %v5971
  %6757 = vmatpush1.bf16.msra.mxu0 %v5970
  %6758 = vmatprep.subr.bf16.mxu0 %v6387
  %6759 = vmatpush1.bf16.msra.mxu0 %v6386
  %6760 = vmatprep.subr.bf16.mxu0 %v6419
  %6761 = vmatpush1.bf16.msra.mxu0 %v6418
  %6762 = vmatprep.subr.bf16.mxu0 %v6451
  %6763 = vmatpush1.bf16.msra.mxu0 %v6450
  %6764 = vmatprep.subr.bf16.mxu0 %v6483
  %6765 = vmatpush1.bf16.msra.mxu0 %v6482
  %6766 = vmatprep.subr.bf16.mxu0 0
  %6767 = vmatpush1.bf16.msra.mxu0 0
  %6768 = vmatprep.subr.bf16.mxu0 0
  %6769 = vmatpush1.bf16.msra.mxu0 0
  %6770 = vmatprep.subr.bf16.mxu0 0
  %6771 = vmatpush1.bf16.msra.mxu0 0
  %6772 = vmatprep.subr.bf16.mxu0 0
  %6773 = vmatpush1.bf16.msra.mxu0 0
  %6774 = vmatprep.subr.bf16.mxu0 0
  %6775 = vmatpush1.bf16.msra.mxu0 0
  %6776 = vmatprep.subr.bf16.mxu0 0
  %6777 = vmatpush1.bf16.msra.mxu0 0
  %6778 = vmatprep.subr.bf16.mxu0 0
  %6779 = vmatpush1.bf16.msra.mxu0 0
  %6780 = vmatprep.subr.bf16.mxu0 0
  %6781 = vmatpush1.bf16.msra.mxu0 0
  %6782 = vmatprep.mubr.bf16.mxu0 0
  %6783 = vmatmul.mubr.bf16.gmra.mrb[0].mxu0 %v6534
  %v6784 = vpop.f32.mrb[0].mxu0
  %v6785 = vadd.f32 %v6512, %v6784
  %v6786 = vpop.f32.mrb[0].mxu0
  %v6787 = vadd.f32 %v6512, %v6786
  %v6788 = vpop.f32.mrb[0].mxu0
  %v6789 = vadd.f32 %v6516, %v6788
  %v6790 = vpop.f32.mrb[0].mxu0
  %v6791 = vadd.f32 %v6516, %v6790
  %6792 = vmatprep.mubr.bf16.mxu0 0
  %6793 = vmatmul.mubr.bf16.gmra.mrb[0].mxu0 %v6535
  %v6794 = vpop.f32.mrb[0].mxu0
  %v6795 = vadd.f32 %v6520, %v6794
  %v6796 = vpop.f32.mrb[0].mxu0
  %v6797 = vadd.f32 %v6520, %v6796
  %v6798 = vpop.f32.mrb[0].mxu0
  %v6799 = vadd.f32 %v6524, %v6798
  %v6800 = vpop.f32.mrb[0].mxu0
  %v6801 = vadd.f32 %v6524, %v6800
  %6802 = vdwg.mxu0
  %6803 = vmatprep.subr.bf16.mxu0 %v5493
  %6804 = vmatpush1.bf16.msra.mxu0 %v5492
  %6805 = vmatprep.subr.bf16.mxu0 %v5525
  %6806 = vmatpush1.bf16.msra.mxu0 %v5524
  %6807 = vmatprep.subr.bf16.mxu0 %v5941
  %6808 = vmatpush1.bf16.msra.mxu0 %v5940
  %6809 = vmatprep.subr.bf16.mxu0 %v5973
  %6810 = vmatpush1.bf16.msra.mxu0 %v5972
  %6811 = vmatprep.subr.bf16.mxu0 %v6389
  %6812 = vmatpush1.bf16.msra.mxu0 %v6388
  %6813 = vmatprep.subr.bf16.mxu0 %v6421
  %6814 = vmatpush1.bf16.msra.mxu0 %v6420
  %6815 = vmatprep.subr.bf16.mxu0 %v6453
  %6816 = vmatpush1.bf16.msra.mxu0 %v6452
  %6817 = vmatprep.subr.bf16.mxu0 %v6485
  %6818 = vmatpush1.bf16.msra.mxu0 %v6484
  %6819 = vmatprep.subr.bf16.mxu0 0
  %6820 = vmatpush1.bf16.msra.mxu0 0
  %6821 = vmatprep.subr.bf16.mxu0 0
  %6822 = vmatpush1.bf16.msra.mxu0 0
  %6823 = vmatprep.subr.bf16.mxu0 0
  %6824 = vmatpush1.bf16.msra.mxu0 0
  %6825 = vmatprep.subr.bf16.mxu0 0
  %6826 = vmatpush1.bf16.msra.mxu0 0
  %6827 = vmatprep.subr.bf16.mxu0 0
  %6828 = vmatpush1.bf16.msra.mxu0 0
  %6829 = vmatprep.subr.bf16.mxu0 0
  %6830 = vmatpush1.bf16.msra.mxu0 0
  %6831 = vmatprep.subr.bf16.mxu0 0
  %6832 = vmatpush1.bf16.msra.mxu0 0
  %6833 = vmatprep.subr.bf16.mxu0 0
  %6834 = vmatpush1.bf16.msra.mxu0 0
  %6835 = vmatprep.mubr.bf16.mxu0 0
  %6836 = vmatmul.mubr.bf16.gmra.mrb[0].mxu0 %v6534
  %v6837 = vpop.f32.mrb[0].mxu0
  %v6838 = vadd.f32 %v6512, %v6837
  %v6839 = vpop.f32.mrb[0].mxu0
  %v6840 = vadd.f32 %v6512, %v6839
  %v6841 = vpop.f32.mrb[0].mxu0
  %v6842 = vadd.f32 %v6516, %v6841
  %v6843 = vpop.f32.mrb[0].mxu0
  %v6844 = vadd.f32 %v6516, %v6843
  %6845 = vmatprep.mubr.bf16.mxu0 0
  %6846 = vmatmul.mubr.bf16.gmra.mrb[0].mxu0 %v6535
  %v6847 = vpop.f32.mrb[0].mxu0
  %v6848 = vadd.f32 %v6520, %v6847
  %v6849 = vpop.f32.mrb[0].mxu0
  %v6850 = vadd.f32 %v6520, %v6849
  %v6851 = vpop.f32.mrb[0].mxu0
  %v6852 = vadd.f32 %v6524, %v6851
  %v6853 = vpop.f32.mrb[0].mxu0
  %v6854 = vadd.f32 %v6524, %v6853
  %6855 = vdwg.mxu0
  %6856 = vmatprep.subr.bf16.mxu0 %v5495
  %6857 = vmatpush1.bf16.msra.mxu0 %v5494
  %6858 = vmatprep.subr.bf16.mxu0 %v5527
  %6859 = vmatpush1.bf16.msra.mxu0 %v5526
  %6860 = vmatprep.subr.bf16.mxu0 %v5943
  %6861 = vmatpush1.bf16.msra.mxu0 %v5942
  %6862 = vmatprep.subr.bf16.mxu0 %v5975
  %6863 = vmatpush1.bf16.msra.mxu0 %v5974
  %6864 = vmatprep.subr.bf16.mxu0 %v6391
  %6865 = vmatpush1.bf16.msra.mxu0 %v6390
  %6866 = vmatprep.subr.bf16.mxu0 %v6423
  %6867 = vmatpush1.bf16.msra.mxu0 %v6422
  %6868 = vmatprep.subr.bf16.mxu0 %v6455
  %6869 = vmatpush1.bf16.msra.mxu0 %v6454
  %6870 = vmatprep.subr.bf16.mxu0 %v6487
  %6871 = vmatpush1.bf16.msra.mxu0 %v6486
  %6872 = vmatprep.subr.bf16.mxu0 0
  %6873 = vmatpush1.bf16.msra.mxu0 0
  %6874 = vmatprep.subr.bf16.mxu0 0
  %6875 = vmatpush1.bf16.msra.mxu0 0
  %6876 = vmatprep.subr.bf16.mxu0 0
  %6877 = vmatpush1.bf16.msra.mxu0 0
  %6878 = vmatprep.subr.bf16.mxu0 0
  %6879 = vmatpush1.bf16.msra.mxu0 0
  %6880 = vmatprep.subr.bf16.mxu0 0
  %6881 = vmatpush1.bf16.msra.mxu0 0
  %6882 = vmatprep.subr.bf16.mxu0 0
  %6883 = vmatpush1.bf16.msra.mxu0 0
  %6884 = vmatprep.subr.bf16.mxu0 0
  %6885 = vmatpush1.bf16.msra.mxu0 0
  %6886 = vmatprep.subr.bf16.mxu0 0
  %6887 = vmatpush1.bf16.msra.mxu0 0
  %6888 = vmatprep.mubr.bf16.mxu0 0
  %6889 = vmatmul.mubr.bf16.gmra.mrb[0].mxu0 %v6534
  %v6890 = vpop.f32.mrb[0].mxu0
  %v6891 = vadd.f32 %v6512, %v6890
  %v6892 = vpop.f32.mrb[0].mxu0
  %v6893 = vadd.f32 %v6512, %v6892
  %v6894 = vpop.f32.mrb[0].mxu0
  %v6895 = vadd.f32 %v6516, %v6894
  %v6896 = vpop.f32.mrb[0].mxu0
  %v6897 = vadd.f32 %v6516, %v6896
  %6898 = vmatprep.mubr.bf16.mxu0 0
  %6899 = vmatmul.mubr.bf16.gmra.mrb[0].mxu0 %v6535
  %v6900 = vpop.f32.mrb[0].mxu0
  %v6901 = vadd.f32 %v6520, %v6900
  %v6902 = vpop.f32.mrb[0].mxu0
  %v6903 = vadd.f32 %v6520, %v6902
  %v6904 = vpop.f32.mrb[0].mxu0
  %v6905 = vadd.f32 %v6524, %v6904
  %v6906 = vpop.f32.mrb[0].mxu0
  %v6907 = vadd.f32 %v6524, %v6906
  %6908 = vdwg.mxu0
  %6909 = vmatprep.subr.bf16.mxu0 %v5497
  %6910 = vmatpush1.bf16.msra.mxu0 %v5496
  %6911 = vmatprep.subr.bf16.mxu0 %v5529
  %6912 = vmatpush1.bf16.msra.mxu0 %v5528
  %6913 = vmatprep.subr.bf16.mxu0 %v5945
  %6914 = vmatpush1.bf16.msra.mxu0 %v5944
  %6915 = vmatprep.subr.bf16.mxu0 %v5977
  %6916 = vmatpush1.bf16.msra.mxu0 %v5976
  %6917 = vmatprep.subr.bf16.mxu0 %v6393
  %6918 = vmatpush1.bf16.msra.mxu0 %v6392
  %6919 = vmatprep.subr.bf16.mxu0 %v6425
  %6920 = vmatpush1.bf16.msra.mxu0 %v6424
  %6921 = vmatprep.subr.bf16.mxu0 %v6457
  %6922 = vmatpush1.bf16.msra.mxu0 %v6456
  %6923 = vmatprep.subr.bf16.mxu0 %v6489
  %6924 = vmatpush1.bf16.msra.mxu0 %v6488
  %6925 = vmatprep.subr.bf16.mxu0 0
  %6926 = vmatpush1.bf16.msra.mxu0 0
  %6927 = vmatprep.subr.bf16.mxu0 0
  %6928 = vmatpush1.bf16.msra.mxu0 0
  %6929 = vmatprep.subr.bf16.mxu0 0
  %6930 = vmatpush1.bf16.msra.mxu0 0
  %6931 = vmatprep.subr.bf16.mxu0 0
  %6932 = vmatpush1.bf16.msra.mxu0 0
  %6933 = vmatprep.subr.bf16.mxu0 0
  %6934 = vmatpush1.bf16.msra.mxu0 0
  %6935 = vmatprep.subr.bf16.mxu0 0
  %6936 = vmatpush1.bf16.msra.mxu0 0
  %6937 = vmatprep.subr.bf16.mxu0 0
  %6938 = vmatpush1.bf16.msra.mxu0 0
  %6939 = vmatprep.subr.bf16.mxu0 0
  %6940 = vmatpush1.bf16.msra.mxu0 0
  %6941 = vmatprep.mubr.bf16.mxu0 0
  %6942 = vmatmul.mubr.bf16.gmra.mrb[0].mxu0 %v6534
  %v6943 = vpop.f32.mrb[0].mxu0
  %v6944 = vadd.f32 %v6512, %v6943
  %v6945 = vpop.f32.mrb[0].mxu0
  %v6946 = vadd.f32 %v6512, %v6945
  %v6947 = vpop.f32.mrb[0].mxu0
  %v6948 = vadd.f32 %v6516, %v6947
  %v6949 = vpop.f32.mrb[0].mxu0
  %v6950 = vadd.f32 %v6516, %v6949
  %6951 = vmatprep.mubr.bf16.mxu0 0
  %6952 = vmatmul.mubr.bf16.gmra.mrb[0].mxu0 %v6535
  %v6953 = vpop.f32.mrb[0].mxu0
  %v6954 = vadd.f32 %v6520, %v6953
  %v6955 = vpop.f32.mrb[0].mxu0
  %v6956 = vadd.f32 %v6520, %v6955
  %v6957 = vpop.f32.mrb[0].mxu0
  %v6958 = vadd.f32 %v6524, %v6957
  %v6959 = vpop.f32.mrb[0].mxu0
  %v6960 = vadd.f32 %v6524, %v6959
  %6961 = vdwg.mxu0
  %6962 = vmatprep.subr.bf16.mxu0 %v5499
  %6963 = vmatpush1.bf16.msra.mxu0 %v5498
  %6964 = vmatprep.subr.bf16.mxu0 %v5531
  %6965 = vmatpush1.bf16.msra.mxu0 %v5530
  %6966 = vmatprep.subr.bf16.mxu0 %v5947
  %6967 = vmatpush1.bf16.msra.mxu0 %v5946
  %6968 = vmatprep.subr.bf16.mxu0 %v5979
  %6969 = vmatpush1.bf16.msra.mxu0 %v5978
  %6970 = vmatprep.subr.bf16.mxu0 %v6395
  %6971 = vmatpush1.bf16.msra.mxu0 %v6394
  %6972 = vmatprep.subr.bf16.mxu0 %v6427
  %6973 = vmatpush1.bf16.msra.mxu0 %v6426
  %6974 = vmatprep.subr.bf16.mxu0 %v6459
  %6975 = vmatpush1.bf16.msra.mxu0 %v6458
  %6976 = vmatprep.subr.bf16.mxu0 %v6491
  %6977 = vmatpush1.bf16.msra.mxu0 %v6490
  %6978 = vmatprep.subr.bf16.mxu0 0
  %6979 = vmatpush1.bf16.msra.mxu0 0
  %6980 = vmatprep.subr.bf16.mxu0 0
  %6981 = vmatpush1.bf16.msra.mxu0 0
  %6982 = vmatprep.subr.bf16.mxu0 0
  %6983 = vmatpush1.bf16.msra.mxu0 0
  %6984 = vmatprep.subr.bf16.mxu0 0
  %6985 = vmatpush1.bf16.msra.mxu0 0
  %6986 = vmatprep.subr.bf16.mxu0 0
  %6987 = vmatpush1.bf16.msra.mxu0 0
  %6988 = vmatprep.subr.bf16.mxu0 0
  %6989 = vmatpush1.bf16.msra.mxu0 0
  %6990 = vmatprep.subr.bf16.mxu0 0
  %6991 = vmatpush1.bf16.msra.mxu0 0
  %6992 = vmatprep.subr.bf16.mxu0 0
  %6993 = vmatpush1.bf16.msra.mxu0 0
  %6994 = vmatprep.mubr.bf16.mxu0 0
  %6995 = vmatmul.mubr.bf16.gmra.mrb[0].mxu0 %v6534
  %v6996 = vpop.f32.mrb[0].mxu0
  %v6997 = vadd.f32 %v6512, %v6996
  %v6998 = vpop.f32.mrb[0].mxu0
  %v6999 = vadd.f32 %v6512, %v6998
  %v7000 = vpop.f32.mrb[0].mxu0
  %v7001 = vadd.f32 %v6516, %v7000
  %v7002 = vpop.f32.mrb[0].mxu0
  %v7003 = vadd.f32 %v6516, %v7002
  %7004 = vmatprep.mubr.bf16.mxu0 0
  %7005 = vmatmul.mubr.bf16.gmra.mrb[0].mxu0 %v6535
  %v7006 = vpop.f32.mrb[0].mxu0
  %v7007 = vadd.f32 %v6520, %v7006
  %v7008 = vpop.f32.mrb[0].mxu0
  %v7009 = vadd.f32 %v6520, %v7008
  %v7010 = vpop.f32.mrb[0].mxu0
  %v7011 = vadd.f32 %v6524, %v7010
  %v7012 = vpop.f32.mrb[0].mxu0
  %v7013 = vadd.f32 %v6524, %v7012
  %7014 = vdwg.mxu0
  %7015 = vmatprep.subr.bf16.mxu0 %v5501
  %7016 = vmatpush1.bf16.msra.mxu0 %v5500
  %7017 = vmatprep.subr.bf16.mxu0 %v5533
  %7018 = vmatpush1.bf16.msra.mxu0 %v5532
  %7019 = vmatprep.subr.bf16.mxu0 %v5949
  %7020 = vmatpush1.bf16.msra.mxu0 %v5948
  %7021 = vmatprep.subr.bf16.mxu0 %v5981
  %7022 = vmatpush1.bf16.msra.mxu0 %v5980
  %7023 = vmatprep.subr.bf16.mxu0 %v6397
  %7024 = vmatpush1.bf16.msra.mxu0 %v6396
  %7025 = vmatprep.subr.bf16.mxu0 %v6429
  %7026 = vmatpush1.bf16.msra.mxu0 %v6428
  %7027 = vmatprep.subr.bf16.mxu0 %v6461
  %7028 = vmatpush1.bf16.msra.mxu0 %v6460
  %7029 = vmatprep.subr.bf16.mxu0 %v6493
  %7030 = vmatpush1.bf16.msra.mxu0 %v6492
  %7031 = vmatprep.subr.bf16.mxu0 0
  %7032 = vmatpush1.bf16.msra.mxu0 0
  %7033 = vmatprep.subr.bf16.mxu0 0
  %7034 = vmatpush1.bf16.msra.mxu0 0
  %7035 = vmatprep.subr.bf16.mxu0 0
  %7036 = vmatpush1.bf16.msra.mxu0 0
  %7037 = vmatprep.subr.bf16.mxu0 0
  %7038 = vmatpush1.bf16.msra.mxu0 0
  %7039 = vmatprep.subr.bf16.mxu0 0
  %7040 = vmatpush1.bf16.msra.mxu0 0
  %7041 = vmatprep.subr.bf16.mxu0 0
  %7042 = vmatpush1.bf16.msra.mxu0 0
  %7043 = vmatprep.subr.bf16.mxu0 0
  %7044 = vmatpush1.bf16.msra.mxu0 0
  %7045 = vmatprep.subr.bf16.mxu0 0
  %7046 = vmatpush1.bf16.msra.mxu0 0
  %7047 = vmatprep.mubr.bf16.mxu0 0
  %7048 = vmatmul.mubr.bf16.gmra.mrb[0].mxu0 %v6534
  %v7049 = vpop.f32.mrb[0].mxu0
  %v7050 = vadd.f32 %v6512, %v7049
  %v7051 = vpop.f32.mrb[0].mxu0
  %v7052 = vadd.f32 %v6512, %v7051
  %v7053 = vpop.f32.mrb[0].mxu0
  %v7054 = vadd.f32 %v6516, %v7053
  %v7055 = vpop.f32.mrb[0].mxu0
  %v7056 = vadd.f32 %v6516, %v7055
  %7057 = vmatprep.mubr.bf16.mxu0 0
  %7058 = vmatmul.mubr.bf16.gmra.mrb[0].mxu0 %v6535
  %v7059 = vpop.f32.mrb[0].mxu0
  %v7060 = vadd.f32 %v6520, %v7059
  %v7061 = vpop.f32.mrb[0].mxu0
  %v7062 = vadd.f32 %v6520, %v7061
  %v7063 = vpop.f32.mrb[0].mxu0
  %v7064 = vadd.f32 %v6524, %v7063
  %v7065 = vpop.f32.mrb[0].mxu0
  %v7066 = vadd.f32 %v6524, %v7065
  %7067 = vdwg.mxu0
  %7068 = vmatprep.subr.bf16.mxu0 %v5503
  %7069 = vmatpush1.bf16.msra.mxu0 %v5502
  %7070 = vmatprep.subr.bf16.mxu0 %v5535
  %7071 = vmatpush1.bf16.msra.mxu0 %v5534
  %7072 = vmatprep.subr.bf16.mxu0 %v5951
  %7073 = vmatpush1.bf16.msra.mxu0 %v5950
  %7074 = vmatprep.subr.bf16.mxu0 %v5983
  %7075 = vmatpush1.bf16.msra.mxu0 %v5982
  %7076 = vmatprep.subr.bf16.mxu0 %v6399
  %7077 = vmatpush1.bf16.msra.mxu0 %v6398
  %7078 = vmatprep.subr.bf16.mxu0 %v6431
  %7079 = vmatpush1.bf16.msra.mxu0 %v6430
  %7080 = vmatprep.subr.bf16.mxu0 %v6463
  %7081 = vmatpush1.bf16.msra.mxu0 %v6462
  %7082 = vmatprep.subr.bf16.mxu0 %v6495
  %7083 = vmatpush1.bf16.msra.mxu0 %v6494
  %7084 = vmatprep.subr.bf16.mxu0 0
  %7085 = vmatpush1.bf16.msra.mxu0 0
  %7086 = vmatprep.subr.bf16.mxu0 0
  %7087 = vmatpush1.bf16.msra.mxu0 0
  %7088 = vmatprep.subr.bf16.mxu0 0
  %7089 = vmatpush1.bf16.msra.mxu0 0
  %7090 = vmatprep.subr.bf16.mxu0 0
  %7091 = vmatpush1.bf16.msra.mxu0 0
  %7092 = vmatprep.subr.bf16.mxu0 0
  %7093 = vmatpush1.bf16.msra.mxu0 0
  %7094 = vmatprep.subr.bf16.mxu0 0
  %7095 = vmatpush1.bf16.msra.mxu0 0
  %7096 = vmatprep.subr.bf16.mxu0 0
  %7097 = vmatpush1.bf16.msra.mxu0 0
  %7098 = vmatprep.subr.bf16.mxu0 0
  %7099 = vmatpush1.bf16.msra.mxu0 0
  %7100 = vmatprep.mubr.bf16.mxu0 0
  %7101 = vmatmul.mubr.bf16.gmra.mrb[0].mxu0 %v6534
  %v7102 = vpop.f32.mrb[0].mxu0
  %v7103 = vadd.f32 %v6512, %v7102
  %v7104 = vpop.f32.mrb[0].mxu0
  %v7105 = vadd.f32 %v6512, %v7104
  %v7106 = vpop.f32.mrb[0].mxu0
  %v7107 = vadd.f32 %v6516, %v7106
  %v7108 = vpop.f32.mrb[0].mxu0
  %v7109 = vadd.f32 %v6516, %v7108
  %7110 = vmatprep.mubr.bf16.mxu0 0
  %7111 = vmatmul.mubr.bf16.gmra.mrb[0].mxu0 %v6535
  %v7112 = vpop.f32.mrb[0].mxu0
  %v7113 = vadd.f32 %v6520, %v7112
  %v7114 = vpop.f32.mrb[0].mxu0
  %v7115 = vadd.f32 %v6520, %v7114
  %v7116 = vpop.f32.mrb[0].mxu0
  %v7117 = vadd.f32 %v6524, %v7116
  %v7118 = vpop.f32.mrb[0].mxu0
  %v7119 = vadd.f32 %v6524, %v7118
  %7120 = vdwg.mxu0
  %7121 = vmatprep.subr.bf16.mxu0 %v5505
  %7122 = vmatpush1.bf16.msra.mxu0 %v5504
  %7123 = vmatprep.subr.bf16.mxu0 %v5537
  %7124 = vmatpush1.bf16.msra.mxu0 %v5536
  %7125 = vmatprep.subr.bf16.mxu0 %v5953
  %7126 = vmatpush1.bf16.msra.mxu0 %v5952
  %7127 = vmatprep.subr.bf16.mxu0 %v5985
  %7128 = vmatpush1.bf16.msra.mxu0 %v5984
  %7129 = vmatprep.subr.bf16.mxu0 %v6401
  %7130 = vmatpush1.bf16.msra.mxu0 %v6400
  %7131 = vmatprep.subr.bf16.mxu0 %v6433
  %7132 = vmatpush1.bf16.msra.mxu0 %v6432
  %7133 = vmatprep.subr.bf16.mxu0 %v6465
  %7134 = vmatpush1.bf16.msra.mxu0 %v6464
  %7135 = vmatprep.subr.bf16.mxu0 %v6497
  %7136 = vmatpush1.bf16.msra.mxu0 %v6496
  %7137 = vmatprep.subr.bf16.mxu0 0
  %7138 = vmatpush1.bf16.msra.mxu0 0
  %7139 = vmatprep.subr.bf16.mxu0 0
  %7140 = vmatpush1.bf16.msra.mxu0 0
  %7141 = vmatprep.subr.bf16.mxu0 0
  %7142 = vmatpush1.bf16.msra.mxu0 0
  %7143 = vmatprep.subr.bf16.mxu0 0
  %7144 = vmatpush1.bf16.msra.mxu0 0
  %7145 = vmatprep.subr.bf16.mxu0 0
  %7146 = vmatpush1.bf16.msra.mxu0 0
  %7147 = vmatprep.subr.bf16.mxu0 0
  %7148 = vmatpush1.bf16.msra.mxu0 0
  %7149 = vmatprep.subr.bf16.mxu0 0
  %7150 = vmatpush1.bf16.msra.mxu0 0
  %7151 = vmatprep.subr.bf16.mxu0 0
  %7152 = vmatpush1.bf16.msra.mxu0 0
  %7153 = vmatprep.mubr.bf16.mxu0 0
  %7154 = vmatmul.mubr.bf16.gmra.mrb[0].mxu0 %v6534
  %v7155 = vpop.f32.mrb[0].mxu0
  %v7156 = vadd.f32 %v6512, %v7155
  %v7157 = vpop.f32.mrb[0].mxu0
  %v7158 = vadd.f32 %v6512, %v7157
  %v7159 = vpop.f32.mrb[0].mxu0
  %v7160 = vadd.f32 %v6516, %v7159
  %v7161 = vpop.f32.mrb[0].mxu0
  %v7162 = vadd.f32 %v6516, %v7161
  %7163 = vmatprep.mubr.bf16.mxu0 0
  %7164 = vmatmul.mubr.bf16.gmra.mrb[0].mxu0 %v6535
  %v7165 = vpop.f32.mrb[0].mxu0
  %v7166 = vadd.f32 %v6520, %v7165
  %v7167 = vpop.f32.mrb[0].mxu0
  %v7168 = vadd.f32 %v6520, %v7167
  %v7169 = vpop.f32.mrb[0].mxu0
  %v7170 = vadd.f32 %v6524, %v7169
  %v7171 = vpop.f32.mrb[0].mxu0
  %v7172 = vadd.f32 %v6524, %v7171
  %7173 = vdwg.mxu0
  %7174 = vmatprep.subr.bf16.mxu0 %v5507
  %7175 = vmatpush1.bf16.msra.mxu0 %v5506
  %7176 = vmatprep.subr.bf16.mxu0 %v5539
  %7177 = vmatpush1.bf16.msra.mxu0 %v5538
  %7178 = vmatprep.subr.bf16.mxu0 %v5955
  %7179 = vmatpush1.bf16.msra.mxu0 %v5954
  %7180 = vmatprep.subr.bf16.mxu0 %v5987
  %7181 = vmatpush1.bf16.msra.mxu0 %v5986
  %7182 = vmatprep.subr.bf16.mxu0 %v6403
  %7183 = vmatpush1.bf16.msra.mxu0 %v6402
  %7184 = vmatprep.subr.bf16.mxu0 %v6435
  %7185 = vmatpush1.bf16.msra.mxu0 %v6434
  %7186 = vmatprep.subr.bf16.mxu0 %v6467
  %7187 = vmatpush1.bf16.msra.mxu0 %v6466
  %7188 = vmatprep.subr.bf16.mxu0 %v6499
  %7189 = vmatpush1.bf16.msra.mxu0 %v6498
  %7190 = vmatprep.subr.bf16.mxu0 0
  %7191 = vmatpush1.bf16.msra.mxu0 0
  %7192 = vmatprep.subr.bf16.mxu0 0
  %7193 = vmatpush1.bf16.msra.mxu0 0
  %7194 = vmatprep.subr.bf16.mxu0 0
  %7195 = vmatpush1.bf16.msra.mxu0 0
  %7196 = vmatprep.subr.bf16.mxu0 0
  %7197 = vmatpush1.bf16.msra.mxu0 0
  %7198 = vmatprep.subr.bf16.mxu0 0
  %7199 = vmatpush1.bf16.msra.mxu0 0
  %7200 = vmatprep.subr.bf16.mxu0 0
  %7201 = vmatpush1.bf16.msra.mxu0 0
  %7202 = vmatprep.subr.bf16.mxu0 0
  %7203 = vmatpush1.bf16.msra.mxu0 0
  %7204 = vmatprep.subr.bf16.mxu0 0
  %7205 = vmatpush1.bf16.msra.mxu0 0
  %7206 = vmatprep.mubr.bf16.mxu0 0
  %7207 = vmatmul.mubr.bf16.gmra.mrb[0].mxu0 %v6534
  %v7208 = vpop.f32.mrb[0].mxu0
  %v7209 = vadd.f32 %v6512, %v7208
  %v7210 = vpop.f32.mrb[0].mxu0
  %v7211 = vadd.f32 %v6512, %v7210
  %v7212 = vpop.f32.mrb[0].mxu0
  %v7213 = vadd.f32 %v6516, %v7212
  %v7214 = vpop.f32.mrb[0].mxu0
  %v7215 = vadd.f32 %v6516, %v7214
  %7216 = vmatprep.mubr.bf16.mxu0 0
  %7217 = vmatmul.mubr.bf16.gmra.mrb[0].mxu0 %v6535
  %v7218 = vpop.f32.mrb[0].mxu0
  %v7219 = vadd.f32 %v6520, %v7218
  %v7220 = vpop.f32.mrb[0].mxu0
  %v7221 = vadd.f32 %v6520, %v7220
  %v7222 = vpop.f32.mrb[0].mxu0
  %v7223 = vadd.f32 %v6524, %v7222
  %v7224 = vpop.f32.mrb[0].mxu0
  %v7225 = vadd.f32 %v6524, %v7224
  %7226 = vdwg.mxu0
  %7227 = vmatprep.subr.bf16.mxu0 %v5509
  %7228 = vmatpush1.bf16.msra.mxu0 %v5508
  %7229 = vmatprep.subr.bf16.mxu0 %v5541
  %7230 = vmatpush1.bf16.msra.mxu0 %v5540
  %7231 = vmatprep.subr.bf16.mxu0 %v5957
  %7232 = vmatpush1.bf16.msra.mxu0 %v5956
  %7233 = vmatprep.subr.bf16.mxu0 %v5989
  %7234 = vmatpush1.bf16.msra.mxu0 %v5988
  %7235 = vmatprep.subr.bf16.mxu0 %v6405
  %7236 = vmatpush1.bf16.msra.mxu0 %v6404
  %7237 = vmatprep.subr.bf16.mxu0 %v6437
  %7238 = vmatpush1.bf16.msra.mxu0 %v6436
  %7239 = vmatprep.subr.bf16.mxu0 %v6469
  %7240 = vmatpush1.bf16.msra.mxu0 %v6468
  %7241 = vmatprep.subr.bf16.mxu0 %v6501
  %7242 = vmatpush1.bf16.msra.mxu0 %v6500
  %7243 = vmatprep.subr.bf16.mxu0 0
  %7244 = vmatpush1.bf16.msra.mxu0 0
  %7245 = vmatprep.subr.bf16.mxu0 0
  %7246 = vmatpush1.bf16.msra.mxu0 0
  %7247 = vmatprep.subr.bf16.mxu0 0
  %7248 = vmatpush1.bf16.msra.mxu0 0
  %7249 = vmatprep.subr.bf16.mxu0 0
  %7250 = vmatpush1.bf16.msra.mxu0 0
  %7251 = vmatprep.subr.bf16.mxu0 0
  %7252 = vmatpush1.bf16.msra.mxu0 0
  %7253 = vmatprep.subr.bf16.mxu0 0
  %7254 = vmatpush1.bf16.msra.mxu0 0
  %7255 = vmatprep.subr.bf16.mxu0 0
  %7256 = vmatpush1.bf16.msra.mxu0 0
  %7257 = vmatprep.subr.bf16.mxu0 0
  %7258 = vmatpush1.bf16.msra.mxu0 0
  %7259 = vmatprep.mubr.bf16.mxu0 0
  %7260 = vmatmul.mubr.bf16.gmra.mrb[0].mxu0 %v6534
  %v7261 = vpop.f32.mrb[0].mxu0
  %v7262 = vadd.f32 %v6512, %v7261
  %v7263 = vpop.f32.mrb[0].mxu0
  %v7264 = vadd.f32 %v6512, %v7263
  %v7265 = vpop.f32.mrb[0].mxu0
  %v7266 = vadd.f32 %v6516, %v7265
  %v7267 = vpop.f32.mrb[0].mxu0
  %v7268 = vadd.f32 %v6516, %v7267
  %7269 = vmatprep.mubr.bf16.mxu0 0
  %7270 = vmatmul.mubr.bf16.gmra.mrb[0].mxu0 %v6535
  %v7271 = vpop.f32.mrb[0].mxu0
  %v7272 = vadd.f32 %v6520, %v7271
  %v7273 = vpop.f32.mrb[0].mxu0
  %v7274 = vadd.f32 %v6520, %v7273
  %v7275 = vpop.f32.mrb[0].mxu0
  %v7276 = vadd.f32 %v6524, %v7275
  %v7277 = vpop.f32.mrb[0].mxu0
  %v7278 = vadd.f32 %v6524, %v7277
  %7279 = vdwg.mxu0
  %7280 = vmatprep.subr.bf16.mxu0 %v5511
  %7281 = vmatpush1.bf16.msra.mxu0 %v5510
  %7282 = vmatprep.subr.bf16.mxu0 %v5543
  %7283 = vmatpush1.bf16.msra.mxu0 %v5542
  %7284 = vmatprep.subr.bf16.mxu0 %v5959
  %7285 = vmatpush1.bf16.msra.mxu0 %v5958
  %7286 = vmatprep.subr.bf16.mxu0 %v5991
  %7287 = vmatpush1.bf16.msra.mxu0 %v5990
  %7288 = vmatprep.subr.bf16.mxu0 %v6407
  %7289 = vmatpush1.bf16.msra.mxu0 %v6406
  %7290 = vmatprep.subr.bf16.mxu0 %v6439
  %7291 = vmatpush1.bf16.msra.mxu0 %v6438
  %7292 = vmatprep.subr.bf16.mxu0 %v6471
  %7293 = vmatpush1.bf16.msra.mxu0 %v6470
  %7294 = vmatprep.subr.bf16.mxu0 %v6503
  %7295 = vmatpush1.bf16.msra.mxu0 %v6502
  %7296 = vmatprep.subr.bf16.mxu0 0
  %7297 = vmatpush1.bf16.msra.mxu0 0
  %7298 = vmatprep.subr.bf16.mxu0 0
  %7299 = vmatpush1.bf16.msra.mxu0 0
  %7300 = vmatprep.subr.bf16.mxu0 0
  %7301 = vmatpush1.bf16.msra.mxu0 0
  %7302 = vmatprep.subr.bf16.mxu0 0
  %7303 = vmatpush1.bf16.msra.mxu0 0
  %7304 = vmatprep.subr.bf16.mxu0 0
  %7305 = vmatpush1.bf16.msra.mxu0 0
  %7306 = vmatprep.subr.bf16.mxu0 0
  %7307 = vmatpush1.bf16.msra.mxu0 0
  %7308 = vmatprep.subr.bf16.mxu0 0
  %7309 = vmatpush1.bf16.msra.mxu0 0
  %7310 = vmatprep.subr.bf16.mxu0 0
  %7311 = vmatpush1.bf16.msra.mxu0 0
  %7312 = vmatprep.mubr.bf16.mxu0 0
  %7313 = vmatmul.mubr.bf16.gmra.mrb[0].mxu0 %v6534
  %v7314 = vpop.f32.mrb[0].mxu0
  %v7315 = vadd.f32 %v6512, %v7314
  %v7316 = vpop.f32.mrb[0].mxu0
  %v7317 = vadd.f32 %v6512, %v7316
  %v7318 = vpop.f32.mrb[0].mxu0
  %v7319 = vadd.f32 %v6516, %v7318
  %v7320 = vpop.f32.mrb[0].mxu0
  %v7321 = vadd.f32 %v6516, %v7320
  %7322 = vmatprep.mubr.bf16.mxu0 0
  %7323 = vmatmul.mubr.bf16.gmra.mrb[0].mxu0 %v6535
  %v7324 = vpop.f32.mrb[0].mxu0
  %v7325 = vadd.f32 %v6520, %v7324
  %v7326 = vpop.f32.mrb[0].mxu0
  %v7327 = vadd.f32 %v6520, %v7326
  %v7328 = vpop.f32.mrb[0].mxu0
  %v7329 = vadd.f32 %v6524, %v7328
  %v7330 = vpop.f32.mrb[0].mxu0
  %v7331 = vadd.f32 %v6524, %v7330
  %7332 = vdwg.mxu0
  %7333 = vmatprep.subr.bf16.mxu0 %v5513
  %7334 = vmatpush1.bf16.msra.mxu0 %v5512
  %7335 = vmatprep.subr.bf16.mxu0 %v5545
  %7336 = vmatpush1.bf16.msra.mxu0 %v5544
  %7337 = vmatprep.subr.bf16.mxu0 %v5961
  %7338 = vmatpush1.bf16.msra.mxu0 %v5960
  %7339 = vmatprep.subr.bf16.mxu0 %v5993
  %7340 = vmatpush1.bf16.msra.mxu0 %v5992
  %7341 = vmatprep.subr.bf16.mxu0 %v6409
  %7342 = vmatpush1.bf16.msra.mxu0 %v6408
  %7343 = vmatprep.subr.bf16.mxu0 %v6441
  %7344 = vmatpush1.bf16.msra.mxu0 %v6440
  %7345 = vmatprep.subr.bf16.mxu0 %v6473
  %7346 = vmatpush1.bf16.msra.mxu0 %v6472
  %7347 = vmatprep.subr.bf16.mxu0 %v6505
  %7348 = vmatpush1.bf16.msra.mxu0 %v6504
  %7349 = vmatprep.subr.bf16.mxu0 0
  %7350 = vmatpush1.bf16.msra.mxu0 0
  %7351 = vmatprep.subr.bf16.mxu0 0
  %7352 = vmatpush1.bf16.msra.mxu0 0
  %7353 = vmatprep.subr.bf16.mxu0 0
  %7354 = vmatpush1.bf16.msra.mxu0 0
  %7355 = vmatprep.subr.bf16.mxu0 0
  %7356 = vmatpush1.bf16.msra.mxu0 0
  %7357 = vmatprep.subr.bf16.mxu0 0
  %7358 = vmatpush1.bf16.msra.mxu0 0
  %7359 = vmatprep.subr.bf16.mxu0 0
  %7360 = vmatpush1.bf16.msra.mxu0 0
  %7361 = vmatprep.subr.bf16.mxu0 0
  %7362 = vmatpush1.bf16.msra.mxu0 0
  %7363 = vmatprep.subr.bf16.mxu0 0
  %7364 = vmatpush1.bf16.msra.mxu0 0
  %7365 = vmatprep.mubr.bf16.mxu0 0
  %7366 = vmatmul.mubr.bf16.gmra.mrb[0].mxu0 %v6534
  %v7367 = vpop.f32.mrb[0].mxu0
  %v7368 = vadd.f32 %v6512, %v7367
  %v7369 = vpop.f32.mrb[0].mxu0
  %v7370 = vadd.f32 %v6512, %v7369
  %v7371 = vpop.f32.mrb[0].mxu0
  %v7372 = vadd.f32 %v6516, %v7371
  %v7373 = vpop.f32.mrb[0].mxu0
  %v7374 = vadd.f32 %v6516, %v7373
  %7375 = vmatprep.mubr.bf16.mxu0 0
  %7376 = vmatmul.mubr.bf16.gmra.mrb[0].mxu0 %v6535
  %v7377 = vpop.f32.mrb[0].mxu0
  %v7378 = vadd.f32 %v6520, %v7377
  %v7379 = vpop.f32.mrb[0].mxu0
  %v7380 = vadd.f32 %v6520, %v7379
  %v7381 = vpop.f32.mrb[0].mxu0
  %v7382 = vadd.f32 %v6524, %v7381
  %v7383 = vpop.f32.mrb[0].mxu0
  %v7384 = vadd.f32 %v6524, %v7383
  %7385 = vdwg.mxu0
  %v7386 = vadd.f32 %v6573, %v2127
  %v7387 = vadd.f32 %v6575, %v2128
  %v7388 = vadd.f32 %v6626, %v2129
  %v7389 = vadd.f32 %v6628, %v2130
  %v7390 = vadd.f32 %v6679, %v2131
  %v7391 = vadd.f32 %v6681, %v2132
  %v7392 = vadd.f32 %v6732, %v2133
  %v7393 = vadd.f32 %v6734, %v2134
  %v7394 = vadd.f32 %v6785, %v2135
  %v7395 = vadd.f32 %v6787, %v2136
  %v7396 = vadd.f32 %v6838, %v2137
  %v7397 = vadd.f32 %v6840, %v2138
  %v7398 = vadd.f32 %v6891, %v2139
  %v7399 = vadd.f32 %v6893, %v2140
  %v7400 = vadd.f32 %v6944, %v2141
  %v7401 = vadd.f32 %v6946, %v2142
  %v7402 = vadd.f32 %v6997, %v2143
  %v7403 = vadd.f32 %v6999, %v2144
  %v7404 = vadd.f32 %v7050, %v2145
  %v7405 = vadd.f32 %v7052, %v2146
  %v7406 = vadd.f32 %v7103, %v2147
  %v7407 = vadd.f32 %v7105, %v2148
  %v7408 = vadd.f32 %v7156, %v2149
  %v7409 = vadd.f32 %v7158, %v2150
  %v7410 = vadd.f32 %v7209, %v2151
  %v7411 = vadd.f32 %v7211, %v2152
  %v7412 = vadd.f32 %v7262, %v2153
  %v7413 = vadd.f32 %v7264, %v2154
  %v7414 = vadd.f32 %v7315, %v2155
  %v7415 = vadd.f32 %v7317, %v2156
  %v7416 = vadd.f32 %v7368, %v2157
  %v7417 = vadd.f32 %v7370, %v2158
  %v7418 = vadd.f32 %v6577, %v2159
  %v7419 = vadd.f32 %v6579, %v2160
  %v7420 = vadd.f32 %v6630, %v2161
  %v7421 = vadd.f32 %v6632, %v2162
  %v7422 = vadd.f32 %v6683, %v2163
  %v7423 = vadd.f32 %v6685, %v2164
  %v7424 = vadd.f32 %v6736, %v2165
  %v7425 = vadd.f32 %v6738, %v2166
  %v7426 = vadd.f32 %v6789, %v2167
  %v7427 = vadd.f32 %v6791, %v2168
  %v7428 = vadd.f32 %v6842, %v2169
  %v7429 = vadd.f32 %v6844, %v2170
  %v7430 = vadd.f32 %v6895, %v2171
  %v7431 = vadd.f32 %v6897, %v2172
  %v7432 = vadd.f32 %v6948, %v2173
  %v7433 = vadd.f32 %v6950, %v2174
  %v7434 = vadd.f32 %v7001, %v2175
  %v7435 = vadd.f32 %v7003, %v2176
  %v7436 = vadd.f32 %v7054, %v2177
  %v7437 = vadd.f32 %v7056, %v2178
  %v7438 = vadd.f32 %v7107, %v2179
  %v7439 = vadd.f32 %v7109, %v2180
  %v7440 = vadd.f32 %v7160, %v2181
  %v7441 = vadd.f32 %v7162, %v2182
  %v7442 = vadd.f32 %v7213, %v2183
  %v7443 = vadd.f32 %v7215, %v2184
  %v7444 = vadd.f32 %v7266, %v2185
  %v7445 = vadd.f32 %v7268, %v2186
  %v7446 = vadd.f32 %v7319, %v2187
  %v7447 = vadd.f32 %v7321, %v2188
  %v7448 = vadd.f32 %v7372, %v2189
  %v7449 = vadd.f32 %v7374, %v2190
  %v7450 = vadd.f32 %v6583, %v2191
  %v7451 = vadd.f32 %v6585, %v2192
  %v7452 = vadd.f32 %v6636, %v2193
  %v7453 = vadd.f32 %v6638, %v2194
  %v7454 = vadd.f32 %v6689, %v2195
  %v7455 = vadd.f32 %v6691, %v2196
  %v7456 = vadd.f32 %v6742, %v2197
  %v7457 = vadd.f32 %v6744, %v2198
  %v7458 = vadd.f32 %v6795, %v2199
  %v7459 = vadd.f32 %v6797, %v2200
  %v7460 = vadd.f32 %v6848, %v2201
  %v7461 = vadd.f32 %v6850, %v2202
  %v7462 = vadd.f32 %v6901, %v2203
  %v7463 = vadd.f32 %v6903, %v2204
  %v7464 = vadd.f32 %v6954, %v2205
  %v7465 = vadd.f32 %v6956, %v2206
  %v7466 = vadd.f32 %v7007, %v2207
  %v7467 = vadd.f32 %v7009, %v2208
  %v7468 = vadd.f32 %v7060, %v2209
  %v7469 = vadd.f32 %v7062, %v2210
  %v7470 = vadd.f32 %v7113, %v2211
  %v7471 = vadd.f32 %v7115, %v2212
  %v7472 = vadd.f32 %v7166, %v2213
  %v7473 = vadd.f32 %v7168, %v2214
  %v7474 = vadd.f32 %v7219, %v2215
  %v7475 = vadd.f32 %v7221, %v2216
  %v7476 = vadd.f32 %v7272, %v2217
  %v7477 = vadd.f32 %v7274, %v2218
  %v7478 = vadd.f32 %v7325, %v2219
  %v7479 = vadd.f32 %v7327, %v2220
  %v7480 = vadd.f32 %v7378, %v2221
  %v7481 = vadd.f32 %v7380, %v2222
  %v7482 = vadd.f32 %v6587, %v2223
  %v7483 = vadd.f32 %v6589, %v2224
  %v7484 = vadd.f32 %v6640, %v2225
  %v7485 = vadd.f32 %v6642, %v2226
  %v7486 = vadd.f32 %v6693, %v2227
  %v7487 = vadd.f32 %v6695, %v2228
  %v7488 = vadd.f32 %v6746, %v2229
  %v7489 = vadd.f32 %v6748, %v2230
  %v7490 = vadd.f32 %v6799, %v2231
  %v7491 = vadd.f32 %v6801, %v2232
  %v7492 = vadd.f32 %v6852, %v2233
  %v7493 = vadd.f32 %v6854, %v2234
  %v7494 = vadd.f32 %v6905, %v2235
  %v7495 = vadd.f32 %v6907, %v2236
  %v7496 = vadd.f32 %v6958, %v2237
  %v7497 = vadd.f32 %v6960, %v2238
  %v7498 = vadd.f32 %v7011, %v2239
  %v7499 = vadd.f32 %v7013, %v2240
  %v7500 = vadd.f32 %v7064, %v2241
  %v7501 = vadd.f32 %v7066, %v2242
  %v7502 = vadd.f32 %v7117, %v2243
  %v7503 = vadd.f32 %v7119, %v2244
  %v7504 = vadd.f32 %v7170, %v2245
  %v7505 = vadd.f32 %v7172, %v2246
  %v7506 = vadd.f32 %v7223, %v2247
  %v7507 = vadd.f32 %v7225, %v2248
  %v7508 = vadd.f32 %v7276, %v2249
  %v7509 = vadd.f32 %v7278, %v2250
  %v7510 = vadd.f32 %v7329, %v2251
  %v7511 = vadd.f32 %v7331, %v2252
  %v7512 = vadd.f32 %v7382, %v2253
  %v7513 = vadd.f32 %v7384, %v2254
  %v7514 = vmul.f32 %v7386, 0.1
  %v7515 = vmul.f32 %v7387, 0.1
  %v7516 = vmul.f32 %v7388, 0.1
  %v7517 = vmul.f32 %v7389, 0.1
  %v7518 = vmul.f32 %v7390, 0.1
  %v7519 = vmul.f32 %v7391, 0.1
  %v7520 = vmul.f32 %v7392, 0.1
  %v7521 = vmul.f32 %v7393, 0.1
  %v7522 = vmul.f32 %v7394, 0.1
  %v7523 = vmul.f32 %v7395, 0.1
  %v7524 = vmul.f32 %v7396, 0.1
  %v7525 = vmul.f32 %v7397, 0.1
  %v7526 = vmul.f32 %v7398, 0.1
  %v7527 = vmul.f32 %v7399, 0.1
  %v7528 = vmul.f32 %v7400, 0.1
  %v7529 = vmul.f32 %v7401, 0.1
  %v7530 = vmul.f32 %v7402, 0.1
  %v7531 = vmul.f32 %v7403, 0.1
  %v7532 = vmul.f32 %v7404, 0.1
  %v7533 = vmul.f32 %v7405, 0.1
  %v7534 = vmul.f32 %v7406, 0.1
  %v7535 = vmul.f32 %v7407, 0.1
  %v7536 = vmul.f32 %v7408, 0.1
  %v7537 = vmul.f32 %v7409, 0.1
  %v7538 = vmul.f32 %v7410, 0.1
  %v7539 = vmul.f32 %v7411, 0.1
  %v7540 = vmul.f32 %v7412, 0.1
  %v7541 = vmul.f32 %v7413, 0.1
  %v7542 = vmul.f32 %v7414, 0.1
  %v7543 = vmul.f32 %v7415, 0.1
  %v7544 = vmul.f32 %v7416, 0.1
  %v7545 = vmul.f32 %v7417, 0.1
  %v7546 = vmul.f32 %v7418, 0.1
  %v7547 = vmul.f32 %v7419, 0.1
  %v7548 = vmul.f32 %v7420, 0.1
  %v7549 = vmul.f32 %v7421, 0.1
  %v7550 = vmul.f32 %v7422, 0.1
  %v7551 = vmul.f32 %v7423, 0.1
  %v7552 = vmul.f32 %v7424, 0.1
  %v7553 = vmul.f32 %v7425, 0.1
  %v7554 = vmul.f32 %v7426, 0.1
  %v7555 = vmul.f32 %v7427, 0.1
  %v7556 = vmul.f32 %v7428, 0.1
  %v7557 = vmul.f32 %v7429, 0.1
  %v7558 = vmul.f32 %v7430, 0.1
  %v7559 = vmul.f32 %v7431, 0.1
  %v7560 = vmul.f32 %v7432, 0.1
  %v7561 = vmul.f32 %v7433, 0.1
  %v7562 = vmul.f32 %v7434, 0.1
  %v7563 = vmul.f32 %v7435, 0.1
  %v7564 = vmul.f32 %v7436, 0.1
  %v7565 = vmul.f32 %v7437, 0.1
  %v7566 = vmul.f32 %v7438, 0.1
  %v7567 = vmul.f32 %v7439, 0.1
  %v7568 = vmul.f32 %v7440, 0.1
  %v7569 = vmul.f32 %v7441, 0.1
  %v7570 = vmul.f32 %v7442, 0.1
  %v7571 = vmul.f32 %v7443, 0.1
  %v7572 = vmul.f32 %v7444, 0.1
  %v7573 = vmul.f32 %v7445, 0.1
  %v7574 = vmul.f32 %v7446, 0.1
  %v7575 = vmul.f32 %v7447, 0.1
  %v7576 = vmul.f32 %v7448, 0.1
  %v7577 = vmul.f32 %v7449, 0.1
  %v7578 = vmul.f32 %v7450, 0.1
  %v7579 = vmul.f32 %v7451, 0.1
  %v7580 = vmul.f32 %v7452, 0.1
  %v7581 = vmul.f32 %v7453, 0.1
  %v7582 = vmul.f32 %v7454, 0.1
  %v7583 = vmul.f32 %v7455, 0.1
  %v7584 = vmul.f32 %v7456, 0.1
  %v7585 = vmul.f32 %v7457, 0.1
  %v7586 = vmul.f32 %v7458, 0.1
  %v7587 = vmul.f32 %v7459, 0.1
  %v7588 = vmul.f32 %v7460, 0.1
  %v7589 = vmul.f32 %v7461, 0.1
  %v7590 = vmul.f32 %v7462, 0.1
  %v7591 = vmul.f32 %v7463, 0.1
  %v7592 = vmul.f32 %v7464, 0.1
  %v7593 = vmul.f32 %v7465, 0.1
  %v7594 = vmul.f32 %v7466, 0.1
  %v7595 = vmul.f32 %v7467, 0.1
  %v7596 = vmul.f32 %v7468, 0.1
  %v7597 = vmul.f32 %v7469, 0.1
  %v7598 = vmul.f32 %v7470, 0.1
  %v7599 = vmul.f32 %v7471, 0.1
  %v7600 = vmul.f32 %v7472, 0.1
  %v7601 = vmul.f32 %v7473, 0.1
  %v7602 = vmul.f32 %v7474, 0.1
  %v7603 = vmul.f32 %v7475, 0.1
  %v7604 = vmul.f32 %v7476, 0.1
  %v7605 = vmul.f32 %v7477, 0.1
  %v7606 = vmul.f32 %v7478, 0.1
  %v7607 = vmul.f32 %v7479, 0.1
  %v7608 = vmul.f32 %v7480, 0.1
  %v7609 = vmul.f32 %v7481, 0.1
  %v7610 = vmul.f32 %v7482, 0.1
  %v7611 = vmul.f32 %v7483, 0.1
  %v7612 = vmul.f32 %v7484, 0.1
  %v7613 = vmul.f32 %v7485, 0.1
  %v7614 = vmul.f32 %v7486, 0.1
  %v7615 = vmul.f32 %v7487, 0.1
  %v7616 = vmul.f32 %v7488, 0.1
  %v7617 = vmul.f32 %v7489, 0.1
  %v7618 = vmul.f32 %v7490, 0.1
  %v7619 = vmul.f32 %v7491, 0.1
  %v7620 = vmul.f32 %v7492, 0.1
  %v7621 = vmul.f32 %v7493, 0.1
  %v7622 = vmul.f32 %v7494, 0.1
  %v7623 = vmul.f32 %v7495, 0.1
  %v7624 = vmul.f32 %v7496, 0.1
  %v7625 = vmul.f32 %v7497, 0.1
  %v7626 = vmul.f32 %v7498, 0.1
  %v7627 = vmul.f32 %v7499, 0.1
  %v7628 = vmul.f32 %v7500, 0.1
  %v7629 = vmul.f32 %v7501, 0.1
  %v7630 = vmul.f32 %v7502, 0.1
  %v7631 = vmul.f32 %v7503, 0.1
  %v7632 = vmul.f32 %v7504, 0.1
  %v7633 = vmul.f32 %v7505, 0.1
  %v7634 = vmul.f32 %v7506, 0.1
  %v7635 = vmul.f32 %v7507, 0.1
  %v7636 = vmul.f32 %v7508, 0.1
  %v7637 = vmul.f32 %v7509, 0.1
  %v7638 = vmul.f32 %v7510, 0.1
  %v7639 = vmul.f32 %v7511, 0.1
  %v7640 = vmul.f32 %v7512, 0.1
  %v7641 = vmul.f32 %v7513, 0.1
  %v7642 = vmax.f32 %v7386, %v7514
  %v7643 = vmax.f32 %v7387, %v7515
  %v7644 = vmax.f32 %v7388, %v7516
  %v7645 = vmax.f32 %v7389, %v7517
  %v7646 = vmax.f32 %v7390, %v7518
  %v7647 = vmax.f32 %v7391, %v7519
  %v7648 = vmax.f32 %v7392, %v7520
  %v7649 = vmax.f32 %v7393, %v7521
  %v7650 = vmax.f32 %v7394, %v7522
  %v7651 = vmax.f32 %v7395, %v7523
  %v7652 = vmax.f32 %v7396, %v7524
  %v7653 = vmax.f32 %v7397, %v7525
  %v7654 = vmax.f32 %v7398, %v7526
  %v7655 = vmax.f32 %v7399, %v7527
  %v7656 = vmax.f32 %v7400, %v7528
  %v7657 = vmax.f32 %v7401, %v7529
  %v7658 = vmax.f32 %v7402, %v7530
  %v7659 = vmax.f32 %v7403, %v7531
  %v7660 = vmax.f32 %v7404, %v7532
  %v7661 = vmax.f32 %v7405, %v7533
  %v7662 = vmax.f32 %v7406, %v7534
  %v7663 = vmax.f32 %v7407, %v7535
  %v7664 = vmax.f32 %v7408, %v7536
  %v7665 = vmax.f32 %v7409, %v7537
  %v7666 = vmax.f32 %v7410, %v7538
  %v7667 = vmax.f32 %v7411, %v7539
  %v7668 = vmax.f32 %v7412, %v7540
  %v7669 = vmax.f32 %v7413, %v7541
  %v7670 = vmax.f32 %v7414, %v7542
  %v7671 = vmax.f32 %v7415, %v7543
  %v7672 = vmax.f32 %v7416, %v7544
  %v7673 = vmax.f32 %v7417, %v7545
  %v7674 = vmax.f32 %v7418, %v7546
  %v7675 = vmax.f32 %v7419, %v7547
  %v7676 = vmax.f32 %v7420, %v7548
  %v7677 = vmax.f32 %v7421, %v7549
  %v7678 = vmax.f32 %v7422, %v7550
  %v7679 = vmax.f32 %v7423, %v7551
  %v7680 = vmax.f32 %v7424, %v7552
  %v7681 = vmax.f32 %v7425, %v7553
  %v7682 = vmax.f32 %v7426, %v7554
  %v7683 = vmax.f32 %v7427, %v7555
  %v7684 = vmax.f32 %v7428, %v7556
  %v7685 = vmax.f32 %v7429, %v7557
  %v7686 = vmax.f32 %v7430, %v7558
  %v7687 = vmax.f32 %v7431, %v7559
  %v7688 = vmax.f32 %v7432, %v7560
  %v7689 = vmax.f32 %v7433, %v7561
  %v7690 = vmax.f32 %v7434, %v7562
  %v7691 = vmax.f32 %v7435, %v7563
  %v7692 = vmax.f32 %v7436, %v7564
  %v7693 = vmax.f32 %v7437, %v7565
  %v7694 = vmax.f32 %v7438, %v7566
  %v7695 = vmax.f32 %v7439, %v7567
  %v7696 = vmax.f32 %v7440, %v7568
  %v7697 = vmax.f32 %v7441, %v7569
  %v7698 = vmax.f32 %v7442, %v7570
  %v7699 = vmax.f32 %v7443, %v7571
  %v7700 = vmax.f32 %v7444, %v7572
  %v7701 = vmax.f32 %v7445, %v7573
  %v7702 = vmax.f32 %v7446, %v7574
  %v7703 = vmax.f32 %v7447, %v7575
  %v7704 = vmax.f32 %v7448, %v7576
  %v7705 = vmax.f32 %v7449, %v7577
  %v7706 = vmax.f32 %v7450, %v7578
  %v7707 = vmax.f32 %v7451, %v7579
  %v7708 = vmax.f32 %v7452, %v7580
  %v7709 = vmax.f32 %v7453, %v7581
  %v7710 = vmax.f32 %v7454, %v7582
  %v7711 = vmax.f32 %v7455, %v7583
  %v7712 = vmax.f32 %v7456, %v7584
  %v7713 = vmax.f32 %v7457, %v7585
  %v7714 = vmax.f32 %v7458, %v7586
  %v7715 = vmax.f32 %v7459, %v7587
  %v7716 = vmax.f32 %v7460, %v7588
  %v7717 = vmax.f32 %v7461, %v7589
  %v7718 = vmax.f32 %v7462, %v7590
  %v7719 = vmax.f32 %v7463, %v7591
  %v7720 = vmax.f32 %v7464, %v7592
  %v7721 = vmax.f32 %v7465, %v7593
  %v7722 = vmax.f32 %v7466, %v7594
  %v7723 = vmax.f32 %v7467, %v7595
  %v7724 = vmax.f32 %v7468, %v7596
  %v7725 = vmax.f32 %v7469, %v7597
  %v7726 = vmax.f32 %v7470, %v7598
  %v7727 = vmax.f32 %v7471, %v7599
  %v7728 = vmax.f32 %v7472, %v7600
  %v7729 = vmax.f32 %v7473, %v7601
  %v7730 = vmax.f32 %v7474, %v7602
  %v7731 = vmax.f32 %v7475, %v7603
  %v7732 = vmax.f32 %v7476, %v7604
  %v7733 = vmax.f32 %v7477, %v7605
  %v7734 = vmax.f32 %v7478, %v7606
  %v7735 = vmax.f32 %v7479, %v7607
  %v7736 = vmax.f32 %v7480, %v7608
  %v7737 = vmax.f32 %v7481, %v7609
  %v7738 = vmax.f32 %v7482, %v7610
  %v7739 = vmax.f32 %v7483, %v7611
  %v7740 = vmax.f32 %v7484, %v7612
  %v7741 = vmax.f32 %v7485, %v7613
  %v7742 = vmax.f32 %v7486, %v7614
  %v7743 = vmax.f32 %v7487, %v7615
  %v7744 = vmax.f32 %v7488, %v7616
  %v7745 = vmax.f32 %v7489, %v7617
  %v7746 = vmax.f32 %v7490, %v7618
  %v7747 = vmax.f32 %v7491, %v7619
  %v7748 = vmax.f32 %v7492, %v7620
  %v7749 = vmax.f32 %v7493, %v7621
  %v7750 = vmax.f32 %v7494, %v7622
  %v7751 = vmax.f32 %v7495, %v7623
  %v7752 = vmax.f32 %v7496, %v7624
  %v7753 = vmax.f32 %v7497, %v7625
  %v7754 = vmax.f32 %v7498, %v7626
  %v7755 = vmax.f32 %v7499, %v7627
  %v7756 = vmax.f32 %v7500, %v7628
  %v7757 = vmax.f32 %v7501, %v7629
  %v7758 = vmax.f32 %v7502, %v7630
  %v7759 = vmax.f32 %v7503, %v7631
  %v7760 = vmax.f32 %v7504, %v7632
  %v7761 = vmax.f32 %v7505, %v7633
  %v7762 = vmax.f32 %v7506, %v7634
  %v7763 = vmax.f32 %v7507, %v7635
  %v7764 = vmax.f32 %v7508, %v7636
  %v7765 = vmax.f32 %v7509, %v7637
  %v7766 = vmax.f32 %v7510, %v7638
  %v7767 = vmax.f32 %v7511, %v7639
  %v7768 = vmax.f32 %v7512, %v7640
  %v7769 = vmax.f32 %v7513, %v7641
  %v7770 = vpack.c.bf16 %v7674, %v7642
  %v7771 = vpack.c.bf16 %v7675, %v7643
  %v7772 = vpack.c.bf16 %v7676, %v7644
  %v7773 = vpack.c.bf16 %v7677, %v7645
  %v7774 = vpack.c.bf16 %v7678, %v7646
  %v7775 = vpack.c.bf16 %v7679, %v7647
  %v7776 = vpack.c.bf16 %v7680, %v7648
  %v7777 = vpack.c.bf16 %v7681, %v7649
  %v7778 = vpack.c.bf16 %v7682, %v7650
  %v7779 = vpack.c.bf16 %v7683, %v7651
  %v7780 = vpack.c.bf16 %v7684, %v7652
  %v7781 = vpack.c.bf16 %v7685, %v7653
  %v7782 = vpack.c.bf16 %v7686, %v7654
  %v7783 = vpack.c.bf16 %v7687, %v7655
  %v7784 = vpack.c.bf16 %v7688, %v7656
  %v7785 = vpack.c.bf16 %v7689, %v7657
  %v7786 = vpack.c.bf16 %v7690, %v7658
  %v7787 = vpack.c.bf16 %v7691, %v7659
  %v7788 = vpack.c.bf16 %v7692, %v7660
  %v7789 = vpack.c.bf16 %v7693, %v7661
  %v7790 = vpack.c.bf16 %v7694, %v7662
  %v7791 = vpack.c.bf16 %v7695, %v7663
  %v7792 = vpack.c.bf16 %v7696, %v7664
  %v7793 = vpack.c.bf16 %v7697, %v7665
  %v7794 = vpack.c.bf16 %v7698, %v7666
  %v7795 = vpack.c.bf16 %v7699, %v7667
  %v7796 = vpack.c.bf16 %v7700, %v7668
  %v7797 = vpack.c.bf16 %v7701, %v7669
  %v7798 = vpack.c.bf16 %v7702, %v7670
  %v7799 = vpack.c.bf16 %v7703, %v7671
  %v7800 = vpack.c.bf16 %v7704, %v7672
  %v7801 = vpack.c.bf16 %v7705, %v7673
  %v7802 = vpack.c.bf16 %v7738, %v7706
  %v7803 = vpack.c.bf16 %v7739, %v7707
  %v7804 = vpack.c.bf16 %v7740, %v7708
  %v7805 = vpack.c.bf16 %v7741, %v7709
  %v7806 = vpack.c.bf16 %v7742, %v7710
  %v7807 = vpack.c.bf16 %v7743, %v7711
  %v7808 = vpack.c.bf16 %v7744, %v7712
  %v7809 = vpack.c.bf16 %v7745, %v7713
  %v7810 = vpack.c.bf16 %v7746, %v7714
  %v7811 = vpack.c.bf16 %v7747, %v7715
  %v7812 = vpack.c.bf16 %v7748, %v7716
  %v7813 = vpack.c.bf16 %v7749, %v7717
  %v7814 = vpack.c.bf16 %v7750, %v7718
  %v7815 = vpack.c.bf16 %v7751, %v7719
  %v7816 = vpack.c.bf16 %v7752, %v7720
  %v7817 = vpack.c.bf16 %v7753, %v7721
  %v7818 = vpack.c.bf16 %v7754, %v7722
  %v7819 = vpack.c.bf16 %v7755, %v7723
  %v7820 = vpack.c.bf16 %v7756, %v7724
  %v7821 = vpack.c.bf16 %v7757, %v7725
  %v7822 = vpack.c.bf16 %v7758, %v7726
  %v7823 = vpack.c.bf16 %v7759, %v7727
  %v7824 = vpack.c.bf16 %v7760, %v7728
  %v7825 = vpack.c.bf16 %v7761, %v7729
  %v7826 = vpack.c.bf16 %v7762, %v7730
  %v7827 = vpack.c.bf16 %v7763, %v7731
  %v7828 = vpack.c.bf16 %v7764, %v7732
  %v7829 = vpack.c.bf16 %v7765, %v7733
  %v7830 = vpack.c.bf16 %v7766, %v7734
  %v7831 = vpack.c.bf16 %v7767, %v7735
  %v7832 = vpack.c.bf16 %v7768, %v7736
  %v7833 = vpack.c.bf16 %v7769, %v7737
  %7834 = vrot.lane.b32.xlu0 %v7642, 127
  %v7835 = vpop.permute.xlu0 %7834
  %7836 = vrot.lane.b32.xlu0 %v7674, 127
  %v7837 = vpop.permute.xlu0 %7836
  %7838 = vrot.lane.b32.xlu0 %v7706, 127
  %v7839 = vpop.permute.xlu0 %7838
  %7840 = vrot.lane.b32.xlu0 %v7738, 127
  %v7841 = vpop.permute.xlu0 %7840
  %7842 = vrot.lane.b32.xlu0 %v7643, 127
  %v7843 = vpop.permute.xlu0 %7842
  %7844 = vrot.lane.b32.xlu0 %v7675, 127
  %v7845 = vpop.permute.xlu0 %7844
  %7846 = vrot.lane.b32.xlu0 %v7707, 127
  %v7847 = vpop.permute.xlu0 %7846
  %7848 = vrot.lane.b32.xlu0 %v7739, 127
  %v7849 = vpop.permute.xlu0 %7848
  %7850 = vrot.lane.b32.xlu0 %v7644, 127
  %v7851 = vpop.permute.xlu0 %7850
  %7852 = vrot.lane.b32.xlu0 %v7676, 127
  %v7853 = vpop.permute.xlu0 %7852
  %7854 = vrot.lane.b32.xlu0 %v7708, 127
  %v7855 = vpop.permute.xlu0 %7854
  %7856 = vrot.lane.b32.xlu0 %v7740, 127
  %v7857 = vpop.permute.xlu0 %7856
  %7858 = vrot.lane.b32.xlu0 %v7645, 127
  %v7859 = vpop.permute.xlu0 %7858
  %7860 = vrot.lane.b32.xlu0 %v7677, 127
  %v7861 = vpop.permute.xlu0 %7860
  %7862 = vrot.lane.b32.xlu0 %v7709, 127
  %v7863 = vpop.permute.xlu0 %7862
  %7864 = vrot.lane.b32.xlu0 %v7741, 127
  %v7865 = vpop.permute.xlu0 %7864
  %7866 = vrot.lane.b32.xlu0 %v7646, 127
  %v7867 = vpop.permute.xlu0 %7866
  %7868 = vrot.lane.b32.xlu0 %v7678, 127
  %v7869 = vpop.permute.xlu0 %7868
  %7870 = vrot.lane.b32.xlu0 %v7710, 127
  %v7871 = vpop.permute.xlu0 %7870
  %7872 = vrot.lane.b32.xlu0 %v7742, 127
  %v7873 = vpop.permute.xlu0 %7872
  %7874 = vrot.lane.b32.xlu0 %v7647, 127
  %v7875 = vpop.permute.xlu0 %7874
  %7876 = vrot.lane.b32.xlu0 %v7679, 127
  %v7877 = vpop.permute.xlu0 %7876
  %7878 = vrot.lane.b32.xlu0 %v7711, 127
  %v7879 = vpop.permute.xlu0 %7878
  %7880 = vrot.lane.b32.xlu0 %v7743, 127
  %v7881 = vpop.permute.xlu0 %7880
  %7882 = vrot.lane.b32.xlu0 %v7648, 127
  %v7883 = vpop.permute.xlu0 %7882
  %7884 = vrot.lane.b32.xlu0 %v7680, 127
  %v7885 = vpop.permute.xlu0 %7884
  %7886 = vrot.lane.b32.xlu0 %v7712, 127
  %v7887 = vpop.permute.xlu0 %7886
  %7888 = vrot.lane.b32.xlu0 %v7744, 127
  %v7889 = vpop.permute.xlu0 %7888
  %7890 = vrot.lane.b32.xlu0 %v7649, 127
  %v7891 = vpop.permute.xlu0 %7890
  %7892 = vrot.lane.b32.xlu0 %v7681, 127
  %v7893 = vpop.permute.xlu0 %7892
  %7894 = vrot.lane.b32.xlu0 %v7713, 127
  %v7895 = vpop.permute.xlu0 %7894
  %7896 = vrot.lane.b32.xlu0 %v7745, 127
  %v7897 = vpop.permute.xlu0 %7896
  %7898 = vrot.lane.b32.xlu0 %v7650, 127
  %v7899 = vpop.permute.xlu0 %7898
  %7900 = vrot.lane.b32.xlu0 %v7682, 127
  %v7901 = vpop.permute.xlu0 %7900
  %7902 = vrot.lane.b32.xlu0 %v7714, 127
  %v7903 = vpop.permute.xlu0 %7902
  %7904 = vrot.lane.b32.xlu0 %v7746, 127
  %v7905 = vpop.permute.xlu0 %7904
  %7906 = vrot.lane.b32.xlu0 %v7651, 127
  %v7907 = vpop.permute.xlu0 %7906
  %7908 = vrot.lane.b32.xlu0 %v7683, 127
  %v7909 = vpop.permute.xlu0 %7908
  %7910 = vrot.lane.b32.xlu0 %v7715, 127
  %v7911 = vpop.permute.xlu0 %7910
  %7912 = vrot.lane.b32.xlu0 %v7747, 127
  %v7913 = vpop.permute.xlu0 %7912
  %7914 = vrot.lane.b32.xlu0 %v7652, 127
  %v7915 = vpop.permute.xlu0 %7914
  %7916 = vrot.lane.b32.xlu0 %v7684, 127
  %v7917 = vpop.permute.xlu0 %7916
  %7918 = vrot.lane.b32.xlu0 %v7716, 127
  %v7919 = vpop.permute.xlu0 %7918
  %7920 = vrot.lane.b32.xlu0 %v7748, 127
  %v7921 = vpop.permute.xlu0 %7920
  %7922 = vrot.lane.b32.xlu0 %v7653, 127
  %v7923 = vpop.permute.xlu0 %7922
  %7924 = vrot.lane.b32.xlu0 %v7685, 127
  %v7925 = vpop.permute.xlu0 %7924
  %7926 = vrot.lane.b32.xlu0 %v7717, 127
  %v7927 = vpop.permute.xlu0 %7926
  %7928 = vrot.lane.b32.xlu0 %v7749, 127
  %v7929 = vpop.permute.xlu0 %7928
  %7930 = vrot.lane.b32.xlu0 %v7654, 127
  %v7931 = vpop.permute.xlu0 %7930
  %7932 = vrot.lane.b32.xlu0 %v7686, 127
  %v7933 = vpop.permute.xlu0 %7932
  %7934 = vrot.lane.b32.xlu0 %v7718, 127
  %v7935 = vpop.permute.xlu0 %7934
  %7936 = vrot.lane.b32.xlu0 %v7750, 127
  %v7937 = vpop.permute.xlu0 %7936
  %7938 = vrot.lane.b32.xlu0 %v7655, 127
  %v7939 = vpop.permute.xlu0 %7938
  %7940 = vrot.lane.b32.xlu0 %v7687, 127
  %v7941 = vpop.permute.xlu0 %7940
  %7942 = vrot.lane.b32.xlu0 %v7719, 127
  %v7943 = vpop.permute.xlu0 %7942
  %7944 = vrot.lane.b32.xlu0 %v7751, 127
  %v7945 = vpop.permute.xlu0 %7944
  %7946 = vrot.lane.b32.xlu0 %v7656, 127
  %v7947 = vpop.permute.xlu0 %7946
  %7948 = vrot.lane.b32.xlu0 %v7688, 127
  %v7949 = vpop.permute.xlu0 %7948
  %7950 = vrot.lane.b32.xlu0 %v7720, 127
  %v7951 = vpop.permute.xlu0 %7950
  %7952 = vrot.lane.b32.xlu0 %v7752, 127
  %v7953 = vpop.permute.xlu0 %7952
  %7954 = vrot.lane.b32.xlu0 %v7657, 127
  %v7955 = vpop.permute.xlu0 %7954
  %7956 = vrot.lane.b32.xlu0 %v7689, 127
  %v7957 = vpop.permute.xlu0 %7956
  %7958 = vrot.lane.b32.xlu0 %v7721, 127
  %v7959 = vpop.permute.xlu0 %7958
  %7960 = vrot.lane.b32.xlu0 %v7753, 127
  %v7961 = vpop.permute.xlu0 %7960
  %7962 = vrot.lane.b32.xlu0 %v7658, 127
  %v7963 = vpop.permute.xlu0 %7962
  %7964 = vrot.lane.b32.xlu0 %v7690, 127
  %v7965 = vpop.permute.xlu0 %7964
  %7966 = vrot.lane.b32.xlu0 %v7722, 127
  %v7967 = vpop.permute.xlu0 %7966
  %7968 = vrot.lane.b32.xlu0 %v7754, 127
  %v7969 = vpop.permute.xlu0 %7968
  %7970 = vrot.lane.b32.xlu0 %v7659, 127
  %v7971 = vpop.permute.xlu0 %7970
  %7972 = vrot.lane.b32.xlu0 %v7691, 127
  %v7973 = vpop.permute.xlu0 %7972
  %7974 = vrot.lane.b32.xlu0 %v7723, 127
  %v7975 = vpop.permute.xlu0 %7974
  %7976 = vrot.lane.b32.xlu0 %v7755, 127
  %v7977 = vpop.permute.xlu0 %7976
  %7978 = vrot.lane.b32.xlu0 %v7660, 127
  %v7979 = vpop.permute.xlu0 %7978
  %7980 = vrot.lane.b32.xlu0 %v7692, 127
  %v7981 = vpop.permute.xlu0 %7980
  %7982 = vrot.lane.b32.xlu0 %v7724, 127
  %v7983 = vpop.permute.xlu0 %7982
  %7984 = vrot.lane.b32.xlu0 %v7756, 127
  %v7985 = vpop.permute.xlu0 %7984
  %7986 = vrot.lane.b32.xlu0 %v7661, 127
  %v7987 = vpop.permute.xlu0 %7986
  %7988 = vrot.lane.b32.xlu0 %v7693, 127
  %v7989 = vpop.permute.xlu0 %7988
  %7990 = vrot.lane.b32.xlu0 %v7725, 127
  %v7991 = vpop.permute.xlu0 %7990
  %7992 = vrot.lane.b32.xlu0 %v7757, 127
  %v7993 = vpop.permute.xlu0 %7992
  %7994 = vrot.lane.b32.xlu0 %v7662, 127
  %v7995 = vpop.permute.xlu0 %7994
  %7996 = vrot.lane.b32.xlu0 %v7694, 127
  %v7997 = vpop.permute.xlu0 %7996
  %7998 = vrot.lane.b32.xlu0 %v7726, 127
  %v7999 = vpop.permute.xlu0 %7998
  %8000 = vrot.lane.b32.xlu0 %v7758, 127
  %v8001 = vpop.permute.xlu0 %8000
  %8002 = vrot.lane.b32.xlu0 %v7663, 127
  %v8003 = vpop.permute.xlu0 %8002
  %8004 = vrot.lane.b32.xlu0 %v7695, 127
  %v8005 = vpop.permute.xlu0 %8004
  %8006 = vrot.lane.b32.xlu0 %v7727, 127
  %v8007 = vpop.permute.xlu0 %8006
  %8008 = vrot.lane.b32.xlu0 %v7759, 127
  %v8009 = vpop.permute.xlu0 %8008
  %8010 = vrot.lane.b32.xlu0 %v7664, 127
  %v8011 = vpop.permute.xlu0 %8010
  %8012 = vrot.lane.b32.xlu0 %v7696, 127
  %v8013 = vpop.permute.xlu0 %8012
  %8014 = vrot.lane.b32.xlu0 %v7728, 127
  %v8015 = vpop.permute.xlu0 %8014
  %8016 = vrot.lane.b32.xlu0 %v7760, 127
  %v8017 = vpop.permute.xlu0 %8016
  %8018 = vrot.lane.b32.xlu0 %v7665, 127
  %v8019 = vpop.permute.xlu0 %8018
  %8020 = vrot.lane.b32.xlu0 %v7697, 127
  %v8021 = vpop.permute.xlu0 %8020
  %8022 = vrot.lane.b32.xlu0 %v7729, 127
  %v8023 = vpop.permute.xlu0 %8022
  %8024 = vrot.lane.b32.xlu0 %v7761, 127
  %v8025 = vpop.permute.xlu0 %8024
  %8026 = vrot.lane.b32.xlu0 %v7666, 127
  %v8027 = vpop.permute.xlu0 %8026
  %8028 = vrot.lane.b32.xlu0 %v7698, 127
  %v8029 = vpop.permute.xlu0 %8028
  %8030 = vrot.lane.b32.xlu0 %v7730, 127
  %v8031 = vpop.permute.xlu0 %8030
  %8032 = vrot.lane.b32.xlu0 %v7762, 127
  %v8033 = vpop.permute.xlu0 %8032
  %8034 = vrot.lane.b32.xlu0 %v7667, 127
  %v8035 = vpop.permute.xlu0 %8034
  %8036 = vrot.lane.b32.xlu0 %v7699, 127
  %v8037 = vpop.permute.xlu0 %8036
  %8038 = vrot.lane.b32.xlu0 %v7731, 127
  %v8039 = vpop.permute.xlu0 %8038
  %8040 = vrot.lane.b32.xlu0 %v7763, 127
  %v8041 = vpop.permute.xlu0 %8040
  %8042 = vrot.lane.b32.xlu0 %v7668, 127
  %v8043 = vpop.permute.xlu0 %8042
  %8044 = vrot.lane.b32.xlu0 %v7700, 127
  %v8045 = vpop.permute.xlu0 %8044
  %8046 = vrot.lane.b32.xlu0 %v7732, 127
  %v8047 = vpop.permute.xlu0 %8046
  %8048 = vrot.lane.b32.xlu0 %v7764, 127
  %v8049 = vpop.permute.xlu0 %8048
  %8050 = vrot.lane.b32.xlu0 %v7669, 127
  %v8051 = vpop.permute.xlu0 %8050
  %8052 = vrot.lane.b32.xlu0 %v7701, 127
  %v8053 = vpop.permute.xlu0 %8052
  %8054 = vrot.lane.b32.xlu0 %v7733, 127
  %v8055 = vpop.permute.xlu0 %8054
  %8056 = vrot.lane.b32.xlu0 %v7765, 127
  %v8057 = vpop.permute.xlu0 %8056
  %8058 = vrot.lane.b32.xlu0 %v7670, 127
  %v8059 = vpop.permute.xlu0 %8058
  %8060 = vrot.lane.b32.xlu0 %v7702, 127
  %v8061 = vpop.permute.xlu0 %8060
  %8062 = vrot.lane.b32.xlu0 %v7734, 127
  %v8063 = vpop.permute.xlu0 %8062
  %8064 = vrot.lane.b32.xlu0 %v7766, 127
  %v8065 = vpop.permute.xlu0 %8064
  %8066 = vrot.lane.b32.xlu0 %v7671, 127
  %v8067 = vpop.permute.xlu0 %8066
  %8068 = vrot.lane.b32.xlu0 %v7703, 127
  %v8069 = vpop.permute.xlu0 %8068
  %8070 = vrot.lane.b32.xlu0 %v7735, 127
  %v8071 = vpop.permute.xlu0 %8070
  %8072 = vrot.lane.b32.xlu0 %v7767, 127
  %v8073 = vpop.permute.xlu0 %8072
  %8074 = vrot.lane.b32.xlu0 %v7672, 127
  %v8075 = vpop.permute.xlu0 %8074
  %8076 = vrot.lane.b32.xlu0 %v7704, 127
  %v8077 = vpop.permute.xlu0 %8076
  %8078 = vrot.lane.b32.xlu0 %v7736, 127
  %v8079 = vpop.permute.xlu0 %8078
  %8080 = vrot.lane.b32.xlu0 %v7768, 127
  %v8081 = vpop.permute.xlu0 %8080
  %8082 = vrot.lane.b32.xlu0 %v7673, 127
  %v8083 = vpop.permute.xlu0 %8082
  %8084 = vrot.lane.b32.xlu0 %v7705, 127
  %v8085 = vpop.permute.xlu0 %8084
  %8086 = vrot.lane.b32.xlu0 %v7737, 127
  %v8087 = vpop.permute.xlu0 %8086
  %8088 = vrot.lane.b32.xlu0 %v7769, 127
  %v8089 = vpop.permute.xlu0 %8088
  %v8090 = vsel %vm2579, %v8075, %v8083
  %v8091 = vsel %vm2579, %v8077, %v8085
  %v8092 = vsel %vm2579, %v8079, %v8087
  %v8093 = vsel %vm2579, %v8081, %v8089
  %v8094 = vsel %vm2579, %v8067, %v8075
  %v8095 = vsel %vm2579, %v8069, %v8077
  %v8096 = vsel %vm2579, %v8071, %v8079
  %v8097 = vsel %vm2579, %v8073, %v8081
  %v8098 = vsel %vm2579, %v8059, %v8067
  %v8099 = vsel %vm2579, %v8061, %v8069
  %v8100 = vsel %vm2579, %v8063, %v8071
  %v8101 = vsel %vm2579, %v8065, %v8073
  %v8102 = vsel %vm2579, %v8051, %v8059
  %v8103 = vsel %vm2579, %v8053, %v8061
  %v8104 = vsel %vm2579, %v8055, %v8063
  %v8105 = vsel %vm2579, %v8057, %v8065
  %v8106 = vsel %vm2579, %v8043, %v8051
  %v8107 = vsel %vm2579, %v8045, %v8053
  %v8108 = vsel %vm2579, %v8047, %v8055
  %v8109 = vsel %vm2579, %v8049, %v8057
  %v8110 = vsel %vm2579, %v8035, %v8043
  %v8111 = vsel %vm2579, %v8037, %v8045
  %v8112 = vsel %vm2579, %v8039, %v8047
  %v8113 = vsel %vm2579, %v8041, %v8049
  %v8114 = vsel %vm2579, %v8027, %v8035
  %v8115 = vsel %vm2579, %v8029, %v8037
  %v8116 = vsel %vm2579, %v8031, %v8039
  %v8117 = vsel %vm2579, %v8033, %v8041
  %v8118 = vsel %vm2579, %v8019, %v8027
  %v8119 = vsel %vm2579, %v8021, %v8029
  %v8120 = vsel %vm2579, %v8023, %v8031
  %v8121 = vsel %vm2579, %v8025, %v8033
  %v8122 = vsel %vm2579, %v8011, %v8019
  %v8123 = vsel %vm2579, %v8013, %v8021
  %v8124 = vsel %vm2579, %v8015, %v8023
  %v8125 = vsel %vm2579, %v8017, %v8025
  %v8126 = vsel %vm2579, %v8003, %v8011
  %v8127 = vsel %vm2579, %v8005, %v8013
  %v8128 = vsel %vm2579, %v8007, %v8015
  %v8129 = vsel %vm2579, %v8009, %v8017
  %v8130 = vsel %vm2579, %v7995, %v8003
  %v8131 = vsel %vm2579, %v7997, %v8005
  %v8132 = vsel %vm2579, %v7999, %v8007
  %v8133 = vsel %vm2579, %v8001, %v8009
  %v8134 = vsel %vm2579, %v7987, %v7995
  %v8135 = vsel %vm2579, %v7989, %v7997
  %v8136 = vsel %vm2579, %v7991, %v7999
  %v8137 = vsel %vm2579, %v7993, %v8001
  %v8138 = vsel %vm2579, %v7979, %v7987
  %v8139 = vsel %vm2579, %v7981, %v7989
  %v8140 = vsel %vm2579, %v7983, %v7991
  %v8141 = vsel %vm2579, %v7985, %v7993
  %v8142 = vsel %vm2579, %v7971, %v7979
  %v8143 = vsel %vm2579, %v7973, %v7981
  %v8144 = vsel %vm2579, %v7975, %v7983
  %v8145 = vsel %vm2579, %v7977, %v7985
  %v8146 = vsel %vm2579, %v7963, %v7971
  %v8147 = vsel %vm2579, %v7965, %v7973
  %v8148 = vsel %vm2579, %v7967, %v7975
  %v8149 = vsel %vm2579, %v7969, %v7977
  %v8150 = vsel %vm2579, %v7955, %v7963
  %v8151 = vsel %vm2579, %v7957, %v7965
  %v8152 = vsel %vm2579, %v7959, %v7967
  %v8153 = vsel %vm2579, %v7961, %v7969
  %v8154 = vsel %vm2579, %v7947, %v7955
  %v8155 = vsel %vm2579, %v7949, %v7957
  %v8156 = vsel %vm2579, %v7951, %v7959
  %v8157 = vsel %vm2579, %v7953, %v7961
  %v8158 = vsel %vm2579, %v7939, %v7947
  %v8159 = vsel %vm2579, %v7941, %v7949
  %v8160 = vsel %vm2579, %v7943, %v7951
  %v8161 = vsel %vm2579, %v7945, %v7953
  %v8162 = vsel %vm2579, %v7931, %v7939
  %v8163 = vsel %vm2579, %v7933, %v7941
  %v8164 = vsel %vm2579, %v7935, %v7943
  %v8165 = vsel %vm2579, %v7937, %v7945
  %v8166 = vsel %vm2579, %v7923, %v7931
  %v8167 = vsel %vm2579, %v7925, %v7933
  %v8168 = vsel %vm2579, %v7927, %v7935
  %v8169 = vsel %vm2579, %v7929, %v7937
  %v8170 = vsel %vm2579, %v7915, %v7923
  %v8171 = vsel %vm2579, %v7917, %v7925
  %v8172 = vsel %vm2579, %v7919, %v7927
  %v8173 = vsel %vm2579, %v7921, %v7929
  %v8174 = vsel %vm2579, %v7907, %v7915
  %v8175 = vsel %vm2579, %v7909, %v7917
  %v8176 = vsel %vm2579, %v7911, %v7919
  %v8177 = vsel %vm2579, %v7913, %v7921
  %v8178 = vsel %vm2579, %v7899, %v7907
  %v8179 = vsel %vm2579, %v7901, %v7909
  %v8180 = vsel %vm2579, %v7903, %v7911
  %v8181 = vsel %vm2579, %v7905, %v7913
  %v8182 = vsel %vm2579, %v7891, %v7899
  %v8183 = vsel %vm2579, %v7893, %v7901
  %v8184 = vsel %vm2579, %v7895, %v7903
  %v8185 = vsel %vm2579, %v7897, %v7905
  %v8186 = vsel %vm2579, %v7883, %v7891
  %v8187 = vsel %vm2579, %v7885, %v7893
  %v8188 = vsel %vm2579, %v7887, %v7895
  %v8189 = vsel %vm2579, %v7889, %v7897
  %v8190 = vsel %vm2579, %v7875, %v7883
  %v8191 = vsel %vm2579, %v7877, %v7885
  %v8192 = vsel %vm2579, %v7879, %v7887
  %v8193 = vsel %vm2579, %v7881, %v7889
  %v8194 = vsel %vm2579, %v7867, %v7875
  %v8195 = vsel %vm2579, %v7869, %v7877
  %v8196 = vsel %vm2579, %v7871, %v7879
  %v8197 = vsel %vm2579, %v7873, %v7881
  %v8198 = vsel %vm2579, %v7859, %v7867
  %v8199 = vsel %vm2579, %v7861, %v7869
  %v8200 = vsel %vm2579, %v7863, %v7871
  %v8201 = vsel %vm2579, %v7865, %v7873
  %v8202 = vsel %vm2579, %v7851, %v7859
  %v8203 = vsel %vm2579, %v7853, %v7861
  %v8204 = vsel %vm2579, %v7855, %v7863
  %v8205 = vsel %vm2579, %v7857, %v7865
  %v8206 = vsel %vm2579, %v7843, %v7851
  %v8207 = vsel %vm2579, %v7845, %v7853
  %v8208 = vsel %vm2579, %v7847, %v7855
  %v8209 = vsel %vm2579, %v7849, %v7857
  %v8210 = vsel %vm2579, %v7835, %v7843
  %v8211 = vsel %vm2579, %v7837, %v7845
  %v8212 = vsel %vm2579, %v7839, %v7847
  %v8213 = vsel %vm2579, %v7841, %v7849
  %v8214 = vsel %vm2579, %v8083, %v7835
  %v8215 = vsel %vm2579, %v8085, %v7837
  %v8216 = vsel %vm2579, %v8087, %v7839
  %v8217 = vsel %vm2579, %v8089, %v7841
  %v8218 = vpack.c.bf16 %v8211, %v8210
  %v8219 = vpack.c.bf16 %v8207, %v8206
  %v8220 = vpack.c.bf16 %v8203, %v8202
  %v8221 = vpack.c.bf16 %v8199, %v8198
  %v8222 = vpack.c.bf16 %v8195, %v8194
  %v8223 = vpack.c.bf16 %v8191, %v8190
  %v8224 = vpack.c.bf16 %v8187, %v8186
  %v8225 = vpack.c.bf16 %v8183, %v8182
  %v8226 = vpack.c.bf16 %v8179, %v8178
  %v8227 = vpack.c.bf16 %v8175, %v8174
  %v8228 = vpack.c.bf16 %v8171, %v8170
  %v8229 = vpack.c.bf16 %v8167, %v8166
  %v8230 = vpack.c.bf16 %v8163, %v8162
  %v8231 = vpack.c.bf16 %v8159, %v8158
  %v8232 = vpack.c.bf16 %v8155, %v8154
  %v8233 = vpack.c.bf16 %v8151, %v8150
  %v8234 = vpack.c.bf16 %v8147, %v8146
  %v8235 = vpack.c.bf16 %v8143, %v8142
  %v8236 = vpack.c.bf16 %v8139, %v8138
  %v8237 = vpack.c.bf16 %v8135, %v8134
  %v8238 = vpack.c.bf16 %v8131, %v8130
  %v8239 = vpack.c.bf16 %v8127, %v8126
  %v8240 = vpack.c.bf16 %v8123, %v8122
  %v8241 = vpack.c.bf16 %v8119, %v8118
  %v8242 = vpack.c.bf16 %v8115, %v8114
  %v8243 = vpack.c.bf16 %v8111, %v8110
  %v8244 = vpack.c.bf16 %v8107, %v8106
  %v8245 = vpack.c.bf16 %v8103, %v8102
  %v8246 = vpack.c.bf16 %v8099, %v8098
  %v8247 = vpack.c.bf16 %v8095, %v8094
  %v8248 = vpack.c.bf16 %v8091, %v8090
  %v8249 = vpack.c.bf16 %v8215, %v8214
  %v8250 = vpack.c.bf16 %v8213, %v8212
  %v8251 = vpack.c.bf16 %v8209, %v8208
  %v8252 = vpack.c.bf16 %v8205, %v8204
  %v8253 = vpack.c.bf16 %v8201, %v8200
  %v8254 = vpack.c.bf16 %v8197, %v8196
  %v8255 = vpack.c.bf16 %v8193, %v8192
  %v8256 = vpack.c.bf16 %v8189, %v8188
  %v8257 = vpack.c.bf16 %v8185, %v8184
  %v8258 = vpack.c.bf16 %v8181, %v8180
  %v8259 = vpack.c.bf16 %v8177, %v8176
  %v8260 = vpack.c.bf16 %v8173, %v8172
  %v8261 = vpack.c.bf16 %v8169, %v8168
  %v8262 = vpack.c.bf16 %v8165, %v8164
  %v8263 = vpack.c.bf16 %v8161, %v8160
  %v8264 = vpack.c.bf16 %v8157, %v8156
  %v8265 = vpack.c.bf16 %v8153, %v8152
  %v8266 = vpack.c.bf16 %v8149, %v8148
  %v8267 = vpack.c.bf16 %v8145, %v8144
  %v8268 = vpack.c.bf16 %v8141, %v8140
  %v8269 = vpack.c.bf16 %v8137, %v8136
  %v8270 = vpack.c.bf16 %v8133, %v8132
  %v8271 = vpack.c.bf16 %v8129, %v8128
  %v8272 = vpack.c.bf16 %v8125, %v8124
  %v8273 = vpack.c.bf16 %v8121, %v8120
  %v8274 = vpack.c.bf16 %v8117, %v8116
  %v8275 = vpack.c.bf16 %v8113, %v8112
  %v8276 = vpack.c.bf16 %v8109, %v8108
  %v8277 = vpack.c.bf16 %v8105, %v8104
  %v8278 = vpack.c.bf16 %v8101, %v8100
  %v8279 = vpack.c.bf16 %v8097, %v8096
  %v8280 = vpack.c.bf16 %v8093, %v8092
  %v8281 = vpack.c.bf16 %v8217, %v8216
  %8282 = vrot.lane.b32.xlu0 %v7642, 103
  %v8283 = vpop.permute.xlu0 %8282
  %8284 = vrot.lane.b32.xlu0 %v7674, 103
  %v8285 = vpop.permute.xlu0 %8284
  %8286 = vrot.lane.b32.xlu0 %v7706, 103
  %v8287 = vpop.permute.xlu0 %8286
  %8288 = vrot.lane.b32.xlu0 %v7738, 103
  %v8289 = vpop.permute.xlu0 %8288
  %8290 = vrot.lane.b32.xlu0 %v7643, 103
  %v8291 = vpop.permute.xlu0 %8290
  %8292 = vrot.lane.b32.xlu0 %v7675, 103
  %v8293 = vpop.permute.xlu0 %8292
  %8294 = vrot.lane.b32.xlu0 %v7707, 103
  %v8295 = vpop.permute.xlu0 %8294
  %8296 = vrot.lane.b32.xlu0 %v7739, 103
  %v8297 = vpop.permute.xlu0 %8296
  %8298 = vrot.lane.b32.xlu0 %v7644, 103
  %v8299 = vpop.permute.xlu0 %8298
  %8300 = vrot.lane.b32.xlu0 %v7676, 103
  %v8301 = vpop.permute.xlu0 %8300
  %8302 = vrot.lane.b32.xlu0 %v7708, 103
  %v8303 = vpop.permute.xlu0 %8302
  %8304 = vrot.lane.b32.xlu0 %v7740, 103
  %v8305 = vpop.permute.xlu0 %8304
  %8306 = vrot.lane.b32.xlu0 %v7645, 103
  %v8307 = vpop.permute.xlu0 %8306
  %8308 = vrot.lane.b32.xlu0 %v7677, 103
  %v8309 = vpop.permute.xlu0 %8308
  %8310 = vrot.lane.b32.xlu0 %v7709, 103
  %v8311 = vpop.permute.xlu0 %8310
  %8312 = vrot.lane.b32.xlu0 %v7741, 103
  %v8313 = vpop.permute.xlu0 %8312
  %8314 = vrot.lane.b32.xlu0 %v7646, 103
  %v8315 = vpop.permute.xlu0 %8314
  %8316 = vrot.lane.b32.xlu0 %v7678, 103
  %v8317 = vpop.permute.xlu0 %8316
  %8318 = vrot.lane.b32.xlu0 %v7710, 103
  %v8319 = vpop.permute.xlu0 %8318
  %8320 = vrot.lane.b32.xlu0 %v7742, 103
  %v8321 = vpop.permute.xlu0 %8320
  %8322 = vrot.lane.b32.xlu0 %v7647, 103
  %v8323 = vpop.permute.xlu0 %8322
  %8324 = vrot.lane.b32.xlu0 %v7679, 103
  %v8325 = vpop.permute.xlu0 %8324
  %8326 = vrot.lane.b32.xlu0 %v7711, 103
  %v8327 = vpop.permute.xlu0 %8326
  %8328 = vrot.lane.b32.xlu0 %v7743, 103
  %v8329 = vpop.permute.xlu0 %8328
  %8330 = vrot.lane.b32.xlu0 %v7648, 103
  %v8331 = vpop.permute.xlu0 %8330
  %8332 = vrot.lane.b32.xlu0 %v7680, 103
  %v8333 = vpop.permute.xlu0 %8332
  %8334 = vrot.lane.b32.xlu0 %v7712, 103
  %v8335 = vpop.permute.xlu0 %8334
  %8336 = vrot.lane.b32.xlu0 %v7744, 103
  %v8337 = vpop.permute.xlu0 %8336
  %8338 = vrot.lane.b32.xlu0 %v7649, 103
  %v8339 = vpop.permute.xlu0 %8338
  %8340 = vrot.lane.b32.xlu0 %v7681, 103
  %v8341 = vpop.permute.xlu0 %8340
  %8342 = vrot.lane.b32.xlu0 %v7713, 103
  %v8343 = vpop.permute.xlu0 %8342
  %8344 = vrot.lane.b32.xlu0 %v7745, 103
  %v8345 = vpop.permute.xlu0 %8344
  %8346 = vrot.lane.b32.xlu0 %v7650, 103
  %v8347 = vpop.permute.xlu0 %8346
  %8348 = vrot.lane.b32.xlu0 %v7682, 103
  %v8349 = vpop.permute.xlu0 %8348
  %8350 = vrot.lane.b32.xlu0 %v7714, 103
  %v8351 = vpop.permute.xlu0 %8350
  %8352 = vrot.lane.b32.xlu0 %v7746, 103
  %v8353 = vpop.permute.xlu0 %8352
  %8354 = vrot.lane.b32.xlu0 %v7651, 103
  %v8355 = vpop.permute.xlu0 %8354
  %8356 = vrot.lane.b32.xlu0 %v7683, 103
  %v8357 = vpop.permute.xlu0 %8356
  %8358 = vrot.lane.b32.xlu0 %v7715, 103
  %v8359 = vpop.permute.xlu0 %8358
  %8360 = vrot.lane.b32.xlu0 %v7747, 103
  %v8361 = vpop.permute.xlu0 %8360
  %8362 = vrot.lane.b32.xlu0 %v7652, 103
  %v8363 = vpop.permute.xlu0 %8362
  %8364 = vrot.lane.b32.xlu0 %v7684, 103
  %v8365 = vpop.permute.xlu0 %8364
  %8366 = vrot.lane.b32.xlu0 %v7716, 103
  %v8367 = vpop.permute.xlu0 %8366
  %8368 = vrot.lane.b32.xlu0 %v7748, 103
  %v8369 = vpop.permute.xlu0 %8368
  %8370 = vrot.lane.b32.xlu0 %v7653, 103
  %v8371 = vpop.permute.xlu0 %8370
  %8372 = vrot.lane.b32.xlu0 %v7685, 103
  %v8373 = vpop.permute.xlu0 %8372
  %8374 = vrot.lane.b32.xlu0 %v7717, 103
  %v8375 = vpop.permute.xlu0 %8374
  %8376 = vrot.lane.b32.xlu0 %v7749, 103
  %v8377 = vpop.permute.xlu0 %8376
  %8378 = vrot.lane.b32.xlu0 %v7654, 103
  %v8379 = vpop.permute.xlu0 %8378
  %8380 = vrot.lane.b32.xlu0 %v7686, 103
  %v8381 = vpop.permute.xlu0 %8380
  %8382 = vrot.lane.b32.xlu0 %v7718, 103
  %v8383 = vpop.permute.xlu0 %8382
  %8384 = vrot.lane.b32.xlu0 %v7750, 103
  %v8385 = vpop.permute.xlu0 %8384
  %8386 = vrot.lane.b32.xlu0 %v7655, 103
  %v8387 = vpop.permute.xlu0 %8386
  %8388 = vrot.lane.b32.xlu0 %v7687, 103
  %v8389 = vpop.permute.xlu0 %8388
  %8390 = vrot.lane.b32.xlu0 %v7719, 103
  %v8391 = vpop.permute.xlu0 %8390
  %8392 = vrot.lane.b32.xlu0 %v7751, 103
  %v8393 = vpop.permute.xlu0 %8392
  %8394 = vrot.lane.b32.xlu0 %v7656, 103
  %v8395 = vpop.permute.xlu0 %8394
  %8396 = vrot.lane.b32.xlu0 %v7688, 103
  %v8397 = vpop.permute.xlu0 %8396
  %8398 = vrot.lane.b32.xlu0 %v7720, 103
  %v8399 = vpop.permute.xlu0 %8398
  %8400 = vrot.lane.b32.xlu0 %v7752, 103
  %v8401 = vpop.permute.xlu0 %8400
  %8402 = vrot.lane.b32.xlu0 %v7657, 103
  %v8403 = vpop.permute.xlu0 %8402
  %8404 = vrot.lane.b32.xlu0 %v7689, 103
  %v8405 = vpop.permute.xlu0 %8404
  %8406 = vrot.lane.b32.xlu0 %v7721, 103
  %v8407 = vpop.permute.xlu0 %8406
  %8408 = vrot.lane.b32.xlu0 %v7753, 103
  %v8409 = vpop.permute.xlu0 %8408
  %8410 = vrot.lane.b32.xlu0 %v7658, 103
  %v8411 = vpop.permute.xlu0 %8410
  %8412 = vrot.lane.b32.xlu0 %v7690, 103
  %v8413 = vpop.permute.xlu0 %8412
  %8414 = vrot.lane.b32.xlu0 %v7722, 103
  %v8415 = vpop.permute.xlu0 %8414
  %8416 = vrot.lane.b32.xlu0 %v7754, 103
  %v8417 = vpop.permute.xlu0 %8416
  %8418 = vrot.lane.b32.xlu0 %v7659, 103
  %v8419 = vpop.permute.xlu0 %8418
  %8420 = vrot.lane.b32.xlu0 %v7691, 103
  %v8421 = vpop.permute.xlu0 %8420
  %8422 = vrot.lane.b32.xlu0 %v7723, 103
  %v8423 = vpop.permute.xlu0 %8422
  %8424 = vrot.lane.b32.xlu0 %v7755, 103
  %v8425 = vpop.permute.xlu0 %8424
  %8426 = vrot.lane.b32.xlu0 %v7660, 103
  %v8427 = vpop.permute.xlu0 %8426
  %8428 = vrot.lane.b32.xlu0 %v7692, 103
  %v8429 = vpop.permute.xlu0 %8428
  %8430 = vrot.lane.b32.xlu0 %v7724, 103
  %v8431 = vpop.permute.xlu0 %8430
  %8432 = vrot.lane.b32.xlu0 %v7756, 103
  %v8433 = vpop.permute.xlu0 %8432
  %8434 = vrot.lane.b32.xlu0 %v7661, 103
  %v8435 = vpop.permute.xlu0 %8434
  %8436 = vrot.lane.b32.xlu0 %v7693, 103
  %v8437 = vpop.permute.xlu0 %8436
  %8438 = vrot.lane.b32.xlu0 %v7725, 103
  %v8439 = vpop.permute.xlu0 %8438
  %8440 = vrot.lane.b32.xlu0 %v7757, 103
  %v8441 = vpop.permute.xlu0 %8440
  %8442 = vrot.lane.b32.xlu0 %v7662, 103
  %v8443 = vpop.permute.xlu0 %8442
  %8444 = vrot.lane.b32.xlu0 %v7694, 103
  %v8445 = vpop.permute.xlu0 %8444
  %8446 = vrot.lane.b32.xlu0 %v7726, 103
  %v8447 = vpop.permute.xlu0 %8446
  %8448 = vrot.lane.b32.xlu0 %v7758, 103
  %v8449 = vpop.permute.xlu0 %8448
  %8450 = vrot.lane.b32.xlu0 %v7663, 103
  %v8451 = vpop.permute.xlu0 %8450
  %8452 = vrot.lane.b32.xlu0 %v7695, 103
  %v8453 = vpop.permute.xlu0 %8452
  %8454 = vrot.lane.b32.xlu0 %v7727, 103
  %v8455 = vpop.permute.xlu0 %8454
  %8456 = vrot.lane.b32.xlu0 %v7759, 103
  %v8457 = vpop.permute.xlu0 %8456
  %8458 = vrot.lane.b32.xlu0 %v7664, 103
  %v8459 = vpop.permute.xlu0 %8458
  %8460 = vrot.lane.b32.xlu0 %v7696, 103
  %v8461 = vpop.permute.xlu0 %8460
  %8462 = vrot.lane.b32.xlu0 %v7728, 103
  %v8463 = vpop.permute.xlu0 %8462
  %8464 = vrot.lane.b32.xlu0 %v7760, 103
  %v8465 = vpop.permute.xlu0 %8464
  %8466 = vrot.lane.b32.xlu0 %v7665, 103
  %v8467 = vpop.permute.xlu0 %8466
  %8468 = vrot.lane.b32.xlu0 %v7697, 103
  %v8469 = vpop.permute.xlu0 %8468
  %8470 = vrot.lane.b32.xlu0 %v7729, 103
  %v8471 = vpop.permute.xlu0 %8470
  %8472 = vrot.lane.b32.xlu0 %v7761, 103
  %v8473 = vpop.permute.xlu0 %8472
  %8474 = vrot.lane.b32.xlu0 %v7666, 103
  %v8475 = vpop.permute.xlu0 %8474
  %8476 = vrot.lane.b32.xlu0 %v7698, 103
  %v8477 = vpop.permute.xlu0 %8476
  %8478 = vrot.lane.b32.xlu0 %v7730, 103
  %v8479 = vpop.permute.xlu0 %8478
  %8480 = vrot.lane.b32.xlu0 %v7762, 103
  %v8481 = vpop.permute.xlu0 %8480
  %8482 = vrot.lane.b32.xlu0 %v7667, 103
  %v8483 = vpop.permute.xlu0 %8482
  %8484 = vrot.lane.b32.xlu0 %v7699, 103
  %v8485 = vpop.permute.xlu0 %8484
  %8486 = vrot.lane.b32.xlu0 %v7731, 103
  %v8487 = vpop.permute.xlu0 %8486
  %8488 = vrot.lane.b32.xlu0 %v7763, 103
  %v8489 = vpop.permute.xlu0 %8488
  %8490 = vrot.lane.b32.xlu0 %v7668, 103
  %v8491 = vpop.permute.xlu0 %8490
  %8492 = vrot.lane.b32.xlu0 %v7700, 103
  %v8493 = vpop.permute.xlu0 %8492
  %8494 = vrot.lane.b32.xlu0 %v7732, 103
  %v8495 = vpop.permute.xlu0 %8494
  %8496 = vrot.lane.b32.xlu0 %v7764, 103
  %v8497 = vpop.permute.xlu0 %8496
  %8498 = vrot.lane.b32.xlu0 %v7669, 103
  %v8499 = vpop.permute.xlu0 %8498
  %8500 = vrot.lane.b32.xlu0 %v7701, 103
  %v8501 = vpop.permute.xlu0 %8500
  %8502 = vrot.lane.b32.xlu0 %v7733, 103
  %v8503 = vpop.permute.xlu0 %8502
  %8504 = vrot.lane.b32.xlu0 %v7765, 103
  %v8505 = vpop.permute.xlu0 %8504
  %8506 = vrot.lane.b32.xlu0 %v7670, 103
  %v8507 = vpop.permute.xlu0 %8506
  %8508 = vrot.lane.b32.xlu0 %v7702, 103
  %v8509 = vpop.permute.xlu0 %8508
  %8510 = vrot.lane.b32.xlu0 %v7734, 103
  %v8511 = vpop.permute.xlu0 %8510
  %8512 = vrot.lane.b32.xlu0 %v7766, 103
  %v8513 = vpop.permute.xlu0 %8512
  %8514 = vrot.lane.b32.xlu0 %v7671, 103
  %v8515 = vpop.permute.xlu0 %8514
  %8516 = vrot.lane.b32.xlu0 %v7703, 103
  %v8517 = vpop.permute.xlu0 %8516
  %8518 = vrot.lane.b32.xlu0 %v7735, 103
  %v8519 = vpop.permute.xlu0 %8518
  %8520 = vrot.lane.b32.xlu0 %v7767, 103
  %v8521 = vpop.permute.xlu0 %8520
  %8522 = vrot.lane.b32.xlu0 %v7672, 103
  %v8523 = vpop.permute.xlu0 %8522
  %8524 = vrot.lane.b32.xlu0 %v7704, 103
  %v8525 = vpop.permute.xlu0 %8524
  %8526 = vrot.lane.b32.xlu0 %v7736, 103
  %v8527 = vpop.permute.xlu0 %8526
  %8528 = vrot.lane.b32.xlu0 %v7768, 103
  %v8529 = vpop.permute.xlu0 %8528
  %8530 = vrot.lane.b32.xlu0 %v7673, 103
  %v8531 = vpop.permute.xlu0 %8530
  %8532 = vrot.lane.b32.xlu0 %v7705, 103
  %v8533 = vpop.permute.xlu0 %8532
  %8534 = vrot.lane.b32.xlu0 %v7737, 103
  %v8535 = vpop.permute.xlu0 %8534
  %8536 = vrot.lane.b32.xlu0 %v7769, 103
  %v8537 = vpop.permute.xlu0 %8536
  %v8538 = vsel %vm3028, %v8523, %v8531
  %v8539 = vsel %vm3028, %v8525, %v8533
  %v8540 = vsel %vm3028, %v8527, %v8535
  %v8541 = vsel %vm3028, %v8529, %v8537
  %v8542 = vsel %vm3028, %v8515, %v8523
  %v8543 = vsel %vm3028, %v8517, %v8525
  %v8544 = vsel %vm3028, %v8519, %v8527
  %v8545 = vsel %vm3028, %v8521, %v8529
  %v8546 = vsel %vm3028, %v8507, %v8515
  %v8547 = vsel %vm3028, %v8509, %v8517
  %v8548 = vsel %vm3028, %v8511, %v8519
  %v8549 = vsel %vm3028, %v8513, %v8521
  %v8550 = vsel %vm3028, %v8499, %v8507
  %v8551 = vsel %vm3028, %v8501, %v8509
  %v8552 = vsel %vm3028, %v8503, %v8511
  %v8553 = vsel %vm3028, %v8505, %v8513
  %v8554 = vsel %vm3028, %v8491, %v8499
  %v8555 = vsel %vm3028, %v8493, %v8501
  %v8556 = vsel %vm3028, %v8495, %v8503
  %v8557 = vsel %vm3028, %v8497, %v8505
  %v8558 = vsel %vm3028, %v8483, %v8491
  %v8559 = vsel %vm3028, %v8485, %v8493
  %v8560 = vsel %vm3028, %v8487, %v8495
  %v8561 = vsel %vm3028, %v8489, %v8497
  %v8562 = vsel %vm3028, %v8475, %v8483
  %v8563 = vsel %vm3028, %v8477, %v8485
  %v8564 = vsel %vm3028, %v8479, %v8487
  %v8565 = vsel %vm3028, %v8481, %v8489
  %v8566 = vsel %vm3028, %v8467, %v8475
  %v8567 = vsel %vm3028, %v8469, %v8477
  %v8568 = vsel %vm3028, %v8471, %v8479
  %v8569 = vsel %vm3028, %v8473, %v8481
  %v8570 = vsel %vm3028, %v8459, %v8467
  %v8571 = vsel %vm3028, %v8461, %v8469
  %v8572 = vsel %vm3028, %v8463, %v8471
  %v8573 = vsel %vm3028, %v8465, %v8473
  %v8574 = vsel %vm3028, %v8451, %v8459
  %v8575 = vsel %vm3028, %v8453, %v8461
  %v8576 = vsel %vm3028, %v8455, %v8463
  %v8577 = vsel %vm3028, %v8457, %v8465
  %v8578 = vsel %vm3028, %v8443, %v8451
  %v8579 = vsel %vm3028, %v8445, %v8453
  %v8580 = vsel %vm3028, %v8447, %v8455
  %v8581 = vsel %vm3028, %v8449, %v8457
  %v8582 = vsel %vm3028, %v8435, %v8443
  %v8583 = vsel %vm3028, %v8437, %v8445
  %v8584 = vsel %vm3028, %v8439, %v8447
  %v8585 = vsel %vm3028, %v8441, %v8449
  %v8586 = vsel %vm3028, %v8427, %v8435
  %v8587 = vsel %vm3028, %v8429, %v8437
  %v8588 = vsel %vm3028, %v8431, %v8439
  %v8589 = vsel %vm3028, %v8433, %v8441
  %v8590 = vsel %vm3028, %v8419, %v8427
  %v8591 = vsel %vm3028, %v8421, %v8429
  %v8592 = vsel %vm3028, %v8423, %v8431
  %v8593 = vsel %vm3028, %v8425, %v8433
  %v8594 = vsel %vm3028, %v8411, %v8419
  %v8595 = vsel %vm3028, %v8413, %v8421
  %v8596 = vsel %vm3028, %v8415, %v8423
  %v8597 = vsel %vm3028, %v8417, %v8425
  %v8598 = vsel %vm3028, %v8403, %v8411
  %v8599 = vsel %vm3028, %v8405, %v8413
  %v8600 = vsel %vm3028, %v8407, %v8415
  %v8601 = vsel %vm3028, %v8409, %v8417
  %v8602 = vsel %vm3028, %v8395, %v8403
  %v8603 = vsel %vm3028, %v8397, %v8405
  %v8604 = vsel %vm3028, %v8399, %v8407
  %v8605 = vsel %vm3028, %v8401, %v8409
  %v8606 = vsel %vm3028, %v8387, %v8395
  %v8607 = vsel %vm3028, %v8389, %v8397
  %v8608 = vsel %vm3028, %v8391, %v8399
  %v8609 = vsel %vm3028, %v8393, %v8401
  %v8610 = vsel %vm3028, %v8379, %v8387
  %v8611 = vsel %vm3028, %v8381, %v8389
  %v8612 = vsel %vm3028, %v8383, %v8391
  %v8613 = vsel %vm3028, %v8385, %v8393
  %v8614 = vsel %vm3028, %v8371, %v8379
  %v8615 = vsel %vm3028, %v8373, %v8381
  %v8616 = vsel %vm3028, %v8375, %v8383
  %v8617 = vsel %vm3028, %v8377, %v8385
  %v8618 = vsel %vm3028, %v8363, %v8371
  %v8619 = vsel %vm3028, %v8365, %v8373
  %v8620 = vsel %vm3028, %v8367, %v8375
  %v8621 = vsel %vm3028, %v8369, %v8377
  %v8622 = vsel %vm3028, %v8355, %v8363
  %v8623 = vsel %vm3028, %v8357, %v8365
  %v8624 = vsel %vm3028, %v8359, %v8367
  %v8625 = vsel %vm3028, %v8361, %v8369
  %v8626 = vsel %vm3028, %v8347, %v8355
  %v8627 = vsel %vm3028, %v8349, %v8357
  %v8628 = vsel %vm3028, %v8351, %v8359
  %v8629 = vsel %vm3028, %v8353, %v8361
  %v8630 = vsel %vm3028, %v8339, %v8347
  %v8631 = vsel %vm3028, %v8341, %v8349
  %v8632 = vsel %vm3028, %v8343, %v8351
  %v8633 = vsel %vm3028, %v8345, %v8353
  %v8634 = vsel %vm3028, %v8331, %v8339
  %v8635 = vsel %vm3028, %v8333, %v8341
  %v8636 = vsel %vm3028, %v8335, %v8343
  %v8637 = vsel %vm3028, %v8337, %v8345
  %v8638 = vsel %vm3028, %v8323, %v8331
  %v8639 = vsel %vm3028, %v8325, %v8333
  %v8640 = vsel %vm3028, %v8327, %v8335
  %v8641 = vsel %vm3028, %v8329, %v8337
  %v8642 = vsel %vm3028, %v8315, %v8323
  %v8643 = vsel %vm3028, %v8317, %v8325
  %v8644 = vsel %vm3028, %v8319, %v8327
  %v8645 = vsel %vm3028, %v8321, %v8329
  %v8646 = vsel %vm3028, %v8307, %v8315
  %v8647 = vsel %vm3028, %v8309, %v8317
  %v8648 = vsel %vm3028, %v8311, %v8319
  %v8649 = vsel %vm3028, %v8313, %v8321
  %v8650 = vsel %vm3028, %v8299, %v8307
  %v8651 = vsel %vm3028, %v8301, %v8309
  %v8652 = vsel %vm3028, %v8303, %v8311
  %v8653 = vsel %vm3028, %v8305, %v8313
  %v8654 = vsel %vm3028, %v8291, %v8299
  %v8655 = vsel %vm3028, %v8293, %v8301
  %v8656 = vsel %vm3028, %v8295, %v8303
  %v8657 = vsel %vm3028, %v8297, %v8305
  %v8658 = vsel %vm3028, %v8283, %v8291
  %v8659 = vsel %vm3028, %v8285, %v8293
  %v8660 = vsel %vm3028, %v8287, %v8295
  %v8661 = vsel %vm3028, %v8289, %v8297
  %v8662 = vsel %vm3028, %v8531, %v8283
  %v8663 = vsel %vm3028, %v8533, %v8285
  %v8664 = vsel %vm3028, %v8535, %v8287
  %v8665 = vsel %vm3028, %v8537, %v8289
  %v8666 = vpack.c.bf16 %v8659, %v8658
  %v8667 = vpack.c.bf16 %v8655, %v8654
  %v8668 = vpack.c.bf16 %v8651, %v8650
  %v8669 = vpack.c.bf16 %v8647, %v8646
  %v8670 = vpack.c.bf16 %v8643, %v8642
  %v8671 = vpack.c.bf16 %v8639, %v8638
  %v8672 = vpack.c.bf16 %v8635, %v8634
  %v8673 = vpack.c.bf16 %v8631, %v8630
  %v8674 = vpack.c.bf16 %v8627, %v8626
  %v8675 = vpack.c.bf16 %v8623, %v8622
  %v8676 = vpack.c.bf16 %v8619, %v8618
  %v8677 = vpack.c.bf16 %v8615, %v8614
  %v8678 = vpack.c.bf16 %v8611, %v8610
  %v8679 = vpack.c.bf16 %v8607, %v8606
  %v8680 = vpack.c.bf16 %v8603, %v8602
  %v8681 = vpack.c.bf16 %v8599, %v8598
  %v8682 = vpack.c.bf16 %v8595, %v8594
  %v8683 = vpack.c.bf16 %v8591, %v8590
  %v8684 = vpack.c.bf16 %v8587, %v8586
  %v8685 = vpack.c.bf16 %v8583, %v8582
  %v8686 = vpack.c.bf16 %v8579, %v8578
  %v8687 = vpack.c.bf16 %v8575, %v8574
  %v8688 = vpack.c.bf16 %v8571, %v8570
  %v8689 = vpack.c.bf16 %v8567, %v8566
  %v8690 = vpack.c.bf16 %v8563, %v8562
  %v8691 = vpack.c.bf16 %v8559, %v8558
  %v8692 = vpack.c.bf16 %v8555, %v8554
  %v8693 = vpack.c.bf16 %v8551, %v8550
  %v8694 = vpack.c.bf16 %v8547, %v8546
  %v8695 = vpack.c.bf16 %v8543, %v8542
  %v8696 = vpack.c.bf16 %v8539, %v8538
  %v8697 = vpack.c.bf16 %v8663, %v8662
  %v8698 = vpack.c.bf16 %v8661, %v8660
  %v8699 = vpack.c.bf16 %v8657, %v8656
  %v8700 = vpack.c.bf16 %v8653, %v8652
  %v8701 = vpack.c.bf16 %v8649, %v8648
  %v8702 = vpack.c.bf16 %v8645, %v8644
  %v8703 = vpack.c.bf16 %v8641, %v8640
  %v8704 = vpack.c.bf16 %v8637, %v8636
  %v8705 = vpack.c.bf16 %v8633, %v8632
  %v8706 = vpack.c.bf16 %v8629, %v8628
  %v8707 = vpack.c.bf16 %v8625, %v8624
  %v8708 = vpack.c.bf16 %v8621, %v8620
  %v8709 = vpack.c.bf16 %v8617, %v8616
  %v8710 = vpack.c.bf16 %v8613, %v8612
  %v8711 = vpack.c.bf16 %v8609, %v8608
  %v8712 = vpack.c.bf16 %v8605, %v8604
  %v8713 = vpack.c.bf16 %v8601, %v8600
  %v8714 = vpack.c.bf16 %v8597, %v8596
  %v8715 = vpack.c.bf16 %v8593, %v8592
  %v8716 = vpack.c.bf16 %v8589, %v8588
  %v8717 = vpack.c.bf16 %v8585, %v8584
  %v8718 = vpack.c.bf16 %v8581, %v8580
  %v8719 = vpack.c.bf16 %v8577, %v8576
  %v8720 = vpack.c.bf16 %v8573, %v8572
  %v8721 = vpack.c.bf16 %v8569, %v8568
  %v8722 = vpack.c.bf16 %v8565, %v8564
  %v8723 = vpack.c.bf16 %v8561, %v8560
  %v8724 = vpack.c.bf16 %v8557, %v8556
  %v8725 = vpack.c.bf16 %v8553, %v8552
  %v8726 = vpack.c.bf16 %v8549, %v8548
  %v8727 = vpack.c.bf16 %v8545, %v8544
  %v8728 = vpack.c.bf16 %v8541, %v8540
  %v8729 = vpack.c.bf16 %v8665, %v8664
  %8730 = vrot.lane.b32.xlu0 %v7642, 102
  %v8731 = vpop.permute.xlu0 %8730
  %8732 = vrot.lane.b32.xlu0 %v7674, 102
  %v8733 = vpop.permute.xlu0 %8732
  %8734 = vrot.lane.b32.xlu0 %v7706, 102
  %v8735 = vpop.permute.xlu0 %8734
  %8736 = vrot.lane.b32.xlu0 %v7738, 102
  %v8737 = vpop.permute.xlu0 %8736
  %8738 = vrot.lane.b32.xlu0 %v7643, 102
  %v8739 = vpop.permute.xlu0 %8738
  %8740 = vrot.lane.b32.xlu0 %v7675, 102
  %v8741 = vpop.permute.xlu0 %8740
  %8742 = vrot.lane.b32.xlu0 %v7707, 102
  %v8743 = vpop.permute.xlu0 %8742
  %8744 = vrot.lane.b32.xlu0 %v7739, 102
  %v8745 = vpop.permute.xlu0 %8744
  %8746 = vrot.lane.b32.xlu0 %v7644, 102
  %v8747 = vpop.permute.xlu0 %8746
  %8748 = vrot.lane.b32.xlu0 %v7676, 102
  %v8749 = vpop.permute.xlu0 %8748
  %8750 = vrot.lane.b32.xlu0 %v7708, 102
  %v8751 = vpop.permute.xlu0 %8750
  %8752 = vrot.lane.b32.xlu0 %v7740, 102
  %v8753 = vpop.permute.xlu0 %8752
  %8754 = vrot.lane.b32.xlu0 %v7645, 102
  %v8755 = vpop.permute.xlu0 %8754
  %8756 = vrot.lane.b32.xlu0 %v7677, 102
  %v8757 = vpop.permute.xlu0 %8756
  %8758 = vrot.lane.b32.xlu0 %v7709, 102
  %v8759 = vpop.permute.xlu0 %8758
  %8760 = vrot.lane.b32.xlu0 %v7741, 102
  %v8761 = vpop.permute.xlu0 %8760
  %8762 = vrot.lane.b32.xlu0 %v7646, 102
  %v8763 = vpop.permute.xlu0 %8762
  %8764 = vrot.lane.b32.xlu0 %v7678, 102
  %v8765 = vpop.permute.xlu0 %8764
  %8766 = vrot.lane.b32.xlu0 %v7710, 102
  %v8767 = vpop.permute.xlu0 %8766
  %8768 = vrot.lane.b32.xlu0 %v7742, 102
  %v8769 = vpop.permute.xlu0 %8768
  %8770 = vrot.lane.b32.xlu0 %v7647, 102
  %v8771 = vpop.permute.xlu0 %8770
  %8772 = vrot.lane.b32.xlu0 %v7679, 102
  %v8773 = vpop.permute.xlu0 %8772
  %8774 = vrot.lane.b32.xlu0 %v7711, 102
  %v8775 = vpop.permute.xlu0 %8774
  %8776 = vrot.lane.b32.xlu0 %v7743, 102
  %v8777 = vpop.permute.xlu0 %8776
  %8778 = vrot.lane.b32.xlu0 %v7648, 102
  %v8779 = vpop.permute.xlu0 %8778
  %8780 = vrot.lane.b32.xlu0 %v7680, 102
  %v8781 = vpop.permute.xlu0 %8780
  %8782 = vrot.lane.b32.xlu0 %v7712, 102
  %v8783 = vpop.permute.xlu0 %8782
  %8784 = vrot.lane.b32.xlu0 %v7744, 102
  %v8785 = vpop.permute.xlu0 %8784
  %8786 = vrot.lane.b32.xlu0 %v7649, 102
  %v8787 = vpop.permute.xlu0 %8786
  %8788 = vrot.lane.b32.xlu0 %v7681, 102
  %v8789 = vpop.permute.xlu0 %8788
  %8790 = vrot.lane.b32.xlu0 %v7713, 102
  %v8791 = vpop.permute.xlu0 %8790
  %8792 = vrot.lane.b32.xlu0 %v7745, 102
  %v8793 = vpop.permute.xlu0 %8792
  %8794 = vrot.lane.b32.xlu0 %v7650, 102
  %v8795 = vpop.permute.xlu0 %8794
  %8796 = vrot.lane.b32.xlu0 %v7682, 102
  %v8797 = vpop.permute.xlu0 %8796
  %8798 = vrot.lane.b32.xlu0 %v7714, 102
  %v8799 = vpop.permute.xlu0 %8798
  %8800 = vrot.lane.b32.xlu0 %v7746, 102
  %v8801 = vpop.permute.xlu0 %8800
  %8802 = vrot.lane.b32.xlu0 %v7651, 102
  %v8803 = vpop.permute.xlu0 %8802
  %8804 = vrot.lane.b32.xlu0 %v7683, 102
  %v8805 = vpop.permute.xlu0 %8804
  %8806 = vrot.lane.b32.xlu0 %v7715, 102
  %v8807 = vpop.permute.xlu0 %8806
  %8808 = vrot.lane.b32.xlu0 %v7747, 102
  %v8809 = vpop.permute.xlu0 %8808
  %8810 = vrot.lane.b32.xlu0 %v7652, 102
  %v8811 = vpop.permute.xlu0 %8810
  %8812 = vrot.lane.b32.xlu0 %v7684, 102
  %v8813 = vpop.permute.xlu0 %8812
  %8814 = vrot.lane.b32.xlu0 %v7716, 102
  %v8815 = vpop.permute.xlu0 %8814
  %8816 = vrot.lane.b32.xlu0 %v7748, 102
  %v8817 = vpop.permute.xlu0 %8816
  %8818 = vrot.lane.b32.xlu0 %v7653, 102
  %v8819 = vpop.permute.xlu0 %8818
  %8820 = vrot.lane.b32.xlu0 %v7685, 102
  %v8821 = vpop.permute.xlu0 %8820
  %8822 = vrot.lane.b32.xlu0 %v7717, 102
  %v8823 = vpop.permute.xlu0 %8822
  %8824 = vrot.lane.b32.xlu0 %v7749, 102
  %v8825 = vpop.permute.xlu0 %8824
  %8826 = vrot.lane.b32.xlu0 %v7654, 102
  %v8827 = vpop.permute.xlu0 %8826
  %8828 = vrot.lane.b32.xlu0 %v7686, 102
  %v8829 = vpop.permute.xlu0 %8828
  %8830 = vrot.lane.b32.xlu0 %v7718, 102
  %v8831 = vpop.permute.xlu0 %8830
  %8832 = vrot.lane.b32.xlu0 %v7750, 102
  %v8833 = vpop.permute.xlu0 %8832
  %8834 = vrot.lane.b32.xlu0 %v7655, 102
  %v8835 = vpop.permute.xlu0 %8834
  %8836 = vrot.lane.b32.xlu0 %v7687, 102
  %v8837 = vpop.permute.xlu0 %8836
  %8838 = vrot.lane.b32.xlu0 %v7719, 102
  %v8839 = vpop.permute.xlu0 %8838
  %8840 = vrot.lane.b32.xlu0 %v7751, 102
  %v8841 = vpop.permute.xlu0 %8840
  %8842 = vrot.lane.b32.xlu0 %v7656, 102
  %v8843 = vpop.permute.xlu0 %8842
  %8844 = vrot.lane.b32.xlu0 %v7688, 102
  %v8845 = vpop.permute.xlu0 %8844
  %8846 = vrot.lane.b32.xlu0 %v7720, 102
  %v8847 = vpop.permute.xlu0 %8846
  %8848 = vrot.lane.b32.xlu0 %v7752, 102
  %v8849 = vpop.permute.xlu0 %8848
  %8850 = vrot.lane.b32.xlu0 %v7657, 102
  %v8851 = vpop.permute.xlu0 %8850
  %8852 = vrot.lane.b32.xlu0 %v7689, 102
  %v8853 = vpop.permute.xlu0 %8852
  %8854 = vrot.lane.b32.xlu0 %v7721, 102
  %v8855 = vpop.permute.xlu0 %8854
  %8856 = vrot.lane.b32.xlu0 %v7753, 102
  %v8857 = vpop.permute.xlu0 %8856
  %8858 = vrot.lane.b32.xlu0 %v7658, 102
  %v8859 = vpop.permute.xlu0 %8858
  %8860 = vrot.lane.b32.xlu0 %v7690, 102
  %v8861 = vpop.permute.xlu0 %8860
  %8862 = vrot.lane.b32.xlu0 %v7722, 102
  %v8863 = vpop.permute.xlu0 %8862
  %8864 = vrot.lane.b32.xlu0 %v7754, 102
  %v8865 = vpop.permute.xlu0 %8864
  %8866 = vrot.lane.b32.xlu0 %v7659, 102
  %v8867 = vpop.permute.xlu0 %8866
  %8868 = vrot.lane.b32.xlu0 %v7691, 102
  %v8869 = vpop.permute.xlu0 %8868
  %8870 = vrot.lane.b32.xlu0 %v7723, 102
  %v8871 = vpop.permute.xlu0 %8870
  %8872 = vrot.lane.b32.xlu0 %v7755, 102
  %v8873 = vpop.permute.xlu0 %8872
  %8874 = vrot.lane.b32.xlu0 %v7660, 102
  %v8875 = vpop.permute.xlu0 %8874
  %8876 = vrot.lane.b32.xlu0 %v7692, 102
  %v8877 = vpop.permute.xlu0 %8876
  %8878 = vrot.lane.b32.xlu0 %v7724, 102
  %v8879 = vpop.permute.xlu0 %8878
  %8880 = vrot.lane.b32.xlu0 %v7756, 102
  %v8881 = vpop.permute.xlu0 %8880
  %8882 = vrot.lane.b32.xlu0 %v7661, 102
  %v8883 = vpop.permute.xlu0 %8882
  %8884 = vrot.lane.b32.xlu0 %v7693, 102
  %v8885 = vpop.permute.xlu0 %8884
  %8886 = vrot.lane.b32.xlu0 %v7725, 102
  %v8887 = vpop.permute.xlu0 %8886
  %8888 = vrot.lane.b32.xlu0 %v7757, 102
  %v8889 = vpop.permute.xlu0 %8888
  %8890 = vrot.lane.b32.xlu0 %v7662, 102
  %v8891 = vpop.permute.xlu0 %8890
  %8892 = vrot.lane.b32.xlu0 %v7694, 102
  %v8893 = vpop.permute.xlu0 %8892
  %8894 = vrot.lane.b32.xlu0 %v7726, 102
  %v8895 = vpop.permute.xlu0 %8894
  %8896 = vrot.lane.b32.xlu0 %v7758, 102
  %v8897 = vpop.permute.xlu0 %8896
  %8898 = vrot.lane.b32.xlu0 %v7663, 102
  %v8899 = vpop.permute.xlu0 %8898
  %8900 = vrot.lane.b32.xlu0 %v7695, 102
  %v8901 = vpop.permute.xlu0 %8900
  %8902 = vrot.lane.b32.xlu0 %v7727, 102
  %v8903 = vpop.permute.xlu0 %8902
  %8904 = vrot.lane.b32.xlu0 %v7759, 102
  %v8905 = vpop.permute.xlu0 %8904
  %8906 = vrot.lane.b32.xlu0 %v7664, 102
  %v8907 = vpop.permute.xlu0 %8906
  %8908 = vrot.lane.b32.xlu0 %v7696, 102
  %v8909 = vpop.permute.xlu0 %8908
  %8910 = vrot.lane.b32.xlu0 %v7728, 102
  %v8911 = vpop.permute.xlu0 %8910
  %8912 = vrot.lane.b32.xlu0 %v7760, 102
  %v8913 = vpop.permute.xlu0 %8912
  %8914 = vrot.lane.b32.xlu0 %v7665, 102
  %v8915 = vpop.permute.xlu0 %8914
  %8916 = vrot.lane.b32.xlu0 %v7697, 102
  %v8917 = vpop.permute.xlu0 %8916
  %8918 = vrot.lane.b32.xlu0 %v7729, 102
  %v8919 = vpop.permute.xlu0 %8918
  %8920 = vrot.lane.b32.xlu0 %v7761, 102
  %v8921 = vpop.permute.xlu0 %8920
  %8922 = vrot.lane.b32.xlu0 %v7666, 102
  %v8923 = vpop.permute.xlu0 %8922
  %8924 = vrot.lane.b32.xlu0 %v7698, 102
  %v8925 = vpop.permute.xlu0 %8924
  %8926 = vrot.lane.b32.xlu0 %v7730, 102
  %v8927 = vpop.permute.xlu0 %8926
  %8928 = vrot.lane.b32.xlu0 %v7762, 102
  %v8929 = vpop.permute.xlu0 %8928
  %8930 = vrot.lane.b32.xlu0 %v7667, 102
  %v8931 = vpop.permute.xlu0 %8930
  %8932 = vrot.lane.b32.xlu0 %v7699, 102
  %v8933 = vpop.permute.xlu0 %8932
  %8934 = vrot.lane.b32.xlu0 %v7731, 102
  %v8935 = vpop.permute.xlu0 %8934
  %8936 = vrot.lane.b32.xlu0 %v7763, 102
  %v8937 = vpop.permute.xlu0 %8936
  %8938 = vrot.lane.b32.xlu0 %v7668, 102
  %v8939 = vpop.permute.xlu0 %8938
  %8940 = vrot.lane.b32.xlu0 %v7700, 102
  %v8941 = vpop.permute.xlu0 %8940
  %8942 = vrot.lane.b32.xlu0 %v7732, 102
  %v8943 = vpop.permute.xlu0 %8942
  %8944 = vrot.lane.b32.xlu0 %v7764, 102
  %v8945 = vpop.permute.xlu0 %8944
  %8946 = vrot.lane.b32.xlu0 %v7669, 102
  %v8947 = vpop.permute.xlu0 %8946
  %8948 = vrot.lane.b32.xlu0 %v7701, 102
  %v8949 = vpop.permute.xlu0 %8948
  %8950 = vrot.lane.b32.xlu0 %v7733, 102
  %v8951 = vpop.permute.xlu0 %8950
  %8952 = vrot.lane.b32.xlu0 %v7765, 102
  %v8953 = vpop.permute.xlu0 %8952
  %8954 = vrot.lane.b32.xlu0 %v7670, 102
  %v8955 = vpop.permute.xlu0 %8954
  %8956 = vrot.lane.b32.xlu0 %v7702, 102
  %v8957 = vpop.permute.xlu0 %8956
  %8958 = vrot.lane.b32.xlu0 %v7734, 102
  %v8959 = vpop.permute.xlu0 %8958
  %8960 = vrot.lane.b32.xlu0 %v7766, 102
  %v8961 = vpop.permute.xlu0 %8960
  %8962 = vrot.lane.b32.xlu0 %v7671, 102
  %v8963 = vpop.permute.xlu0 %8962
  %8964 = vrot.lane.b32.xlu0 %v7703, 102
  %v8965 = vpop.permute.xlu0 %8964
  %8966 = vrot.lane.b32.xlu0 %v7735, 102
  %v8967 = vpop.permute.xlu0 %8966
  %8968 = vrot.lane.b32.xlu0 %v7767, 102
  %v8969 = vpop.permute.xlu0 %8968
  %8970 = vrot.lane.b32.xlu0 %v7672, 102
  %v8971 = vpop.permute.xlu0 %8970
  %8972 = vrot.lane.b32.xlu0 %v7704, 102
  %v8973 = vpop.permute.xlu0 %8972
  %8974 = vrot.lane.b32.xlu0 %v7736, 102
  %v8975 = vpop.permute.xlu0 %8974
  %8976 = vrot.lane.b32.xlu0 %v7768, 102
  %v8977 = vpop.permute.xlu0 %8976
  %8978 = vrot.lane.b32.xlu0 %v7673, 102
  %v8979 = vpop.permute.xlu0 %8978
  %8980 = vrot.lane.b32.xlu0 %v7705, 102
  %v8981 = vpop.permute.xlu0 %8980
  %8982 = vrot.lane.b32.xlu0 %v7737, 102
  %v8983 = vpop.permute.xlu0 %8982
  %8984 = vrot.lane.b32.xlu0 %v7769, 102
  %v8985 = vpop.permute.xlu0 %8984
  %v8986 = vsel %vm3477, %v8971, %v8979
  %v8987 = vsel %vm3477, %v8973, %v8981
  %v8988 = vsel %vm3477, %v8975, %v8983
  %v8989 = vsel %vm3477, %v8977, %v8985
  %v8990 = vsel %vm3477, %v8963, %v8971
  %v8991 = vsel %vm3477, %v8965, %v8973
  %v8992 = vsel %vm3477, %v8967, %v8975
  %v8993 = vsel %vm3477, %v8969, %v8977
  %v8994 = vsel %vm3477, %v8955, %v8963
  %v8995 = vsel %vm3477, %v8957, %v8965
  %v8996 = vsel %vm3477, %v8959, %v8967
  %v8997 = vsel %vm3477, %v8961, %v8969
  %v8998 = vsel %vm3477, %v8947, %v8955
  %v8999 = vsel %vm3477, %v8949, %v8957
  %v9000 = vsel %vm3477, %v8951, %v8959
  %v9001 = vsel %vm3477, %v8953, %v8961
  %v9002 = vsel %vm3477, %v8939, %v8947
  %v9003 = vsel %vm3477, %v8941, %v8949
  %v9004 = vsel %vm3477, %v8943, %v8951
  %v9005 = vsel %vm3477, %v8945, %v8953
  %v9006 = vsel %vm3477, %v8931, %v8939
  %v9007 = vsel %vm3477, %v8933, %v8941
  %v9008 = vsel %vm3477, %v8935, %v8943
  %v9009 = vsel %vm3477, %v8937, %v8945
  %v9010 = vsel %vm3477, %v8923, %v8931
  %v9011 = vsel %vm3477, %v8925, %v8933
  %v9012 = vsel %vm3477, %v8927, %v8935
  %v9013 = vsel %vm3477, %v8929, %v8937
  %v9014 = vsel %vm3477, %v8915, %v8923
  %v9015 = vsel %vm3477, %v8917, %v8925
  %v9016 = vsel %vm3477, %v8919, %v8927
  %v9017 = vsel %vm3477, %v8921, %v8929
  %v9018 = vsel %vm3477, %v8907, %v8915
  %v9019 = vsel %vm3477, %v8909, %v8917
  %v9020 = vsel %vm3477, %v8911, %v8919
  %v9021 = vsel %vm3477, %v8913, %v8921
  %v9022 = vsel %vm3477, %v8899, %v8907
  %v9023 = vsel %vm3477, %v8901, %v8909
  %v9024 = vsel %vm3477, %v8903, %v8911
  %v9025 = vsel %vm3477, %v8905, %v8913
  %v9026 = vsel %vm3477, %v8891, %v8899
  %v9027 = vsel %vm3477, %v8893, %v8901
  %v9028 = vsel %vm3477, %v8895, %v8903
  %v9029 = vsel %vm3477, %v8897, %v8905
  %v9030 = vsel %vm3477, %v8883, %v8891
  %v9031 = vsel %vm3477, %v8885, %v8893
  %v9032 = vsel %vm3477, %v8887, %v8895
  %v9033 = vsel %vm3477, %v8889, %v8897
  %v9034 = vsel %vm3477, %v8875, %v8883
  %v9035 = vsel %vm3477, %v8877, %v8885
  %v9036 = vsel %vm3477, %v8879, %v8887
  %v9037 = vsel %vm3477, %v8881, %v8889
  %v9038 = vsel %vm3477, %v8867, %v8875
  %v9039 = vsel %vm3477, %v8869, %v8877
  %v9040 = vsel %vm3477, %v8871, %v8879
  %v9041 = vsel %vm3477, %v8873, %v8881
  %v9042 = vsel %vm3477, %v8859, %v8867
  %v9043 = vsel %vm3477, %v8861, %v8869
  %v9044 = vsel %vm3477, %v8863, %v8871
  %v9045 = vsel %vm3477, %v8865, %v8873
  %v9046 = vsel %vm3477, %v8851, %v8859
  %v9047 = vsel %vm3477, %v8853, %v8861
  %v9048 = vsel %vm3477, %v8855, %v8863
  %v9049 = vsel %vm3477, %v8857, %v8865
  %v9050 = vsel %vm3477, %v8843, %v8851
  %v9051 = vsel %vm3477, %v8845, %v8853
  %v9052 = vsel %vm3477, %v8847, %v8855
  %v9053 = vsel %vm3477, %v8849, %v8857
  %v9054 = vsel %vm3477, %v8835, %v8843
  %v9055 = vsel %vm3477, %v8837, %v8845
  %v9056 = vsel %vm3477, %v8839, %v8847
  %v9057 = vsel %vm3477, %v8841, %v8849
  %v9058 = vsel %vm3477, %v8827, %v8835
  %v9059 = vsel %vm3477, %v8829, %v8837
  %v9060 = vsel %vm3477, %v8831, %v8839
  %v9061 = vsel %vm3477, %v8833, %v8841
  %v9062 = vsel %vm3477, %v8819, %v8827
  %v9063 = vsel %vm3477, %v8821, %v8829
  %v9064 = vsel %vm3477, %v8823, %v8831
  %v9065 = vsel %vm3477, %v8825, %v8833
  %v9066 = vsel %vm3477, %v8811, %v8819
  %v9067 = vsel %vm3477, %v8813, %v8821
  %v9068 = vsel %vm3477, %v8815, %v8823
  %v9069 = vsel %vm3477, %v8817, %v8825
  %v9070 = vsel %vm3477, %v8803, %v8811
  %v9071 = vsel %vm3477, %v8805, %v8813
  %v9072 = vsel %vm3477, %v8807, %v8815
  %v9073 = vsel %vm3477, %v8809, %v8817
  %v9074 = vsel %vm3477, %v8795, %v8803
  %v9075 = vsel %vm3477, %v8797, %v8805
  %v9076 = vsel %vm3477, %v8799, %v8807
  %v9077 = vsel %vm3477, %v8801, %v8809
  %v9078 = vsel %vm3477, %v8787, %v8795
  %v9079 = vsel %vm3477, %v8789, %v8797
  %v9080 = vsel %vm3477, %v8791, %v8799
  %v9081 = vsel %vm3477, %v8793, %v8801
  %v9082 = vsel %vm3477, %v8779, %v8787
  %v9083 = vsel %vm3477, %v8781, %v8789
  %v9084 = vsel %vm3477, %v8783, %v8791
  %v9085 = vsel %vm3477, %v8785, %v8793
  %v9086 = vsel %vm3477, %v8771, %v8779
  %v9087 = vsel %vm3477, %v8773, %v8781
  %v9088 = vsel %vm3477, %v8775, %v8783
  %v9089 = vsel %vm3477, %v8777, %v8785
  %v9090 = vsel %vm3477, %v8763, %v8771
  %v9091 = vsel %vm3477, %v8765, %v8773
  %v9092 = vsel %vm3477, %v8767, %v8775
  %v9093 = vsel %vm3477, %v8769, %v8777
  %v9094 = vsel %vm3477, %v8755, %v8763
  %v9095 = vsel %vm3477, %v8757, %v8765
  %v9096 = vsel %vm3477, %v8759, %v8767
  %v9097 = vsel %vm3477, %v8761, %v8769
  %v9098 = vsel %vm3477, %v8747, %v8755
  %v9099 = vsel %vm3477, %v8749, %v8757
  %v9100 = vsel %vm3477, %v8751, %v8759
  %v9101 = vsel %vm3477, %v8753, %v8761
  %v9102 = vsel %vm3477, %v8739, %v8747
  %v9103 = vsel %vm3477, %v8741, %v8749
  %v9104 = vsel %vm3477, %v8743, %v8751
  %v9105 = vsel %vm3477, %v8745, %v8753
  %v9106 = vsel %vm3477, %v8731, %v8739
  %v9107 = vsel %vm3477, %v8733, %v8741
  %v9108 = vsel %vm3477, %v8735, %v8743
  %v9109 = vsel %vm3477, %v8737, %v8745
  %v9110 = vsel %vm3477, %v8979, %v8731
  %v9111 = vsel %vm3477, %v8981, %v8733
  %v9112 = vsel %vm3477, %v8983, %v8735
  %v9113 = vsel %vm3477, %v8985, %v8737
  %v9114 = vpack.c.bf16 %v9107, %v9106
  %v9115 = vpack.c.bf16 %v9103, %v9102
  %v9116 = vpack.c.bf16 %v9099, %v9098
  %v9117 = vpack.c.bf16 %v9095, %v9094
  %v9118 = vpack.c.bf16 %v9091, %v9090
  %v9119 = vpack.c.bf16 %v9087, %v9086
  %v9120 = vpack.c.bf16 %v9083, %v9082
  %v9121 = vpack.c.bf16 %v9079, %v9078
  %v9122 = vpack.c.bf16 %v9075, %v9074
  %v9123 = vpack.c.bf16 %v9071, %v9070
  %v9124 = vpack.c.bf16 %v9067, %v9066
  %v9125 = vpack.c.bf16 %v9063, %v9062
  %v9126 = vpack.c.bf16 %v9059, %v9058
  %v9127 = vpack.c.bf16 %v9055, %v9054
  %v9128 = vpack.c.bf16 %v9051, %v9050
  %v9129 = vpack.c.bf16 %v9047, %v9046
  %v9130 = vpack.c.bf16 %v9043, %v9042
  %v9131 = vpack.c.bf16 %v9039, %v9038
  %v9132 = vpack.c.bf16 %v9035, %v9034
  %v9133 = vpack.c.bf16 %v9031, %v9030
  %v9134 = vpack.c.bf16 %v9027, %v9026
  %v9135 = vpack.c.bf16 %v9023, %v9022
  %v9136 = vpack.c.bf16 %v9019, %v9018
  %v9137 = vpack.c.bf16 %v9015, %v9014
  %v9138 = vpack.c.bf16 %v9011, %v9010
  %v9139 = vpack.c.bf16 %v9007, %v9006
  %v9140 = vpack.c.bf16 %v9003, %v9002
  %v9141 = vpack.c.bf16 %v8999, %v8998
  %v9142 = vpack.c.bf16 %v8995, %v8994
  %v9143 = vpack.c.bf16 %v8991, %v8990
  %v9144 = vpack.c.bf16 %v8987, %v8986
  %v9145 = vpack.c.bf16 %v9111, %v9110
  %v9146 = vpack.c.bf16 %v9109, %v9108
  %v9147 = vpack.c.bf16 %v9105, %v9104
  %v9148 = vpack.c.bf16 %v9101, %v9100
  %v9149 = vpack.c.bf16 %v9097, %v9096
  %v9150 = vpack.c.bf16 %v9093, %v9092
  %v9151 = vpack.c.bf16 %v9089, %v9088
  %v9152 = vpack.c.bf16 %v9085, %v9084
  %v9153 = vpack.c.bf16 %v9081, %v9080
  %v9154 = vpack.c.bf16 %v9077, %v9076
  %v9155 = vpack.c.bf16 %v9073, %v9072
  %v9156 = vpack.c.bf16 %v9069, %v9068
  %v9157 = vpack.c.bf16 %v9065, %v9064
  %v9158 = vpack.c.bf16 %v9061, %v9060
  %v9159 = vpack.c.bf16 %v9057, %v9056
  %v9160 = vpack.c.bf16 %v9053, %v9052
  %v9161 = vpack.c.bf16 %v9049, %v9048
  %v9162 = vpack.c.bf16 %v9045, %v9044
  %v9163 = vpack.c.bf16 %v9041, %v9040
  %v9164 = vpack.c.bf16 %v9037, %v9036
  %v9165 = vpack.c.bf16 %v9033, %v9032
  %v9166 = vpack.c.bf16 %v9029, %v9028
  %v9167 = vpack.c.bf16 %v9025, %v9024
  %v9168 = vpack.c.bf16 %v9021, %v9020
  %v9169 = vpack.c.bf16 %v9017, %v9016
  %v9170 = vpack.c.bf16 %v9013, %v9012
  %v9171 = vpack.c.bf16 %v9009, %v9008
  %v9172 = vpack.c.bf16 %v9005, %v9004
  %v9173 = vpack.c.bf16 %v9001, %v9000
  %v9174 = vpack.c.bf16 %v8997, %v8996
  %v9175 = vpack.c.bf16 %v8993, %v8992
  %v9176 = vpack.c.bf16 %v8989, %v8988
  %v9177 = vpack.c.bf16 %v9113, %v9112
  %v9178 = vld [vmem:[%s6] sm:$0xf]
  %v9179 = vld [vmem:[%s6 + $0x4] sm:$0xf]
  %v9180 = vld [vmem:[%s6 + $0x8] sm:$0xf]
  %v9181 = vld [vmem:[%s6 + $0xc] sm:$0xf]
  %9182 = vset.pattern.permute.xlu0 3
  %9183 = vperm.xlu0 %9182, %v42
  %v9184 = vpop.permute.xlu0 %9183
  %9186 = vset.pattern.permute.xlu0 3
  %9187 = vperm.xlu0 %9186, %v43
  %v9188 = vpop.permute.xlu0 %9187
  %9190 = vset.pattern.permute.xlu0 3
  %9191 = vperm.xlu0 %9190, %v44
  %v9192 = vpop.permute.xlu0 %9191
  %9194 = vset.pattern.permute.xlu0 3
  %9195 = vperm.xlu0 %9194, %v45
  %v9196 = vpop.permute.xlu0 %9195
  %v9202 = vunpack.c.l.b16 %v9178
  %v9203 = vunpack.c.l.b16 %v9179
  %v9204 = vunpack.c.l.b16 %v9180
  %v9205 = vunpack.c.l.b16 %v9181
  %v9206 = vpack.c.b16 %v9203, %v9202
  %v9207 = vpack.c.b16 %v9205, %v9204
  %9210 = vmatprep.subr.bf16.mxu0 %v7771
  %9211 = vmatpush1.bf16.msra.mxu0 %v7770
  %9212 = vmatprep.subr.bf16.mxu0 %v7803
  %9213 = vmatpush1.bf16.msra.mxu0 %v7802
  %9214 = vmatprep.subr.bf16.mxu0 %v8219
  %9215 = vmatpush1.bf16.msra.mxu0 %v8218
  %9216 = vmatprep.subr.bf16.mxu0 %v8251
  %9217 = vmatpush1.bf16.msra.mxu0 %v8250
  %9218 = vmatprep.subr.bf16.mxu0 %v8667
  %9219 = vmatpush1.bf16.msra.mxu0 %v8666
  %9220 = vmatprep.subr.bf16.mxu0 %v8699
  %9221 = vmatpush1.bf16.msra.mxu0 %v8698
  %9222 = vmatprep.subr.bf16.mxu0 %v9115
  %9223 = vmatpush1.bf16.msra.mxu0 %v9114
  %9224 = vmatprep.subr.bf16.mxu0 %v9147
  %9225 = vmatpush1.bf16.msra.mxu0 %v9146
  %9226 = vmatprep.subr.bf16.mxu0 0
  %9227 = vmatpush1.bf16.msra.mxu0 0
  %9228 = vmatprep.subr.bf16.mxu0 0
  %9229 = vmatpush1.bf16.msra.mxu0 0
  %9230 = vmatprep.subr.bf16.mxu0 0
  %9231 = vmatpush1.bf16.msra.mxu0 0
  %9232 = vmatprep.subr.bf16.mxu0 0
  %9233 = vmatpush1.bf16.msra.mxu0 0
  %9234 = vmatprep.subr.bf16.mxu0 0
  %9235 = vmatpush1.bf16.msra.mxu0 0
  %9236 = vmatprep.subr.bf16.mxu0 0
  %9237 = vmatpush1.bf16.msra.mxu0 0
  %9238 = vmatprep.subr.bf16.mxu0 0
  %9239 = vmatpush1.bf16.msra.mxu0 0
  %9240 = vmatprep.subr.bf16.mxu0 0
  %9241 = vmatpush1.bf16.msra.mxu0 0
  %9242 = vmatprep.mubr.bf16.mxu0 0
  %9243 = vmatmul.mubr.bf16.gmra.mrb[0].mxu0 %v9206
  %v9244 = vpop.f32.mrb[0].mxu0
  %v9245 = vadd.f32 %v9184, %v9244
  %v9246 = vpop.f32.mrb[0].mxu0
  %v9247 = vadd.f32 %v9184, %v9246
  %v9248 = vpop.f32.mrb[0].mxu0
  %v9249 = vadd.f32 %v9188, %v9248
  %v9250 = vpop.f32.mrb[0].mxu0
  %v9251 = vadd.f32 %v9188, %v9250
  %9252 = vmatprep.mubr.bf16.mxu0 0
  %9253 = vmatmul.mubr.bf16.gmra.mrb[0].mxu0 %v9207
  %v9254 = vpop.f32.mrb[0].mxu0
  %v9255 = vadd.f32 %v9192, %v9254
  %v9256 = vpop.f32.mrb[0].mxu0
  %v9257 = vadd.f32 %v9192, %v9256
  %v9258 = vpop.f32.mrb[0].mxu0
  %v9259 = vadd.f32 %v9196, %v9258
  %v9260 = vpop.f32.mrb[0].mxu0
  %v9261 = vadd.f32 %v9196, %v9260
  %9262 = vdwg.mxu0
  %9263 = vmatprep.subr.bf16.mxu0 %v7773
  %9264 = vmatpush1.bf16.msra.mxu0 %v7772
  %9265 = vmatprep.subr.bf16.mxu0 %v7805
  %9266 = vmatpush1.bf16.msra.mxu0 %v7804
  %9267 = vmatprep.subr.bf16.mxu0 %v8221
  %9268 = vmatpush1.bf16.msra.mxu0 %v8220
  %9269 = vmatprep.subr.bf16.mxu0 %v8253
  %9270 = vmatpush1.bf16.msra.mxu0 %v8252
  %9271 = vmatprep.subr.bf16.mxu0 %v8669
  %9272 = vmatpush1.bf16.msra.mxu0 %v8668
  %9273 = vmatprep.subr.bf16.mxu0 %v8701
  %9274 = vmatpush1.bf16.msra.mxu0 %v8700
  %9275 = vmatprep.subr.bf16.mxu0 %v9117
  %9276 = vmatpush1.bf16.msra.mxu0 %v9116
  %9277 = vmatprep.subr.bf16.mxu0 %v9149
  %9278 = vmatpush1.bf16.msra.mxu0 %v9148
  %9279 = vmatprep.subr.bf16.mxu0 0
  %9280 = vmatpush1.bf16.msra.mxu0 0
  %9281 = vmatprep.subr.bf16.mxu0 0
  %9282 = vmatpush1.bf16.msra.mxu0 0
  %9283 = vmatprep.subr.bf16.mxu0 0
  %9284 = vmatpush1.bf16.msra.mxu0 0
  %9285 = vmatprep.subr.bf16.mxu0 0
  %9286 = vmatpush1.bf16.msra.mxu0 0
  %9287 = vmatprep.subr.bf16.mxu0 0
  %9288 = vmatpush1.bf16.msra.mxu0 0
  %9289 = vmatprep.subr.bf16.mxu0 0
  %9290 = vmatpush1.bf16.msra.mxu0 0
  %9291 = vmatprep.subr.bf16.mxu0 0
  %9292 = vmatpush1.bf16.msra.mxu0 0
  %9293 = vmatprep.subr.bf16.mxu0 0
  %9294 = vmatpush1.bf16.msra.mxu0 0
  %9295 = vmatprep.mubr.bf16.mxu0 0
  %9296 = vmatmul.mubr.bf16.gmra.mrb[0].mxu0 %v9206
  %v9297 = vpop.f32.mrb[0].mxu0
  %v9298 = vadd.f32 %v9184, %v9297
  %v9299 = vpop.f32.mrb[0].mxu0
  %v9300 = vadd.f32 %v9184, %v9299
  %v9301 = vpop.f32.mrb[0].mxu0
  %v9302 = vadd.f32 %v9188, %v9301
  %v9303 = vpop.f32.mrb[0].mxu0
  %v9304 = vadd.f32 %v9188, %v9303
  %9305 = vmatprep.mubr.bf16.mxu0 0
  %9306 = vmatmul.mubr.bf16.gmra.mrb[0].mxu0 %v9207
  %v9307 = vpop.f32.mrb[0].mxu0
  %v9308 = vadd.f32 %v9192, %v9307
  %v9309 = vpop.f32.mrb[0].mxu0
  %v9310 = vadd.f32 %v9192, %v9309
  %v9311 = vpop.f32.mrb[0].mxu0
  %v9312 = vadd.f32 %v9196, %v9311
  %v9313 = vpop.f32.mrb[0].mxu0
  %v9314 = vadd.f32 %v9196, %v9313
  %9315 = vdwg.mxu0
  %9316 = vmatprep.subr.bf16.mxu0 %v7775
  %9317 = vmatpush1.bf16.msra.mxu0 %v7774
  %9318 = vmatprep.subr.bf16.mxu0 %v7807
  %9319 = vmatpush1.bf16.msra.mxu0 %v7806
  %9320 = vmatprep.subr.bf16.mxu0 %v8223
  %9321 = vmatpush1.bf16.msra.mxu0 %v8222
  %9322 = vmatprep.subr.bf16.mxu0 %v8255
  %9323 = vmatpush1.bf16.msra.mxu0 %v8254
  %9324 = vmatprep.subr.bf16.mxu0 %v8671
  %9325 = vmatpush1.bf16.msra.mxu0 %v8670
  %9326 = vmatprep.subr.bf16.mxu0 %v8703
  %9327 = vmatpush1.bf16.msra.mxu0 %v8702
  %9328 = vmatprep.subr.bf16.mxu0 %v9119
  %9329 = vmatpush1.bf16.msra.mxu0 %v9118
  %9330 = vmatprep.subr.bf16.mxu0 %v9151
  %9331 = vmatpush1.bf16.msra.mxu0 %v9150
  %9332 = vmatprep.subr.bf16.mxu0 0
  %9333 = vmatpush1.bf16.msra.mxu0 0
  %9334 = vmatprep.subr.bf16.mxu0 0
  %9335 = vmatpush1.bf16.msra.mxu0 0
  %9336 = vmatprep.subr.bf16.mxu0 0
  %9337 = vmatpush1.bf16.msra.mxu0 0
  %9338 = vmatprep.subr.bf16.mxu0 0
  %9339 = vmatpush1.bf16.msra.mxu0 0
  %9340 = vmatprep.subr.bf16.mxu0 0
  %9341 = vmatpush1.bf16.msra.mxu0 0
  %9342 = vmatprep.subr.bf16.mxu0 0
  %9343 = vmatpush1.bf16.msra.mxu0 0
  %9344 = vmatprep.subr.bf16.mxu0 0
  %9345 = vmatpush1.bf16.msra.mxu0 0
  %9346 = vmatprep.subr.bf16.mxu0 0
  %9347 = vmatpush1.bf16.msra.mxu0 0
  %9348 = vmatprep.mubr.bf16.mxu0 0
  %9349 = vmatmul.mubr.bf16.gmra.mrb[0].mxu0 %v9206
  %v9350 = vpop.f32.mrb[0].mxu0
  %v9351 = vadd.f32 %v9184, %v9350
  %v9352 = vpop.f32.mrb[0].mxu0
  %v9353 = vadd.f32 %v9184, %v9352
  %v9354 = vpop.f32.mrb[0].mxu0
  %v9355 = vadd.f32 %v9188, %v9354
  %v9356 = vpop.f32.mrb[0].mxu0
  %v9357 = vadd.f32 %v9188, %v9356
  %9358 = vmatprep.mubr.bf16.mxu0 0
  %9359 = vmatmul.mubr.bf16.gmra.mrb[0].mxu0 %v9207
  %v9360 = vpop.f32.mrb[0].mxu0
  %v9361 = vadd.f32 %v9192, %v9360
  %v9362 = vpop.f32.mrb[0].mxu0
  %v9363 = vadd.f32 %v9192, %v9362
  %v9364 = vpop.f32.mrb[0].mxu0
  %v9365 = vadd.f32 %v9196, %v9364
  %v9366 = vpop.f32.mrb[0].mxu0
  %v9367 = vadd.f32 %v9196, %v9366
  %9368 = vdwg.mxu0
  %9369 = vmatprep.subr.bf16.mxu0 %v7777
  %9370 = vmatpush1.bf16.msra.mxu0 %v7776
  %9371 = vmatprep.subr.bf16.mxu0 %v7809
  %9372 = vmatpush1.bf16.msra.mxu0 %v7808
  %9373 = vmatprep.subr.bf16.mxu0 %v8225
  %9374 = vmatpush1.bf16.msra.mxu0 %v8224
  %9375 = vmatprep.subr.bf16.mxu0 %v8257
  %9376 = vmatpush1.bf16.msra.mxu0 %v8256
  %9377 = vmatprep.subr.bf16.mxu0 %v8673
  %9378 = vmatpush1.bf16.msra.mxu0 %v8672
  %9379 = vmatprep.subr.bf16.mxu0 %v8705
  %9380 = vmatpush1.bf16.msra.mxu0 %v8704
  %9381 = vmatprep.subr.bf16.mxu0 %v9121
  %9382 = vmatpush1.bf16.msra.mxu0 %v9120
  %9383 = vmatprep.subr.bf16.mxu0 %v9153
  %9384 = vmatpush1.bf16.msra.mxu0 %v9152
  %9385 = vmatprep.subr.bf16.mxu0 0
  %9386 = vmatpush1.bf16.msra.mxu0 0
  %9387 = vmatprep.subr.bf16.mxu0 0
  %9388 = vmatpush1.bf16.msra.mxu0 0
  %9389 = vmatprep.subr.bf16.mxu0 0
  %9390 = vmatpush1.bf16.msra.mxu0 0
  %9391 = vmatprep.subr.bf16.mxu0 0
  %9392 = vmatpush1.bf16.msra.mxu0 0
  %9393 = vmatprep.subr.bf16.mxu0 0
  %9394 = vmatpush1.bf16.msra.mxu0 0
  %9395 = vmatprep.subr.bf16.mxu0 0
  %9396 = vmatpush1.bf16.msra.mxu0 0
  %9397 = vmatprep.subr.bf16.mxu0 0
  %9398 = vmatpush1.bf16.msra.mxu0 0
  %9399 = vmatprep.subr.bf16.mxu0 0
  %9400 = vmatpush1.bf16.msra.mxu0 0
  %9401 = vmatprep.mubr.bf16.mxu0 0
  %9402 = vmatmul.mubr.bf16.gmra.mrb[0].mxu0 %v9206
  %v9403 = vpop.f32.mrb[0].mxu0
  %v9404 = vadd.f32 %v9184, %v9403
  %v9405 = vpop.f32.mrb[0].mxu0
  %v9406 = vadd.f32 %v9184, %v9405
  %v9407 = vpop.f32.mrb[0].mxu0
  %v9408 = vadd.f32 %v9188, %v9407
  %v9409 = vpop.f32.mrb[0].mxu0
  %v9410 = vadd.f32 %v9188, %v9409
  %9411 = vmatprep.mubr.bf16.mxu0 0
  %9412 = vmatmul.mubr.bf16.gmra.mrb[0].mxu0 %v9207
  %v9413 = vpop.f32.mrb[0].mxu0
  %v9414 = vadd.f32 %v9192, %v9413
  %v9415 = vpop.f32.mrb[0].mxu0
  %v9416 = vadd.f32 %v9192, %v9415
  %v9417 = vpop.f32.mrb[0].mxu0
  %v9418 = vadd.f32 %v9196, %v9417
  %v9419 = vpop.f32.mrb[0].mxu0
  %v9420 = vadd.f32 %v9196, %v9419
  %9421 = vdwg.mxu0
  %9422 = vmatprep.subr.bf16.mxu0 %v7779
  %9423 = vmatpush1.bf16.msra.mxu0 %v7778
  %9424 = vmatprep.subr.bf16.mxu0 %v7811
  %9425 = vmatpush1.bf16.msra.mxu0 %v7810
  %9426 = vmatprep.subr.bf16.mxu0 %v8227
  %9427 = vmatpush1.bf16.msra.mxu0 %v8226
  %9428 = vmatprep.subr.bf16.mxu0 %v8259
  %9429 = vmatpush1.bf16.msra.mxu0 %v8258
  %9430 = vmatprep.subr.bf16.mxu0 %v8675
  %9431 = vmatpush1.bf16.msra.mxu0 %v8674
  %9432 = vmatprep.subr.bf16.mxu0 %v8707
  %9433 = vmatpush1.bf16.msra.mxu0 %v8706
  %9434 = vmatprep.subr.bf16.mxu0 %v9123
  %9435 = vmatpush1.bf16.msra.mxu0 %v9122
  %9436 = vmatprep.subr.bf16.mxu0 %v9155
  %9437 = vmatpush1.bf16.msra.mxu0 %v9154
  %9438 = vmatprep.subr.bf16.mxu0 0
  %9439 = vmatpush1.bf16.msra.mxu0 0
  %9440 = vmatprep.subr.bf16.mxu0 0
  %9441 = vmatpush1.bf16.msra.mxu0 0
  %9442 = vmatprep.subr.bf16.mxu0 0
  %9443 = vmatpush1.bf16.msra.mxu0 0
  %9444 = vmatprep.subr.bf16.mxu0 0
  %9445 = vmatpush1.bf16.msra.mxu0 0
  %9446 = vmatprep.subr.bf16.mxu0 0
  %9447 = vmatpush1.bf16.msra.mxu0 0
  %9448 = vmatprep.subr.bf16.mxu0 0
  %9449 = vmatpush1.bf16.msra.mxu0 0
  %9450 = vmatprep.subr.bf16.mxu0 0
  %9451 = vmatpush1.bf16.msra.mxu0 0
  %9452 = vmatprep.subr.bf16.mxu0 0
  %9453 = vmatpush1.bf16.msra.mxu0 0
  %9454 = vmatprep.mubr.bf16.mxu0 0
  %9455 = vmatmul.mubr.bf16.gmra.mrb[0].mxu0 %v9206
  %v9456 = vpop.f32.mrb[0].mxu0
  %v9457 = vadd.f32 %v9184, %v9456
  %v9458 = vpop.f32.mrb[0].mxu0
  %v9459 = vadd.f32 %v9184, %v9458
  %v9460 = vpop.f32.mrb[0].mxu0
  %v9461 = vadd.f32 %v9188, %v9460
  %v9462 = vpop.f32.mrb[0].mxu0
  %v9463 = vadd.f32 %v9188, %v9462
  %9464 = vmatprep.mubr.bf16.mxu0 0
  %9465 = vmatmul.mubr.bf16.gmra.mrb[0].mxu0 %v9207
  %v9466 = vpop.f32.mrb[0].mxu0
  %v9467 = vadd.f32 %v9192, %v9466
  %v9468 = vpop.f32.mrb[0].mxu0
  %v9469 = vadd.f32 %v9192, %v9468
  %v9470 = vpop.f32.mrb[0].mxu0
  %v9471 = vadd.f32 %v9196, %v9470
  %v9472 = vpop.f32.mrb[0].mxu0
  %v9473 = vadd.f32 %v9196, %v9472
  %9474 = vdwg.mxu0
  %9475 = vmatprep.subr.bf16.mxu0 %v7781
  %9476 = vmatpush1.bf16.msra.mxu0 %v7780
  %9477 = vmatprep.subr.bf16.mxu0 %v7813
  %9478 = vmatpush1.bf16.msra.mxu0 %v7812
  %9479 = vmatprep.subr.bf16.mxu0 %v8229
  %9480 = vmatpush1.bf16.msra.mxu0 %v8228
  %9481 = vmatprep.subr.bf16.mxu0 %v8261
  %9482 = vmatpush1.bf16.msra.mxu0 %v8260
  %9483 = vmatprep.subr.bf16.mxu0 %v8677
  %9484 = vmatpush1.bf16.msra.mxu0 %v8676
  %9485 = vmatprep.subr.bf16.mxu0 %v8709
  %9486 = vmatpush1.bf16.msra.mxu0 %v8708
  %9487 = vmatprep.subr.bf16.mxu0 %v9125
  %9488 = vmatpush1.bf16.msra.mxu0 %v9124
  %9489 = vmatprep.subr.bf16.mxu0 %v9157
  %9490 = vmatpush1.bf16.msra.mxu0 %v9156
  %9491 = vmatprep.subr.bf16.mxu0 0
  %9492 = vmatpush1.bf16.msra.mxu0 0
  %9493 = vmatprep.subr.bf16.mxu0 0
  %9494 = vmatpush1.bf16.msra.mxu0 0
  %9495 = vmatprep.subr.bf16.mxu0 0
  %9496 = vmatpush1.bf16.msra.mxu0 0
  %9497 = vmatprep.subr.bf16.mxu0 0
  %9498 = vmatpush1.bf16.msra.mxu0 0
  %9499 = vmatprep.subr.bf16.mxu0 0
  %9500 = vmatpush1.bf16.msra.mxu0 0
  %9501 = vmatprep.subr.bf16.mxu0 0
  %9502 = vmatpush1.bf16.msra.mxu0 0
  %9503 = vmatprep.subr.bf16.mxu0 0
  %9504 = vmatpush1.bf16.msra.mxu0 0
  %9505 = vmatprep.subr.bf16.mxu0 0
  %9506 = vmatpush1.bf16.msra.mxu0 0
  %9507 = vmatprep.mubr.bf16.mxu0 0
  %9508 = vmatmul.mubr.bf16.gmra.mrb[0].mxu0 %v9206
  %v9509 = vpop.f32.mrb[0].mxu0
  %v9510 = vadd.f32 %v9184, %v9509
  %v9511 = vpop.f32.mrb[0].mxu0
  %v9512 = vadd.f32 %v9184, %v9511
  %v9513 = vpop.f32.mrb[0].mxu0
  %v9514 = vadd.f32 %v9188, %v9513
  %v9515 = vpop.f32.mrb[0].mxu0
  %v9516 = vadd.f32 %v9188, %v9515
  %9517 = vmatprep.mubr.bf16.mxu0 0
  %9518 = vmatmul.mubr.bf16.gmra.mrb[0].mxu0 %v9207
  %v9519 = vpop.f32.mrb[0].mxu0
  %v9520 = vadd.f32 %v9192, %v9519
  %v9521 = vpop.f32.mrb[0].mxu0
  %v9522 = vadd.f32 %v9192, %v9521
  %v9523 = vpop.f32.mrb[0].mxu0
  %v9524 = vadd.f32 %v9196, %v9523
  %v9525 = vpop.f32.mrb[0].mxu0
  %v9526 = vadd.f32 %v9196, %v9525
  %9527 = vdwg.mxu0
  %9528 = vmatprep.subr.bf16.mxu0 %v7783
  %9529 = vmatpush1.bf16.msra.mxu0 %v7782
  %9530 = vmatprep.subr.bf16.mxu0 %v7815
  %9531 = vmatpush1.bf16.msra.mxu0 %v7814
  %9532 = vmatprep.subr.bf16.mxu0 %v8231
  %9533 = vmatpush1.bf16.msra.mxu0 %v8230
  %9534 = vmatprep.subr.bf16.mxu0 %v8263
  %9535 = vmatpush1.bf16.msra.mxu0 %v8262
  %9536 = vmatprep.subr.bf16.mxu0 %v8679
  %9537 = vmatpush1.bf16.msra.mxu0 %v8678
  %9538 = vmatprep.subr.bf16.mxu0 %v8711
  %9539 = vmatpush1.bf16.msra.mxu0 %v8710
  %9540 = vmatprep.subr.bf16.mxu0 %v9127
  %9541 = vmatpush1.bf16.msra.mxu0 %v9126
  %9542 = vmatprep.subr.bf16.mxu0 %v9159
  %9543 = vmatpush1.bf16.msra.mxu0 %v9158
  %9544 = vmatprep.subr.bf16.mxu0 0
  %9545 = vmatpush1.bf16.msra.mxu0 0
  %9546 = vmatprep.subr.bf16.mxu0 0
  %9547 = vmatpush1.bf16.msra.mxu0 0
  %9548 = vmatprep.subr.bf16.mxu0 0
  %9549 = vmatpush1.bf16.msra.mxu0 0
  %9550 = vmatprep.subr.bf16.mxu0 0
  %9551 = vmatpush1.bf16.msra.mxu0 0
  %9552 = vmatprep.subr.bf16.mxu0 0
  %9553 = vmatpush1.bf16.msra.mxu0 0
  %9554 = vmatprep.subr.bf16.mxu0 0
  %9555 = vmatpush1.bf16.msra.mxu0 0
  %9556 = vmatprep.subr.bf16.mxu0 0
  %9557 = vmatpush1.bf16.msra.mxu0 0
  %9558 = vmatprep.subr.bf16.mxu0 0
  %9559 = vmatpush1.bf16.msra.mxu0 0
  %9560 = vmatprep.mubr.bf16.mxu0 0
  %9561 = vmatmul.mubr.bf16.gmra.mrb[0].mxu0 %v9206
  %v9562 = vpop.f32.mrb[0].mxu0
  %v9563 = vadd.f32 %v9184, %v9562
  %v9564 = vpop.f32.mrb[0].mxu0
  %v9565 = vadd.f32 %v9184, %v9564
  %v9566 = vpop.f32.mrb[0].mxu0
  %v9567 = vadd.f32 %v9188, %v9566
  %v9568 = vpop.f32.mrb[0].mxu0
  %v9569 = vadd.f32 %v9188, %v9568
  %9570 = vmatprep.mubr.bf16.mxu0 0
  %9571 = vmatmul.mubr.bf16.gmra.mrb[0].mxu0 %v9207
  %v9572 = vpop.f32.mrb[0].mxu0
  %v9573 = vadd.f32 %v9192, %v9572
  %v9574 = vpop.f32.mrb[0].mxu0
  %v9575 = vadd.f32 %v9192, %v9574
  %v9576 = vpop.f32.mrb[0].mxu0
  %v9577 = vadd.f32 %v9196, %v9576
  %v9578 = vpop.f32.mrb[0].mxu0
  %v9579 = vadd.f32 %v9196, %v9578
  %9580 = vdwg.mxu0
  %9581 = vmatprep.subr.bf16.mxu0 %v7785
  %9582 = vmatpush1.bf16.msra.mxu0 %v7784
  %9583 = vmatprep.subr.bf16.mxu0 %v7817
  %9584 = vmatpush1.bf16.msra.mxu0 %v7816
  %9585 = vmatprep.subr.bf16.mxu0 %v8233
  %9586 = vmatpush1.bf16.msra.mxu0 %v8232
  %9587 = vmatprep.subr.bf16.mxu0 %v8265
  %9588 = vmatpush1.bf16.msra.mxu0 %v8264
  %9589 = vmatprep.subr.bf16.mxu0 %v8681
  %9590 = vmatpush1.bf16.msra.mxu0 %v8680
  %9591 = vmatprep.subr.bf16.mxu0 %v8713
  %9592 = vmatpush1.bf16.msra.mxu0 %v8712
  %9593 = vmatprep.subr.bf16.mxu0 %v9129
  %9594 = vmatpush1.bf16.msra.mxu0 %v9128
  %9595 = vmatprep.subr.bf16.mxu0 %v9161
  %9596 = vmatpush1.bf16.msra.mxu0 %v9160
  %9597 = vmatprep.subr.bf16.mxu0 0
  %9598 = vmatpush1.bf16.msra.mxu0 0
  %9599 = vmatprep.subr.bf16.mxu0 0
  %9600 = vmatpush1.bf16.msra.mxu0 0
  %9601 = vmatprep.subr.bf16.mxu0 0
  %9602 = vmatpush1.bf16.msra.mxu0 0
  %9603 = vmatprep.subr.bf16.mxu0 0
  %9604 = vmatpush1.bf16.msra.mxu0 0
  %9605 = vmatprep.subr.bf16.mxu0 0
  %9606 = vmatpush1.bf16.msra.mxu0 0
  %9607 = vmatprep.subr.bf16.mxu0 0
  %9608 = vmatpush1.bf16.msra.mxu0 0
  %9609 = vmatprep.subr.bf16.mxu0 0
  %9610 = vmatpush1.bf16.msra.mxu0 0
  %9611 = vmatprep.subr.bf16.mxu0 0
  %9612 = vmatpush1.bf16.msra.mxu0 0
  %9613 = vmatprep.mubr.bf16.mxu0 0
  %9614 = vmatmul.mubr.bf16.gmra.mrb[0].mxu0 %v9206
  %v9615 = vpop.f32.mrb[0].mxu0
  %v9616 = vadd.f32 %v9184, %v9615
  %v9617 = vpop.f32.mrb[0].mxu0
  %v9618 = vadd.f32 %v9184, %v9617
  %v9619 = vpop.f32.mrb[0].mxu0
  %v9620 = vadd.f32 %v9188, %v9619
  %v9621 = vpop.f32.mrb[0].mxu0
  %v9622 = vadd.f32 %v9188, %v9621
  %9623 = vmatprep.mubr.bf16.mxu0 0
  %9624 = vmatmul.mubr.bf16.gmra.mrb[0].mxu0 %v9207
  %v9625 = vpop.f32.mrb[0].mxu0
  %v9626 = vadd.f32 %v9192, %v9625
  %v9627 = vpop.f32.mrb[0].mxu0
  %v9628 = vadd.f32 %v9192, %v9627
  %v9629 = vpop.f32.mrb[0].mxu0
  %v9630 = vadd.f32 %v9196, %v9629
  %v9631 = vpop.f32.mrb[0].mxu0
  %v9632 = vadd.f32 %v9196, %v9631
  %9633 = vdwg.mxu0
  %9634 = vmatprep.subr.bf16.mxu0 %v7787
  %9635 = vmatpush1.bf16.msra.mxu0 %v7786
  %9636 = vmatprep.subr.bf16.mxu0 %v7819
  %9637 = vmatpush1.bf16.msra.mxu0 %v7818
  %9638 = vmatprep.subr.bf16.mxu0 %v8235
  %9639 = vmatpush1.bf16.msra.mxu0 %v8234
  %9640 = vmatprep.subr.bf16.mxu0 %v8267
  %9641 = vmatpush1.bf16.msra.mxu0 %v8266
  %9642 = vmatprep.subr.bf16.mxu0 %v8683
  %9643 = vmatpush1.bf16.msra.mxu0 %v8682
  %9644 = vmatprep.subr.bf16.mxu0 %v8715
  %9645 = vmatpush1.bf16.msra.mxu0 %v8714
  %9646 = vmatprep.subr.bf16.mxu0 %v9131
  %9647 = vmatpush1.bf16.msra.mxu0 %v9130
  %9648 = vmatprep.subr.bf16.mxu0 %v9163
  %9649 = vmatpush1.bf16.msra.mxu0 %v9162
  %9650 = vmatprep.subr.bf16.mxu0 0
  %9651 = vmatpush1.bf16.msra.mxu0 0
  %9652 = vmatprep.subr.bf16.mxu0 0
  %9653 = vmatpush1.bf16.msra.mxu0 0
  %9654 = vmatprep.subr.bf16.mxu0 0
  %9655 = vmatpush1.bf16.msra.mxu0 0
  %9656 = vmatprep.subr.bf16.mxu0 0
  %9657 = vmatpush1.bf16.msra.mxu0 0
  %9658 = vmatprep.subr.bf16.mxu0 0
  %9659 = vmatpush1.bf16.msra.mxu0 0
  %9660 = vmatprep.subr.bf16.mxu0 0
  %9661 = vmatpush1.bf16.msra.mxu0 0
  %9662 = vmatprep.subr.bf16.mxu0 0
  %9663 = vmatpush1.bf16.msra.mxu0 0
  %9664 = vmatprep.subr.bf16.mxu0 0
  %9665 = vmatpush1.bf16.msra.mxu0 0
  %9666 = vmatprep.mubr.bf16.mxu0 0
  %9667 = vmatmul.mubr.bf16.gmra.mrb[0].mxu0 %v9206
  %v9668 = vpop.f32.mrb[0].mxu0
  %v9669 = vadd.f32 %v9184, %v9668
  %v9670 = vpop.f32.mrb[0].mxu0
  %v9671 = vadd.f32 %v9184, %v9670
  %v9672 = vpop.f32.mrb[0].mxu0
  %v9673 = vadd.f32 %v9188, %v9672
  %v9674 = vpop.f32.mrb[0].mxu0
  %v9675 = vadd.f32 %v9188, %v9674
  %9676 = vmatprep.mubr.bf16.mxu0 0
  %9677 = vmatmul.mubr.bf16.gmra.mrb[0].mxu0 %v9207
  %v9678 = vpop.f32.mrb[0].mxu0
  %v9679 = vadd.f32 %v9192, %v9678
  %v9680 = vpop.f32.mrb[0].mxu0
  %v9681 = vadd.f32 %v9192, %v9680
  %v9682 = vpop.f32.mrb[0].mxu0
  %v9683 = vadd.f32 %v9196, %v9682
  %v9684 = vpop.f32.mrb[0].mxu0
  %v9685 = vadd.f32 %v9196, %v9684
  %9686 = vdwg.mxu0
  %9687 = vmatprep.subr.bf16.mxu0 %v7789
  %9688 = vmatpush1.bf16.msra.mxu0 %v7788
  %9689 = vmatprep.subr.bf16.mxu0 %v7821
  %9690 = vmatpush1.bf16.msra.mxu0 %v7820
  %9691 = vmatprep.subr.bf16.mxu0 %v8237
  %9692 = vmatpush1.bf16.msra.mxu0 %v8236
  %9693 = vmatprep.subr.bf16.mxu0 %v8269
  %9694 = vmatpush1.bf16.msra.mxu0 %v8268
  %9695 = vmatprep.subr.bf16.mxu0 %v8685
  %9696 = vmatpush1.bf16.msra.mxu0 %v8684
  %9697 = vmatprep.subr.bf16.mxu0 %v8717
  %9698 = vmatpush1.bf16.msra.mxu0 %v8716
  %9699 = vmatprep.subr.bf16.mxu0 %v9133
  %9700 = vmatpush1.bf16.msra.mxu0 %v9132
  %9701 = vmatprep.subr.bf16.mxu0 %v9165
  %9702 = vmatpush1.bf16.msra.mxu0 %v9164
  %9703 = vmatprep.subr.bf16.mxu0 0
  %9704 = vmatpush1.bf16.msra.mxu0 0
  %9705 = vmatprep.subr.bf16.mxu0 0
  %9706 = vmatpush1.bf16.msra.mxu0 0
  %9707 = vmatprep.subr.bf16.mxu0 0
  %9708 = vmatpush1.bf16.msra.mxu0 0
  %9709 = vmatprep.subr.bf16.mxu0 0
  %9710 = vmatpush1.bf16.msra.mxu0 0
  %9711 = vmatprep.subr.bf16.mxu0 0
  %9712 = vmatpush1.bf16.msra.mxu0 0
  %9713 = vmatprep.subr.bf16.mxu0 0
  %9714 = vmatpush1.bf16.msra.mxu0 0
  %9715 = vmatprep.subr.bf16.mxu0 0
  %9716 = vmatpush1.bf16.msra.mxu0 0
  %9717 = vmatprep.subr.bf16.mxu0 0
  %9718 = vmatpush1.bf16.msra.mxu0 0
  %9719 = vmatprep.mubr.bf16.mxu0 0
  %9720 = vmatmul.mubr.bf16.gmra.mrb[0].mxu0 %v9206
  %v9721 = vpop.f32.mrb[0].mxu0
  %v9722 = vadd.f32 %v9184, %v9721
  %v9723 = vpop.f32.mrb[0].mxu0
  %v9724 = vadd.f32 %v9184, %v9723
  %v9725 = vpop.f32.mrb[0].mxu0
  %v9726 = vadd.f32 %v9188, %v9725
  %v9727 = vpop.f32.mrb[0].mxu0
  %v9728 = vadd.f32 %v9188, %v9727
  %9729 = vmatprep.mubr.bf16.mxu0 0
  %9730 = vmatmul.mubr.bf16.gmra.mrb[0].mxu0 %v9207
  %v9731 = vpop.f32.mrb[0].mxu0
  %v9732 = vadd.f32 %v9192, %v9731
  %v9733 = vpop.f32.mrb[0].mxu0
  %v9734 = vadd.f32 %v9192, %v9733
  %v9735 = vpop.f32.mrb[0].mxu0
  %v9736 = vadd.f32 %v9196, %v9735
  %v9737 = vpop.f32.mrb[0].mxu0
  %v9738 = vadd.f32 %v9196, %v9737
  %9739 = vdwg.mxu0
  %9740 = vmatprep.subr.bf16.mxu0 %v7791
  %9741 = vmatpush1.bf16.msra.mxu0 %v7790
  %9742 = vmatprep.subr.bf16.mxu0 %v7823
  %9743 = vmatpush1.bf16.msra.mxu0 %v7822
  %9744 = vmatprep.subr.bf16.mxu0 %v8239
  %9745 = vmatpush1.bf16.msra.mxu0 %v8238
  %9746 = vmatprep.subr.bf16.mxu0 %v8271
  %9747 = vmatpush1.bf16.msra.mxu0 %v8270
  %9748 = vmatprep.subr.bf16.mxu0 %v8687
  %9749 = vmatpush1.bf16.msra.mxu0 %v8686
  %9750 = vmatprep.subr.bf16.mxu0 %v8719
  %9751 = vmatpush1.bf16.msra.mxu0 %v8718
  %9752 = vmatprep.subr.bf16.mxu0 %v9135
  %9753 = vmatpush1.bf16.msra.mxu0 %v9134
  %9754 = vmatprep.subr.bf16.mxu0 %v9167
  %9755 = vmatpush1.bf16.msra.mxu0 %v9166
  %9756 = vmatprep.subr.bf16.mxu0 0
  %9757 = vmatpush1.bf16.msra.mxu0 0
  %9758 = vmatprep.subr.bf16.mxu0 0
  %9759 = vmatpush1.bf16.msra.mxu0 0
  %9760 = vmatprep.subr.bf16.mxu0 0
  %9761 = vmatpush1.bf16.msra.mxu0 0
  %9762 = vmatprep.subr.bf16.mxu0 0
  %9763 = vmatpush1.bf16.msra.mxu0 0
  %9764 = vmatprep.subr.bf16.mxu0 0
  %9765 = vmatpush1.bf16.msra.mxu0 0
  %9766 = vmatprep.subr.bf16.mxu0 0
  %9767 = vmatpush1.bf16.msra.mxu0 0
  %9768 = vmatprep.subr.bf16.mxu0 0
  %9769 = vmatpush1.bf16.msra.mxu0 0
  %9770 = vmatprep.subr.bf16.mxu0 0
  %9771 = vmatpush1.bf16.msra.mxu0 0
  %9772 = vmatprep.mubr.bf16.mxu0 0
  %9773 = vmatmul.mubr.bf16.gmra.mrb[0].mxu0 %v9206
  %v9774 = vpop.f32.mrb[0].mxu0
  %v9775 = vadd.f32 %v9184, %v9774
  %v9776 = vpop.f32.mrb[0].mxu0
  %v9777 = vadd.f32 %v9184, %v9776
  %v9778 = vpop.f32.mrb[0].mxu0
  %v9779 = vadd.f32 %v9188, %v9778
  %v9780 = vpop.f32.mrb[0].mxu0
  %v9781 = vadd.f32 %v9188, %v9780
  %9782 = vmatprep.mubr.bf16.mxu0 0
  %9783 = vmatmul.mubr.bf16.gmra.mrb[0].mxu0 %v9207
  %v9784 = vpop.f32.mrb[0].mxu0
  %v9785 = vadd.f32 %v9192, %v9784
  %v9786 = vpop.f32.mrb[0].mxu0
  %v9787 = vadd.f32 %v9192, %v9786
  %v9788 = vpop.f32.mrb[0].mxu0
  %v9789 = vadd.f32 %v9196, %v9788
  %v9790 = vpop.f32.mrb[0].mxu0
  %v9791 = vadd.f32 %v9196, %v9790
  %9792 = vdwg.mxu0
  %9793 = vmatprep.subr.bf16.mxu0 %v7793
  %9794 = vmatpush1.bf16.msra.mxu0 %v7792
  %9795 = vmatprep.subr.bf16.mxu0 %v7825
  %9796 = vmatpush1.bf16.msra.mxu0 %v7824
  %9797 = vmatprep.subr.bf16.mxu0 %v8241
  %9798 = vmatpush1.bf16.msra.mxu0 %v8240
  %9799 = vmatprep.subr.bf16.mxu0 %v8273
  %9800 = vmatpush1.bf16.msra.mxu0 %v8272
  %9801 = vmatprep.subr.bf16.mxu0 %v8689
  %9802 = vmatpush1.bf16.msra.mxu0 %v8688
  %9803 = vmatprep.subr.bf16.mxu0 %v8721
  %9804 = vmatpush1.bf16.msra.mxu0 %v8720
  %9805 = vmatprep.subr.bf16.mxu0 %v9137
  %9806 = vmatpush1.bf16.msra.mxu0 %v9136
  %9807 = vmatprep.subr.bf16.mxu0 %v9169
  %9808 = vmatpush1.bf16.msra.mxu0 %v9168
  %9809 = vmatprep.subr.bf16.mxu0 0
  %9810 = vmatpush1.bf16.msra.mxu0 0
  %9811 = vmatprep.subr.bf16.mxu0 0
  %9812 = vmatpush1.bf16.msra.mxu0 0
  %9813 = vmatprep.subr.bf16.mxu0 0
  %9814 = vmatpush1.bf16.msra.mxu0 0
  %9815 = vmatprep.subr.bf16.mxu0 0
  %9816 = vmatpush1.bf16.msra.mxu0 0
  %9817 = vmatprep.subr.bf16.mxu0 0
  %9818 = vmatpush1.bf16.msra.mxu0 0
  %9819 = vmatprep.subr.bf16.mxu0 0
  %9820 = vmatpush1.bf16.msra.mxu0 0
  %9821 = vmatprep.subr.bf16.mxu0 0
  %9822 = vmatpush1.bf16.msra.mxu0 0
  %9823 = vmatprep.subr.bf16.mxu0 0
  %9824 = vmatpush1.bf16.msra.mxu0 0
  %9825 = vmatprep.mubr.bf16.mxu0 0
  %9826 = vmatmul.mubr.bf16.gmra.mrb[0].mxu0 %v9206
  %v9827 = vpop.f32.mrb[0].mxu0
  %v9828 = vadd.f32 %v9184, %v9827
  %v9829 = vpop.f32.mrb[0].mxu0
  %v9830 = vadd.f32 %v9184, %v9829
  %v9831 = vpop.f32.mrb[0].mxu0
  %v9832 = vadd.f32 %v9188, %v9831
  %v9833 = vpop.f32.mrb[0].mxu0
  %v9834 = vadd.f32 %v9188, %v9833
  %9835 = vmatprep.mubr.bf16.mxu0 0
  %9836 = vmatmul.mubr.bf16.gmra.mrb[0].mxu0 %v9207
  %v9837 = vpop.f32.mrb[0].mxu0
  %v9838 = vadd.f32 %v9192, %v9837
  %v9839 = vpop.f32.mrb[0].mxu0
  %v9840 = vadd.f32 %v9192, %v9839
  %v9841 = vpop.f32.mrb[0].mxu0
  %v9842 = vadd.f32 %v9196, %v9841
  %v9843 = vpop.f32.mrb[0].mxu0
  %v9844 = vadd.f32 %v9196, %v9843
  %9845 = vdwg.mxu0
  %9846 = vmatprep.subr.bf16.mxu0 %v7795
  %9847 = vmatpush1.bf16.msra.mxu0 %v7794
  %9848 = vmatprep.subr.bf16.mxu0 %v7827
  %9849 = vmatpush1.bf16.msra.mxu0 %v7826
  %9850 = vmatprep.subr.bf16.mxu0 %v8243
  %9851 = vmatpush1.bf16.msra.mxu0 %v8242
  %9852 = vmatprep.subr.bf16.mxu0 %v8275
  %9853 = vmatpush1.bf16.msra.mxu0 %v8274
  %9854 = vmatprep.subr.bf16.mxu0 %v8691
  %9855 = vmatpush1.bf16.msra.mxu0 %v8690
  %9856 = vmatprep.subr.bf16.mxu0 %v8723
  %9857 = vmatpush1.bf16.msra.mxu0 %v8722
  %9858 = vmatprep.subr.bf16.mxu0 %v9139
  %9859 = vmatpush1.bf16.msra.mxu0 %v9138
  %9860 = vmatprep.subr.bf16.mxu0 %v9171
  %9861 = vmatpush1.bf16.msra.mxu0 %v9170
  %9862 = vmatprep.subr.bf16.mxu0 0
  %9863 = vmatpush1.bf16.msra.mxu0 0
  %9864 = vmatprep.subr.bf16.mxu0 0
  %9865 = vmatpush1.bf16.msra.mxu0 0
  %9866 = vmatprep.subr.bf16.mxu0 0
  %9867 = vmatpush1.bf16.msra.mxu0 0
  %9868 = vmatprep.subr.bf16.mxu0 0
  %9869 = vmatpush1.bf16.msra.mxu0 0
  %9870 = vmatprep.subr.bf16.mxu0 0
  %9871 = vmatpush1.bf16.msra.mxu0 0
  %9872 = vmatprep.subr.bf16.mxu0 0
  %9873 = vmatpush1.bf16.msra.mxu0 0
  %9874 = vmatprep.subr.bf16.mxu0 0
  %9875 = vmatpush1.bf16.msra.mxu0 0
  %9876 = vmatprep.subr.bf16.mxu0 0
  %9877 = vmatpush1.bf16.msra.mxu0 0
  %9878 = vmatprep.mubr.bf16.mxu0 0
  %9879 = vmatmul.mubr.bf16.gmra.mrb[0].mxu0 %v9206
  %v9880 = vpop.f32.mrb[0].mxu0
  %v9881 = vadd.f32 %v9184, %v9880
  %v9882 = vpop.f32.mrb[0].mxu0
  %v9883 = vadd.f32 %v9184, %v9882
  %v9884 = vpop.f32.mrb[0].mxu0
  %v9885 = vadd.f32 %v9188, %v9884
  %v9886 = vpop.f32.mrb[0].mxu0
  %v9887 = vadd.f32 %v9188, %v9886
  %9888 = vmatprep.mubr.bf16.mxu0 0
  %9889 = vmatmul.mubr.bf16.gmra.mrb[0].mxu0 %v9207
  %v9890 = vpop.f32.mrb[0].mxu0
  %v9891 = vadd.f32 %v9192, %v9890
  %v9892 = vpop.f32.mrb[0].mxu0
  %v9893 = vadd.f32 %v9192, %v9892
  %v9894 = vpop.f32.mrb[0].mxu0
  %v9895 = vadd.f32 %v9196, %v9894
  %v9896 = vpop.f32.mrb[0].mxu0
  %v9897 = vadd.f32 %v9196, %v9896
  %9898 = vdwg.mxu0
  %9899 = vmatprep.subr.bf16.mxu0 %v7797
  %9900 = vmatpush1.bf16.msra.mxu0 %v7796
  %9901 = vmatprep.subr.bf16.mxu0 %v7829
  %9902 = vmatpush1.bf16.msra.mxu0 %v7828
  %9903 = vmatprep.subr.bf16.mxu0 %v8245
  %9904 = vmatpush1.bf16.msra.mxu0 %v8244
  %9905 = vmatprep.subr.bf16.mxu0 %v8277
  %9906 = vmatpush1.bf16.msra.mxu0 %v8276
  %9907 = vmatprep.subr.bf16.mxu0 %v8693
  %9908 = vmatpush1.bf16.msra.mxu0 %v8692
  %9909 = vmatprep.subr.bf16.mxu0 %v8725
  %9910 = vmatpush1.bf16.msra.mxu0 %v8724
  %9911 = vmatprep.subr.bf16.mxu0 %v9141
  %9912 = vmatpush1.bf16.msra.mxu0 %v9140
  %9913 = vmatprep.subr.bf16.mxu0 %v9173
  %9914 = vmatpush1.bf16.msra.mxu0 %v9172
  %9915 = vmatprep.subr.bf16.mxu0 0
  %9916 = vmatpush1.bf16.msra.mxu0 0
  %9917 = vmatprep.subr.bf16.mxu0 0
  %9918 = vmatpush1.bf16.msra.mxu0 0
  %9919 = vmatprep.subr.bf16.mxu0 0
  %9920 = vmatpush1.bf16.msra.mxu0 0
  %9921 = vmatprep.subr.bf16.mxu0 0
  %9922 = vmatpush1.bf16.msra.mxu0 0
  %9923 = vmatprep.subr.bf16.mxu0 0
  %9924 = vmatpush1.bf16.msra.mxu0 0
  %9925 = vmatprep.subr.bf16.mxu0 0
  %9926 = vmatpush1.bf16.msra.mxu0 0
  %9927 = vmatprep.subr.bf16.mxu0 0
  %9928 = vmatpush1.bf16.msra.mxu0 0
  %9929 = vmatprep.subr.bf16.mxu0 0
  %9930 = vmatpush1.bf16.msra.mxu0 0
  %9931 = vmatprep.mubr.bf16.mxu0 0
  %9932 = vmatmul.mubr.bf16.gmra.mrb[0].mxu0 %v9206
  %v9933 = vpop.f32.mrb[0].mxu0
  %v9934 = vadd.f32 %v9184, %v9933
  %v9935 = vpop.f32.mrb[0].mxu0
  %v9936 = vadd.f32 %v9184, %v9935
  %v9937 = vpop.f32.mrb[0].mxu0
  %v9938 = vadd.f32 %v9188, %v9937
  %v9939 = vpop.f32.mrb[0].mxu0
  %v9940 = vadd.f32 %v9188, %v9939
  %9941 = vmatprep.mubr.bf16.mxu0 0
  %9942 = vmatmul.mubr.bf16.gmra.mrb[0].mxu0 %v9207
  %v9943 = vpop.f32.mrb[0].mxu0
  %v9944 = vadd.f32 %v9192, %v9943
  %v9945 = vpop.f32.mrb[0].mxu0
  %v9946 = vadd.f32 %v9192, %v9945
  %v9947 = vpop.f32.mrb[0].mxu0
  %v9948 = vadd.f32 %v9196, %v9947
  %v9949 = vpop.f32.mrb[0].mxu0
  %v9950 = vadd.f32 %v9196, %v9949
  %9951 = vdwg.mxu0
  %9952 = vmatprep.subr.bf16.mxu0 %v7799
  %9953 = vmatpush1.bf16.msra.mxu0 %v7798
  %9954 = vmatprep.subr.bf16.mxu0 %v7831
  %9955 = vmatpush1.bf16.msra.mxu0 %v7830
  %9956 = vmatprep.subr.bf16.mxu0 %v8247
  %9957 = vmatpush1.bf16.msra.mxu0 %v8246
  %9958 = vmatprep.subr.bf16.mxu0 %v8279
  %9959 = vmatpush1.bf16.msra.mxu0 %v8278
  %9960 = vmatprep.subr.bf16.mxu0 %v8695
  %9961 = vmatpush1.bf16.msra.mxu0 %v8694
  %9962 = vmatprep.subr.bf16.mxu0 %v8727
  %9963 = vmatpush1.bf16.msra.mxu0 %v8726
  %9964 = vmatprep.subr.bf16.mxu0 %v9143
  %9965 = vmatpush1.bf16.msra.mxu0 %v9142
  %9966 = vmatprep.subr.bf16.mxu0 %v9175
  %9967 = vmatpush1.bf16.msra.mxu0 %v9174
  %9968 = vmatprep.subr.bf16.mxu0 0
  %9969 = vmatpush1.bf16.msra.mxu0 0
  %9970 = vmatprep.subr.bf16.mxu0 0
  %9971 = vmatpush1.bf16.msra.mxu0 0
  %9972 = vmatprep.subr.bf16.mxu0 0
  %9973 = vmatpush1.bf16.msra.mxu0 0
  %9974 = vmatprep.subr.bf16.mxu0 0
  %9975 = vmatpush1.bf16.msra.mxu0 0
  %9976 = vmatprep.subr.bf16.mxu0 0
  %9977 = vmatpush1.bf16.msra.mxu0 0
  %9978 = vmatprep.subr.bf16.mxu0 0
  %9979 = vmatpush1.bf16.msra.mxu0 0
  %9980 = vmatprep.subr.bf16.mxu0 0
  %9981 = vmatpush1.bf16.msra.mxu0 0
  %9982 = vmatprep.subr.bf16.mxu0 0
  %9983 = vmatpush1.bf16.msra.mxu0 0
  %9984 = vmatprep.mubr.bf16.mxu0 0
  %9985 = vmatmul.mubr.bf16.gmra.mrb[0].mxu0 %v9206
  %v9986 = vpop.f32.mrb[0].mxu0
  %v9987 = vadd.f32 %v9184, %v9986
  %v9988 = vpop.f32.mrb[0].mxu0
  %v9989 = vadd.f32 %v9184, %v9988
  %v9990 = vpop.f32.mrb[0].mxu0
  %v9991 = vadd.f32 %v9188, %v9990
  %v9992 = vpop.f32.mrb[0].mxu0
  %v9993 = vadd.f32 %v9188, %v9992
  %9994 = vmatprep.mubr.bf16.mxu0 0
  %9995 = vmatmul.mubr.bf16.gmra.mrb[0].mxu0 %v9207
  %v9996 = vpop.f32.mrb[0].mxu0
  %v9997 = vadd.f32 %v9192, %v9996
  %v9998 = vpop.f32.mrb[0].mxu0
  %v9999 = vadd.f32 %v9192, %v9998
  %v10000 = vpop.f32.mrb[0].mxu0
  %v10001 = vadd.f32 %v9196, %v10000
  %v10002 = vpop.f32.mrb[0].mxu0
  %v10003 = vadd.f32 %v9196, %v10002
  %10004 = vdwg.mxu0
  %10005 = vmatprep.subr.bf16.mxu0 %v7801
  %10006 = vmatpush1.bf16.msra.mxu0 %v7800
  %10007 = vmatprep.subr.bf16.mxu0 %v7833
  %10008 = vmatpush1.bf16.msra.mxu0 %v7832
  %10009 = vmatprep.subr.bf16.mxu0 %v8249
  %10010 = vmatpush1.bf16.msra.mxu0 %v8248
  %10011 = vmatprep.subr.bf16.mxu0 %v8281
  %10012 = vmatpush1.bf16.msra.mxu0 %v8280
  %10013 = vmatprep.subr.bf16.mxu0 %v8697
  %10014 = vmatpush1.bf16.msra.mxu0 %v8696
  %10015 = vmatprep.subr.bf16.mxu0 %v8729
  %10016 = vmatpush1.bf16.msra.mxu0 %v8728
  %10017 = vmatprep.subr.bf16.mxu0 %v9145
  %10018 = vmatpush1.bf16.msra.mxu0 %v9144
  %10019 = vmatprep.subr.bf16.mxu0 %v9177
  %10020 = vmatpush1.bf16.msra.mxu0 %v9176
  %10021 = vmatprep.subr.bf16.mxu0 0
  %10022 = vmatpush1.bf16.msra.mxu0 0
  %10023 = vmatprep.subr.bf16.mxu0 0
  %10024 = vmatpush1.bf16.msra.mxu0 0
  %10025 = vmatprep.subr.bf16.mxu0 0
  %10026 = vmatpush1.bf16.msra.mxu0 0
  %10027 = vmatprep.subr.bf16.mxu0 0
  %10028 = vmatpush1.bf16.msra.mxu0 0
  %10029 = vmatprep.subr.bf16.mxu0 0
  %10030 = vmatpush1.bf16.msra.mxu0 0
  %10031 = vmatprep.subr.bf16.mxu0 0
  %10032 = vmatpush1.bf16.msra.mxu0 0
  %10033 = vmatprep.subr.bf16.mxu0 0
  %10034 = vmatpush1.bf16.msra.mxu0 0
  %10035 = vmatprep.subr.bf16.mxu0 0
  %10036 = vmatpush1.bf16.msra.mxu0 0
  %10037 = vmatprep.mubr.bf16.mxu0 0
  %10038 = vmatmul.mubr.bf16.gmra.mrb[0].mxu0 %v9206
  %v10039 = vpop.f32.mrb[0].mxu0
  %v10040 = vadd.f32 %v9184, %v10039
  %v10041 = vpop.f32.mrb[0].mxu0
  %v10042 = vadd.f32 %v9184, %v10041
  %v10043 = vpop.f32.mrb[0].mxu0
  %v10044 = vadd.f32 %v9188, %v10043
  %v10045 = vpop.f32.mrb[0].mxu0
  %v10046 = vadd.f32 %v9188, %v10045
  %10047 = vmatprep.mubr.bf16.mxu0 0
  %10048 = vmatmul.mubr.bf16.gmra.mrb[0].mxu0 %v9207
  %v10049 = vpop.f32.mrb[0].mxu0
  %v10050 = vadd.f32 %v9192, %v10049
  %v10051 = vpop.f32.mrb[0].mxu0
  %v10052 = vadd.f32 %v9192, %v10051
  %v10053 = vpop.f32.mrb[0].mxu0
  %v10054 = vadd.f32 %v9196, %v10053
  %v10055 = vpop.f32.mrb[0].mxu0
  %v10056 = vadd.f32 %v9196, %v10055
  %10057 = vdwg.mxu0
  %v10058 = vadd.f32 %v9245, %v4970
  %v10059 = vadd.f32 %v9247, %v4971
  %v10060 = vadd.f32 %v9298, %v4972
  %v10061 = vadd.f32 %v9300, %v4973
  %v10062 = vadd.f32 %v9351, %v4974
  %v10063 = vadd.f32 %v9353, %v4975
  %v10064 = vadd.f32 %v9404, %v4976
  %v10065 = vadd.f32 %v9406, %v4977
  %v10066 = vadd.f32 %v9457, %v4978
  %v10067 = vadd.f32 %v9459, %v4979
  %v10068 = vadd.f32 %v9510, %v4980
  %v10069 = vadd.f32 %v9512, %v4981
  %v10070 = vadd.f32 %v9563, %v4982
  %v10071 = vadd.f32 %v9565, %v4983
  %v10072 = vadd.f32 %v9616, %v4984
  %v10073 = vadd.f32 %v9618, %v4985
  %v10074 = vadd.f32 %v9669, %v4986
  %v10075 = vadd.f32 %v9671, %v4987
  %v10076 = vadd.f32 %v9722, %v4988
  %v10077 = vadd.f32 %v9724, %v4989
  %v10078 = vadd.f32 %v9775, %v4990
  %v10079 = vadd.f32 %v9777, %v4991
  %v10080 = vadd.f32 %v9828, %v4992
  %v10081 = vadd.f32 %v9830, %v4993
  %v10082 = vadd.f32 %v9881, %v4994
  %v10083 = vadd.f32 %v9883, %v4995
  %v10084 = vadd.f32 %v9934, %v4996
  %v10085 = vadd.f32 %v9936, %v4997
  %v10086 = vadd.f32 %v9987, %v4998
  %v10087 = vadd.f32 %v9989, %v4999
  %v10088 = vadd.f32 %v10040, %v5000
  %v10089 = vadd.f32 %v10042, %v5001
  %v10090 = vadd.f32 %v9249, %v5002
  %v10091 = vadd.f32 %v9251, %v5003
  %v10092 = vadd.f32 %v9302, %v5004
  %v10093 = vadd.f32 %v9304, %v5005
  %v10094 = vadd.f32 %v9355, %v5006
  %v10095 = vadd.f32 %v9357, %v5007
  %v10096 = vadd.f32 %v9408, %v5008
  %v10097 = vadd.f32 %v9410, %v5009
  %v10098 = vadd.f32 %v9461, %v5010
  %v10099 = vadd.f32 %v9463, %v5011
  %v10100 = vadd.f32 %v9514, %v5012
  %v10101 = vadd.f32 %v9516, %v5013
  %v10102 = vadd.f32 %v9567, %v5014
  %v10103 = vadd.f32 %v9569, %v5015
  %v10104 = vadd.f32 %v9620, %v5016
  %v10105 = vadd.f32 %v9622, %v5017
  %v10106 = vadd.f32 %v9673, %v5018
  %v10107 = vadd.f32 %v9675, %v5019
  %v10108 = vadd.f32 %v9726, %v5020
  %v10109 = vadd.f32 %v9728, %v5021
  %v10110 = vadd.f32 %v9779, %v5022
  %v10111 = vadd.f32 %v9781, %v5023
  %v10112 = vadd.f32 %v9832, %v5024
  %v10113 = vadd.f32 %v9834, %v5025
  %v10114 = vadd.f32 %v9885, %v5026
  %v10115 = vadd.f32 %v9887, %v5027
  %v10116 = vadd.f32 %v9938, %v5028
  %v10117 = vadd.f32 %v9940, %v5029
  %v10118 = vadd.f32 %v9991, %v5030
  %v10119 = vadd.f32 %v9993, %v5031
  %v10120 = vadd.f32 %v10044, %v5032
  %v10121 = vadd.f32 %v10046, %v5033
  %v10122 = vadd.f32 %v9255, %v5034
  %v10123 = vadd.f32 %v9257, %v5035
  %v10124 = vadd.f32 %v9308, %v5036
  %v10125 = vadd.f32 %v9310, %v5037
  %v10126 = vadd.f32 %v9361, %v5038
  %v10127 = vadd.f32 %v9363, %v5039
  %v10128 = vadd.f32 %v9414, %v5040
  %v10129 = vadd.f32 %v9416, %v5041
  %v10130 = vadd.f32 %v9467, %v5042
  %v10131 = vadd.f32 %v9469, %v5043
  %v10132 = vadd.f32 %v9520, %v5044
  %v10133 = vadd.f32 %v9522, %v5045
  %v10134 = vadd.f32 %v9573, %v5046
  %v10135 = vadd.f32 %v9575, %v5047
  %v10136 = vadd.f32 %v9626, %v5048
  %v10137 = vadd.f32 %v9628, %v5049
  %v10138 = vadd.f32 %v9679, %v5050
  %v10139 = vadd.f32 %v9681, %v5051
  %v10140 = vadd.f32 %v9732, %v5052
  %v10141 = vadd.f32 %v9734, %v5053
  %v10142 = vadd.f32 %v9785, %v5054
  %v10143 = vadd.f32 %v9787, %v5055
  %v10144 = vadd.f32 %v9838, %v5056
  %v10145 = vadd.f32 %v9840, %v5057
  %v10146 = vadd.f32 %v9891, %v5058
  %v10147 = vadd.f32 %v9893, %v5059
  %v10148 = vadd.f32 %v9944, %v5060
  %v10149 = vadd.f32 %v9946, %v5061
  %v10150 = vadd.f32 %v9997, %v5062
  %v10151 = vadd.f32 %v9999, %v5063
  %v10152 = vadd.f32 %v10050, %v5064
  %v10153 = vadd.f32 %v10052, %v5065
  %v10154 = vadd.f32 %v9259, %v5066
  %v10155 = vadd.f32 %v9261, %v5067
  %v10156 = vadd.f32 %v9312, %v5068
  %v10157 = vadd.f32 %v9314, %v5069
  %v10158 = vadd.f32 %v9365, %v5070
  %v10159 = vadd.f32 %v9367, %v5071
  %v10160 = vadd.f32 %v9418, %v5072
  %v10161 = vadd.f32 %v9420, %v5073
  %v10162 = vadd.f32 %v9471, %v5074
  %v10163 = vadd.f32 %v9473, %v5075
  %v10164 = vadd.f32 %v9524, %v5076
  %v10165 = vadd.f32 %v9526, %v5077
  %v10166 = vadd.f32 %v9577, %v5078
  %v10167 = vadd.f32 %v9579, %v5079
  %v10168 = vadd.f32 %v9630, %v5080
  %v10169 = vadd.f32 %v9632, %v5081
  %v10170 = vadd.f32 %v9683, %v5082
  %v10171 = vadd.f32 %v9685, %v5083
  %v10172 = vadd.f32 %v9736, %v5084
  %v10173 = vadd.f32 %v9738, %v5085
  %v10174 = vadd.f32 %v9789, %v5086
  %v10175 = vadd.f32 %v9791, %v5087
  %v10176 = vadd.f32 %v9842, %v5088
  %v10177 = vadd.f32 %v9844, %v5089
  %v10178 = vadd.f32 %v9895, %v5090
  %v10179 = vadd.f32 %v9897, %v5091
  %v10180 = vadd.f32 %v9948, %v5092
  %v10181 = vadd.f32 %v9950, %v5093
  %v10182 = vadd.f32 %v10001, %v5094
  %v10183 = vadd.f32 %v10003, %v5095
  %v10184 = vadd.f32 %v10054, %v5096
  %v10185 = vadd.f32 %v10056, %v5097
  %v10186 = vmul.f32 %v10058, 0.1
  %v10187 = vmul.f32 %v10059, 0.1
  %v10188 = vmul.f32 %v10060, 0.1
  %v10189 = vmul.f32 %v10061, 0.1
  %v10190 = vmul.f32 %v10062, 0.1
  %v10191 = vmul.f32 %v10063, 0.1
  %v10192 = vmul.f32 %v10064, 0.1
  %v10193 = vmul.f32 %v10065, 0.1
  %v10194 = vmul.f32 %v10066, 0.1
  %v10195 = vmul.f32 %v10067, 0.1
  %v10196 = vmul.f32 %v10068, 0.1
  %v10197 = vmul.f32 %v10069, 0.1
  %v10198 = vmul.f32 %v10070, 0.1
  %v10199 = vmul.f32 %v10071, 0.1
  %v10200 = vmul.f32 %v10072, 0.1
  %v10201 = vmul.f32 %v10073, 0.1
  %v10202 = vmul.f32 %v10074, 0.1
  %v10203 = vmul.f32 %v10075, 0.1
  %v10204 = vmul.f32 %v10076, 0.1
  %v10205 = vmul.f32 %v10077, 0.1
  %v10206 = vmul.f32 %v10078, 0.1
  %v10207 = vmul.f32 %v10079, 0.1
  %v10208 = vmul.f32 %v10080, 0.1
  %v10209 = vmul.f32 %v10081, 0.1
  %v10210 = vmul.f32 %v10082, 0.1
  %v10211 = vmul.f32 %v10083, 0.1
  %v10212 = vmul.f32 %v10084, 0.1
  %v10213 = vmul.f32 %v10085, 0.1
  %v10214 = vmul.f32 %v10086, 0.1
  %v10215 = vmul.f32 %v10087, 0.1
  %v10216 = vmul.f32 %v10088, 0.1
  %v10217 = vmul.f32 %v10089, 0.1
  %v10218 = vmul.f32 %v10090, 0.1
  %v10219 = vmul.f32 %v10091, 0.1
  %v10220 = vmul.f32 %v10092, 0.1
  %v10221 = vmul.f32 %v10093, 0.1
  %v10222 = vmul.f32 %v10094, 0.1
  %v10223 = vmul.f32 %v10095, 0.1
  %v10224 = vmul.f32 %v10096, 0.1
  %v10225 = vmul.f32 %v10097, 0.1
  %v10226 = vmul.f32 %v10098, 0.1
  %v10227 = vmul.f32 %v10099, 0.1
  %v10228 = vmul.f32 %v10100, 0.1
  %v10229 = vmul.f32 %v10101, 0.1
  %v10230 = vmul.f32 %v10102, 0.1
  %v10231 = vmul.f32 %v10103, 0.1
  %v10232 = vmul.f32 %v10104, 0.1
  %v10233 = vmul.f32 %v10105, 0.1
  %v10234 = vmul.f32 %v10106, 0.1
  %v10235 = vmul.f32 %v10107, 0.1
  %v10236 = vmul.f32 %v10108, 0.1
  %v10237 = vmul.f32 %v10109, 0.1
  %v10238 = vmul.f32 %v10110, 0.1
  %v10239 = vmul.f32 %v10111, 0.1
  %v10240 = vmul.f32 %v10112, 0.1
  %v10241 = vmul.f32 %v10113, 0.1
  %v10242 = vmul.f32 %v10114, 0.1
  %v10243 = vmul.f32 %v10115, 0.1
  %v10244 = vmul.f32 %v10116, 0.1
  %v10245 = vmul.f32 %v10117, 0.1
  %v10246 = vmul.f32 %v10118, 0.1
  %v10247 = vmul.f32 %v10119, 0.1
  %v10248 = vmul.f32 %v10120, 0.1
  %v10249 = vmul.f32 %v10121, 0.1
  %v10250 = vmul.f32 %v10122, 0.1
  %v10251 = vmul.f32 %v10123, 0.1
  %v10252 = vmul.f32 %v10124, 0.1
  %v10253 = vmul.f32 %v10125, 0.1
  %v10254 = vmul.f32 %v10126, 0.1
  %v10255 = vmul.f32 %v10127, 0.1
  %v10256 = vmul.f32 %v10128, 0.1
  %v10257 = vmul.f32 %v10129, 0.1
  %v10258 = vmul.f32 %v10130, 0.1
  %v10259 = vmul.f32 %v10131, 0.1
  %v10260 = vmul.f32 %v10132, 0.1
  %v10261 = vmul.f32 %v10133, 0.1
  %v10262 = vmul.f32 %v10134, 0.1
  %v10263 = vmul.f32 %v10135, 0.1
  %v10264 = vmul.f32 %v10136, 0.1
  %v10265 = vmul.f32 %v10137, 0.1
  %v10266 = vmul.f32 %v10138, 0.1
  %v10267 = vmul.f32 %v10139, 0.1
  %v10268 = vmul.f32 %v10140, 0.1
  %v10269 = vmul.f32 %v10141, 0.1
  %v10270 = vmul.f32 %v10142, 0.1
  %v10271 = vmul.f32 %v10143, 0.1
  %v10272 = vmul.f32 %v10144, 0.1
  %v10273 = vmul.f32 %v10145, 0.1
  %v10274 = vmul.f32 %v10146, 0.1
  %v10275 = vmul.f32 %v10147, 0.1
  %v10276 = vmul.f32 %v10148, 0.1
  %v10277 = vmul.f32 %v10149, 0.1
  %v10278 = vmul.f32 %v10150, 0.1
  %v10279 = vmul.f32 %v10151, 0.1
  %v10280 = vmul.f32 %v10152, 0.1
  %v10281 = vmul.f32 %v10153, 0.1
  %v10282 = vmul.f32 %v10154, 0.1
  %v10283 = vmul.f32 %v10155, 0.1
  %v10284 = vmul.f32 %v10156, 0.1
  %v10285 = vmul.f32 %v10157, 0.1
  %v10286 = vmul.f32 %v10158, 0.1
  %v10287 = vmul.f32 %v10159, 0.1
  %v10288 = vmul.f32 %v10160, 0.1
  %v10289 = vmul.f32 %v10161, 0.1
  %v10290 = vmul.f32 %v10162, 0.1
  %v10291 = vmul.f32 %v10163, 0.1
  %v10292 = vmul.f32 %v10164, 0.1
  %v10293 = vmul.f32 %v10165, 0.1
  %v10294 = vmul.f32 %v10166, 0.1
  %v10295 = vmul.f32 %v10167, 0.1
  %v10296 = vmul.f32 %v10168, 0.1
  %v10297 = vmul.f32 %v10169, 0.1
  %v10298 = vmul.f32 %v10170, 0.1
  %v10299 = vmul.f32 %v10171, 0.1
  %v10300 = vmul.f32 %v10172, 0.1
  %v10301 = vmul.f32 %v10173, 0.1
  %v10302 = vmul.f32 %v10174, 0.1
  %v10303 = vmul.f32 %v10175, 0.1
  %v10304 = vmul.f32 %v10176, 0.1
  %v10305 = vmul.f32 %v10177, 0.1
  %v10306 = vmul.f32 %v10178, 0.1
  %v10307 = vmul.f32 %v10179, 0.1
  %v10308 = vmul.f32 %v10180, 0.1
  %v10309 = vmul.f32 %v10181, 0.1
  %v10310 = vmul.f32 %v10182, 0.1
  %v10311 = vmul.f32 %v10183, 0.1
  %v10312 = vmul.f32 %v10184, 0.1
  %v10313 = vmul.f32 %v10185, 0.1
  %v10314 = vmax.f32 %v10058, %v10186
  %v10315 = vmax.f32 %v10059, %v10187
  %v10316 = vmax.f32 %v10060, %v10188
  %v10317 = vmax.f32 %v10061, %v10189
  %v10318 = vmax.f32 %v10062, %v10190
  %v10319 = vmax.f32 %v10063, %v10191
  %v10320 = vmax.f32 %v10064, %v10192
  %v10321 = vmax.f32 %v10065, %v10193
  %v10322 = vmax.f32 %v10066, %v10194
  %v10323 = vmax.f32 %v10067, %v10195
  %v10324 = vmax.f32 %v10068, %v10196
  %v10325 = vmax.f32 %v10069, %v10197
  %v10326 = vmax.f32 %v10070, %v10198
  %v10327 = vmax.f32 %v10071, %v10199
  %v10328 = vmax.f32 %v10072, %v10200
  %v10329 = vmax.f32 %v10073, %v10201
  %v10330 = vmax.f32 %v10074, %v10202
  %v10331 = vmax.f32 %v10075, %v10203
  %v10332 = vmax.f32 %v10076, %v10204
  %v10333 = vmax.f32 %v10077, %v10205
  %v10334 = vmax.f32 %v10078, %v10206
  %v10335 = vmax.f32 %v10079, %v10207
  %v10336 = vmax.f32 %v10080, %v10208
  %v10337 = vmax.f32 %v10081, %v10209
  %v10338 = vmax.f32 %v10082, %v10210
  %v10339 = vmax.f32 %v10083, %v10211
  %v10340 = vmax.f32 %v10084, %v10212
  %v10341 = vmax.f32 %v10085, %v10213
  %v10342 = vmax.f32 %v10086, %v10214
  %v10343 = vmax.f32 %v10087, %v10215
  %v10344 = vmax.f32 %v10088, %v10216
  %v10345 = vmax.f32 %v10089, %v10217
  %v10346 = vmax.f32 %v10090, %v10218
  %v10347 = vmax.f32 %v10091, %v10219
  %v10348 = vmax.f32 %v10092, %v10220
  %v10349 = vmax.f32 %v10093, %v10221
  %v10350 = vmax.f32 %v10094, %v10222
  %v10351 = vmax.f32 %v10095, %v10223
  %v10352 = vmax.f32 %v10096, %v10224
  %v10353 = vmax.f32 %v10097, %v10225
  %v10354 = vmax.f32 %v10098, %v10226
  %v10355 = vmax.f32 %v10099, %v10227
  %v10356 = vmax.f32 %v10100, %v10228
  %v10357 = vmax.f32 %v10101, %v10229
  %v10358 = vmax.f32 %v10102, %v10230
  %v10359 = vmax.f32 %v10103, %v10231
  %v10360 = vmax.f32 %v10104, %v10232
  %v10361 = vmax.f32 %v10105, %v10233
  %v10362 = vmax.f32 %v10106, %v10234
  %v10363 = vmax.f32 %v10107, %v10235
  %v10364 = vmax.f32 %v10108, %v10236
  %v10365 = vmax.f32 %v10109, %v10237
  %v10366 = vmax.f32 %v10110, %v10238
  %v10367 = vmax.f32 %v10111, %v10239
  %v10368 = vmax.f32 %v10112, %v10240
  %v10369 = vmax.f32 %v10113, %v10241
  %v10370 = vmax.f32 %v10114, %v10242
  %v10371 = vmax.f32 %v10115, %v10243
  %v10372 = vmax.f32 %v10116, %v10244
  %v10373 = vmax.f32 %v10117, %v10245
  %v10374 = vmax.f32 %v10118, %v10246
  %v10375 = vmax.f32 %v10119, %v10247
  %v10376 = vmax.f32 %v10120, %v10248
  %v10377 = vmax.f32 %v10121, %v10249
  %v10378 = vmax.f32 %v10122, %v10250
  %v10379 = vmax.f32 %v10123, %v10251
  %v10380 = vmax.f32 %v10124, %v10252
  %v10381 = vmax.f32 %v10125, %v10253
  %v10382 = vmax.f32 %v10126, %v10254
  %v10383 = vmax.f32 %v10127, %v10255
  %v10384 = vmax.f32 %v10128, %v10256
  %v10385 = vmax.f32 %v10129, %v10257
  %v10386 = vmax.f32 %v10130, %v10258
  %v10387 = vmax.f32 %v10131, %v10259
  %v10388 = vmax.f32 %v10132, %v10260
  %v10389 = vmax.f32 %v10133, %v10261
  %v10390 = vmax.f32 %v10134, %v10262
  %v10391 = vmax.f32 %v10135, %v10263
  %v10392 = vmax.f32 %v10136, %v10264
  %v10393 = vmax.f32 %v10137, %v10265
  %v10394 = vmax.f32 %v10138, %v10266
  %v10395 = vmax.f32 %v10139, %v10267
  %v10396 = vmax.f32 %v10140, %v10268
  %v10397 = vmax.f32 %v10141, %v10269
  %v10398 = vmax.f32 %v10142, %v10270
  %v10399 = vmax.f32 %v10143, %v10271
  %v10400 = vmax.f32 %v10144, %v10272
  %v10401 = vmax.f32 %v10145, %v10273
  %v10402 = vmax.f32 %v10146, %v10274
  %v10403 = vmax.f32 %v10147, %v10275
  %v10404 = vmax.f32 %v10148, %v10276
  %v10405 = vmax.f32 %v10149, %v10277
  %v10406 = vmax.f32 %v10150, %v10278
  %v10407 = vmax.f32 %v10151, %v10279
  %v10408 = vmax.f32 %v10152, %v10280
  %v10409 = vmax.f32 %v10153, %v10281
  %v10410 = vmax.f32 %v10154, %v10282
  %v10411 = vmax.f32 %v10155, %v10283
  %v10412 = vmax.f32 %v10156, %v10284
  %v10413 = vmax.f32 %v10157, %v10285
  %v10414 = vmax.f32 %v10158, %v10286
  %v10415 = vmax.f32 %v10159, %v10287
  %v10416 = vmax.f32 %v10160, %v10288
  %v10417 = vmax.f32 %v10161, %v10289
  %v10418 = vmax.f32 %v10162, %v10290
  %v10419 = vmax.f32 %v10163, %v10291
  %v10420 = vmax.f32 %v10164, %v10292
  %v10421 = vmax.f32 %v10165, %v10293
  %v10422 = vmax.f32 %v10166, %v10294
  %v10423 = vmax.f32 %v10167, %v10295
  %v10424 = vmax.f32 %v10168, %v10296
  %v10425 = vmax.f32 %v10169, %v10297
  %v10426 = vmax.f32 %v10170, %v10298
  %v10427 = vmax.f32 %v10171, %v10299
  %v10428 = vmax.f32 %v10172, %v10300
  %v10429 = vmax.f32 %v10173, %v10301
  %v10430 = vmax.f32 %v10174, %v10302
  %v10431 = vmax.f32 %v10175, %v10303
  %v10432 = vmax.f32 %v10176, %v10304
  %v10433 = vmax.f32 %v10177, %v10305
  %v10434 = vmax.f32 %v10178, %v10306
  %v10435 = vmax.f32 %v10179, %v10307
  %v10436 = vmax.f32 %v10180, %v10308
  %v10437 = vmax.f32 %v10181, %v10309
  %v10438 = vmax.f32 %v10182, %v10310
  %v10439 = vmax.f32 %v10183, %v10311
  %v10440 = vmax.f32 %v10184, %v10312
  %v10441 = vmax.f32 %v10185, %v10313
  %v10442 = vld [vmem:[%s7] sm:$0xff]
  %v10443 = vld [vmem:[%s7 + $0x8] sm:$0xff]
  %v10444 = vld [vmem:[%s7 + $0x10] sm:$0xff]
  %v10445 = vld [vmem:[%s7 + $0x18] sm:$0xff]
  %10447 = vset.pattern.permute.xlu0 0
  %10448 = vperm.xlu0 %10447, %v10442
  %v10449 = vpop.permute.xlu0 %10448
  %10452 = vset.pattern.permute.xlu0 0
  %10453 = vperm.xlu0 %10452, %v10443
  %v10454 = vpop.permute.xlu0 %10453
  %10457 = vset.pattern.permute.xlu0 0
  %10458 = vperm.xlu0 %10457, %v10444
  %v10459 = vpop.permute.xlu0 %10458
  %10462 = vset.pattern.permute.xlu0 0
  %10463 = vperm.xlu0 %10462, %v10445
  %v10464 = vpop.permute.xlu0 %10463
  %v10466 = vmul.f32 %v10314, %v10449
  %v10467 = vmul.f32 %v10315, %v10449
  %v10468 = vmul.f32 %v10316, %v10449
  %v10469 = vmul.f32 %v10317, %v10449
  %v10470 = vmul.f32 %v10318, %v10449
  %v10471 = vmul.f32 %v10319, %v10449
  %v10472 = vmul.f32 %v10320, %v10449
  %v10473 = vmul.f32 %v10321, %v10449
  %v10474 = vmul.f32 %v10322, %v10449
  %v10475 = vmul.f32 %v10323, %v10449
  %v10476 = vmul.f32 %v10324, %v10449
  %v10477 = vmul.f32 %v10325, %v10449
  %v10478 = vmul.f32 %v10326, %v10449
  %v10479 = vmul.f32 %v10327, %v10449
  %v10480 = vmul.f32 %v10328, %v10449
  %v10481 = vmul.f32 %v10329, %v10449
  %v10482 = vmul.f32 %v10330, %v10449
  %v10483 = vmul.f32 %v10331, %v10449
  %v10484 = vmul.f32 %v10332, %v10449
  %v10485 = vmul.f32 %v10333, %v10449
  %v10486 = vmul.f32 %v10334, %v10449
  %v10487 = vmul.f32 %v10335, %v10449
  %v10488 = vmul.f32 %v10336, %v10449
  %v10489 = vmul.f32 %v10337, %v10449
  %v10490 = vmul.f32 %v10338, %v10449
  %v10491 = vmul.f32 %v10339, %v10449
  %v10492 = vmul.f32 %v10340, %v10449
  %v10493 = vmul.f32 %v10341, %v10449
  %v10494 = vmul.f32 %v10342, %v10449
  %v10495 = vmul.f32 %v10343, %v10449
  %v10496 = vmul.f32 %v10344, %v10449
  %v10497 = vmul.f32 %v10345, %v10449
  %v10498 = vmul.f32 %v10346, %v10454
  %v10499 = vmul.f32 %v10347, %v10454
  %v10500 = vmul.f32 %v10348, %v10454
  %v10501 = vmul.f32 %v10349, %v10454
  %v10502 = vmul.f32 %v10350, %v10454
  %v10503 = vmul.f32 %v10351, %v10454
  %v10504 = vmul.f32 %v10352, %v10454
  %v10505 = vmul.f32 %v10353, %v10454
  %v10506 = vmul.f32 %v10354, %v10454
  %v10507 = vmul.f32 %v10355, %v10454
  %v10508 = vmul.f32 %v10356, %v10454
  %v10509 = vmul.f32 %v10357, %v10454
  %v10510 = vmul.f32 %v10358, %v10454
  %v10511 = vmul.f32 %v10359, %v10454
  %v10512 = vmul.f32 %v10360, %v10454
  %v10513 = vmul.f32 %v10361, %v10454
  %v10514 = vmul.f32 %v10362, %v10454
  %v10515 = vmul.f32 %v10363, %v10454
  %v10516 = vmul.f32 %v10364, %v10454
  %v10517 = vmul.f32 %v10365, %v10454
  %v10518 = vmul.f32 %v10366, %v10454
  %v10519 = vmul.f32 %v10367, %v10454
  %v10520 = vmul.f32 %v10368, %v10454
  %v10521 = vmul.f32 %v10369, %v10454
  %v10522 = vmul.f32 %v10370, %v10454
  %v10523 = vmul.f32 %v10371, %v10454
  %v10524 = vmul.f32 %v10372, %v10454
  %v10525 = vmul.f32 %v10373, %v10454
  %v10526 = vmul.f32 %v10374, %v10454
  %v10527 = vmul.f32 %v10375, %v10454
  %v10528 = vmul.f32 %v10376, %v10454
  %v10529 = vmul.f32 %v10377, %v10454
  %v10530 = vmul.f32 %v10378, %v10459
  %v10531 = vmul.f32 %v10379, %v10459
  %v10532 = vmul.f32 %v10380, %v10459
  %v10533 = vmul.f32 %v10381, %v10459
  %v10534 = vmul.f32 %v10382, %v10459
  %v10535 = vmul.f32 %v10383, %v10459
  %v10536 = vmul.f32 %v10384, %v10459
  %v10537 = vmul.f32 %v10385, %v10459
  %v10538 = vmul.f32 %v10386, %v10459
  %v10539 = vmul.f32 %v10387, %v10459
  %v10540 = vmul.f32 %v10388, %v10459
  %v10541 = vmul.f32 %v10389, %v10459
  %v10542 = vmul.f32 %v10390, %v10459
  %v10543 = vmul.f32 %v10391, %v10459
  %v10544 = vmul.f32 %v10392, %v10459
  %v10545 = vmul.f32 %v10393, %v10459
  %v10546 = vmul.f32 %v10394, %v10459
  %v10547 = vmul.f32 %v10395, %v10459
  %v10548 = vmul.f32 %v10396, %v10459
  %v10549 = vmul.f32 %v10397, %v10459
  %v10550 = vmul.f32 %v10398, %v10459
  %v10551 = vmul.f32 %v10399, %v10459
  %v10552 = vmul.f32 %v10400, %v10459
  %v10553 = vmul.f32 %v10401, %v10459
  %v10554 = vmul.f32 %v10402, %v10459
  %v10555 = vmul.f32 %v10403, %v10459
  %v10556 = vmul.f32 %v10404, %v10459
  %v10557 = vmul.f32 %v10405, %v10459
  %v10558 = vmul.f32 %v10406, %v10459
  %v10559 = vmul.f32 %v10407, %v10459
  %v10560 = vmul.f32 %v10408, %v10459
  %v10561 = vmul.f32 %v10409, %v10459
  %v10562 = vmul.f32 %v10410, %v10464
  %v10563 = vmul.f32 %v10411, %v10464
  %v10564 = vmul.f32 %v10412, %v10464
  %v10565 = vmul.f32 %v10413, %v10464
  %v10566 = vmul.f32 %v10414, %v10464
  %v10567 = vmul.f32 %v10415, %v10464
  %v10568 = vmul.f32 %v10416, %v10464
  %v10569 = vmul.f32 %v10417, %v10464
  %v10570 = vmul.f32 %v10418, %v10464
  %v10571 = vmul.f32 %v10419, %v10464
  %v10572 = vmul.f32 %v10420, %v10464
  %v10573 = vmul.f32 %v10421, %v10464
  %v10574 = vmul.f32 %v10422, %v10464
  %v10575 = vmul.f32 %v10423, %v10464
  %v10576 = vmul.f32 %v10424, %v10464
  %v10577 = vmul.f32 %v10425, %v10464
  %v10578 = vmul.f32 %v10426, %v10464
  %v10579 = vmul.f32 %v10427, %v10464
  %v10580 = vmul.f32 %v10428, %v10464
  %v10581 = vmul.f32 %v10429, %v10464
  %v10582 = vmul.f32 %v10430, %v10464
  %v10583 = vmul.f32 %v10431, %v10464
  %v10584 = vmul.f32 %v10432, %v10464
  %v10585 = vmul.f32 %v10433, %v10464
  %v10586 = vmul.f32 %v10434, %v10464
  %v10587 = vmul.f32 %v10435, %v10464
  %v10588 = vmul.f32 %v10436, %v10464
  %v10589 = vmul.f32 %v10437, %v10464
  %v10590 = vmul.f32 %v10438, %v10464
  %v10591 = vmul.f32 %v10439, %v10464
  %v10592 = vmul.f32 %v10440, %v10464
  %v10593 = vmul.f32 %v10441, %v10464
  %v10594 = vadd.f32 %v10466, %v10498
  %v10595 = vadd.f32 %v10594, %v10530
  %v10596 = vadd.f32 %v10595, %v10562
  %v10597 = vrot.slane %v10596, 4
  %v10598 = vadd.f32 %v10596, %v10597
  %v10599 = vrot.slane %v10598, 2
  %v10600 = vadd.f32 %v10598, %v10599
  %v10601 = vrot.slane %v10600, 1
  %v10602 = vadd.f32 %v10600, %v10601
  %v10603 = vadd.f32 %v10467, %v10499
  %v10604 = vadd.f32 %v10603, %v10531
  %v10605 = vadd.f32 %v10604, %v10563
  %v10606 = vrot.slane %v10605, 4
  %v10607 = vadd.f32 %v10605, %v10606
  %v10608 = vrot.slane %v10607, 2
  %v10609 = vadd.f32 %v10607, %v10608
  %v10610 = vrot.slane %v10609, 1
  %v10611 = vadd.f32 %v10609, %v10610
  %v10612 = vadd.f32 %v10468, %v10500
  %v10613 = vadd.f32 %v10612, %v10532
  %v10614 = vadd.f32 %v10613, %v10564
  %v10615 = vrot.slane %v10614, 4
  %v10616 = vadd.f32 %v10614, %v10615
  %v10617 = vrot.slane %v10616, 2
  %v10618 = vadd.f32 %v10616, %v10617
  %v10619 = vrot.slane %v10618, 1
  %v10620 = vadd.f32 %v10618, %v10619
  %v10621 = vadd.f32 %v10469, %v10501
  %v10622 = vadd.f32 %v10621, %v10533
  %v10623 = vadd.f32 %v10622, %v10565
  %v10624 = vrot.slane %v10623, 4
  %v10625 = vadd.f32 %v10623, %v10624
  %v10626 = vrot.slane %v10625, 2
  %v10627 = vadd.f32 %v10625, %v10626
  %v10628 = vrot.slane %v10627, 1
  %v10629 = vadd.f32 %v10627, %v10628
  %v10630 = vadd.f32 %v10470, %v10502
  %v10631 = vadd.f32 %v10630, %v10534
  %v10632 = vadd.f32 %v10631, %v10566
  %v10633 = vrot.slane %v10632, 4
  %v10634 = vadd.f32 %v10632, %v10633
  %v10635 = vrot.slane %v10634, 2
  %v10636 = vadd.f32 %v10634, %v10635
  %v10637 = vrot.slane %v10636, 1
  %v10638 = vadd.f32 %v10636, %v10637
  %v10639 = vadd.f32 %v10471, %v10503
  %v10640 = vadd.f32 %v10639, %v10535
  %v10641 = vadd.f32 %v10640, %v10567
  %v10642 = vrot.slane %v10641, 4
  %v10643 = vadd.f32 %v10641, %v10642
  %v10644 = vrot.slane %v10643, 2
  %v10645 = vadd.f32 %v10643, %v10644
  %v10646 = vrot.slane %v10645, 1
  %v10647 = vadd.f32 %v10645, %v10646
  %v10648 = vadd.f32 %v10472, %v10504
  %v10649 = vadd.f32 %v10648, %v10536
  %v10650 = vadd.f32 %v10649, %v10568
  %v10651 = vrot.slane %v10650, 4
  %v10652 = vadd.f32 %v10650, %v10651
  %v10653 = vrot.slane %v10652, 2
  %v10654 = vadd.f32 %v10652, %v10653
  %v10655 = vrot.slane %v10654, 1
  %v10656 = vadd.f32 %v10654, %v10655
  %v10657 = vadd.f32 %v10473, %v10505
  %v10658 = vadd.f32 %v10657, %v10537
  %v10659 = vadd.f32 %v10658, %v10569
  %v10660 = vrot.slane %v10659, 4
  %v10661 = vadd.f32 %v10659, %v10660
  %v10662 = vrot.slane %v10661, 2
  %v10663 = vadd.f32 %v10661, %v10662
  %v10664 = vrot.slane %v10663, 1
  %v10665 = vadd.f32 %v10663, %v10664
  %v10666 = vadd.f32 %v10474, %v10506
  %v10667 = vadd.f32 %v10666, %v10538
  %v10668 = vadd.f32 %v10667, %v10570
  %v10669 = vrot.slane %v10668, 4
  %v10670 = vadd.f32 %v10668, %v10669
  %v10671 = vrot.slane %v10670, 2
  %v10672 = vadd.f32 %v10670, %v10671
  %v10673 = vrot.slane %v10672, 1
  %v10674 = vadd.f32 %v10672, %v10673
  %v10675 = vadd.f32 %v10475, %v10507
  %v10676 = vadd.f32 %v10675, %v10539
  %v10677 = vadd.f32 %v10676, %v10571
  %v10678 = vrot.slane %v10677, 4
  %v10679 = vadd.f32 %v10677, %v10678
  %v10680 = vrot.slane %v10679, 2
  %v10681 = vadd.f32 %v10679, %v10680
  %v10682 = vrot.slane %v10681, 1
  %v10683 = vadd.f32 %v10681, %v10682
  %v10684 = vadd.f32 %v10476, %v10508
  %v10685 = vadd.f32 %v10684, %v10540
  %v10686 = vadd.f32 %v10685, %v10572
  %v10687 = vrot.slane %v10686, 4
  %v10688 = vadd.f32 %v10686, %v10687
  %v10689 = vrot.slane %v10688, 2
  %v10690 = vadd.f32 %v10688, %v10689
  %v10691 = vrot.slane %v10690, 1
  %v10692 = vadd.f32 %v10690, %v10691
  %v10693 = vadd.f32 %v10477, %v10509
  %v10694 = vadd.f32 %v10693, %v10541
  %v10695 = vadd.f32 %v10694, %v10573
  %v10696 = vrot.slane %v10695, 4
  %v10697 = vadd.f32 %v10695, %v10696
  %v10698 = vrot.slane %v10697, 2
  %v10699 = vadd.f32 %v10697, %v10698
  %v10700 = vrot.slane %v10699, 1
  %v10701 = vadd.f32 %v10699, %v10700
  %v10702 = vadd.f32 %v10478, %v10510
  %v10703 = vadd.f32 %v10702, %v10542
  %v10704 = vadd.f32 %v10703, %v10574
  %v10705 = vrot.slane %v10704, 4
  %v10706 = vadd.f32 %v10704, %v10705
  %v10707 = vrot.slane %v10706, 2
  %v10708 = vadd.f32 %v10706, %v10707
  %v10709 = vrot.slane %v10708, 1
  %v10710 = vadd.f32 %v10708, %v10709
  %v10711 = vadd.f32 %v10479, %v10511
  %v10712 = vadd.f32 %v10711, %v10543
  %v10713 = vadd.f32 %v10712, %v10575
  %v10714 = vrot.slane %v10713, 4
  %v10715 = vadd.f32 %v10713, %v10714
  %v10716 = vrot.slane %v10715, 2
  %v10717 = vadd.f32 %v10715, %v10716
  %v10718 = vrot.slane %v10717, 1
  %v10719 = vadd.f32 %v10717, %v10718
  %v10720 = vadd.f32 %v10480, %v10512
  %v10721 = vadd.f32 %v10720, %v10544
  %v10722 = vadd.f32 %v10721, %v10576
  %v10723 = vrot.slane %v10722, 4
  %v10724 = vadd.f32 %v10722, %v10723
  %v10725 = vrot.slane %v10724, 2
  %v10726 = vadd.f32 %v10724, %v10725
  %v10727 = vrot.slane %v10726, 1
  %v10728 = vadd.f32 %v10726, %v10727
  %v10729 = vadd.f32 %v10481, %v10513
  %v10730 = vadd.f32 %v10729, %v10545
  %v10731 = vadd.f32 %v10730, %v10577
  %v10732 = vrot.slane %v10731, 4
  %v10733 = vadd.f32 %v10731, %v10732
  %v10734 = vrot.slane %v10733, 2
  %v10735 = vadd.f32 %v10733, %v10734
  %v10736 = vrot.slane %v10735, 1
  %v10737 = vadd.f32 %v10735, %v10736
  %v10738 = vadd.f32 %v10482, %v10514
  %v10739 = vadd.f32 %v10738, %v10546
  %v10740 = vadd.f32 %v10739, %v10578
  %v10741 = vrot.slane %v10740, 4
  %v10742 = vadd.f32 %v10740, %v10741
  %v10743 = vrot.slane %v10742, 2
  %v10744 = vadd.f32 %v10742, %v10743
  %v10745 = vrot.slane %v10744, 1
  %v10746 = vadd.f32 %v10744, %v10745
  %v10747 = vadd.f32 %v10483, %v10515
  %v10748 = vadd.f32 %v10747, %v10547
  %v10749 = vadd.f32 %v10748, %v10579
  %v10750 = vrot.slane %v10749, 4
  %v10751 = vadd.f32 %v10749, %v10750
  %v10752 = vrot.slane %v10751, 2
  %v10753 = vadd.f32 %v10751, %v10752
  %v10754 = vrot.slane %v10753, 1
  %v10755 = vadd.f32 %v10753, %v10754
  %v10756 = vadd.f32 %v10484, %v10516
  %v10757 = vadd.f32 %v10756, %v10548
  %v10758 = vadd.f32 %v10757, %v10580
  %v10759 = vrot.slane %v10758, 4
  %v10760 = vadd.f32 %v10758, %v10759
  %v10761 = vrot.slane %v10760, 2
  %v10762 = vadd.f32 %v10760, %v10761
  %v10763 = vrot.slane %v10762, 1
  %v10764 = vadd.f32 %v10762, %v10763
  %v10765 = vadd.f32 %v10485, %v10517
  %v10766 = vadd.f32 %v10765, %v10549
  %v10767 = vadd.f32 %v10766, %v10581
  %v10768 = vrot.slane %v10767, 4
  %v10769 = vadd.f32 %v10767, %v10768
  %v10770 = vrot.slane %v10769, 2
  %v10771 = vadd.f32 %v10769, %v10770
  %v10772 = vrot.slane %v10771, 1
  %v10773 = vadd.f32 %v10771, %v10772
  %v10774 = vadd.f32 %v10486, %v10518
  %v10775 = vadd.f32 %v10774, %v10550
  %v10776 = vadd.f32 %v10775, %v10582
  %v10777 = vrot.slane %v10776, 4
  %v10778 = vadd.f32 %v10776, %v10777
  %v10779 = vrot.slane %v10778, 2
  %v10780 = vadd.f32 %v10778, %v10779
  %v10781 = vrot.slane %v10780, 1
  %v10782 = vadd.f32 %v10780, %v10781
  %v10783 = vadd.f32 %v10487, %v10519
  %v10784 = vadd.f32 %v10783, %v10551
  %v10785 = vadd.f32 %v10784, %v10583
  %v10786 = vrot.slane %v10785, 4
  %v10787 = vadd.f32 %v10785, %v10786
  %v10788 = vrot.slane %v10787, 2
  %v10789 = vadd.f32 %v10787, %v10788
  %v10790 = vrot.slane %v10789, 1
  %v10791 = vadd.f32 %v10789, %v10790
  %v10792 = vadd.f32 %v10488, %v10520
  %v10793 = vadd.f32 %v10792, %v10552
  %v10794 = vadd.f32 %v10793, %v10584
  %v10795 = vrot.slane %v10794, 4
  %v10796 = vadd.f32 %v10794, %v10795
  %v10797 = vrot.slane %v10796, 2
  %v10798 = vadd.f32 %v10796, %v10797
  %v10799 = vrot.slane %v10798, 1
  %v10800 = vadd.f32 %v10798, %v10799
  %v10801 = vadd.f32 %v10489, %v10521
  %v10802 = vadd.f32 %v10801, %v10553
  %v10803 = vadd.f32 %v10802, %v10585
  %v10804 = vrot.slane %v10803, 4
  %v10805 = vadd.f32 %v10803, %v10804
  %v10806 = vrot.slane %v10805, 2
  %v10807 = vadd.f32 %v10805, %v10806
  %v10808 = vrot.slane %v10807, 1
  %v10809 = vadd.f32 %v10807, %v10808
  %v10810 = vadd.f32 %v10490, %v10522
  %v10811 = vadd.f32 %v10810, %v10554
  %v10812 = vadd.f32 %v10811, %v10586
  %v10813 = vrot.slane %v10812, 4
  %v10814 = vadd.f32 %v10812, %v10813
  %v10815 = vrot.slane %v10814, 2
  %v10816 = vadd.f32 %v10814, %v10815
  %v10817 = vrot.slane %v10816, 1
  %v10818 = vadd.f32 %v10816, %v10817
  %v10819 = vadd.f32 %v10491, %v10523
  %v10820 = vadd.f32 %v10819, %v10555
  %v10821 = vadd.f32 %v10820, %v10587
  %v10822 = vrot.slane %v10821, 4
  %v10823 = vadd.f32 %v10821, %v10822
  %v10824 = vrot.slane %v10823, 2
  %v10825 = vadd.f32 %v10823, %v10824
  %v10826 = vrot.slane %v10825, 1
  %v10827 = vadd.f32 %v10825, %v10826
  %v10828 = vadd.f32 %v10492, %v10524
  %v10829 = vadd.f32 %v10828, %v10556
  %v10830 = vadd.f32 %v10829, %v10588
  %v10831 = vrot.slane %v10830, 4
  %v10832 = vadd.f32 %v10830, %v10831
  %v10833 = vrot.slane %v10832, 2
  %v10834 = vadd.f32 %v10832, %v10833
  %v10835 = vrot.slane %v10834, 1
  %v10836 = vadd.f32 %v10834, %v10835
  %v10837 = vadd.f32 %v10493, %v10525
  %v10838 = vadd.f32 %v10837, %v10557
  %v10839 = vadd.f32 %v10838, %v10589
  %v10840 = vrot.slane %v10839, 4
  %v10841 = vadd.f32 %v10839, %v10840
  %v10842 = vrot.slane %v10841, 2
  %v10843 = vadd.f32 %v10841, %v10842
  %v10844 = vrot.slane %v10843, 1
  %v10845 = vadd.f32 %v10843, %v10844
  %v10846 = vadd.f32 %v10494, %v10526
  %v10847 = vadd.f32 %v10846, %v10558
  %v10848 = vadd.f32 %v10847, %v10590
  %v10849 = vrot.slane %v10848, 4
  %v10850 = vadd.f32 %v10848, %v10849
  %v10851 = vrot.slane %v10850, 2
  %v10852 = vadd.f32 %v10850, %v10851
  %v10853 = vrot.slane %v10852, 1
  %v10854 = vadd.f32 %v10852, %v10853
  %v10855 = vadd.f32 %v10495, %v10527
  %v10856 = vadd.f32 %v10855, %v10559
  %v10857 = vadd.f32 %v10856, %v10591
  %v10858 = vrot.slane %v10857, 4
  %v10859 = vadd.f32 %v10857, %v10858
  %v10860 = vrot.slane %v10859, 2
  %v10861 = vadd.f32 %v10859, %v10860
  %v10862 = vrot.slane %v10861, 1
  %v10863 = vadd.f32 %v10861, %v10862
  %v10864 = vadd.f32 %v10496, %v10528
  %v10865 = vadd.f32 %v10864, %v10560
  %v10866 = vadd.f32 %v10865, %v10592
  %v10867 = vrot.slane %v10866, 4
  %v10868 = vadd.f32 %v10866, %v10867
  %v10869 = vrot.slane %v10868, 2
  %v10870 = vadd.f32 %v10868, %v10869
  %v10871 = vrot.slane %v10870, 1
  %v10872 = vadd.f32 %v10870, %v10871
  %v10873 = vadd.f32 %v10497, %v10529
  %v10874 = vadd.f32 %v10873, %v10561
  %v10875 = vadd.f32 %v10874, %v10593
  %v10876 = vrot.slane %v10875, 4
  %v10877 = vadd.f32 %v10875, %v10876
  %v10878 = vrot.slane %v10877, 2
  %v10879 = vadd.f32 %v10877, %v10878
  %v10880 = vrot.slane %v10879, 1
  %v10881 = vadd.f32 %v10879, %v10880
  %s10882 = sld [smem:[#allocation2]]
  %v10883 = vstv %s10882
  %v10884 = vadd.f32 %v10602, %v10883
  %v10885 = vadd.f32 %v10611, %v10883
  %v10886 = vadd.f32 %v10620, %v10883
  %v10887 = vadd.f32 %v10629, %v10883
  %v10888 = vadd.f32 %v10638, %v10883
  %v10889 = vadd.f32 %v10647, %v10883
  %v10890 = vadd.f32 %v10656, %v10883
  %v10891 = vadd.f32 %v10665, %v10883
  %v10892 = vadd.f32 %v10674, %v10883
  %v10893 = vadd.f32 %v10683, %v10883
  %v10894 = vadd.f32 %v10692, %v10883
  %v10895 = vadd.f32 %v10701, %v10883
  %v10896 = vadd.f32 %v10710, %v10883
  %v10897 = vadd.f32 %v10719, %v10883
  %v10898 = vadd.f32 %v10728, %v10883
  %v10899 = vadd.f32 %v10737, %v10883
  %v10900 = vadd.f32 %v10746, %v10883
  %v10901 = vadd.f32 %v10755, %v10883
  %v10902 = vadd.f32 %v10764, %v10883
  %v10903 = vadd.f32 %v10773, %v10883
  %v10904 = vadd.f32 %v10782, %v10883
  %v10905 = vadd.f32 %v10791, %v10883
  %v10906 = vadd.f32 %v10800, %v10883
  %v10907 = vadd.f32 %v10809, %v10883
  %v10908 = vadd.f32 %v10818, %v10883
  %v10909 = vadd.f32 %v10827, %v10883
  %v10910 = vadd.f32 %v10836, %v10883
  %v10911 = vadd.f32 %v10845, %v10883
  %v10912 = vadd.f32 %v10854, %v10883
  %v10913 = vadd.f32 %v10863, %v10883
  %v10914 = vadd.f32 %v10872, %v10883
  %v10915 = vadd.f32 %v10881, %v10883
  %v10916 = vmul.f32 %v10884, 0.1
  %v10917 = vmul.f32 %v10885, 0.1
  %v10918 = vmul.f32 %v10886, 0.1
  %v10919 = vmul.f32 %v10887, 0.1
  %v10920 = vmul.f32 %v10888, 0.1
  %v10921 = vmul.f32 %v10889, 0.1
  %v10922 = vmul.f32 %v10890, 0.1
  %v10923 = vmul.f32 %v10891, 0.1
  %v10924 = vmul.f32 %v10892, 0.1
  %v10925 = vmul.f32 %v10893, 0.1
  %v10926 = vmul.f32 %v10894, 0.1
  %v10927 = vmul.f32 %v10895, 0.1
  %v10928 = vmul.f32 %v10896, 0.1
  %v10929 = vmul.f32 %v10897, 0.1
  %v10930 = vmul.f32 %v10898, 0.1
  %v10931 = vmul.f32 %v10899, 0.1
  %v10932 = vmul.f32 %v10900, 0.1
  %v10933 = vmul.f32 %v10901, 0.1
  %v10934 = vmul.f32 %v10902, 0.1
  %v10935 = vmul.f32 %v10903, 0.1
  %v10936 = vmul.f32 %v10904, 0.1
  %v10937 = vmul.f32 %v10905, 0.1
  %v10938 = vmul.f32 %v10906, 0.1
  %v10939 = vmul.f32 %v10907, 0.1
  %v10940 = vmul.f32 %v10908, 0.1
  %v10941 = vmul.f32 %v10909, 0.1
  %v10942 = vmul.f32 %v10910, 0.1
  %v10943 = vmul.f32 %v10911, 0.1
  %v10944 = vmul.f32 %v10912, 0.1
  %v10945 = vmul.f32 %v10913, 0.1
  %v10946 = vmul.f32 %v10914, 0.1
  %v10947 = vmul.f32 %v10915, 0.1
  %v10948 = vmax.f32 %v10884, %v10916
  %v10949 = vmax.f32 %v10885, %v10917
  %v10950 = vmax.f32 %v10886, %v10918
  %v10951 = vmax.f32 %v10887, %v10919
  %v10952 = vmax.f32 %v10888, %v10920
  %v10953 = vmax.f32 %v10889, %v10921
  %v10954 = vmax.f32 %v10890, %v10922
  %v10955 = vmax.f32 %v10891, %v10923
  %v10956 = vmax.f32 %v10892, %v10924
  %v10957 = vmax.f32 %v10893, %v10925
  %v10958 = vmax.f32 %v10894, %v10926
  %v10959 = vmax.f32 %v10895, %v10927
  %v10960 = vmax.f32 %v10896, %v10928
  %v10961 = vmax.f32 %v10897, %v10929
  %v10962 = vmax.f32 %v10898, %v10930
  %v10963 = vmax.f32 %v10899, %v10931
  %v10964 = vmax.f32 %v10900, %v10932
  %v10965 = vmax.f32 %v10901, %v10933
  %v10966 = vmax.f32 %v10902, %v10934
  %v10967 = vmax.f32 %v10903, %v10935
  %v10968 = vmax.f32 %v10904, %v10936
  %v10969 = vmax.f32 %v10905, %v10937
  %v10970 = vmax.f32 %v10906, %v10938
  %v10971 = vmax.f32 %v10907, %v10939
  %v10972 = vmax.f32 %v10908, %v10940
  %v10973 = vmax.f32 %v10909, %v10941
  %v10974 = vmax.f32 %v10910, %v10942
  %v10975 = vmax.f32 %v10911, %v10943
  %v10976 = vmax.f32 %v10912, %v10944
  %v10977 = vmax.f32 %v10913, %v10945
  %v10978 = vmax.f32 %v10914, %v10946
  %v10979 = vmax.f32 %v10915, %v10947
  %v11012 = vcombine.low %v10948, %v10949
  %v11013 = vcombine.low %v10950, %v10951
  %v11014 = vcombine.low %v10952, %v10953
  %v11015 = vcombine.low %v10954, %v10955
  %v11017 = vunpack.c.l.s4 1966171168
  %v11018 = vunpack.c.0.s8 %v11017
  %v11019 = vlaneseq
  %v11020 = vshrl.u32 %v11019, 7
  %v11021 = vsub.s32 %v11018, %v11020
  %v11022 = vrot.slane %v11012, %v11021
  %v11024 = vunpack.c.l.s4 1966171168
  %v11025 = vunpack.c.0.s8 %v11024
  %v11026 = vlaneseq
  %v11027 = vshrl.u32 %v11026, 7
  %v11028 = vsub.s32 %v11025, %v11027
  %v11029 = vrot.slane %v11013, %v11028
  %v11031 = vunpack.c.l.s4 1966171168
  %v11032 = vunpack.c.0.s8 %v11031
  %v11033 = vlaneseq
  %v11034 = vshrl.u32 %v11033, 7
  %v11035 = vsub.s32 %v11032, %v11034
  %v11036 = vrot.slane %v11014, %v11035
  %v11038 = vunpack.c.l.s4 1966171168
  %v11039 = vunpack.c.0.s8 %v11038
  %v11040 = vlaneseq
  %v11041 = vshrl.u32 %v11040, 7
  %v11042 = vsub.s32 %v11039, %v11041
  %v11043 = vrot.slane %v11015, %v11042
  %v11044 = vcombine.low %v11022, %v11029
  %v11045 = vcombine.low %v11036, %v11043
  %v11047 = vunpack.c.l.s4 1966171168
  %v11048 = vunpack.c.0.s8 %v11047
  %v11049 = vlaneseq
  %v11050 = vshrl.u32 %v11049, 7
  %v11051 = vsub.s32 %v11048, %v11050
  %v11052 = vrot.slane %v11044, %v11051
  %v11054 = vunpack.c.l.s4 1966171168
  %v11055 = vunpack.c.0.s8 %v11054
  %v11056 = vlaneseq
  %v11057 = vshrl.u32 %v11056, 7
  %v11058 = vsub.s32 %v11055, %v11057
  %v11059 = vrot.slane %v11045, %v11058
  %v11060 = vcombine.low %v11052, %v11059
  %v11061 = vcombine.low %v10956, %v10957
  %v11062 = vcombine.low %v10958, %v10959
  %v11063 = vcombine.low %v10960, %v10961
  %v11064 = vcombine.low %v10962, %v10963
  %v11066 = vunpack.c.l.s4 1966171168
  %v11067 = vunpack.c.0.s8 %v11066
  %v11068 = vlaneseq
  %v11069 = vshrl.u32 %v11068, 7
  %v11070 = vsub.s32 %v11067, %v11069
  %v11071 = vrot.slane %v11061, %v11070
  %v11073 = vunpack.c.l.s4 1966171168
  %v11074 = vunpack.c.0.s8 %v11073
  %v11075 = vlaneseq
  %v11076 = vshrl.u32 %v11075, 7
  %v11077 = vsub.s32 %v11074, %v11076
  %v11078 = vrot.slane %v11062, %v11077
  %v11080 = vunpack.c.l.s4 1966171168
  %v11081 = vunpack.c.0.s8 %v11080
  %v11082 = vlaneseq
  %v11083 = vshrl.u32 %v11082, 7
  %v11084 = vsub.s32 %v11081, %v11083
  %v11085 = vrot.slane %v11063, %v11084
  %v11087 = vunpack.c.l.s4 1966171168
  %v11088 = vunpack.c.0.s8 %v11087
  %v11089 = vlaneseq
  %v11090 = vshrl.u32 %v11089, 7
  %v11091 = vsub.s32 %v11088, %v11090
  %v11092 = vrot.slane %v11064, %v11091
  %v11093 = vcombine.low %v11071, %v11078
  %v11094 = vcombine.low %v11085, %v11092
  %v11096 = vunpack.c.l.s4 1966171168
  %v11097 = vunpack.c.0.s8 %v11096
  %v11098 = vlaneseq
  %v11099 = vshrl.u32 %v11098, 7
  %v11100 = vsub.s32 %v11097, %v11099
  %v11101 = vrot.slane %v11093, %v11100
  %v11103 = vunpack.c.l.s4 1966171168
  %v11104 = vunpack.c.0.s8 %v11103
  %v11105 = vlaneseq
  %v11106 = vshrl.u32 %v11105, 7
  %v11107 = vsub.s32 %v11104, %v11106
  %v11108 = vrot.slane %v11094, %v11107
  %v11109 = vcombine.low %v11101, %v11108
  %v11110 = vcombine.low %v10964, %v10965
  %v11111 = vcombine.low %v10966, %v10967
  %v11112 = vcombine.low %v10968, %v10969
  %v11113 = vcombine.low %v10970, %v10971
  %v11115 = vunpack.c.l.s4 1966171168
  %v11116 = vunpack.c.0.s8 %v11115
  %v11117 = vlaneseq
  %v11118 = vshrl.u32 %v11117, 7
  %v11119 = vsub.s32 %v11116, %v11118
  %v11120 = vrot.slane %v11110, %v11119
  %v11122 = vunpack.c.l.s4 1966171168
  %v11123 = vunpack.c.0.s8 %v11122
  %v11124 = vlaneseq
  %v11125 = vshrl.u32 %v11124, 7
  %v11126 = vsub.s32 %v11123, %v11125
  %v11127 = vrot.slane %v11111, %v11126
  %v11129 = vunpack.c.l.s4 1966171168
  %v11130 = vunpack.c.0.s8 %v11129
  %v11131 = vlaneseq
  %v11132 = vshrl.u32 %v11131, 7
  %v11133 = vsub.s32 %v11130, %v11132
  %v11134 = vrot.slane %v11112, %v11133
  %v11136 = vunpack.c.l.s4 1966171168
  %v11137 = vunpack.c.0.s8 %v11136
  %v11138 = vlaneseq
  %v11139 = vshrl.u32 %v11138, 7
  %v11140 = vsub.s32 %v11137, %v11139
  %v11141 = vrot.slane %v11113, %v11140
  %v11142 = vcombine.low %v11120, %v11127
  %v11143 = vcombine.low %v11134, %v11141
  %v11145 = vunpack.c.l.s4 1966171168
  %v11146 = vunpack.c.0.s8 %v11145
  %v11147 = vlaneseq
  %v11148 = vshrl.u32 %v11147, 7
  %v11149 = vsub.s32 %v11146, %v11148
  %v11150 = vrot.slane %v11142, %v11149
  %v11152 = vunpack.c.l.s4 1966171168
  %v11153 = vunpack.c.0.s8 %v11152
  %v11154 = vlaneseq
  %v11155 = vshrl.u32 %v11154, 7
  %v11156 = vsub.s32 %v11153, %v11155
  %v11157 = vrot.slane %v11143, %v11156
  %v11158 = vcombine.low %v11150, %v11157
  %v11159 = vcombine.low %v10972, %v10973
  %v11160 = vcombine.low %v10974, %v10975
  %v11161 = vcombine.low %v10976, %v10977
  %v11162 = vcombine.low %v10978, %v10979
  %v11164 = vunpack.c.l.s4 1966171168
  %v11165 = vunpack.c.0.s8 %v11164
  %v11166 = vlaneseq
  %v11167 = vshrl.u32 %v11166, 7
  %v11168 = vsub.s32 %v11165, %v11167
  %v11169 = vrot.slane %v11159, %v11168
  %v11171 = vunpack.c.l.s4 1966171168
  %v11172 = vunpack.c.0.s8 %v11171
  %v11173 = vlaneseq
  %v11174 = vshrl.u32 %v11173, 7
  %v11175 = vsub.s32 %v11172, %v11174
  %v11176 = vrot.slane %v11160, %v11175
  %v11178 = vunpack.c.l.s4 1966171168
  %v11179 = vunpack.c.0.s8 %v11178
  %v11180 = vlaneseq
  %v11181 = vshrl.u32 %v11180, 7
  %v11182 = vsub.s32 %v11179, %v11181
  %v11183 = vrot.slane %v11161, %v11182
  %v11185 = vunpack.c.l.s4 1966171168
  %v11186 = vunpack.c.0.s8 %v11185
  %v11187 = vlaneseq
  %v11188 = vshrl.u32 %v11187, 7
  %v11189 = vsub.s32 %v11186, %v11188
  %v11190 = vrot.slane %v11162, %v11189
  %v11191 = vcombine.low %v11169, %v11176
  %v11192 = vcombine.low %v11183, %v11190
  %v11194 = vunpack.c.l.s4 1966171168
  %v11195 = vunpack.c.0.s8 %v11194
  %v11196 = vlaneseq
  %v11197 = vshrl.u32 %v11196, 7
  %v11198 = vsub.s32 %v11195, %v11197
  %v11199 = vrot.slane %v11191, %v11198
  %v11201 = vunpack.c.l.s4 1966171168
  %v11202 = vunpack.c.0.s8 %v11201
  %v11203 = vlaneseq
  %v11204 = vshrl.u32 %v11203, 7
  %v11205 = vsub.s32 %v11202, %v11204
  %v11206 = vrot.slane %v11192, %v11205
  %v11207 = vcombine.low %v11199, %v11206
  %11212 = vst [vmem:[%s9] sm:$0xff] %v11060
  %11213 = vst [vmem:[%s9 + $0x8] sm:$0xff] %v11109
  %11214 = vst [vmem:[%s9 + $0x10] sm:$0xff] %v11158
  %11215 = vst [vmem:[%s9 + $0x18] sm:$0xff] %v11207
  // Predicated region
  $region38: #{_lambda_.2} parent=0 // pred_check
    _
  $region39: #{_lambda_.2} parent=0 // pred_check_branch
    %11217 = sbr.rel (0) target = $region41
  $region40: #{_lambda_.2} parent=0 // pred_region
    _
  $region41: #{_lambda_.2} parent=0 // pred_fallthru
    _
  // Predicated region
  $region42: #{_lambda_.2} parent=0 // pred_check
    _
  $region43: #{_lambda_.2} parent=0 // pred_check_branch
    %11219 = sbr.rel (0) target = $region45
  $region44: #{_lambda_.2} parent=0 // pred_region
    _
  $region45: #{_lambda_.2} parent=0 // pred_fallthru
    _

</llo_original>
